<compile_context>
chip_gen: v5e
topology: v5e:2x2
jax: 0.10.0
libtpu: 0.0.40
codegen_flags: <defaults>
</compile_context>

<pallas_src>
import functools

import jax
import jax.numpy as jnp
from jax.experimental import pallas as pl
from jax.experimental.pallas import tpu as pltpu


def dgmstcn_kernel(
    xa_ref, w1_ref, b1_ref, coeff_ref,
    wt0_ref, wt1_ref, wt2_ref, wt3_ref,
    tcnb_ref, tscale_ref, tbias_ref, wtr_ref, btr_ref,
    o_ref,
    hpad_sc, out_sc,
    *, c_branches, dilations,
):
    nb, T, V1, c_in = xa_ref.shape
    V = V1 - 1
    c_tin = sum(c_branches)
    c_out = o_ref.shape[-1]
    pad = max(dilations)
    R = nb * T * V1
    n_relu = c_tin - c_branches[-1]           # branch 5 ('1x1') has no BN/ReLU

    # ---- fused per-branch 1x1 convs (branch BNs folded into w1/b1 outside) ----
    xa = xa_ref[...]                                            # (nb,T,V1,c_in) bf16
    h = jnp.dot(xa.reshape(R, c_in), w1_ref[...],
                preferred_element_type=jnp.float32) + b1_ref[...]
    # partial ReLU as a single lane-masked select (no channel slicing / concat)
    lane = jax.lax.broadcasted_iota(jnp.int32, (1, c_tin), 1)
    h = jnp.where(lane < n_relu, jnp.maximum(h, 0.0), h)        # (R, c_tin) f32

    # branch-5 channels of `h` are already final; branches 0..4 overwrite theirs below.
    out_sc[...] = h.reshape(nb * T, V1, c_tin)

    # ---- zero-padded temporal scratch shared by every shifted read ----
    zero_halo = jnp.zeros((nb, pad, V1, c_tin), jnp.float32)
    hpad_sc[:, 0:pad, :, :] = zero_halo
    hpad_sc[:, pad + T:pad + T + pad, :, :] = zero_halo
    hpad_sc[:, pad:pad + T, :, :] = h.reshape(nb, T, V1, c_tin)

    offs = [0]
    for c in c_branches:
        offs.append(offs[-1] + c)
    wt_refs = (wt0_ref, wt1_ref, wt2_ref, wt3_ref)

    # ---- branches 0..3: unit_tcn (temporal conv, kernel 3, dilation d, 'same' pad) ----
    for bi in range(4):
        cb, d, off = c_branches[bi], dilations[bi], offs[bi]
        acc = None
        for k in range(3):
            s = pad + (k - 1) * d
            win = hpad_sc[:, s:s + T, :, off:off + cb]          # (nb,T,V1,cb) static window
            p = jnp.dot(win.reshape(R, cb), wt_refs[bi][k],
                        preferred_element_type=jnp.float32)
            acc = p if acc is None else acc + p
        out_sc[:, :, off:off + cb] = acc.reshape(nb * T, V1, cb)

    # ---- branch 4: temporal max-pool (kernel 3, stride 1, pad 1) ----
    # zero halo == -inf halo here because branch-4 inputs are post-ReLU (>= 0).
    off, cb = offs[4], c_branches[4]
    m = jnp.maximum(hpad_sc[:, pad - 1:pad - 1 + T, :, off:off + cb],
                    hpad_sc[:, pad:pad + T, :, off:off + cb])
    m = jnp.maximum(m, hpad_sc[:, pad + 1:pad + 1 + T, :, off:off + cb])
    out_sc[:, :, off:off + cb] = m.reshape(nb * T, V1, cb)

    # ---- local + add_coeff * global, then transform: BN -> ReLU -> 1x1 conv ----
    out = out_sc[...] + tcnb_ref[...]                           # + folded unit_tcn biases
    feat = out + coeff_ref[...] * out[:, V:V1, :]               # coeff[V] == 0
    z = jnp.maximum(feat * tscale_ref[...] + tbias_ref[...], 0.0)
    y = jnp.dot(z.reshape(R, c_tin), wtr_ref[...],
                preferred_element_type=jnp.float32) + btr_ref[...]
    o_ref[...] = y.reshape(nb, T, V1, c_out)


def init_params(key, c_in, c_out, num_joints,
                ms_cfg=((3, 1), (3, 2), (3, 3), (3, 4), ('max', 3), '1x1')):
    num_branches = len(ms_cfg)
    mid = c_out // num_branches
    rem = c_out - mid * (num_branches - 1)
    c_branches = [rem] + [mid] * (num_branches - 1)
    eps = 1e-5
    keys = iter(jax.random.split(key, 64))
    nk = lambda: next(keys)

    def conv_w(co, ci, kh=1):
        bound = 1.0 / float(ci * kh) ** 0.5
        w = jax.random.uniform(nk(), (co, ci, kh), jnp.float32, -bound, bound)
        b = jax.random.uniform(nk(), (co,), jnp.float32, -bound, bound)
        return w, b

    def bn_params(c):
        g = jax.random.uniform(nk(), (c,), jnp.float32, 0.5, 1.5)
        be = jax.random.uniform(nk(), (c,), jnp.float32, -0.5, 0.5)
        m = jax.random.uniform(nk(), (c,), jnp.float32, -0.5, 0.5)
        v = jax.random.uniform(nk(), (c,), jnp.float32, 0.5, 1.5)
        return g, be, m, v

    # branch 1x1 convs, eval-mode BN folded for branches 0..4
    w1_cols, b1_cols = [], []
    for i, cfg in enumerate(ms_cfg):
        cb = c_branches[i]
        w, b = conv_w(cb, c_in)
        w = w[:, :, 0]
        if cfg != '1x1':
            g, be, m, v = bn_params(cb)
            s = g / jnp.sqrt(v + eps)
            w = w * s[:, None]
            b = (b - m) * s + be
        w1_cols.append(w.T)                                   # (c_in, cb)
        b1_cols.append(b)
    w1 = jnp.concatenate(w1_cols, axis=1)                     # (c_in, c_tin)
    b1 = jnp.concatenate(b1_cols)[None, :]                    # (1, c_tin)

    # unit_tcn temporal convs for branches 0..3 (norm=None inside unit_tcn)
    wts, bts, dilations = [], [], []
    for i in range(4):
        assert ms_cfg[i][0] == 3
        cb = c_branches[i]
        w, b = conv_w(cb, cb, 3)                              # (cb, cb, 3)
        wts.append(jnp.transpose(w, (2, 1, 0)))               # (3, cin_b, cout_b)
        bts.append(b[None, :])
        dilations.append(int(ms_cfg[i][1]))

    c_tin = sum(c_branches)
    # transform: BN -> ReLU -> 1x1 conv; final self.bn folded into the conv
    g, be, m, v = bn_params(c_tin)
    ts = g / jnp.sqrt(v + eps)
    tscale = ts[None, :]
    tbias = (be - m * ts)[None, :]
    wtr, btr = conv_w(c_out, c_tin)
    wtr = wtr[:, :, 0]
    fg, fb, fm, fv = bn_params(c_out)
    fs = fg / jnp.sqrt(fv + eps)
    wtr = (wtr * fs[:, None]).T                               # (c_tin, c_out)
    btr = ((btr - fm) * fs + fb)[None, :]                     # (1, c_out)

    # add_coeff is zeros in __init__; use small nonzero values so the global path is exercised.
    add_coeff = jax.random.uniform(nk(), (num_joints,), jnp.float32, -0.1, 0.1)

    return dict(w1=w1, b1=b1, add_coeff=add_coeff, wts=wts, bts=bts,
                tscale=tscale, tbias=tbias, wtr=wtr, btr=btr,
                c_branches=c_branches, dilations=dilations)


def dgmstcn_forward(x, params, batch_block=None):
    N, T, V, c_in = x.shape
    V1 = V + 1
    c_branches = tuple(int(c) for c in params['c_branches'])
    dilations = tuple(int(d) for d in params['dilations'])
    c_tin = sum(c_branches)
    c_out = params['wtr'].shape[1]
    pad = max(dilations)

    # Append the "global joint" (joint mean) in XLA: kernel works on an 8-aligned
    # sublane count (V1) and never concatenates/slices along sublanes.  bf16 halves
    # the activation DMA; all in-kernel accumulation/elementwise math stays f32.
    xa = jnp.concatenate([x, x.mean(axis=2, keepdims=True)], axis=2).astype(jnp.bfloat16)

    if batch_block is None:
        # fold batch into the block, but keep >= 2 grid steps (v7x has 2 TensorCores)
        # and stay well inside the v7x 64 MiB VMEM budget.
        per_sample = 4 * T * V1 * (c_in + c_out + 4 * c_tin)
        nb = max(1, min(N // 2 if N >= 2 else 1, (8 << 20) // max(1, per_sample)))
        while N % nb:
            nb -= 1
    else:
        nb = int(batch_block)
    grid = (N // nb,)

    # add_coeff padded with 0 for the synthetic global-joint row (cropped later)
    coeff = jnp.concatenate([params['add_coeff'][:V].astype(jnp.float32),
                             jnp.zeros((1,), jnp.float32)]).reshape(1, V1, 1)
    # concatenated unit_tcn biases (zeros for max-pool / plain-1x1 branches),
    # added once in-kernel instead of per-branch broadcast inits.
    tcnb = jnp.concatenate(
        [params['bts'][i][0] for i in range(4)]
        + [jnp.zeros((c_branches[4] + c_branches[5],), jnp.float32)]).reshape(1, 1, c_tin)
    tscale = params['tscale'].reshape(1, 1, c_tin)
    tbias = params['tbias'].reshape(1, 1, c_tin)

    weights = [params['w1'].astype(jnp.bfloat16), params['b1'], coeff,
               params['wts'][0], params['wts'][1], params['wts'][2], params['wts'][3],
               tcnb, tscale, tbias,
               params['wtr'].astype(jnp.bfloat16), params['btr']]

    kernel = functools.partial(dgmstcn_kernel, c_branches=c_branches,
                               dilations=dilations)

    in_specs = [pl.BlockSpec((nb, T, V1, c_in), lambda n: (n, 0, 0, 0))]
    for w in weights:
        in_specs.append(pl.BlockSpec(w.shape, lambda n, nd=w.ndim: (0,) * nd))

    flops = 2 * N * T * V1 * (c_in * c_tin + c_tin * c_out
                              + 3 * sum(c_branches[i] ** 2 for i in range(4)))
    bytes_accessed = (int(xa.size) * 2 + N * T * V1 * c_out * 4
                      + sum(int(w.size) * w.dtype.itemsize for w in weights))

    out = pl.pallas_call(
        kernel,
        out_shape=jax.ShapeDtypeStruct((N, T, V1, c_out), jnp.float32),
        grid=grid,
        in_specs=in_specs,
        out_specs=pl.BlockSpec((nb, T, V1, c_out), lambda n: (n, 0, 0, 0)),
        scratch_shapes=[pltpu.VMEM((nb, T + 2 * pad, V1, c_tin), jnp.float32),
                        pltpu.VMEM((nb * T, V1, c_tin), jnp.float32)],
        compiler_params=pltpu.CompilerParams(
            dimension_semantics=("parallel",),
            vmem_limit_bytes=64 * 1024 * 1024),
        cost_estimate=pl.CostEstimate(flops=int(flops), transcendentals=0,
                                      bytes_accessed=int(bytes_accessed)),
    )(xa, *weights)

    # drop the synthetic global-joint column in XLA (keeps in-kernel stores aligned)
    return out[:, :, :V, :]


def reference_forward(x, params):
    """Plain-JAX mirror of the PyTorch ops (same bf16 input/weight rounding as the kernel)."""
    N, T, V, c_in = x.shape
    hi = jax.lax.Precision.HIGHEST
    bq = lambda a: a.astype(jnp.bfloat16).astype(jnp.float32)
    xa = bq(jnp.concatenate([x, x.mean(axis=2, keepdims=True)], axis=2))   # (N,T,V+1,Cin)
    w1 = bq(params['w1'])
    h = jnp.einsum('ntvc,cd->ntvd', xa, w1, precision=hi) + params['b1'][0]
    cbs = list(params['c_branches'])
    c_tin = sum(cbs)
    n_relu = c_tin - cbs[-1]
    ch = jnp.arange(c_tin)
    h = jnp.where(ch < n_relu, jnp.maximum(h, 0.0), h)
    offs = [0]
    for c in cbs:
        offs.append(offs[-1] + c)
    outs = []
    for bi in range(4):
        hb = h[..., offs[bi]:offs[bi + 1]]
        d = int(params['dilations'][bi])
        hp = jnp.pad(hb, ((0, 0), (d, d), (0, 0), (0, 0)))
        y = jnp.zeros_like(hb) + params['bts'][bi][0]
        for k in range(3):
            y = y + jnp.einsum('ntvc,cd->ntvd', hp[:, k * d:k * d + T],
                               params['wts'][bi][k], precision=hi)
        outs.append(y)
    h4 = h[..., offs[4]:offs[5]]
    hp = jnp.pad(h4, ((0, 0), (1, 1), (0, 0), (0, 0)), constant_values=-jnp.inf)
    outs.append(jnp.maximum(jnp.maximum(hp[:, :T], hp[:, 1:T + 1]), hp[:, 2:T + 2]))
    outs.append(h[..., offs[5]:offs[6]])
    out = jnp.concatenate(outs, axis=-1)
    local = out[:, :, :V]
    glob = out[:, :, V]
    coeff = params['add_coeff'][:V]
    feat = local + coeff[None, None, :, None] * glob[:, :, None, :]
    z = jnp.maximum(feat * params['tscale'][0] + params['tbias'][0], 0.0)
    wtr = bq(params['wtr'])
    return jnp.einsum('ntvc,cd->ntvd', z, wtr, precision=hi) + params['btr'][0]


if __name__ == "__main__":
    key = jax.random.PRNGKey(0)
    kx, kp = jax.random.split(key)
    # small shapes: N=2, C_in=8, T=16, V=23 joints (V1=24), C_out=12 (mid=2, rem=2)
    N, C_in, T, V, C_out = 2, 8, 16, 23, 12
    x_nctv = jax.random.normal(kx, (N, C_in, T, V), jnp.float32)   # PyTorch NCTV layout
    x = jnp.transpose(x_nctv, (0, 2, 3, 1))                        # (N, T, V, C)

    params = init_params(kp, C_in, C_out, num_joints=V)

    # TODO(synk): training-mode BatchNorm statistic updates / non-zero Dropout are not
    # modeled; BNs are folded assuming eval mode (matches the PyTorch forward in eval).
    out = jax.block_until_ready(dgmstcn_forward(x, params))
    assert out.shape == (N, T, V, C_out)

    ref = jax.block_until_ready(reference_forward(x, params))
    err = float(jnp.max(jnp.abs(out - ref)))
    assert err < 2e-3, err

    print("KERNEL_OK")
</pallas_src>

<mosaic_0001>
module attributes {stable_mosaic.version = 11 : i64} {
  func.func @dgmstcn_kernel(%arg0: i32, %arg1: memref<1x16x24x8xbf16, #tpu.memory_space<vmem>>, %arg2: memref<8x12xbf16, #tpu.memory_space<vmem>>, %arg3: memref<1x12xf32, #tpu.memory_space<vmem>>, %arg4: memref<1x24x1xf32, #tpu.memory_space<vmem>>, %arg5: memref<3x2x2xf32, #tpu.memory_space<vmem>>, %arg6: memref<3x2x2xf32, #tpu.memory_space<vmem>>, %arg7: memref<3x2x2xf32, #tpu.memory_space<vmem>>, %arg8: memref<3x2x2xf32, #tpu.memory_space<vmem>>, %arg9: memref<1x1x12xf32, #tpu.memory_space<vmem>>, %arg10: memref<1x1x12xf32, #tpu.memory_space<vmem>>, %arg11: memref<1x1x12xf32, #tpu.memory_space<vmem>>, %arg12: memref<12x12xbf16, #tpu.memory_space<vmem>>, %arg13: memref<1x12xf32, #tpu.memory_space<vmem>>, %arg14: memref<1x16x24x12xf32, #tpu.memory_space<vmem>>, %arg15: memref<1x24x24x12xf32, #tpu.memory_space<vmem>>, %arg16: memref<16x24x12xf32, #tpu.memory_space<vmem>>) attributes {dimension_semantics = [#tpu.dimension_semantics<parallel>], iteration_bounds = array<i64: 2>, scalar_prefetch = 0 : i64, scratch_operands = 2 : i64, tpu.core_type = #tpu.core_type<tc>, window_params = [{transform_indices = @transform_0, window_bounds = array<i64: 1, 16, 24, 8>}, {pipeline_mode = #tpu.pipeline_mode<synchronous>, transform_indices = @transform_1, window_bounds = array<i64: 8, 12>}, {pipeline_mode = #tpu.pipeline_mode<synchronous>, transform_indices = @transform_2, window_bounds = array<i64: 1, 12>}, {pipeline_mode = #tpu.pipeline_mode<synchronous>, transform_indices = @transform_3, window_bounds = array<i64: 1, 24, 1>}, {pipeline_mode = #tpu.pipeline_mode<synchronous>, transform_indices = @transform_4, window_bounds = array<i64: 3, 2, 2>}, {pipeline_mode = #tpu.pipeline_mode<synchronous>, transform_indices = @transform_5, window_bounds = array<i64: 3, 2, 2>}, {pipeline_mode = #tpu.pipeline_mode<synchronous>, transform_indices = @transform_6, window_bounds = array<i64: 3, 2, 2>}, {pipeline_mode = #tpu.pipeline_mode<synchronous>, transform_indices = @transform_7, window_bounds = array<i64: 3, 2, 2>}, {pipeline_mode = #tpu.pipeline_mode<synchronous>, transform_indices = @transform_8, window_bounds = array<i64: 1, 1, 12>}, {pipeline_mode = #tpu.pipeline_mode<synchronous>, transform_indices = @transform_9, window_bounds = array<i64: 1, 1, 12>}, {pipeline_mode = #tpu.pipeline_mode<synchronous>, transform_indices = @transform_10, window_bounds = array<i64: 1, 1, 12>}, {pipeline_mode = #tpu.pipeline_mode<synchronous>, transform_indices = @transform_11, window_bounds = array<i64: 12, 12>}, {pipeline_mode = #tpu.pipeline_mode<synchronous>, transform_indices = @transform_12, window_bounds = array<i64: 1, 12>}, {transform_indices = @transform_13, window_bounds = array<i64: 1, 16, 24, 12>}]} {
    %c0 = arith.constant 0 : index
    %c0_0 = arith.constant 0 : index
    %c0_1 = arith.constant 0 : index
    %c0_2 = arith.constant 0 : index
    %0 = vector.load %arg1[%c0, %c0_0, %c0_1, %c0_2] : memref<1x16x24x8xbf16, #tpu.memory_space<vmem>>, vector<1x16x24x8xbf16>
    %1 = vector.shape_cast %0 : vector<1x16x24x8xbf16> to vector<384x8xbf16>
    %c0_3 = arith.constant 0 : index
    %c0_4 = arith.constant 0 : index
    %2 = vector.load %arg2[%c0_3, %c0_4] : memref<8x12xbf16, #tpu.memory_space<vmem>>, vector<8x12xbf16>
    %cst = arith.constant dense<0.000000e+00> : vector<384x12xf32>
    %3 = tpu.matmul %1, %2, %cst {dimension_numbers = #tpu.dot_dimension_numbers<[1], [0], [0], [1], [0, 0, 1, 1], [], []>} : vector<384x8xbf16>, vector<8x12xbf16>, vector<384x12xf32> -> vector<384x12xf32>
    %c0_5 = arith.constant 0 : index
    %c0_6 = arith.constant 0 : index
    %4 = vector.load %arg3[%c0_5, %c0_6] : memref<1x12xf32, #tpu.memory_space<vmem>>, vector<1x12xf32>
    %5 = vector.broadcast %4 : vector<1x12xf32> to vector<384x12xf32>
    %6 = arith.addf %3, %5 : vector<384x12xf32>
    %7 = tpu.iota {dimensions = array<i32: 1>} : vector<1x12xi32>
    %c10_i32 = arith.constant 10 : i32
    %8 = vector.broadcast %c10_i32 : i32 to vector<1x12xi32>
    %9 = arith.cmpi slt, %7, %8 : vector<1x12xi32>
    %cst_7 = arith.constant 0.000000e+00 : f32
    %10 = vector.broadcast %cst_7 : f32 to vector<384x12xf32>
    %11 = arith.maximumf %6, %10 : vector<384x12xf32>
    %12 = vector.shape_cast %9 : vector<1x12xi1> to vector<1x12xi1>
    %13 = vector.broadcast %12 : vector<1x12xi1> to vector<384x12xi1>
    %14 = arith.select %13, %11, %6 : vector<384x12xi1>, vector<384x12xf32>
    %15 = vector.shape_cast %14 : vector<384x12xf32> to vector<16x24x12xf32>
    %c0_8 = arith.constant 0 : index
    %c0_9 = arith.constant 0 : index
    %c0_10 = arith.constant 0 : index
    %16 = vector.load %arg16[%c0_8, %c0_9, %c0_10] : memref<16x24x12xf32, #tpu.memory_space<vmem>>, vector<16x24x12xf32>
    tpu.vector_store %arg16[%c0_8, %c0_9, %c0_10], %15 {strides = array<i32>} : memref<16x24x12xf32, #tpu.memory_space<vmem>>, vector<16x24x12xf32>,
    %cst_11 = arith.constant 0.000000e+00 : f32
    %17 = vector.broadcast %cst_11 : f32 to vector<1x4x24x12xf32>
    %c0_12 = arith.constant 0 : index
    %c0_13 = arith.constant 0 : index
    %c0_14 = arith.constant 0 : index
    %c0_15 = arith.constant 0 : index
    %18 = vector.load %arg15[%c0_12, %c0_13, %c0_14, %c0_15] : memref<1x24x24x12xf32, #tpu.memory_space<vmem>>, vector<1x4x24x12xf32>
    tpu.vector_store %arg15[%c0_12, %c0_13, %c0_14, %c0_15], %17 {strides = array<i32>} : memref<1x24x24x12xf32, #tpu.memory_space<vmem>>, vector<1x4x24x12xf32>,
    %c0_16 = arith.constant 0 : index
    %c20 = arith.constant 20 : index
    %c0_17 = arith.constant 0 : index
    %c0_18 = arith.constant 0 : index
    %19 = vector.load %arg15[%c0_16, %c20, %c0_17, %c0_18] : memref<1x24x24x12xf32, #tpu.memory_space<vmem>>, vector<1x4x24x12xf32>
    tpu.vector_store %arg15[%c0_16, %c20, %c0_17, %c0_18], %17 {strides = array<i32>} : memref<1x24x24x12xf32, #tpu.memory_space<vmem>>, vector<1x4x24x12xf32>,
    %20 = vector.shape_cast %14 : vector<384x12xf32> to vector<1x16x24x12xf32>
    %c0_19 = arith.constant 0 : index
    %c4 = arith.constant 4 : index
    %c0_20 = arith.constant 0 : index
    %c0_21 = arith.constant 0 : index
    %21 = vector.load %arg15[%c0_19, %c4, %c0_20, %c0_21] : memref<1x24x24x12xf32, #tpu.memory_space<vmem>>, vector<1x16x24x12xf32>
    tpu.vector_store %arg15[%c0_19, %c4, %c0_20, %c0_21], %20 {strides = array<i32>} : memref<1x24x24x12xf32, #tpu.memory_space<vmem>>, vector<1x16x24x12xf32>,
    %c0_22 = arith.constant 0 : index
    %c3 = arith.constant 3 : index
    %c0_23 = arith.constant 0 : index
    %c0_24 = arith.constant 0 : index
    %22 = vector.load %arg15[%c0_22, %c3, %c0_23, %c0_24] : memref<1x24x24x12xf32, #tpu.memory_space<vmem>>, vector<1x16x24x2xf32>
    %23 = vector.shape_cast %22 : vector<1x16x24x2xf32> to vector<384x2xf32>
    %c0_25 = arith.constant 0 : index
    %c0_26 = arith.constant 0 : index
    %c0_27 = arith.constant 0 : index
    %24 = vector.load %arg5[%c0_25, %c0_26, %c0_27] : memref<3x2x2xf32, #tpu.memory_space<vmem>>, vector<1x2x2xf32>
    %25 = vector.shape_cast %24 : vector<1x2x2xf32> to vector<2x2xf32>
    %cst_28 = arith.constant dense<0.000000e+00> : vector<384x2xf32>
    %26 = tpu.matmul %23, %25, %cst_28 {dimension_numbers = #tpu.dot_dimension_numbers<[1], [0], [0], [1], [0, 0, 1, 1], [], []>} : vector<384x2xf32>, vector<2x2xf32>, vector<384x2xf32> -> vector<384x2xf32>
    %c0_29 = arith.constant 0 : index
    %c4_30 = arith.constant 4 : index
    %c0_31 = arith.constant 0 : index
    %c0_32 = arith.constant 0 : index
    %27 = vector.load %arg15[%c0_29, %c4_30, %c0_31, %c0_32] : memref<1x24x24x12xf32, #tpu.memory_space<vmem>>, vector<1x16x24x2xf32>
    %28 = vector.shape_cast %27 : vector<1x16x24x2xf32> to vector<384x2xf32>
    %c1 = arith.constant 1 : index
    %c0_33 = arith.constant 0 : index
    %c0_34 = arith.constant 0 : index
    %29 = vector.load %arg5[%c1, %c0_33, %c0_34] : memref<3x2x2xf32, #tpu.memory_space<vmem>>, vector<1x2x2xf32>
    %30 = vector.shape_cast %29 : vector<1x2x2xf32> to vector<2x2xf32>
    %cst_35 = arith.constant dense<0.000000e+00> : vector<384x2xf32>
    %31 = tpu.matmul %28, %30, %cst_35 {dimension_numbers = #tpu.dot_dimension_numbers<[1], [0], [0], [1], [0, 0, 1, 1], [], []>} : vector<384x2xf32>, vector<2x2xf32>, vector<384x2xf32> -> vector<384x2xf32>
    %32 = arith.addf %26, %31 : vector<384x2xf32>
    %c0_36 = arith.constant 0 : index
    %c5 = arith.constant 5 : index
    %c0_37 = arith.constant 0 : index
    %c0_38 = arith.constant 0 : index
    %33 = vector.load %arg15[%c0_36, %c5, %c0_37, %c0_38] : memref<1x24x24x12xf32, #tpu.memory_space<vmem>>, vector<1x16x24x2xf32>
    %34 = vector.shape_cast %33 : vector<1x16x24x2xf32> to vector<384x2xf32>
    %c2 = arith.constant 2 : index
    %c0_39 = arith.constant 0 : index
    %c0_40 = arith.constant 0 : index
    %35 = vector.load %arg5[%c2, %c0_39, %c0_40] : memref<3x2x2xf32, #tpu.memory_space<vmem>>, vector<1x2x2xf32>
    %36 = vector.shape_cast %35 : vector<1x2x2xf32> to vector<2x2xf32>
    %cst_41 = arith.constant dense<0.000000e+00> : vector<384x2xf32>
    %37 = tpu.matmul %34, %36, %cst_41 {dimension_numbers = #tpu.dot_dimension_numbers<[1], [0], [0], [1], [0, 0, 1, 1], [], []>} : vector<384x2xf32>, vector<2x2xf32>, vector<384x2xf32> -> vector<384x2xf32>
    %38 = arith.addf %32, %37 : vector<384x2xf32>
    %39 = vector.shape_cast %38 : vector<384x2xf32> to vector<16x24x2xf32>
    %c0_42 = arith.constant 0 : index
    %c0_43 = arith.constant 0 : index
    %c0_44 = arith.constant 0 : index
    %40 = vector.load %arg16[%c0_42, %c0_43, %c0_44] : memref<16x24x12xf32, #tpu.memory_space<vmem>>, vector<16x24x2xf32>
    tpu.vector_store %arg16[%c0_42, %c0_43, %c0_44], %39 {strides = array<i32>} : memref<16x24x12xf32, #tpu.memory_space<vmem>>, vector<16x24x2xf32>,
    %c0_45 = arith.constant 0 : index
    %c2_46 = arith.constant 2 : index
    %c0_47 = arith.constant 0 : index
    %c2_48 = arith.constant 2 : index
    %41 = vector.load %arg15[%c0_45, %c2_46, %c0_47, %c2_48] : memref<1x24x24x12xf32, #tpu.memory_space<vmem>>, vector<1x16x24x2xf32>
    %42 = vector.shape_cast %41 : vector<1x16x24x2xf32> to vector<384x2xf32>
    %c0_49 = arith.constant 0 : index
    %c0_50 = arith.constant 0 : index
    %c0_51 = arith.constant 0 : index
    %43 = vector.load %arg6[%c0_49, %c0_50, %c0_51] : memref<3x2x2xf32, #tpu.memory_space<vmem>>, vector<1x2x2xf32>
    %44 = vector.shape_cast %43 : vector<1x2x2xf32> to vector<2x2xf32>
    %cst_52 = arith.constant dense<0.000000e+00> : vector<384x2xf32>
    %45 = tpu.matmul %42, %44, %cst_52 {dimension_numbers = #tpu.dot_dimension_numbers<[1], [0], [0], [1], [0, 0, 1, 1], [], []>} : vector<384x2xf32>, vector<2x2xf32>, vector<384x2xf32> -> vector<384x2xf32>
    %c0_53 = arith.constant 0 : index
    %c4_54 = arith.constant 4 : index
    %c0_55 = arith.constant 0 : index
    %c2_56 = arith.constant 2 : index
    %46 = vector.load %arg15[%c0_53, %c4_54, %c0_55, %c2_56] : memref<1x24x24x12xf32, #tpu.memory_space<vmem>>, vector<1x16x24x2xf32>
    %47 = vector.shape_cast %46 : vector<1x16x24x2xf32> to vector<384x2xf32>
    %c1_57 = arith.constant 1 : index
    %c0_58 = arith.constant 0 : index
    %c0_59 = arith.constant 0 : index
    %48 = vector.load %arg6[%c1_57, %c0_58, %c0_59] : memref<3x2x2xf32, #tpu.memory_space<vmem>>, vector<1x2x2xf32>
    %49 = vector.shape_cast %48 : vector<1x2x2xf32> to vector<2x2xf32>
    %cst_60 = arith.constant dense<0.000000e+00> : vector<384x2xf32>
    %50 = tpu.matmul %47, %49, %cst_60 {dimension_numbers = #tpu.dot_dimension_numbers<[1], [0], [0], [1], [0, 0, 1, 1], [], []>} : vector<384x2xf32>, vector<2x2xf32>, vector<384x2xf32> -> vector<384x2xf32>
    %51 = arith.addf %45, %50 : vector<384x2xf32>
    %c0_61 = arith.constant 0 : index
    %c6 = arith.constant 6 : index
    %c0_62 = arith.constant 0 : index
    %c2_63 = arith.constant 2 : index
    %52 = vector.load %arg15[%c0_61, %c6, %c0_62, %c2_63] : memref<1x24x24x12xf32, #tpu.memory_space<vmem>>, vector<1x16x24x2xf32>
    %53 = vector.shape_cast %52 : vector<1x16x24x2xf32> to vector<384x2xf32>
    %c2_64 = arith.constant 2 : index
    %c0_65 = arith.constant 0 : index
    %c0_66 = arith.constant 0 : index
    %54 = vector.load %arg6[%c2_64, %c0_65, %c0_66] : memref<3x2x2xf32, #tpu.memory_space<vmem>>, vector<1x2x2xf32>
    %55 = vector.shape_cast %54 : vector<1x2x2xf32> to vector<2x2xf32>
    %cst_67 = arith.constant dense<0.000000e+00> : vector<384x2xf32>
    %56 = tpu.matmul %53, %55, %cst_67 {dimension_numbers = #tpu.dot_dimension_numbers<[1], [0], [0], [1], [0, 0, 1, 1], [], []>} : vector<384x2xf32>, vector<2x2xf32>, vector<384x2xf32> -> vector<384x2xf32>
    %57 = arith.addf %51, %56 : vector<384x2xf32>
    %58 = vector.shape_cast %57 : vector<384x2xf32> to vector<16x24x2xf32>
    %c0_68 = arith.constant 0 : index
    %c0_69 = arith.constant 0 : index
    %c2_70 = arith.constant 2 : index
    %59 = vector.load %arg16[%c0_68, %c0_69, %c2_70] : memref<16x24x12xf32, #tpu.memory_space<vmem>>, vector<16x24x2xf32>
    tpu.vector_store %arg16[%c0_68, %c0_69, %c2_70], %58 {strides = array<i32>} : memref<16x24x12xf32, #tpu.memory_space<vmem>>, vector<16x24x2xf32>,
    %c0_71 = arith.constant 0 : index
    %c1_72 = arith.constant 1 : index
    %c0_73 = arith.constant 0 : index
    %c4_74 = arith.constant 4 : index
    %60 = vector.load %arg15[%c0_71, %c1_72, %c0_73, %c4_74] : memref<1x24x24x12xf32, #tpu.memory_space<vmem>>, vector<1x16x24x2xf32>
    %61 = vector.shape_cast %60 : vector<1x16x24x2xf32> to vector<384x2xf32>
    %c0_75 = arith.constant 0 : index
    %c0_76 = arith.constant 0 : index
    %c0_77 = arith.constant 0 : index
    %62 = vector.load %arg7[%c0_75, %c0_76, %c0_77] : memref<3x2x2xf32, #tpu.memory_space<vmem>>, vector<1x2x2xf32>
    %63 = vector.shape_cast %62 : vector<1x2x2xf32> to vector<2x2xf32>
    %cst_78 = arith.constant dense<0.000000e+00> : vector<384x2xf32>
    %64 = tpu.matmul %61, %63, %cst_78 {dimension_numbers = #tpu.dot_dimension_numbers<[1], [0], [0], [1], [0, 0, 1, 1], [], []>} : vector<384x2xf32>, vector<2x2xf32>, vector<384x2xf32> -> vector<384x2xf32>
    %c0_79 = arith.constant 0 : index
    %c4_80 = arith.constant 4 : index
    %c0_81 = arith.constant 0 : index
    %c4_82 = arith.constant 4 : index
    %65 = vector.load %arg15[%c0_79, %c4_80, %c0_81, %c4_82] : memref<1x24x24x12xf32, #tpu.memory_space<vmem>>, vector<1x16x24x2xf32>
    %66 = vector.shape_cast %65 : vector<1x16x24x2xf32> to vector<384x2xf32>
    %c1_83 = arith.constant 1 : index
    %c0_84 = arith.constant 0 : index
    %c0_85 = arith.constant 0 : index
    %67 = vector.load %arg7[%c1_83, %c0_84, %c0_85] : memref<3x2x2xf32, #tpu.memory_space<vmem>>, vector<1x2x2xf32>
    %68 = vector.shape_cast %67 : vector<1x2x2xf32> to vector<2x2xf32>
    %cst_86 = arith.constant dense<0.000000e+00> : vector<384x2xf32>
    %69 = tpu.matmul %66, %68, %cst_86 {dimension_numbers = #tpu.dot_dimension_numbers<[1], [0], [0], [1], [0, 0, 1, 1], [], []>} : vector<384x2xf32>, vector<2x2xf32>, vector<384x2xf32> -> vector<384x2xf32>
    %70 = arith.addf %64, %69 : vector<384x2xf32>
    %c0_87 = arith.constant 0 : index
    %c7 = arith.constant 7 : index
    %c0_88 = arith.constant 0 : index
    %c4_89 = arith.constant 4 : index
    %71 = vector.load %arg15[%c0_87, %c7, %c0_88, %c4_89] : memref<1x24x24x12xf32, #tpu.memory_space<vmem>>, vector<1x16x24x2xf32>
    %72 = vector.shape_cast %71 : vector<1x16x24x2xf32> to vector<384x2xf32>
    %c2_90 = arith.constant 2 : index
    %c0_91 = arith.constant 0 : index
    %c0_92 = arith.constant 0 : index
    %73 = vector.load %arg7[%c2_90, %c0_91, %c0_92] : memref<3x2x2xf32, #tpu.memory_space<vmem>>, vector<1x2x2xf32>
    %74 = vector.shape_cast %73 : vector<1x2x2xf32> to vector<2x2xf32>
    %cst_93 = arith.constant dense<0.000000e+00> : vector<384x2xf32>
    %75 = tpu.matmul %72, %74, %cst_93 {dimension_numbers = #tpu.dot_dimension_numbers<[1], [0], [0], [1], [0, 0, 1, 1], [], []>} : vector<384x2xf32>, vector<2x2xf32>, vector<384x2xf32> -> vector<384x2xf32>
    %76 = arith.addf %70, %75 : vector<384x2xf32>
    %77 = vector.shape_cast %76 : vector<384x2xf32> to vector<16x24x2xf32>
    %c0_94 = arith.constant 0 : index
    %c0_95 = arith.constant 0 : index
    %c4_96 = arith.constant 4 : index
    %78 = vector.load %arg16[%c0_94, %c0_95, %c4_96] : memref<16x24x12xf32, #tpu.memory_space<vmem>>, vector<16x24x2xf32>
    tpu.vector_store %arg16[%c0_94, %c0_95, %c4_96], %77 {strides = array<i32>} : memref<16x24x12xf32, #tpu.memory_space<vmem>>, vector<16x24x2xf32>,
    %c0_97 = arith.constant 0 : index
    %c0_98 = arith.constant 0 : index
    %c0_99 = arith.constant 0 : index
    %c6_100 = arith.constant 6 : index
    %79 = vector.load %arg15[%c0_97, %c0_98, %c0_99, %c6_100] : memref<1x24x24x12xf32, #tpu.memory_space<vmem>>, vector<1x16x24x2xf32>
    %80 = vector.shape_cast %79 : vector<1x16x24x2xf32> to vector<384x2xf32>
    %c0_101 = arith.constant 0 : index
    %c0_102 = arith.constant 0 : index
    %c0_103 = arith.constant 0 : index
    %81 = vector.load %arg8[%c0_101, %c0_102, %c0_103] : memref<3x2x2xf32, #tpu.memory_space<vmem>>, vector<1x2x2xf32>
    %82 = vector.shape_cast %81 : vector<1x2x2xf32> to vector<2x2xf32>
    %cst_104 = arith.constant dense<0.000000e+00> : vector<384x2xf32>
    %83 = tpu.matmul %80, %82, %cst_104 {dimension_numbers = #tpu.dot_dimension_numbers<[1], [0], [0], [1], [0, 0, 1, 1], [], []>} : vector<384x2xf32>, vector<2x2xf32>, vector<384x2xf32> -> vector<384x2xf32>
    %c0_105 = arith.constant 0 : index
    %c4_106 = arith.constant 4 : index
    %c0_107 = arith.constant 0 : index
    %c6_108 = arith.constant 6 : index
    %84 = vector.load %arg15[%c0_105, %c4_106, %c0_107, %c6_108] : memref<1x24x24x12xf32, #tpu.memory_space<vmem>>, vector<1x16x24x2xf32>
    %85 = vector.shape_cast %84 : vector<1x16x24x2xf32> to vector<384x2xf32>
    %c1_109 = arith.constant 1 : index
    %c0_110 = arith.constant 0 : index
    %c0_111 = arith.constant 0 : index
    %86 = vector.load %arg8[%c1_109, %c0_110, %c0_111] : memref<3x2x2xf32, #tpu.memory_space<vmem>>, vector<1x2x2xf32>
    %87 = vector.shape_cast %86 : vector<1x2x2xf32> to vector<2x2xf32>
    %cst_112 = arith.constant dense<0.000000e+00> : vector<384x2xf32>
    %88 = tpu.matmul %85, %87, %cst_112 {dimension_numbers = #tpu.dot_dimension_numbers<[1], [0], [0], [1], [0, 0, 1, 1], [], []>} : vector<384x2xf32>, vector<2x2xf32>, vector<384x2xf32> -> vector<384x2xf32>
    %89 = arith.addf %83, %88 : vector<384x2xf32>
    %c0_113 = arith.constant 0 : index
    %c8 = arith.constant 8 : index
    %c0_114 = arith.constant 0 : index
    %c6_115 = arith.constant 6 : index
    %90 = vector.load %arg15[%c0_113, %c8, %c0_114, %c6_115] : memref<1x24x24x12xf32, #tpu.memory_space<vmem>>, vector<1x16x24x2xf32>
    %91 = vector.shape_cast %90 : vector<1x16x24x2xf32> to vector<384x2xf32>
    %c2_116 = arith.constant 2 : index
    %c0_117 = arith.constant 0 : index
    %c0_118 = arith.constant 0 : index
    %92 = vector.load %arg8[%c2_116, %c0_117, %c0_118] : memref<3x2x2xf32, #tpu.memory_space<vmem>>, vector<1x2x2xf32>
    %93 = vector.shape_cast %92 : vector<1x2x2xf32> to vector<2x2xf32>
    %cst_119 = arith.constant dense<0.000000e+00> : vector<384x2xf32>
    %94 = tpu.matmul %91, %93, %cst_119 {dimension_numbers = #tpu.dot_dimension_numbers<[1], [0], [0], [1], [0, 0, 1, 1], [], []>} : vector<384x2xf32>, vector<2x2xf32>, vector<384x2xf32> -> vector<384x2xf32>
    %95 = arith.addf %89, %94 : vector<384x2xf32>
    %96 = vector.shape_cast %95 : vector<384x2xf32> to vector<16x24x2xf32>
    %c0_120 = arith.constant 0 : index
    %c0_121 = arith.constant 0 : index
    %c6_122 = arith.constant 6 : index
    %97 = vector.load %arg16[%c0_120, %c0_121, %c6_122] : memref<16x24x12xf32, #tpu.memory_space<vmem>>, vector<16x24x2xf32>
    tpu.vector_store %arg16[%c0_120, %c0_121, %c6_122], %96 {strides = array<i32>} : memref<16x24x12xf32, #tpu.memory_space<vmem>>, vector<16x24x2xf32>,
    %c0_123 = arith.constant 0 : index
    %c3_124 = arith.constant 3 : index
    %c0_125 = arith.constant 0 : index
    %c8_126 = arith.constant 8 : index
    %98 = vector.load %arg15[%c0_123, %c3_124, %c0_125, %c8_126] : memref<1x24x24x12xf32, #tpu.memory_space<vmem>>, vector<1x16x24x2xf32>
    %c0_127 = arith.constant 0 : index
    %c4_128 = arith.constant 4 : index
    %c0_129 = arith.constant 0 : index
    %c8_130 = arith.constant 8 : index
    %99 = vector.load %arg15[%c0_127, %c4_128, %c0_129, %c8_130] : memref<1x24x24x12xf32, #tpu.memory_space<vmem>>, vector<1x16x24x2xf32>
    %100 = arith.maximumf %98, %99 : vector<1x16x24x2xf32>
    %c0_131 = arith.constant 0 : index
    %c5_132 = arith.constant 5 : index
    %c0_133 = arith.constant 0 : index
    %c8_134 = arith.constant 8 : index
    %101 = vector.load %arg15[%c0_131, %c5_132, %c0_133, %c8_134] : memref<1x24x24x12xf32, #tpu.memory_space<vmem>>, vector<1x16x24x2xf32>
    %102 = arith.maximumf %100, %101 : vector<1x16x24x2xf32>
    %103 = vector.shape_cast %102 : vector<1x16x24x2xf32> to vector<16x24x2xf32>
    %c0_135 = arith.constant 0 : index
    %c0_136 = arith.constant 0 : index
    %c8_137 = arith.constant 8 : index
    %104 = vector.load %arg16[%c0_135, %c0_136, %c8_137] : memref<16x24x12xf32, #tpu.memory_space<vmem>>, vector<16x24x2xf32>
    tpu.vector_store %arg16[%c0_135, %c0_136, %c8_137], %103 {strides = array<i32>} : memref<16x24x12xf32, #tpu.memory_space<vmem>>, vector<16x24x2xf32>,
    %c0_138 = arith.constant 0 : index
    %c0_139 = arith.constant 0 : index
    %c0_140 = arith.constant 0 : index
    %105 = vector.load %arg16[%c0_138, %c0_139, %c0_140] : memref<16x24x12xf32, #tpu.memory_space<vmem>>, vector<16x24x12xf32>
    %c0_141 = arith.constant 0 : index
    %c0_142 = arith.constant 0 : index
    %c0_143 = arith.constant 0 : index
    %106 = vector.load %arg9[%c0_141, %c0_142, %c0_143] : memref<1x1x12xf32, #tpu.memory_space<vmem>>, vector<1x1x12xf32>
    %107 = vector.broadcast %106 : vector<1x1x12xf32> to vector<16x24x12xf32>
    %108 = arith.addf %105, %107 : vector<16x24x12xf32>
    %c0_144 = arith.constant 0 : index
    %c0_145 = arith.constant 0 : index
    %c0_146 = arith.constant 0 : index
    %109 = vector.load %arg4[%c0_144, %c0_145, %c0_146] : memref<1x24x1xf32, #tpu.memory_space<vmem>>, vector<1x24x1xf32>
    %110 = vector.extract_strided_slice %108 {offsets = [0, 23, 0], sizes = [16, 1, 12], strides = [1, 1, 1]} : vector<16x24x12xf32> to vector<16x1x12xf32>
    %111 = vector.broadcast %109 : vector<1x24x1xf32> to vector<16x24x12xf32>
    %112 = vector.broadcast %110 : vector<16x1x12xf32> to vector<16x24x12xf32>
    %113 = arith.mulf %111, %112 : vector<16x24x12xf32>
    %114 = arith.addf %108, %113 : vector<16x24x12xf32>
    %c0_147 = arith.constant 0 : index
    %c0_148 = arith.constant 0 : index
    %c0_149 = arith.constant 0 : index
    %115 = vector.load %arg10[%c0_147, %c0_148, %c0_149] : memref<1x1x12xf32, #tpu.memory_space<vmem>>, vector<1x1x12xf32>
    %116 = vector.broadcast %115 : vector<1x1x12xf32> to vector<16x24x12xf32>
    %117 = arith.mulf %114, %116 : vector<16x24x12xf32>
    %c0_150 = arith.constant 0 : index
    %c0_151 = arith.constant 0 : index
    %c0_152 = arith.constant 0 : index
    %118 = vector.load %arg11[%c0_150, %c0_151, %c0_152] : memref<1x1x12xf32, #tpu.memory_space<vmem>>, vector<1x1x12xf32>
    %119 = vector.broadcast %118 : vector<1x1x12xf32> to vector<16x24x12xf32>
    %120 = arith.addf %117, %119 : vector<16x24x12xf32>
    %cst_153 = arith.constant 0.000000e+00 : f32
    %121 = vector.broadcast %cst_153 : f32 to vector<16x24x12xf32>
    %122 = arith.maximumf %120, %121 : vector<16x24x12xf32>
    %123 = vector.shape_cast %122 : vector<16x24x12xf32> to vector<384x12xf32>
    %c0_154 = arith.constant 0 : index
    %c0_155 = arith.constant 0 : index
    %124 = vector.load %arg12[%c0_154, %c0_155] : memref<12x12xbf16, #tpu.memory_space<vmem>>, vector<12x12xbf16>
    %cst_156 = arith.constant dense<0.000000e+00> : vector<384x12xf32>
    %125 = tpu.matmul %123, %124, %cst_156 {dimension_numbers = #tpu.dot_dimension_numbers<[1], [0], [0], [1], [0, 0, 1, 1], [], []>} : vector<384x12xf32>, vector<12x12xbf16>, vector<384x12xf32> -> vector<384x12xf32>
    %c0_157 = arith.constant 0 : index
    %c0_158 = arith.constant 0 : index
    %126 = vector.load %arg13[%c0_157, %c0_158] : memref<1x12xf32, #tpu.memory_space<vmem>>, vector<1x12xf32>
    %127 = vector.broadcast %126 : vector<1x12xf32> to vector<384x12xf32>
    %128 = arith.addf %125, %127 : vector<384x12xf32>
    %129 = vector.shape_cast %128 : vector<384x12xf32> to vector<1x16x24x12xf32>
    %c0_159 = arith.constant 0 : index
    %c0_160 = arith.constant 0 : index
    %c0_161 = arith.constant 0 : index
    %c0_162 = arith.constant 0 : index
    %130 = vector.load %arg14[%c0_159, %c0_160, %c0_161, %c0_162] : memref<1x16x24x12xf32, #tpu.memory_space<vmem>>, vector<1x16x24x12xf32>
    tpu.vector_store %arg14[%c0_159, %c0_160, %c0_161, %c0_162], %129 {strides = array<i32>} : memref<1x16x24x12xf32, #tpu.memory_space<vmem>>, vector<1x16x24x12xf32>,
    return
  }
  func.func @transform_0(%arg0: i32) -> (i32, i32, i32, i32) {
    %c0_i32 = arith.constant 0 : i32
    %c0_i32_0 = arith.constant 0 : i32
    %c0_i32_1 = arith.constant 0 : i32
    %c0_i32_2 = arith.constant 0 : i32
    return %arg0, %c0_i32, %c0_i32_0, %c0_i32_1 : i32, i32, i32, i32
  }
  func.func @transform_1(%arg0: i32) -> (i32, i32) {
    %c0_i32 = arith.constant 0 : i32
    %c0_i32_0 = arith.constant 0 : i32
    %c0_i32_1 = arith.constant 0 : i32
    return %c0_i32, %c0_i32_0 : i32, i32
  }
  func.func @transform_2(%arg0: i32) -> (i32, i32) {
    %c0_i32 = arith.constant 0 : i32
    %c0_i32_0 = arith.constant 0 : i32
    %c0_i32_1 = arith.constant 0 : i32
    return %c0_i32, %c0_i32_0 : i32, i32
  }
  func.func @transform_3(%arg0: i32) -> (i32, i32, i32) {
    %c0_i32 = arith.constant 0 : i32
    %c0_i32_0 = arith.constant 0 : i32
    %c0_i32_1 = arith.constant 0 : i32
    %c0_i32_2 = arith.constant 0 : i32
    return %c0_i32, %c0_i32_0, %c0_i32_1 : i32, i32, i32
  }
  func.func @transform_4(%arg0: i32) -> (i32, i32, i32) {
    %c0_i32 = arith.constant 0 : i32
    %c0_i32_0 = arith.constant 0 : i32
    %c0_i32_1 = arith.constant 0 : i32
    %c0_i32_2 = arith.constant 0 : i32
    return %c0_i32, %c0_i32_0, %c0_i32_1 : i32, i32, i32
  }
  func.func @transform_5(%arg0: i32) -> (i32, i32, i32) {
    %c0_i32 = arith.constant 0 : i32
    %c0_i32_0 = arith.constant 0 : i32
    %c0_i32_1 = arith.constant 0 : i32
    %c0_i32_2 = arith.constant 0 : i32
    return %c0_i32, %c0_i32_0, %c0_i32_1 : i32, i32, i32
  }
  func.func @transform_6(%arg0: i32) -> (i32, i32, i32) {
    %c0_i32 = arith.constant 0 : i32
    %c0_i32_0 = arith.constant 0 : i32
    %c0_i32_1 = arith.constant 0 : i32
    %c0_i32_2 = arith.constant 0 : i32
    return %c0_i32, %c0_i32_0, %c0_i32_1 : i32, i32, i32
  }
  func.func @transform_7(%arg0: i32) -> (i32, i32, i32) {
    %c0_i32 = arith.constant 0 : i32
    %c0_i32_0 = arith.constant 0 : i32
    %c0_i32_1 = arith.constant 0 : i32
    %c0_i32_2 = arith.constant 0 : i32
    return %c0_i32, %c0_i32_0, %c0_i32_1 : i32, i32, i32
  }
  func.func @transform_8(%arg0: i32) -> (i32, i32, i32) {
    %c0_i32 = arith.constant 0 : i32
    %c0_i32_0 = arith.constant 0 : i32
    %c0_i32_1 = arith.constant 0 : i32
    %c0_i32_2 = arith.constant 0 : i32
    return %c0_i32, %c0_i32_0, %c0_i32_1 : i32, i32, i32
  }
  func.func @transform_9(%arg0: i32) -> (i32, i32, i32) {
    %c0_i32 = arith.constant 0 : i32
    %c0_i32_0 = arith.constant 0 : i32
    %c0_i32_1 = arith.constant 0 : i32
    %c0_i32_2 = arith.constant 0 : i32
    return %c0_i32, %c0_i32_0, %c0_i32_1 : i32, i32, i32
  }
  func.func @transform_10(%arg0: i32) -> (i32, i32, i32) {
    %c0_i32 = arith.constant 0 : i32
    %c0_i32_0 = arith.constant 0 : i32
    %c0_i32_1 = arith.constant 0 : i32
    %c0_i32_2 = arith.constant 0 : i32
    return %c0_i32, %c0_i32_0, %c0_i32_1 : i32, i32, i32
  }
  func.func @transform_11(%arg0: i32) -> (i32, i32) {
    %c0_i32 = arith.constant 0 : i32
    %c0_i32_0 = arith.constant 0 : i32
    %c0_i32_1 = arith.constant 0 : i32
    return %c0_i32, %c0_i32_0 : i32, i32
  }
  func.func @transform_12(%arg0: i32) -> (i32, i32) {
    %c0_i32 = arith.constant 0 : i32
    %c0_i32_0 = arith.constant 0 : i32
    %c0_i32_1 = arith.constant 0 : i32
    return %c0_i32, %c0_i32_0 : i32, i32
  }
  func.func @transform_13(%arg0: i32) -> (i32, i32, i32, i32) {
    %c0_i32 = arith.constant 0 : i32
    %c0_i32_0 = arith.constant 0 : i32
    %c0_i32_1 = arith.constant 0 : i32
    %c0_i32_2 = arith.constant 0 : i32
    return %arg0, %c0_i32, %c0_i32_0, %c0_i32_1 : i32, i32, i32, i32
  }
}

</mosaic_0001>

<llo_original>
// kernel: tpu_custom_call.1
$region0: #{tpu_custom_call.1}
  #allocation0 [shape = 'u32[]', space=smem, size = 0x4, offset = 0x4, fixed_abs, tag = 'smem constant byte address 0x4 - core index']
  #allocation1 [shape = 'u32[72,128]{1,0:T(1,128)}', space=vmem, size = 0x9000, scoped, tag = 'internal scratch']
  #allocation2 [shape = 'f32[1,24,24,12]{3,2,1,0:T(8,128)}', space=vmem, size = 0x48000, scoped, tag = 'scratch operand']
  #allocation3 [shape = 'f32[16,24,12]{2,1,0:T(8,128)}', space=vmem, size = 0x30000, scoped, tag = 'scratch operand']
  %s0 = inlined_call_operand.vmem [shape: bf16[2,16,24,8], index: 0, kind: input, shape index: {}]
  %s1 = inlined_call_operand.vmem [shape: bf16[8,12], index: 1, kind: input, shape index: {}]
  %s2 = inlined_call_operand.vmem [shape: f32[1,12], index: 2, kind: input, shape index: {}]
  %s3 = inlined_call_operand.vmem [shape: f32[1,24,1], index: 3, kind: input, shape index: {}]
  %s4 = inlined_call_operand.vmem [shape: f32[3,2,2], index: 4, kind: input, shape index: {}]
  %s5 = inlined_call_operand.vmem [shape: f32[3,2,2], index: 5, kind: input, shape index: {}]
  %s6 = inlined_call_operand.vmem [shape: f32[3,2,2], index: 6, kind: input, shape index: {}]
  %s7 = inlined_call_operand.vmem [shape: f32[3,2,2], index: 7, kind: input, shape index: {}]
  %s8 = inlined_call_operand.vmem [shape: f32[1,1,12], index: 8, kind: input, shape index: {}]
  %s9 = inlined_call_operand.vmem [shape: f32[1,1,12], index: 9, kind: input, shape index: {}]
  %s10 = inlined_call_operand.vmem [shape: f32[1,1,12], index: 10, kind: input, shape index: {}]
  %s11 = inlined_call_operand.vmem [shape: bf16[12,12], index: 11, kind: input, shape index: {}]
  %s12 = inlined_call_operand.vmem [shape: f32[1,12], index: 12, kind: input, shape index: {}]
  %s13 = inlined_call_operand.vmem [shape: f32[2,16,24,12], index: 13, kind: output, shape index: {}]
  %s14 = sld [smem:[#allocation0]]
  $region85: #{tpu_custom_call.1} parent=0
    _
  %s16 = ssub.s32 1, %s14
  %s17 = scalar_select 0, %s16, %s14
  loop: start=0, step=1, limit=4
  $region2: #{tpu_custom_call.1} parent=0 // loop_pre_header
    _
  $region3: #{tpu_custom_call.1} parent=0 // loop_header
    %s19 = sphi 0, %s23
    %p20 = scmp.ge.s32.totalorder %s19, 4
    %s29 = sphi 0, %s31
    %s32 = sphi 0, %s29
    %s33 = sphi 0, %s32
    %s49 = sphi 0, %s33
    %s53 = sphi 0, %s53
    %s55 = sphi 0, %s53
    %s56 = sphi 0, %s55
    %s70 = sphi 0, %s56
    %s74 = sphi 0, %s74
    %s76 = sphi 0, %s74
    %s77 = sphi 0, %s76
    %s91 = sphi 0, %s77
    %s95 = sphi 0, %s95
    %s97 = sphi 0, %s95
    %s98 = sphi 0, %s97
    %s112 = sphi 0, %s98
    %s116 = sphi 0, %s116
    %s118 = sphi 0, %s116
    %s119 = sphi 0, %s118
    %s133 = sphi 0, %s119
    %s137 = sphi 0, %s137
    %s139 = sphi 0, %s137
    %s140 = sphi 0, %s139
    %s154 = sphi 0, %s140
    %s158 = sphi 0, %s158
    %s160 = sphi 0, %s158
    %s161 = sphi 0, %s160
    %s175 = sphi 0, %s161
    %s179 = sphi 0, %s179
    %s181 = sphi 0, %s179
    %s182 = sphi 0, %s181
    %s196 = sphi 0, %s182
    %s200 = sphi 0, %s200
    %s202 = sphi 0, %s200
    %s203 = sphi 0, %s202
    %s217 = sphi 0, %s203
    %s221 = sphi 0, %s221
    %s223 = sphi 0, %s221
    %s224 = sphi 0, %s223
    %s238 = sphi 0, %s224
    %s242 = sphi 0, %s242
    %s244 = sphi 0, %s242
    %s245 = sphi 0, %s244
    %s259 = sphi 0, %s245
    %s263 = sphi 0, %s263
    %s265 = sphi 0, %s263
    %s266 = sphi 0, %s265
    %s280 = sphi 0, %s266
    %s284 = sphi 0, %s284
    %s286 = sphi 0, %s284
    %s287 = sphi 0, %s286
    %s301 = sphi 0, %s287
    %s307 = sphi 0, %s309
    %s310 = sphi 0, %s307
    %s311 = sphi 0, %s310
    %s327 = sphi 0, %s311
  $region4: #{tpu_custom_call.1} parent=0 // loop_header_branch
    %22 = sbr.rel (%p20) target = $region8
  $region5: #{tpu_custom_call.1} parent=0 // loop_body
    %s24 = ssub.s32 %s19, 1
    %s25 = ssub.s32 %s19, 2
    %s26 = sadd.s32 %s19, 1
    %s27 = ssub.s32 %s19, %s26
    %p28 = scmp.eq.s32.totalorder %s27, 0
    %s30 = sadd.s32 %s29, 1
    %s31 = scalar_select %p28, %s29, %s30
    %p34 = pneg %p28
    %p35 = scmp.eq.s32.totalorder %s19, 1
    %p36 = por %p34, %p35
    %p37 = scmp.ne.s32.totalorder %s29, %s32
    %p38 = scmp.eq.s32.totalorder %s19, 0
    %p39 = por %p37, %p38
    %p40 = scmp.ne.s32.totalorder %s29, %s32
    %p41 = scmp.eq.s32.totalorder %s24, 1
    %p42 = por %p40, %p41
    %p43 = scmp.ne.s32.totalorder %s32, %s33
    %p44 = scmp.eq.s32.totalorder %s24, 0
    %p45 = por %p43, %p44
    %p46 = scmp.ne.s32.totalorder %s32, %s33
    %p47 = scmp.eq.s32.totalorder %s25, 1
    %p48 = por %p46, %p47
    %p50 = scmp.ne.s32.totalorder %s33, %s49
    %p51 = scmp.eq.s32.totalorder %s25, 0
    %p52 = por %p50, %p51
    %s54 = sadd.s32 %s53, 1
    %p57 = scmp.eq.s32.totalorder %s19, 1
    %p58 = scmp.ne.s32.totalorder %s53, %s55
    %p59 = scmp.eq.s32.totalorder %s19, 0
    %p60 = por %p58, %p59
    %p61 = scmp.ne.s32.totalorder %s53, %s55
    %p62 = scmp.eq.s32.totalorder %s24, 1
    %p63 = por %p61, %p62
    %p64 = scmp.ne.s32.totalorder %s55, %s56
    %p65 = scmp.eq.s32.totalorder %s24, 0
    %p66 = por %p64, %p65
    %p67 = scmp.ne.s32.totalorder %s55, %s56
    %p68 = scmp.eq.s32.totalorder %s25, 1
    %p69 = por %p67, %p68
    %p71 = scmp.ne.s32.totalorder %s56, %s70
    %p72 = scmp.eq.s32.totalorder %s25, 0
    %p73 = por %p71, %p72
    %s75 = sadd.s32 %s74, 1
    %p78 = scmp.eq.s32.totalorder %s19, 1
    %p79 = scmp.ne.s32.totalorder %s74, %s76
    %p80 = scmp.eq.s32.totalorder %s19, 0
    %p81 = por %p79, %p80
    %p82 = scmp.ne.s32.totalorder %s74, %s76
    %p83 = scmp.eq.s32.totalorder %s24, 1
    %p84 = por %p82, %p83
    %p85 = scmp.ne.s32.totalorder %s76, %s77
    %p86 = scmp.eq.s32.totalorder %s24, 0
    %p87 = por %p85, %p86
    %p88 = scmp.ne.s32.totalorder %s76, %s77
    %p89 = scmp.eq.s32.totalorder %s25, 1
    %p90 = por %p88, %p89
    %p92 = scmp.ne.s32.totalorder %s77, %s91
    %p93 = scmp.eq.s32.totalorder %s25, 0
    %p94 = por %p92, %p93
    %s96 = sadd.s32 %s95, 1
    %p99 = scmp.eq.s32.totalorder %s19, 1
    %p100 = scmp.ne.s32.totalorder %s95, %s97
    %p101 = scmp.eq.s32.totalorder %s19, 0
    %p102 = por %p100, %p101
    %p103 = scmp.ne.s32.totalorder %s95, %s97
    %p104 = scmp.eq.s32.totalorder %s24, 1
    %p105 = por %p103, %p104
    %p106 = scmp.ne.s32.totalorder %s97, %s98
    %p107 = scmp.eq.s32.totalorder %s24, 0
    %p108 = por %p106, %p107
    %p109 = scmp.ne.s32.totalorder %s97, %s98
    %p110 = scmp.eq.s32.totalorder %s25, 1
    %p111 = por %p109, %p110
    %p113 = scmp.ne.s32.totalorder %s98, %s112
    %p114 = scmp.eq.s32.totalorder %s25, 0
    %p115 = por %p113, %p114
    %s117 = sadd.s32 %s116, 1
    %p120 = scmp.eq.s32.totalorder %s19, 1
    %p121 = scmp.ne.s32.totalorder %s116, %s118
    %p122 = scmp.eq.s32.totalorder %s19, 0
    %p123 = por %p121, %p122
    %p124 = scmp.ne.s32.totalorder %s116, %s118
    %p125 = scmp.eq.s32.totalorder %s24, 1
    %p126 = por %p124, %p125
    %p127 = scmp.ne.s32.totalorder %s118, %s119
    %p128 = scmp.eq.s32.totalorder %s24, 0
    %p129 = por %p127, %p128
    %p130 = scmp.ne.s32.totalorder %s118, %s119
    %p131 = scmp.eq.s32.totalorder %s25, 1
    %p132 = por %p130, %p131
    %p134 = scmp.ne.s32.totalorder %s119, %s133
    %p135 = scmp.eq.s32.totalorder %s25, 0
    %p136 = por %p134, %p135
    %s138 = sadd.s32 %s137, 1
    %p141 = scmp.eq.s32.totalorder %s19, 1
    %p142 = scmp.ne.s32.totalorder %s137, %s139
    %p143 = scmp.eq.s32.totalorder %s19, 0
    %p144 = por %p142, %p143
    %p145 = scmp.ne.s32.totalorder %s137, %s139
    %p146 = scmp.eq.s32.totalorder %s24, 1
    %p147 = por %p145, %p146
    %p148 = scmp.ne.s32.totalorder %s139, %s140
    %p149 = scmp.eq.s32.totalorder %s24, 0
    %p150 = por %p148, %p149
    %p151 = scmp.ne.s32.totalorder %s139, %s140
    %p152 = scmp.eq.s32.totalorder %s25, 1
    %p153 = por %p151, %p152
    %p155 = scmp.ne.s32.totalorder %s140, %s154
    %p156 = scmp.eq.s32.totalorder %s25, 0
    %p157 = por %p155, %p156
    %s159 = sadd.s32 %s158, 1
    %p162 = scmp.eq.s32.totalorder %s19, 1
    %p163 = scmp.ne.s32.totalorder %s158, %s160
    %p164 = scmp.eq.s32.totalorder %s19, 0
    %p165 = por %p163, %p164
    %p166 = scmp.ne.s32.totalorder %s158, %s160
    %p167 = scmp.eq.s32.totalorder %s24, 1
    %p168 = por %p166, %p167
    %p169 = scmp.ne.s32.totalorder %s160, %s161
    %p170 = scmp.eq.s32.totalorder %s24, 0
    %p171 = por %p169, %p170
    %p172 = scmp.ne.s32.totalorder %s160, %s161
    %p173 = scmp.eq.s32.totalorder %s25, 1
    %p174 = por %p172, %p173
    %p176 = scmp.ne.s32.totalorder %s161, %s175
    %p177 = scmp.eq.s32.totalorder %s25, 0
    %p178 = por %p176, %p177
    %s180 = sadd.s32 %s179, 1
    %p183 = scmp.eq.s32.totalorder %s19, 1
    %p184 = scmp.ne.s32.totalorder %s179, %s181
    %p185 = scmp.eq.s32.totalorder %s19, 0
    %p186 = por %p184, %p185
    %p187 = scmp.ne.s32.totalorder %s179, %s181
    %p188 = scmp.eq.s32.totalorder %s24, 1
    %p189 = por %p187, %p188
    %p190 = scmp.ne.s32.totalorder %s181, %s182
    %p191 = scmp.eq.s32.totalorder %s24, 0
    %p192 = por %p190, %p191
    %p193 = scmp.ne.s32.totalorder %s181, %s182
    %p194 = scmp.eq.s32.totalorder %s25, 1
    %p195 = por %p193, %p194
    %p197 = scmp.ne.s32.totalorder %s182, %s196
    %p198 = scmp.eq.s32.totalorder %s25, 0
    %p199 = por %p197, %p198
    %s201 = sadd.s32 %s200, 1
    %p204 = scmp.eq.s32.totalorder %s19, 1
    %p205 = scmp.ne.s32.totalorder %s200, %s202
    %p206 = scmp.eq.s32.totalorder %s19, 0
    %p207 = por %p205, %p206
    %p208 = scmp.ne.s32.totalorder %s200, %s202
    %p209 = scmp.eq.s32.totalorder %s24, 1
    %p210 = por %p208, %p209
    %p211 = scmp.ne.s32.totalorder %s202, %s203
    %p212 = scmp.eq.s32.totalorder %s24, 0
    %p213 = por %p211, %p212
    %p214 = scmp.ne.s32.totalorder %s202, %s203
    %p215 = scmp.eq.s32.totalorder %s25, 1
    %p216 = por %p214, %p215
    %p218 = scmp.ne.s32.totalorder %s203, %s217
    %p219 = scmp.eq.s32.totalorder %s25, 0
    %p220 = por %p218, %p219
    %s222 = sadd.s32 %s221, 1
    %p225 = scmp.eq.s32.totalorder %s19, 1
    %p226 = scmp.ne.s32.totalorder %s221, %s223
    %p227 = scmp.eq.s32.totalorder %s19, 0
    %p228 = por %p226, %p227
    %p229 = scmp.ne.s32.totalorder %s221, %s223
    %p230 = scmp.eq.s32.totalorder %s24, 1
    %p231 = por %p229, %p230
    %p232 = scmp.ne.s32.totalorder %s223, %s224
    %p233 = scmp.eq.s32.totalorder %s24, 0
    %p234 = por %p232, %p233
    %p235 = scmp.ne.s32.totalorder %s223, %s224
    %p236 = scmp.eq.s32.totalorder %s25, 1
    %p237 = por %p235, %p236
    %p239 = scmp.ne.s32.totalorder %s224, %s238
    %p240 = scmp.eq.s32.totalorder %s25, 0
    %p241 = por %p239, %p240
    %s243 = sadd.s32 %s242, 1
    %p246 = scmp.eq.s32.totalorder %s19, 1
    %p247 = scmp.ne.s32.totalorder %s242, %s244
    %p248 = scmp.eq.s32.totalorder %s19, 0
    %p249 = por %p247, %p248
    %p250 = scmp.ne.s32.totalorder %s242, %s244
    %p251 = scmp.eq.s32.totalorder %s24, 1
    %p252 = por %p250, %p251
    %p253 = scmp.ne.s32.totalorder %s244, %s245
    %p254 = scmp.eq.s32.totalorder %s24, 0
    %p255 = por %p253, %p254
    %p256 = scmp.ne.s32.totalorder %s244, %s245
    %p257 = scmp.eq.s32.totalorder %s25, 1
    %p258 = por %p256, %p257
    %p260 = scmp.ne.s32.totalorder %s245, %s259
    %p261 = scmp.eq.s32.totalorder %s25, 0
    %p262 = por %p260, %p261
    %s264 = sadd.s32 %s263, 1
    %p267 = scmp.eq.s32.totalorder %s19, 1
    %p268 = scmp.ne.s32.totalorder %s263, %s265
    %p269 = scmp.eq.s32.totalorder %s19, 0
    %p270 = por %p268, %p269
    %p271 = scmp.ne.s32.totalorder %s263, %s265
    %p272 = scmp.eq.s32.totalorder %s24, 1
    %p273 = por %p271, %p272
    %p274 = scmp.ne.s32.totalorder %s265, %s266
    %p275 = scmp.eq.s32.totalorder %s24, 0
    %p276 = por %p274, %p275
    %p277 = scmp.ne.s32.totalorder %s265, %s266
    %p278 = scmp.eq.s32.totalorder %s25, 1
    %p279 = por %p277, %p278
    %p281 = scmp.ne.s32.totalorder %s266, %s280
    %p282 = scmp.eq.s32.totalorder %s25, 0
    %p283 = por %p281, %p282
    %s285 = sadd.s32 %s284, 1
    %p288 = scmp.eq.s32.totalorder %s19, 1
    %p289 = scmp.ne.s32.totalorder %s284, %s286
    %p290 = scmp.eq.s32.totalorder %s19, 0
    %p291 = por %p289, %p290
    %p292 = scmp.ne.s32.totalorder %s284, %s286
    %p293 = scmp.eq.s32.totalorder %s24, 1
    %p294 = por %p292, %p293
    %p295 = scmp.ne.s32.totalorder %s286, %s287
    %p296 = scmp.eq.s32.totalorder %s24, 0
    %p297 = por %p295, %p296
    %p298 = scmp.ne.s32.totalorder %s286, %s287
    %p299 = scmp.eq.s32.totalorder %s25, 1
    %p300 = por %p298, %p299
    %p302 = scmp.ne.s32.totalorder %s287, %s301
    %p303 = scmp.eq.s32.totalorder %s25, 0
    %p304 = por %p302, %p303
    %s305 = ssub.s32 %s19, %s26
    %p306 = scmp.eq.s32.totalorder %s305, 0
    %s308 = sadd.s32 %s307, 1
    %s309 = scalar_select %p306, %s307, %s308
    %p312 = pneg %p306
    %p313 = scmp.eq.s32.totalorder %s19, 1
    %p314 = por %p312, %p313
    %p315 = scmp.ne.s32.totalorder %s307, %s310
    %p316 = scmp.eq.s32.totalorder %s19, 0
    %p317 = por %p315, %p316
    %p318 = scmp.ne.s32.totalorder %s307, %s310
    %p319 = scmp.eq.s32.totalorder %s24, 1
    %p320 = por %p318, %p319
    %p321 = scmp.ne.s32.totalorder %s310, %s311
    %p322 = scmp.eq.s32.totalorder %s24, 0
    %p323 = por %p321, %p322
    %p324 = scmp.ne.s32.totalorder %s310, %s311
    %p325 = scmp.eq.s32.totalorder %s25, 1
    %p326 = por %p324, %p325
    %p328 = scmp.ne.s32.totalorder %s311, %s327
    %p329 = scmp.eq.s32.totalorder %s25, 0
    %p330 = por %p328, %p329
    %p331 = scmp.le.s32.totalorder 1, %s19
    %p332 = scmp.lt.s32.totalorder %s19, 3
    %p333 = pnand %p331, %p332
    %p334 = pneg %p333
    // Predicated region
    $region9: #{tpu_custom_call.1} parent=5 // pred_check
      _
    $region10: #{tpu_custom_call.1} parent=5 // pred_check_branch
      %336 = sbr.rel (%p333) target = $region12
    $region11: #{tpu_custom_call.1} parent=5 // pred_region
      %s337 = ssub.s32 %s19, 1
      // Predicated region
      $region13: #{tpu_custom_call.1} parent=11 // pred_check
        %p338 = pneg %p66
      $region14: #{tpu_custom_call.1} parent=11 // pred_check_branch
        %340 = sbr.rel (%p338) target = $region16
      $region15: #{tpu_custom_call.1} parent=11 // pred_region
        _
      $region16: #{tpu_custom_call.1} parent=11 // pred_fallthru
        _
      // Predicated region
      $region17: #{tpu_custom_call.1} parent=11 // pred_check
        %p341 = pneg %p87
      $region18: #{tpu_custom_call.1} parent=11 // pred_check_branch
        %343 = sbr.rel (%p341) target = $region20
      $region19: #{tpu_custom_call.1} parent=11 // pred_region
        _
      $region20: #{tpu_custom_call.1} parent=11 // pred_fallthru
        _
      // Predicated region
      $region21: #{tpu_custom_call.1} parent=11 // pred_check
        %p344 = pneg %p108
      $region22: #{tpu_custom_call.1} parent=11 // pred_check_branch
        %346 = sbr.rel (%p344) target = $region24
      $region23: #{tpu_custom_call.1} parent=11 // pred_region
        _
      $region24: #{tpu_custom_call.1} parent=11 // pred_fallthru
        _
      // Predicated region
      $region25: #{tpu_custom_call.1} parent=11 // pred_check
        %p347 = pneg %p129
      $region26: #{tpu_custom_call.1} parent=11 // pred_check_branch
        %349 = sbr.rel (%p347) target = $region28
      $region27: #{tpu_custom_call.1} parent=11 // pred_region
        _
      $region28: #{tpu_custom_call.1} parent=11 // pred_fallthru
        _
      // Predicated region
      $region29: #{tpu_custom_call.1} parent=11 // pred_check
        %p350 = pneg %p150
      $region30: #{tpu_custom_call.1} parent=11 // pred_check_branch
        %352 = sbr.rel (%p350) target = $region32
      $region31: #{tpu_custom_call.1} parent=11 // pred_region
        _
      $region32: #{tpu_custom_call.1} parent=11 // pred_fallthru
        _
      // Predicated region
      $region33: #{tpu_custom_call.1} parent=11 // pred_check
        %p353 = pneg %p171
      $region34: #{tpu_custom_call.1} parent=11 // pred_check_branch
        %355 = sbr.rel (%p353) target = $region36
      $region35: #{tpu_custom_call.1} parent=11 // pred_region
        _
      $region36: #{tpu_custom_call.1} parent=11 // pred_fallthru
        _
      // Predicated region
      $region37: #{tpu_custom_call.1} parent=11 // pred_check
        %p356 = pneg %p192
      $region38: #{tpu_custom_call.1} parent=11 // pred_check_branch
        %358 = sbr.rel (%p356) target = $region40
      $region39: #{tpu_custom_call.1} parent=11 // pred_region
        _
      $region40: #{tpu_custom_call.1} parent=11 // pred_fallthru
        _
      // Predicated region
      $region41: #{tpu_custom_call.1} parent=11 // pred_check
        %p359 = pneg %p213
      $region42: #{tpu_custom_call.1} parent=11 // pred_check_branch
        %361 = sbr.rel (%p359) target = $region44
      $region43: #{tpu_custom_call.1} parent=11 // pred_region
        _
      $region44: #{tpu_custom_call.1} parent=11 // pred_fallthru
        _
      // Predicated region
      $region45: #{tpu_custom_call.1} parent=11 // pred_check
        %p362 = pneg %p234
      $region46: #{tpu_custom_call.1} parent=11 // pred_check_branch
        %364 = sbr.rel (%p362) target = $region48
      $region47: #{tpu_custom_call.1} parent=11 // pred_region
        _
      $region48: #{tpu_custom_call.1} parent=11 // pred_fallthru
        _
      // Predicated region
      $region49: #{tpu_custom_call.1} parent=11 // pred_check
        %p365 = pneg %p255
      $region50: #{tpu_custom_call.1} parent=11 // pred_check_branch
        %367 = sbr.rel (%p365) target = $region52
      $region51: #{tpu_custom_call.1} parent=11 // pred_region
        _
      $region52: #{tpu_custom_call.1} parent=11 // pred_fallthru
        _
      // Predicated region
      $region53: #{tpu_custom_call.1} parent=11 // pred_check
        %p368 = pneg %p276
      $region54: #{tpu_custom_call.1} parent=11 // pred_check_branch
        %370 = sbr.rel (%p368) target = $region56
      $region55: #{tpu_custom_call.1} parent=11 // pred_region
        _
      $region56: #{tpu_custom_call.1} parent=11 // pred_fallthru
        _
      // Predicated region
      $region57: #{tpu_custom_call.1} parent=11 // pred_check
        %p371 = pneg %p297
      $region58: #{tpu_custom_call.1} parent=11 // pred_check_branch
        %373 = sbr.rel (%p371) target = $region60
      $region59: #{tpu_custom_call.1} parent=11 // pred_region
        _
      $region60: #{tpu_custom_call.1} parent=11 // pred_fallthru
        _
    $region12: #{tpu_custom_call.1} parent=5 // pred_fallthru
      _
    %p374 = scmp.lt.s32.totalorder %s19, 2
    // Predicated region
    $region61: #{tpu_custom_call.1} parent=5 // pred_check
      %p375 = pneg %p374
    $region62: #{tpu_custom_call.1} parent=5 // pred_check_branch
      %377 = sbr.rel (%p375) target = $region64
    $region63: #{tpu_custom_call.1} parent=5 // pred_region
      // Predicated region
      $region65: #{tpu_custom_call.1} parent=63 // pred_check
        %p378 = pneg %p39
      $region66: #{tpu_custom_call.1} parent=63 // pred_check_branch
        %380 = sbr.rel (%p378) target = $region68
      $region67: #{tpu_custom_call.1} parent=63 // pred_region
        %p381 = scmp.lt.s32.totalorder %s19, 1
        %s382 = scalar_select %p381, %s19, 1
        %s383 = smul.addr %s382, 48
        %s384 = smul.addr %s383, 4
        %s385 = scalar_lea.vmem %s0, %s384
      $region68: #{tpu_custom_call.1} parent=63 // pred_fallthru
        _
    $region64: #{tpu_custom_call.1} parent=5 // pred_fallthru
      _
    %p386 = scmp.le.s32.totalorder 1, %s19
    %p387 = scmp.lt.s32.totalorder %s19, 3
    %p388 = pnand %p386, %p387
    %p389 = pneg %p388
    // Predicated region
    $region69: #{tpu_custom_call.1} parent=5 // pred_check
      _
    $region70: #{tpu_custom_call.1} parent=5 // pred_check_branch
      %391 = sbr.rel (%p388) target = $region72
    $region71: #{tpu_custom_call.1} parent=5 // pred_region
      %s392 = ssub.s32 %s19, 1
      %p393 = scmp.lt.s32.totalorder %s24, 1
      %s394 = scalar_select %p393, %s24, 1
      %s395 = smul.addr %s394, 48
      %s396 = smul.addr %s395, 4
      %s397 = scalar_lea.vmem %s0, %s396
      %p398 = pneg %p45
      %p399 = pneg %p42
      %p400 = pneg %p66
      %p401 = pneg %p63
      %p402 = pneg %p87
      %p403 = pneg %p84
      %p404 = pneg %p108
      %p405 = pneg %p105
      %p406 = pneg %p129
      %p407 = pneg %p126
      %p408 = pneg %p150
      %p409 = pneg %p147
      %p410 = pneg %p171
      %p411 = pneg %p168
      %p412 = pneg %p192
      %p413 = pneg %p189
      %p414 = pneg %p213
      %p415 = pneg %p210
      %p416 = pneg %p234
      %p417 = pneg %p231
      %p418 = pneg %p255
      %p419 = pneg %p252
      %p420 = pneg %p276
      %p421 = pneg %p273
      %p422 = pneg %p297
      %p423 = pneg %p294
      %p424 = pneg %p323
      %p425 = pneg %p320
      %p426 = scmp.lt.s32.totalorder %s24, 1
      %s427 = scalar_select %p426, %s24, 1
      %s428 = smul.addr %s427, 48
      %s429 = smul.addr %s428, 8
      %s430 = scalar_lea.vmem %s13, %s429
      %p431 = scmp.lt.s32.totalorder %s24, 1
      %s432 = scalar_select %p431, %s24, 1
      %s433 = smul.addr %s432, 48
      %s434 = smul.addr %s433, 4
      %s435 = scalar_lea.vmem %s0, %s434
      %p436 = scmp.lt.s32.totalorder %s24, 1
      %s437 = scalar_select %p436, %s24, 1
      %s438 = smul.addr %s437, 48
      %s439 = smul.addr %s438, 8
      %s440 = scalar_lea.vmem %s13, %s439
      %v442 = vld [vmem:[%s435] sm:$0xf]
      %v443 = vld [vmem:[%s435 + $0x4] sm:$0xf]
      %v444 = vld [vmem:[%s435 + $0x8] sm:$0xf]
      %v445 = vld [vmem:[%s435 + $0xc] sm:$0xf]
      %v446 = vld [vmem:[%s435 + $0x10] sm:$0xf]
      %v447 = vld [vmem:[%s435 + $0x14] sm:$0xf]
      %v448 = vld [vmem:[%s435 + $0x18] sm:$0xf]
      %v449 = vld [vmem:[%s435 + $0x1c] sm:$0xf]
      %v450 = vld [vmem:[%s435 + $0x20] sm:$0xf]
      %v451 = vld [vmem:[%s435 + $0x24] sm:$0xf]
      %v452 = vld [vmem:[%s435 + $0x28] sm:$0xf]
      %v453 = vld [vmem:[%s435 + $0x2c] sm:$0xf]
      %v454 = vld [vmem:[%s435 + $0x30] sm:$0xf]
      %v455 = vld [vmem:[%s435 + $0x34] sm:$0xf]
      %v456 = vld [vmem:[%s435 + $0x38] sm:$0xf]
      %v457 = vld [vmem:[%s435 + $0x3c] sm:$0xf]
      %v458 = vld [vmem:[%s435 + $0x40] sm:$0xf]
      %v459 = vld [vmem:[%s435 + $0x44] sm:$0xf]
      %v460 = vld [vmem:[%s435 + $0x48] sm:$0xf]
      %v461 = vld [vmem:[%s435 + $0x4c] sm:$0xf]
      %v462 = vld [vmem:[%s435 + $0x50] sm:$0xf]
      %v463 = vld [vmem:[%s435 + $0x54] sm:$0xf]
      %v464 = vld [vmem:[%s435 + $0x58] sm:$0xf]
      %v465 = vld [vmem:[%s435 + $0x5c] sm:$0xf]
      %v466 = vld [vmem:[%s435 + $0x60] sm:$0xf]
      %v467 = vld [vmem:[%s435 + $0x64] sm:$0xf]
      %v468 = vld [vmem:[%s435 + $0x68] sm:$0xf]
      %v469 = vld [vmem:[%s435 + $0x6c] sm:$0xf]
      %v470 = vld [vmem:[%s435 + $0x70] sm:$0xf]
      %v471 = vld [vmem:[%s435 + $0x74] sm:$0xf]
      %v472 = vld [vmem:[%s435 + $0x78] sm:$0xf]
      %v473 = vld [vmem:[%s435 + $0x7c] sm:$0xf]
      %v474 = vld [vmem:[%s435 + $0x80] sm:$0xf]
      %v475 = vld [vmem:[%s435 + $0x84] sm:$0xf]
      %v476 = vld [vmem:[%s435 + $0x88] sm:$0xf]
      %v477 = vld [vmem:[%s435 + $0x8c] sm:$0xf]
      %v478 = vld [vmem:[%s435 + $0x90] sm:$0xf]
      %v479 = vld [vmem:[%s435 + $0x94] sm:$0xf]
      %v480 = vld [vmem:[%s435 + $0x98] sm:$0xf]
      %v481 = vld [vmem:[%s435 + $0x9c] sm:$0xf]
      %v482 = vld [vmem:[%s435 + $0xa0] sm:$0xf]
      %v483 = vld [vmem:[%s435 + $0xa4] sm:$0xf]
      %v484 = vld [vmem:[%s435 + $0xa8] sm:$0xf]
      %v485 = vld [vmem:[%s435 + $0xac] sm:$0xf]
      %v486 = vld [vmem:[%s435 + $0xb0] sm:$0xf]
      %v487 = vld [vmem:[%s435 + $0xb4] sm:$0xf]
      %v488 = vld [vmem:[%s435 + $0xb8] sm:$0xf]
      %v489 = vld [vmem:[%s435 + $0xbc] sm:$0xf]
      %v490 = vld [vmem:[%s1] sm:$0xf]
      %v491 = vld [vmem:[%s2] sm:$0x1]
      %v493 = vperm.slane %v491, 0
      %v543 = vunpack.c.l.b16 %v442
      %v544 = vunpack.c.l.b16 %v443
      %v545 = vunpack.c.l.b16 %v444
      %v546 = vunpack.c.l.b16 %v445
      %v547 = vunpack.c.l.b16 %v446
      %v548 = vunpack.c.l.b16 %v447
      %v549 = vunpack.c.l.b16 %v448
      %v550 = vunpack.c.l.b16 %v449
      %v551 = vunpack.c.l.b16 %v450
      %v552 = vunpack.c.l.b16 %v451
      %v553 = vunpack.c.l.b16 %v452
      %v554 = vunpack.c.l.b16 %v453
      %v555 = vunpack.c.l.b16 %v454
      %v556 = vunpack.c.l.b16 %v455
      %v557 = vunpack.c.l.b16 %v456
      %v558 = vunpack.c.l.b16 %v457
      %v559 = vunpack.c.l.b16 %v458
      %v560 = vunpack.c.l.b16 %v459
      %v561 = vunpack.c.l.b16 %v460
      %v562 = vunpack.c.l.b16 %v461
      %v563 = vunpack.c.l.b16 %v462
      %v564 = vunpack.c.l.b16 %v463
      %v565 = vunpack.c.l.b16 %v464
      %v566 = vunpack.c.l.b16 %v465
      %v567 = vunpack.c.l.b16 %v466
      %v568 = vunpack.c.l.b16 %v467
      %v569 = vunpack.c.l.b16 %v468
      %v570 = vunpack.c.l.b16 %v469
      %v571 = vunpack.c.l.b16 %v470
      %v572 = vunpack.c.l.b16 %v471
      %v573 = vunpack.c.l.b16 %v472
      %v574 = vunpack.c.l.b16 %v473
      %v575 = vunpack.c.l.b16 %v474
      %v576 = vunpack.c.l.b16 %v475
      %v577 = vunpack.c.l.b16 %v476
      %v578 = vunpack.c.l.b16 %v477
      %v579 = vunpack.c.l.b16 %v478
      %v580 = vunpack.c.l.b16 %v479
      %v581 = vunpack.c.l.b16 %v480
      %v582 = vunpack.c.l.b16 %v481
      %v583 = vunpack.c.l.b16 %v482
      %v584 = vunpack.c.l.b16 %v483
      %v585 = vunpack.c.l.b16 %v484
      %v586 = vunpack.c.l.b16 %v485
      %v587 = vunpack.c.l.b16 %v486
      %v588 = vunpack.c.l.b16 %v487
      %v589 = vunpack.c.l.b16 %v488
      %v590 = vunpack.c.l.b16 %v489
      %v591 = vpack.c.b16 %v544, %v543
      %v592 = vpack.c.b16 %v546, %v545
      %v593 = vpack.c.b16 %v548, %v547
      %v594 = vpack.c.b16 %v550, %v549
      %v595 = vpack.c.b16 %v552, %v551
      %v596 = vpack.c.b16 %v554, %v553
      %v597 = vpack.c.b16 %v556, %v555
      %v598 = vpack.c.b16 %v558, %v557
      %v599 = vpack.c.b16 %v560, %v559
      %v600 = vpack.c.b16 %v562, %v561
      %v601 = vpack.c.b16 %v564, %v563
      %v602 = vpack.c.b16 %v566, %v565
      %v603 = vpack.c.b16 %v568, %v567
      %v604 = vpack.c.b16 %v570, %v569
      %v605 = vpack.c.b16 %v572, %v571
      %v606 = vpack.c.b16 %v574, %v573
      %v607 = vpack.c.b16 %v576, %v575
      %v608 = vpack.c.b16 %v578, %v577
      %v609 = vpack.c.b16 %v580, %v579
      %v610 = vpack.c.b16 %v582, %v581
      %v611 = vpack.c.b16 %v584, %v583
      %v612 = vpack.c.b16 %v586, %v585
      %v613 = vpack.c.b16 %v588, %v587
      %v614 = vpack.c.b16 %v590, %v589
      %vm615 = vcmask 64512
      %v617 = vsel %vm615, %v591, 0
      %v620 = vsel %vm615, %v592, 0
      %v623 = vsel %vm615, %v593, 0
      %v626 = vsel %vm615, %v594, 0
      %v629 = vsel %vm615, %v595, 0
      %v632 = vsel %vm615, %v596, 0
      %v635 = vsel %vm615, %v597, 0
      %v638 = vsel %vm615, %v598, 0
      %v641 = vsel %vm615, %v599, 0
      %v644 = vsel %vm615, %v600, 0
      %v647 = vsel %vm615, %v601, 0
      %v650 = vsel %vm615, %v602, 0
      %v653 = vsel %vm615, %v603, 0
      %v656 = vsel %vm615, %v604, 0
      %v659 = vsel %vm615, %v605, 0
      %v662 = vsel %vm615, %v606, 0
      %v665 = vsel %vm615, %v607, 0
      %v668 = vsel %vm615, %v608, 0
      %v671 = vsel %vm615, %v609, 0
      %v674 = vsel %vm615, %v610, 0
      %v677 = vsel %vm615, %v611, 0
      %v680 = vsel %vm615, %v612, 0
      %v683 = vsel %vm615, %v613, 0
      %v686 = vsel %vm615, %v614, 0
      %vm688 = vcmask 1043456
      %v690 = vsel %vm688, %v490, 0
      %692 = vmatpush.bf16.msra.mxu0 0
      %693 = vmatpush.bf16.msra.mxu0 0
      %694 = vmatpush.bf16.msra.mxu0 0
      %695 = vmatpush.bf16.msra.mxu0 0
      %696 = vmatpush.bf16.msra.mxu0 0
      %697 = vmatpush.bf16.msra.mxu0 0
      %698 = vmatpush.bf16.msra.mxu0 0
      %699 = vmatpush.bf16.msra.mxu0 %v690
      %700 = vmatmul.bf16.gmra.mxu0 %v617
      %v701 = vpop.f32.mrf.mxu0
      %v702 = vadd.f32 %v493, %v701
      %v703 = vpop.f32.mrf.mxu0
      %v704 = vadd.f32 %v493, %v703
      %705 = vmatmul.bf16.gmra.mxu0 %v620
      %v706 = vpop.f32.mrf.mxu0
      %v707 = vadd.f32 %v493, %v706
      %v708 = vpop.f32.mrf.mxu0
      %v709 = vadd.f32 %v493, %v708
      %710 = vmatmul.bf16.gmra.mxu0 %v623
      %v711 = vpop.f32.mrf.mxu0
      %v712 = vadd.f32 %v493, %v711
      %v713 = vpop.f32.mrf.mxu0
      %v714 = vadd.f32 %v493, %v713
      %715 = vmatmul.bf16.gmra.mxu0 %v626
      %v716 = vpop.f32.mrf.mxu0
      %v717 = vadd.f32 %v493, %v716
      %v718 = vpop.f32.mrf.mxu0
      %v719 = vadd.f32 %v493, %v718
      %720 = vmatmul.bf16.gmra.mxu0 %v629
      %v721 = vpop.f32.mrf.mxu0
      %v722 = vadd.f32 %v493, %v721
      %v723 = vpop.f32.mrf.mxu0
      %v724 = vadd.f32 %v493, %v723
      %725 = vmatmul.bf16.gmra.mxu0 %v632
      %v726 = vpop.f32.mrf.mxu0
      %v727 = vadd.f32 %v493, %v726
      %v728 = vpop.f32.mrf.mxu0
      %v729 = vadd.f32 %v493, %v728
      %730 = vmatmul.bf16.gmra.mxu0 %v635
      %v731 = vpop.f32.mrf.mxu0
      %v732 = vadd.f32 %v493, %v731
      %v733 = vpop.f32.mrf.mxu0
      %v734 = vadd.f32 %v493, %v733
      %735 = vmatmul.bf16.gmra.mxu0 %v638
      %v736 = vpop.f32.mrf.mxu0
      %v737 = vadd.f32 %v493, %v736
      %v738 = vpop.f32.mrf.mxu0
      %v739 = vadd.f32 %v493, %v738
      %740 = vmatmul.bf16.gmra.mxu0 %v641
      %v741 = vpop.f32.mrf.mxu0
      %v742 = vadd.f32 %v493, %v741
      %v743 = vpop.f32.mrf.mxu0
      %v744 = vadd.f32 %v493, %v743
      %745 = vmatmul.bf16.gmra.mxu0 %v644
      %v746 = vpop.f32.mrf.mxu0
      %v747 = vadd.f32 %v493, %v746
      %v748 = vpop.f32.mrf.mxu0
      %v749 = vadd.f32 %v493, %v748
      %750 = vmatmul.bf16.gmra.mxu0 %v647
      %v751 = vpop.f32.mrf.mxu0
      %v752 = vadd.f32 %v493, %v751
      %v753 = vpop.f32.mrf.mxu0
      %v754 = vadd.f32 %v493, %v753
      %755 = vmatmul.bf16.gmra.mxu0 %v650
      %v756 = vpop.f32.mrf.mxu0
      %v757 = vadd.f32 %v493, %v756
      %v758 = vpop.f32.mrf.mxu0
      %v759 = vadd.f32 %v493, %v758
      %760 = vmatmul.bf16.gmra.mxu0 %v653
      %v761 = vpop.f32.mrf.mxu0
      %v762 = vadd.f32 %v493, %v761
      %v763 = vpop.f32.mrf.mxu0
      %v764 = vadd.f32 %v493, %v763
      %765 = vmatmul.bf16.gmra.mxu0 %v656
      %v766 = vpop.f32.mrf.mxu0
      %v767 = vadd.f32 %v493, %v766
      %v768 = vpop.f32.mrf.mxu0
      %v769 = vadd.f32 %v493, %v768
      %770 = vmatmul.bf16.gmra.mxu0 %v659
      %v771 = vpop.f32.mrf.mxu0
      %v772 = vadd.f32 %v493, %v771
      %v773 = vpop.f32.mrf.mxu0
      %v774 = vadd.f32 %v493, %v773
      %775 = vmatmul.bf16.gmra.mxu0 %v662
      %v776 = vpop.f32.mrf.mxu0
      %v777 = vadd.f32 %v493, %v776
      %v778 = vpop.f32.mrf.mxu0
      %v779 = vadd.f32 %v493, %v778
      %780 = vmatmul.bf16.gmra.mxu0 %v665
      %v781 = vpop.f32.mrf.mxu0
      %v782 = vadd.f32 %v493, %v781
      %v783 = vpop.f32.mrf.mxu0
      %v784 = vadd.f32 %v493, %v783
      %785 = vmatmul.bf16.gmra.mxu0 %v668
      %v786 = vpop.f32.mrf.mxu0
      %v787 = vadd.f32 %v493, %v786
      %v788 = vpop.f32.mrf.mxu0
      %v789 = vadd.f32 %v493, %v788
      %790 = vmatmul.bf16.gmra.mxu0 %v671
      %v791 = vpop.f32.mrf.mxu0
      %v792 = vadd.f32 %v493, %v791
      %v793 = vpop.f32.mrf.mxu0
      %v794 = vadd.f32 %v493, %v793
      %795 = vmatmul.bf16.gmra.mxu0 %v674
      %v796 = vpop.f32.mrf.mxu0
      %v797 = vadd.f32 %v493, %v796
      %v798 = vpop.f32.mrf.mxu0
      %v799 = vadd.f32 %v493, %v798
      %800 = vmatmul.bf16.gmra.mxu0 %v677
      %v801 = vpop.f32.mrf.mxu0
      %v802 = vadd.f32 %v493, %v801
      %v803 = vpop.f32.mrf.mxu0
      %v804 = vadd.f32 %v493, %v803
      %805 = vmatmul.bf16.gmra.mxu0 %v680
      %v806 = vpop.f32.mrf.mxu0
      %v807 = vadd.f32 %v493, %v806
      %v808 = vpop.f32.mrf.mxu0
      %v809 = vadd.f32 %v493, %v808
      %810 = vmatmul.bf16.gmra.mxu0 %v683
      %v811 = vpop.f32.mrf.mxu0
      %v812 = vadd.f32 %v493, %v811
      %v813 = vpop.f32.mrf.mxu0
      %v814 = vadd.f32 %v493, %v813
      %815 = vmatmul.bf16.gmra.mxu0 %v686
      %v816 = vpop.f32.mrf.mxu0
      %v817 = vadd.f32 %v493, %v816
      %v818 = vpop.f32.mrf.mxu0
      %v819 = vadd.f32 %v493, %v818
      %820 = vdwg.mxu0
      %v821 = vlaneseq
      %v822 = vand.u32 %v821, 127
      %vm823 = vcmp.lt.s32.totalorder %v822, 10
      %v824 = vmax.f32 %v702, 0.0
      %v825 = vmax.f32 %v704, 0.0
      %v826 = vmax.f32 %v707, 0.0
      %v827 = vmax.f32 %v709, 0.0
      %v828 = vmax.f32 %v712, 0.0
      %v829 = vmax.f32 %v714, 0.0
      %v830 = vmax.f32 %v717, 0.0
      %v831 = vmax.f32 %v719, 0.0
      %v832 = vmax.f32 %v722, 0.0
      %v833 = vmax.f32 %v724, 0.0
      %v834 = vmax.f32 %v727, 0.0
      %v835 = vmax.f32 %v729, 0.0
      %v836 = vmax.f32 %v732, 0.0
      %v837 = vmax.f32 %v734, 0.0
      %v838 = vmax.f32 %v737, 0.0
      %v839 = vmax.f32 %v739, 0.0
      %v840 = vmax.f32 %v742, 0.0
      %v841 = vmax.f32 %v744, 0.0
      %v842 = vmax.f32 %v747, 0.0
      %v843 = vmax.f32 %v749, 0.0
      %v844 = vmax.f32 %v752, 0.0
      %v845 = vmax.f32 %v754, 0.0
      %v846 = vmax.f32 %v757, 0.0
      %v847 = vmax.f32 %v759, 0.0
      %v848 = vmax.f32 %v762, 0.0
      %v849 = vmax.f32 %v764, 0.0
      %v850 = vmax.f32 %v767, 0.0
      %v851 = vmax.f32 %v769, 0.0
      %v852 = vmax.f32 %v772, 0.0
      %v853 = vmax.f32 %v774, 0.0
      %v854 = vmax.f32 %v777, 0.0
      %v855 = vmax.f32 %v779, 0.0
      %v856 = vmax.f32 %v782, 0.0
      %v857 = vmax.f32 %v784, 0.0
      %v858 = vmax.f32 %v787, 0.0
      %v859 = vmax.f32 %v789, 0.0
      %v860 = vmax.f32 %v792, 0.0
      %v861 = vmax.f32 %v794, 0.0
      %v862 = vmax.f32 %v797, 0.0
      %v863 = vmax.f32 %v799, 0.0
      %v864 = vmax.f32 %v802, 0.0
      %v865 = vmax.f32 %v804, 0.0
      %v866 = vmax.f32 %v807, 0.0
      %v867 = vmax.f32 %v809, 0.0
      %v868 = vmax.f32 %v812, 0.0
      %v869 = vmax.f32 %v814, 0.0
      %v870 = vmax.f32 %v817, 0.0
      %v871 = vmax.f32 %v819, 0.0
      %v872 = vsel %vm823, 1, 0
      %vm873 = vcmp.eq.s32.totalorder %v872, 1
      %v874 = vsel %vm873, %v824, %v702
      %v875 = vsel %vm873, %v825, %v704
      %v876 = vsel %vm873, %v826, %v707
      %v877 = vsel %vm873, %v827, %v709
      %v878 = vsel %vm873, %v828, %v712
      %v879 = vsel %vm873, %v829, %v714
      %v880 = vsel %vm873, %v830, %v717
      %v881 = vsel %vm873, %v831, %v719
      %v882 = vsel %vm873, %v832, %v722
      %v883 = vsel %vm873, %v833, %v724
      %v884 = vsel %vm873, %v834, %v727
      %v885 = vsel %vm873, %v835, %v729
      %v886 = vsel %vm873, %v836, %v732
      %v887 = vsel %vm873, %v837, %v734
      %v888 = vsel %vm873, %v838, %v737
      %v889 = vsel %vm873, %v839, %v739
      %v890 = vsel %vm873, %v840, %v742
      %v891 = vsel %vm873, %v841, %v744
      %v892 = vsel %vm873, %v842, %v747
      %v893 = vsel %vm873, %v843, %v749
      %v894 = vsel %vm873, %v844, %v752
      %v895 = vsel %vm873, %v845, %v754
      %v896 = vsel %vm873, %v846, %v757
      %v897 = vsel %vm873, %v847, %v759
      %v898 = vsel %vm873, %v848, %v762
      %v899 = vsel %vm873, %v849, %v764
      %v900 = vsel %vm873, %v850, %v767
      %v901 = vsel %vm873, %v851, %v769
      %v902 = vsel %vm873, %v852, %v772
      %v903 = vsel %vm873, %v853, %v774
      %v904 = vsel %vm873, %v854, %v777
      %v905 = vsel %vm873, %v855, %v779
      %v906 = vsel %vm873, %v856, %v782
      %v907 = vsel %vm873, %v857, %v784
      %v908 = vsel %vm873, %v858, %v787
      %v909 = vsel %vm873, %v859, %v789
      %v910 = vsel %vm873, %v860, %v792
      %v911 = vsel %vm873, %v861, %v794
      %v912 = vsel %vm873, %v862, %v797
      %v913 = vsel %vm873, %v863, %v799
      %v914 = vsel %vm873, %v864, %v802
      %v915 = vsel %vm873, %v865, %v804
      %v916 = vsel %vm873, %v866, %v807
      %v917 = vsel %vm873, %v867, %v809
      %v918 = vsel %vm873, %v868, %v812
      %v919 = vsel %vm873, %v869, %v814
      %v920 = vsel %vm873, %v870, %v817
      %v921 = vsel %vm873, %v871, %v819
      %vm922 = vcmask 97280
      %923 = vst.msk [vmem:[#allocation3] sm:$0xff] %vm922, %v874
      %924 = vst.msk [vmem:[#allocation3 + $0x8] sm:$0xff] %vm922, %v875
      %925 = vst.msk [vmem:[#allocation3 + $0x10] sm:$0xff] %vm922, %v876
      %926 = vst.msk [vmem:[#allocation3 + $0x18] sm:$0xff] %vm922, %v877
      %927 = vst.msk [vmem:[#allocation3 + $0x20] sm:$0xff] %vm922, %v878
      %928 = vst.msk [vmem:[#allocation3 + $0x28] sm:$0xff] %vm922, %v879
      %929 = vst.msk [vmem:[#allocation3 + $0x30] sm:$0xff] %vm922, %v880
      %930 = vst.msk [vmem:[#allocation3 + $0x38] sm:$0xff] %vm922, %v881
      %931 = vst.msk [vmem:[#allocation3 + $0x40] sm:$0xff] %vm922, %v882
      %932 = vst.msk [vmem:[#allocation3 + $0x48] sm:$0xff] %vm922, %v883
      %933 = vst.msk [vmem:[#allocation3 + $0x50] sm:$0xff] %vm922, %v884
      %934 = vst.msk [vmem:[#allocation3 + $0x58] sm:$0xff] %vm922, %v885
      %935 = vst.msk [vmem:[#allocation3 + $0x60] sm:$0xff] %vm922, %v886
      %936 = vst.msk [vmem:[#allocation3 + $0x68] sm:$0xff] %vm922, %v887
      %937 = vst.msk [vmem:[#allocation3 + $0x70] sm:$0xff] %vm922, %v888
      %938 = vst.msk [vmem:[#allocation3 + $0x78] sm:$0xff] %vm922, %v889
      %939 = vst.msk [vmem:[#allocation3 + $0x80] sm:$0xff] %vm922, %v890
      %940 = vst.msk [vmem:[#allocation3 + $0x88] sm:$0xff] %vm922, %v891
      %941 = vst.msk [vmem:[#allocation3 + $0x90] sm:$0xff] %vm922, %v892
      %942 = vst.msk [vmem:[#allocation3 + $0x98] sm:$0xff] %vm922, %v893
      %943 = vst.msk [vmem:[#allocation3 + $0xa0] sm:$0xff] %vm922, %v894
      %944 = vst.msk [vmem:[#allocation3 + $0xa8] sm:$0xff] %vm922, %v895
      %945 = vst.msk [vmem:[#allocation3 + $0xb0] sm:$0xff] %vm922, %v896
      %946 = vst.msk [vmem:[#allocation3 + $0xb8] sm:$0xff] %vm922, %v897
      %947 = vst.msk [vmem:[#allocation3 + $0xc0] sm:$0xff] %vm922, %v898
      %948 = vst.msk [vmem:[#allocation3 + $0xc8] sm:$0xff] %vm922, %v899
      %949 = vst.msk [vmem:[#allocation3 + $0xd0] sm:$0xff] %vm922, %v900
      %950 = vst.msk [vmem:[#allocation3 + $0xd8] sm:$0xff] %vm922, %v901
      %951 = vst.msk [vmem:[#allocation3 + $0xe0] sm:$0xff] %vm922, %v902
      %952 = vst.msk [vmem:[#allocation3 + $0xe8] sm:$0xff] %vm922, %v903
      %953 = vst.msk [vmem:[#allocation3 + $0xf0] sm:$0xff] %vm922, %v904
      %954 = vst.msk [vmem:[#allocation3 + $0xf8] sm:$0xff] %vm922, %v905
      %955 = vst.msk [vmem:[#allocation3 + $0x100] sm:$0xff] %vm922, %v906
      %956 = vst.msk [vmem:[#allocation3 + $0x108] sm:$0xff] %vm922, %v907
      %957 = vst.msk [vmem:[#allocation3 + $0x110] sm:$0xff] %vm922, %v908
      %958 = vst.msk [vmem:[#allocation3 + $0x118] sm:$0xff] %vm922, %v909
      %959 = vst.msk [vmem:[#allocation3 + $0x120] sm:$0xff] %vm922, %v910
      %960 = vst.msk [vmem:[#allocation3 + $0x128] sm:$0xff] %vm922, %v911
      %961 = vst.msk [vmem:[#allocation3 + $0x130] sm:$0xff] %vm922, %v912
      %962 = vst.msk [vmem:[#allocation3 + $0x138] sm:$0xff] %vm922, %v913
      %963 = vst.msk [vmem:[#allocation3 + $0x140] sm:$0xff] %vm922, %v914
      %964 = vst.msk [vmem:[#allocation3 + $0x148] sm:$0xff] %vm922, %v915
      %965 = vst.msk [vmem:[#allocation3 + $0x150] sm:$0xff] %vm922, %v916
      %966 = vst.msk [vmem:[#allocation3 + $0x158] sm:$0xff] %vm922, %v917
      %967 = vst.msk [vmem:[#allocation3 + $0x160] sm:$0xff] %vm922, %v918
      %968 = vst.msk [vmem:[#allocation3 + $0x168] sm:$0xff] %vm922, %v919
      %969 = vst.msk [vmem:[#allocation3 + $0x170] sm:$0xff] %vm922, %v920
      %970 = vst.msk [vmem:[#allocation3 + $0x178] sm:$0xff] %vm922, %v921
      %971 = vst.msk [vmem:[#allocation2] sm:$0xff] %vm922, 0.0
      %972 = vst.msk [vmem:[#allocation2 + $0x8] sm:$0xff] %vm922, 0.0
      %973 = vst.msk [vmem:[#allocation2 + $0x10] sm:$0xff] %vm922, 0.0
      %974 = vst.msk [vmem:[#allocation2 + $0x18] sm:$0xff] %vm922, 0.0
      %975 = vst.msk [vmem:[#allocation2 + $0x20] sm:$0xff] %vm922, 0.0
      %976 = vst.msk [vmem:[#allocation2 + $0x28] sm:$0xff] %vm922, 0.0
      %977 = vst.msk [vmem:[#allocation2 + $0x30] sm:$0xff] %vm922, 0.0
      %978 = vst.msk [vmem:[#allocation2 + $0x38] sm:$0xff] %vm922, 0.0
      %979 = vst.msk [vmem:[#allocation2 + $0x40] sm:$0xff] %vm922, 0.0
      %980 = vst.msk [vmem:[#allocation2 + $0x48] sm:$0xff] %vm922, 0.0
      %981 = vst.msk [vmem:[#allocation2 + $0x50] sm:$0xff] %vm922, 0.0
      %982 = vst.msk [vmem:[#allocation2 + $0x58] sm:$0xff] %vm922, 0.0
      %s983 = scalar_lea.vmem [#allocation2], 480
      %984 = vst.msk [vmem:[%s983] sm:$0xff] %vm922, 0.0
      %985 = vst.msk [vmem:[%s983 + $0x8] sm:$0xff] %vm922, 0.0
      %986 = vst.msk [vmem:[%s983 + $0x10] sm:$0xff] %vm922, 0.0
      %987 = vst.msk [vmem:[%s983 + $0x18] sm:$0xff] %vm922, 0.0
      %988 = vst.msk [vmem:[%s983 + $0x20] sm:$0xff] %vm922, 0.0
      %989 = vst.msk [vmem:[%s983 + $0x28] sm:$0xff] %vm922, 0.0
      %990 = vst.msk [vmem:[%s983 + $0x30] sm:$0xff] %vm922, 0.0
      %991 = vst.msk [vmem:[%s983 + $0x38] sm:$0xff] %vm922, 0.0
      %992 = vst.msk [vmem:[%s983 + $0x40] sm:$0xff] %vm922, 0.0
      %993 = vst.msk [vmem:[%s983 + $0x48] sm:$0xff] %vm922, 0.0
      %994 = vst.msk [vmem:[%s983 + $0x50] sm:$0xff] %vm922, 0.0
      %995 = vst.msk [vmem:[%s983 + $0x58] sm:$0xff] %vm922, 0.0
      %s996 = scalar_lea.vmem [#allocation2], 96
      %997 = vst.msk [vmem:[%s996] sm:$0xff] %vm922, %v874
      %998 = vst.msk [vmem:[%s996 + $0x8] sm:$0xff] %vm922, %v875
      %999 = vst.msk [vmem:[%s996 + $0x10] sm:$0xff] %vm922, %v876
      %1000 = vst.msk [vmem:[%s996 + $0x18] sm:$0xff] %vm922, %v877
      %1001 = vst.msk [vmem:[%s996 + $0x20] sm:$0xff] %vm922, %v878
      %1002 = vst.msk [vmem:[%s996 + $0x28] sm:$0xff] %vm922, %v879
      %1003 = vst.msk [vmem:[%s996 + $0x30] sm:$0xff] %vm922, %v880
      %1004 = vst.msk [vmem:[%s996 + $0x38] sm:$0xff] %vm922, %v881
      %1005 = vst.msk [vmem:[%s996 + $0x40] sm:$0xff] %vm922, %v882
      %1006 = vst.msk [vmem:[%s996 + $0x48] sm:$0xff] %vm922, %v883
      %1007 = vst.msk [vmem:[%s996 + $0x50] sm:$0xff] %vm922, %v884
      %1008 = vst.msk [vmem:[%s996 + $0x58] sm:$0xff] %vm922, %v885
      %1009 = vst.msk [vmem:[%s996 + $0x60] sm:$0xff] %vm922, %v886
      %1010 = vst.msk [vmem:[%s996 + $0x68] sm:$0xff] %vm922, %v887
      %1011 = vst.msk [vmem:[%s996 + $0x70] sm:$0xff] %vm922, %v888
      %1012 = vst.msk [vmem:[%s996 + $0x78] sm:$0xff] %vm922, %v889
      %1013 = vst.msk [vmem:[%s996 + $0x80] sm:$0xff] %vm922, %v890
      %1014 = vst.msk [vmem:[%s996 + $0x88] sm:$0xff] %vm922, %v891
      %1015 = vst.msk [vmem:[%s996 + $0x90] sm:$0xff] %vm922, %v892
      %1016 = vst.msk [vmem:[%s996 + $0x98] sm:$0xff] %vm922, %v893
      %1017 = vst.msk [vmem:[%s996 + $0xa0] sm:$0xff] %vm922, %v894
      %1018 = vst.msk [vmem:[%s996 + $0xa8] sm:$0xff] %vm922, %v895
      %1019 = vst.msk [vmem:[%s996 + $0xb0] sm:$0xff] %vm922, %v896
      %1020 = vst.msk [vmem:[%s996 + $0xb8] sm:$0xff] %vm922, %v897
      %1021 = vst.msk [vmem:[%s996 + $0xc0] sm:$0xff] %vm922, %v898
      %1022 = vst.msk [vmem:[%s996 + $0xc8] sm:$0xff] %vm922, %v899
      %1023 = vst.msk [vmem:[%s996 + $0xd0] sm:$0xff] %vm922, %v900
      %1024 = vst.msk [vmem:[%s996 + $0xd8] sm:$0xff] %vm922, %v901
      %1025 = vst.msk [vmem:[%s996 + $0xe0] sm:$0xff] %vm922, %v902
      %1026 = vst.msk [vmem:[%s996 + $0xe8] sm:$0xff] %vm922, %v903
      %1027 = vst.msk [vmem:[%s996 + $0xf0] sm:$0xff] %vm922, %v904
      %1028 = vst.msk [vmem:[%s996 + $0xf8] sm:$0xff] %vm922, %v905
      %1029 = vst.msk [vmem:[%s996 + $0x100] sm:$0xff] %vm922, %v906
      %1030 = vst.msk [vmem:[%s996 + $0x108] sm:$0xff] %vm922, %v907
      %1031 = vst.msk [vmem:[%s996 + $0x110] sm:$0xff] %vm922, %v908
      %1032 = vst.msk [vmem:[%s996 + $0x118] sm:$0xff] %vm922, %v909
      %1033 = vst.msk [vmem:[%s996 + $0x120] sm:$0xff] %vm922, %v910
      %1034 = vst.msk [vmem:[%s996 + $0x128] sm:$0xff] %vm922, %v911
      %1035 = vst.msk [vmem:[%s996 + $0x130] sm:$0xff] %vm922, %v912
      %1036 = vst.msk [vmem:[%s996 + $0x138] sm:$0xff] %vm922, %v913
      %1037 = vst.msk [vmem:[%s996 + $0x140] sm:$0xff] %vm922, %v914
      %1038 = vst.msk [vmem:[%s996 + $0x148] sm:$0xff] %vm922, %v915
      %1039 = vst.msk [vmem:[%s996 + $0x150] sm:$0xff] %vm922, %v916
      %1040 = vst.msk [vmem:[%s996 + $0x158] sm:$0xff] %vm922, %v917
      %1041 = vst.msk [vmem:[%s996 + $0x160] sm:$0xff] %vm922, %v918
      %1042 = vst.msk [vmem:[%s996 + $0x168] sm:$0xff] %vm922, %v919
      %1043 = vst.msk [vmem:[%s996 + $0x170] sm:$0xff] %vm922, %v920
      %1044 = vst.msk [vmem:[%s996 + $0x178] sm:$0xff] %vm922, %v921
      %s1045 = scalar_lea.vmem [#allocation2], 72
      %v1046 = vld [vmem:[%s1045] sm:$0xff]
      %v1047 = vld [vmem:[%s1045 + $0x8] sm:$0xff]
      %v1048 = vld [vmem:[%s1045 + $0x10] sm:$0xff]
      %v1049 = vld [vmem:[%s1045 + $0x18] sm:$0xff]
      %v1050 = vld [vmem:[%s1045 + $0x20] sm:$0xff]
      %v1051 = vld [vmem:[%s1045 + $0x28] sm:$0xff]
      %v1052 = vld [vmem:[%s1045 + $0x30] sm:$0xff]
      %v1053 = vld [vmem:[%s1045 + $0x38] sm:$0xff]
      %v1054 = vld [vmem:[%s1045 + $0x40] sm:$0xff]
      %v1055 = vld [vmem:[%s1045 + $0x48] sm:$0xff]
      %v1056 = vld [vmem:[%s1045 + $0x50] sm:$0xff]
      %v1057 = vld [vmem:[%s1045 + $0x58] sm:$0xff]
      %v1058 = vld [vmem:[%s1045 + $0x60] sm:$0xff]
      %v1059 = vld [vmem:[%s1045 + $0x68] sm:$0xff]
      %v1060 = vld [vmem:[%s1045 + $0x70] sm:$0xff]
      %v1061 = vld [vmem:[%s1045 + $0x78] sm:$0xff]
      %v1062 = vld [vmem:[%s1045 + $0x80] sm:$0xff]
      %v1063 = vld [vmem:[%s1045 + $0x88] sm:$0xff]
      %v1064 = vld [vmem:[%s1045 + $0x90] sm:$0xff]
      %v1065 = vld [vmem:[%s1045 + $0x98] sm:$0xff]
      %v1066 = vld [vmem:[%s1045 + $0xa0] sm:$0xff]
      %v1067 = vld [vmem:[%s1045 + $0xa8] sm:$0xff]
      %v1068 = vld [vmem:[%s1045 + $0xb0] sm:$0xff]
      %v1069 = vld [vmem:[%s1045 + $0xb8] sm:$0xff]
      %v1070 = vld [vmem:[%s1045 + $0xc0] sm:$0xff]
      %v1071 = vld [vmem:[%s1045 + $0xc8] sm:$0xff]
      %v1072 = vld [vmem:[%s1045 + $0xd0] sm:$0xff]
      %v1073 = vld [vmem:[%s1045 + $0xd8] sm:$0xff]
      %v1074 = vld [vmem:[%s1045 + $0xe0] sm:$0xff]
      %v1075 = vld [vmem:[%s1045 + $0xe8] sm:$0xff]
      %v1076 = vld [vmem:[%s1045 + $0xf0] sm:$0xff]
      %v1077 = vld [vmem:[%s1045 + $0xf8] sm:$0xff]
      %v1078 = vld [vmem:[%s1045 + $0x100] sm:$0xff]
      %v1079 = vld [vmem:[%s1045 + $0x108] sm:$0xff]
      %v1080 = vld [vmem:[%s1045 + $0x110] sm:$0xff]
      %v1081 = vld [vmem:[%s1045 + $0x118] sm:$0xff]
      %v1082 = vld [vmem:[%s1045 + $0x120] sm:$0xff]
      %v1083 = vld [vmem:[%s1045 + $0x128] sm:$0xff]
      %v1084 = vld [vmem:[%s1045 + $0x130] sm:$0xff]
      %v1085 = vld [vmem:[%s1045 + $0x138] sm:$0xff]
      %v1086 = vld [vmem:[%s1045 + $0x140] sm:$0xff]
      %v1087 = vld [vmem:[%s1045 + $0x148] sm:$0xff]
      %v1088 = vld [vmem:[%s1045 + $0x150] sm:$0xff]
      %v1089 = vld [vmem:[%s1045 + $0x158] sm:$0xff]
      %v1090 = vld [vmem:[%s1045 + $0x160] sm:$0xff]
      %v1091 = vld [vmem:[%s1045 + $0x168] sm:$0xff]
      %v1092 = vld [vmem:[%s1045 + $0x170] sm:$0xff]
      %v1093 = vld [vmem:[%s1045 + $0x178] sm:$0xff]
      %v1094 = vld [vmem:[%s4] sm:$0x3]
      %v1095 = vld [vmem:[%s996] sm:$0xff]
      %v1096 = vld [vmem:[%s996 + $0x8] sm:$0xff]
      %v1097 = vld [vmem:[%s996 + $0x10] sm:$0xff]
      %v1098 = vld [vmem:[%s996 + $0x18] sm:$0xff]
      %v1099 = vld [vmem:[%s996 + $0x20] sm:$0xff]
      %v1100 = vld [vmem:[%s996 + $0x28] sm:$0xff]
      %v1101 = vld [vmem:[%s996 + $0x30] sm:$0xff]
      %v1102 = vld [vmem:[%s996 + $0x38] sm:$0xff]
      %v1103 = vld [vmem:[%s996 + $0x40] sm:$0xff]
      %v1104 = vld [vmem:[%s996 + $0x48] sm:$0xff]
      %v1105 = vld [vmem:[%s996 + $0x50] sm:$0xff]
      %v1106 = vld [vmem:[%s996 + $0x58] sm:$0xff]
      %v1107 = vld [vmem:[%s996 + $0x60] sm:$0xff]
      %v1108 = vld [vmem:[%s996 + $0x68] sm:$0xff]
      %v1109 = vld [vmem:[%s996 + $0x70] sm:$0xff]
      %v1110 = vld [vmem:[%s996 + $0x78] sm:$0xff]
      %v1111 = vld [vmem:[%s996 + $0x80] sm:$0xff]
      %v1112 = vld [vmem:[%s996 + $0x88] sm:$0xff]
      %v1113 = vld [vmem:[%s996 + $0x90] sm:$0xff]
      %v1114 = vld [vmem:[%s996 + $0x98] sm:$0xff]
      %v1115 = vld [vmem:[%s996 + $0xa0] sm:$0xff]
      %v1116 = vld [vmem:[%s996 + $0xa8] sm:$0xff]
      %v1117 = vld [vmem:[%s996 + $0xb0] sm:$0xff]
      %v1118 = vld [vmem:[%s996 + $0xb8] sm:$0xff]
      %v1119 = vld [vmem:[%s996 + $0xc0] sm:$0xff]
      %v1120 = vld [vmem:[%s996 + $0xc8] sm:$0xff]
      %v1121 = vld [vmem:[%s996 + $0xd0] sm:$0xff]
      %v1122 = vld [vmem:[%s996 + $0xd8] sm:$0xff]
      %v1123 = vld [vmem:[%s996 + $0xe0] sm:$0xff]
      %v1124 = vld [vmem:[%s996 + $0xe8] sm:$0xff]
      %v1125 = vld [vmem:[%s996 + $0xf0] sm:$0xff]
      %v1126 = vld [vmem:[%s996 + $0xf8] sm:$0xff]
      %v1127 = vld [vmem:[%s996 + $0x100] sm:$0xff]
      %v1128 = vld [vmem:[%s996 + $0x108] sm:$0xff]
      %v1129 = vld [vmem:[%s996 + $0x110] sm:$0xff]
      %v1130 = vld [vmem:[%s996 + $0x118] sm:$0xff]
      %v1131 = vld [vmem:[%s996 + $0x120] sm:$0xff]
      %v1132 = vld [vmem:[%s996 + $0x128] sm:$0xff]
      %v1133 = vld [vmem:[%s996 + $0x130] sm:$0xff]
      %v1134 = vld [vmem:[%s996 + $0x138] sm:$0xff]
      %v1135 = vld [vmem:[%s996 + $0x140] sm:$0xff]
      %v1136 = vld [vmem:[%s996 + $0x148] sm:$0xff]
      %v1137 = vld [vmem:[%s996 + $0x150] sm:$0xff]
      %v1138 = vld [vmem:[%s996 + $0x158] sm:$0xff]
      %v1139 = vld [vmem:[%s996 + $0x160] sm:$0xff]
      %v1140 = vld [vmem:[%s996 + $0x168] sm:$0xff]
      %v1141 = vld [vmem:[%s996 + $0x170] sm:$0xff]
      %v1142 = vld [vmem:[%s996 + $0x178] sm:$0xff]
      %s1143 = scalar_lea.vmem %s4, 2
      %v1144 = vld [vmem:[%s1143] sm:$0x3]
      %vm1145 = vcmask 15360
      %v1147 = vsel %vm1145, %v1095, 0
      %v1150 = vsel %vm1145, %v1096, 0
      %v1153 = vsel %vm1145, %v1097, 0
      %v1156 = vsel %vm1145, %v1098, 0
      %v1159 = vsel %vm1145, %v1099, 0
      %v1162 = vsel %vm1145, %v1100, 0
      %v1165 = vsel %vm1145, %v1101, 0
      %v1168 = vsel %vm1145, %v1102, 0
      %v1171 = vsel %vm1145, %v1103, 0
      %v1174 = vsel %vm1145, %v1104, 0
      %v1177 = vsel %vm1145, %v1105, 0
      %v1180 = vsel %vm1145, %v1106, 0
      %v1183 = vsel %vm1145, %v1107, 0
      %v1186 = vsel %vm1145, %v1108, 0
      %v1189 = vsel %vm1145, %v1109, 0
      %v1192 = vsel %vm1145, %v1110, 0
      %v1195 = vsel %vm1145, %v1111, 0
      %v1198 = vsel %vm1145, %v1112, 0
      %v1201 = vsel %vm1145, %v1113, 0
      %v1204 = vsel %vm1145, %v1114, 0
      %v1207 = vsel %vm1145, %v1115, 0
      %v1210 = vsel %vm1145, %v1116, 0
      %v1213 = vsel %vm1145, %v1117, 0
      %v1216 = vsel %vm1145, %v1118, 0
      %v1219 = vsel %vm1145, %v1119, 0
      %v1222 = vsel %vm1145, %v1120, 0
      %v1225 = vsel %vm1145, %v1121, 0
      %v1228 = vsel %vm1145, %v1122, 0
      %v1231 = vsel %vm1145, %v1123, 0
      %v1234 = vsel %vm1145, %v1124, 0
      %v1237 = vsel %vm1145, %v1125, 0
      %v1240 = vsel %vm1145, %v1126, 0
      %v1243 = vsel %vm1145, %v1127, 0
      %v1246 = vsel %vm1145, %v1128, 0
      %v1249 = vsel %vm1145, %v1129, 0
      %v1252 = vsel %vm1145, %v1130, 0
      %v1255 = vsel %vm1145, %v1131, 0
      %v1258 = vsel %vm1145, %v1132, 0
      %v1261 = vsel %vm1145, %v1133, 0
      %v1264 = vsel %vm1145, %v1134, 0
      %v1267 = vsel %vm1145, %v1135, 0
      %v1270 = vsel %vm1145, %v1136, 0
      %v1273 = vsel %vm1145, %v1137, 0
      %v1276 = vsel %vm1145, %v1138, 0
      %v1279 = vsel %vm1145, %v1139, 0
      %v1282 = vsel %vm1145, %v1140, 0
      %v1285 = vsel %vm1145, %v1141, 0
      %v1288 = vsel %vm1145, %v1142, 0
      %vm1290 = vcmask 1041408
      %v1292 = vsel %vm1290, %v1144, 0
      %1294 = vmatpush.msra.mxu0 0.0
      %1295 = vmatpush.msra.mxu0 0.0
      %1296 = vmatpush.msra.mxu0 0.0
      %1297 = vmatpush.msra.mxu0 0.0
      %1298 = vmatpush.msra.mxu0 0.0
      %1299 = vmatpush.msra.mxu0 0.0
      %1300 = vmatpush.msra.mxu0 0.0
      %1301 = vmatpush.msra.mxu0 0.0
      %1302 = vmatpush.msra.mxu0 0.0
      %1303 = vmatpush.msra.mxu0 0.0
      %1304 = vmatpush.msra.mxu0 0.0
      %1305 = vmatpush.msra.mxu0 0.0
      %1306 = vmatpush.msra.mxu0 0.0
      %1307 = vmatpush.msra.mxu0 0.0
      %1308 = vmatpush.msra.mxu0 0.0
      %1309 = vmatpush.msra.mxu0 %v1292
      %1310 = vmatmul.f32.gmra.mxu0 %v1147
      %v1311 = vpop.f32.mrf.mxu0
      %v1312 = vadd.f32 0.0, %v1311
      %1313 = vmatmul.f32.gmra.mxu0 %v1150
      %v1314 = vpop.f32.mrf.mxu0
      %v1315 = vadd.f32 0.0, %v1314
      %1316 = vmatmul.f32.gmra.mxu0 %v1153
      %v1317 = vpop.f32.mrf.mxu0
      %v1318 = vadd.f32 0.0, %v1317
      %1319 = vmatmul.f32.gmra.mxu0 %v1156
      %v1320 = vpop.f32.mrf.mxu0
      %v1321 = vadd.f32 0.0, %v1320
      %1322 = vmatmul.f32.gmra.mxu0 %v1159
      %v1323 = vpop.f32.mrf.mxu0
      %v1324 = vadd.f32 0.0, %v1323
      %1325 = vmatmul.f32.gmra.mxu0 %v1162
      %v1326 = vpop.f32.mrf.mxu0
      %v1327 = vadd.f32 0.0, %v1326
      %1328 = vmatmul.f32.gmra.mxu0 %v1165
      %v1329 = vpop.f32.mrf.mxu0
      %v1330 = vadd.f32 0.0, %v1329
      %1331 = vmatmul.f32.gmra.mxu0 %v1168
      %v1332 = vpop.f32.mrf.mxu0
      %v1333 = vadd.f32 0.0, %v1332
      %1334 = vmatmul.f32.gmra.mxu0 %v1171
      %v1335 = vpop.f32.mrf.mxu0
      %v1336 = vadd.f32 0.0, %v1335
      %1337 = vmatmul.f32.gmra.mxu0 %v1174
      %v1338 = vpop.f32.mrf.mxu0
      %v1339 = vadd.f32 0.0, %v1338
      %1340 = vmatmul.f32.gmra.mxu0 %v1177
      %v1341 = vpop.f32.mrf.mxu0
      %v1342 = vadd.f32 0.0, %v1341
      %1343 = vmatmul.f32.gmra.mxu0 %v1180
      %v1344 = vpop.f32.mrf.mxu0
      %v1345 = vadd.f32 0.0, %v1344
      %1346 = vmatmul.f32.gmra.mxu0 %v1183
      %v1347 = vpop.f32.mrf.mxu0
      %v1348 = vadd.f32 0.0, %v1347
      %1349 = vmatmul.f32.gmra.mxu0 %v1186
      %v1350 = vpop.f32.mrf.mxu0
      %v1351 = vadd.f32 0.0, %v1350
      %1352 = vmatmul.f32.gmra.mxu0 %v1189
      %v1353 = vpop.f32.mrf.mxu0
      %v1354 = vadd.f32 0.0, %v1353
      %1355 = vmatmul.f32.gmra.mxu0 %v1192
      %v1356 = vpop.f32.mrf.mxu0
      %v1357 = vadd.f32 0.0, %v1356
      %1358 = vmatmul.f32.gmra.mxu0 %v1195
      %v1359 = vpop.f32.mrf.mxu0
      %v1360 = vadd.f32 0.0, %v1359
      %1361 = vmatmul.f32.gmra.mxu0 %v1198
      %v1362 = vpop.f32.mrf.mxu0
      %v1363 = vadd.f32 0.0, %v1362
      %1364 = vmatmul.f32.gmra.mxu0 %v1201
      %v1365 = vpop.f32.mrf.mxu0
      %v1366 = vadd.f32 0.0, %v1365
      %1367 = vmatmul.f32.gmra.mxu0 %v1204
      %v1368 = vpop.f32.mrf.mxu0
      %v1369 = vadd.f32 0.0, %v1368
      %1370 = vmatmul.f32.gmra.mxu0 %v1207
      %v1371 = vpop.f32.mrf.mxu0
      %v1372 = vadd.f32 0.0, %v1371
      %1373 = vmatmul.f32.gmra.mxu0 %v1210
      %v1374 = vpop.f32.mrf.mxu0
      %v1375 = vadd.f32 0.0, %v1374
      %1376 = vmatmul.f32.gmra.mxu0 %v1213
      %v1377 = vpop.f32.mrf.mxu0
      %v1378 = vadd.f32 0.0, %v1377
      %1379 = vmatmul.f32.gmra.mxu0 %v1216
      %v1380 = vpop.f32.mrf.mxu0
      %v1381 = vadd.f32 0.0, %v1380
      %1382 = vmatmul.f32.gmra.mxu0 %v1219
      %v1383 = vpop.f32.mrf.mxu0
      %v1384 = vadd.f32 0.0, %v1383
      %1385 = vmatmul.f32.gmra.mxu0 %v1222
      %v1386 = vpop.f32.mrf.mxu0
      %v1387 = vadd.f32 0.0, %v1386
      %1388 = vmatmul.f32.gmra.mxu0 %v1225
      %v1389 = vpop.f32.mrf.mxu0
      %v1390 = vadd.f32 0.0, %v1389
      %1391 = vmatmul.f32.gmra.mxu0 %v1228
      %v1392 = vpop.f32.mrf.mxu0
      %v1393 = vadd.f32 0.0, %v1392
      %1394 = vmatmul.f32.gmra.mxu0 %v1231
      %v1395 = vpop.f32.mrf.mxu0
      %v1396 = vadd.f32 0.0, %v1395
      %1397 = vmatmul.f32.gmra.mxu0 %v1234
      %v1398 = vpop.f32.mrf.mxu0
      %v1399 = vadd.f32 0.0, %v1398
      %1400 = vmatmul.f32.gmra.mxu0 %v1237
      %v1401 = vpop.f32.mrf.mxu0
      %v1402 = vadd.f32 0.0, %v1401
      %1403 = vmatmul.f32.gmra.mxu0 %v1240
      %v1404 = vpop.f32.mrf.mxu0
      %v1405 = vadd.f32 0.0, %v1404
      %1406 = vmatmul.f32.gmra.mxu0 %v1243
      %v1407 = vpop.f32.mrf.mxu0
      %v1408 = vadd.f32 0.0, %v1407
      %1409 = vmatmul.f32.gmra.mxu0 %v1246
      %v1410 = vpop.f32.mrf.mxu0
      %v1411 = vadd.f32 0.0, %v1410
      %1412 = vmatmul.f32.gmra.mxu0 %v1249
      %v1413 = vpop.f32.mrf.mxu0
      %v1414 = vadd.f32 0.0, %v1413
      %1415 = vmatmul.f32.gmra.mxu0 %v1252
      %v1416 = vpop.f32.mrf.mxu0
      %v1417 = vadd.f32 0.0, %v1416
      %1418 = vmatmul.f32.gmra.mxu0 %v1255
      %v1419 = vpop.f32.mrf.mxu0
      %v1420 = vadd.f32 0.0, %v1419
      %1421 = vmatmul.f32.gmra.mxu0 %v1258
      %v1422 = vpop.f32.mrf.mxu0
      %v1423 = vadd.f32 0.0, %v1422
      %1424 = vmatmul.f32.gmra.mxu0 %v1261
      %v1425 = vpop.f32.mrf.mxu0
      %v1426 = vadd.f32 0.0, %v1425
      %1427 = vmatmul.f32.gmra.mxu0 %v1264
      %v1428 = vpop.f32.mrf.mxu0
      %v1429 = vadd.f32 0.0, %v1428
      %1430 = vmatmul.f32.gmra.mxu0 %v1267
      %v1431 = vpop.f32.mrf.mxu0
      %v1432 = vadd.f32 0.0, %v1431
      %1433 = vmatmul.f32.gmra.mxu0 %v1270
      %v1434 = vpop.f32.mrf.mxu0
      %v1435 = vadd.f32 0.0, %v1434
      %1436 = vmatmul.f32.gmra.mxu0 %v1273
      %v1437 = vpop.f32.mrf.mxu0
      %v1438 = vadd.f32 0.0, %v1437
      %1439 = vmatmul.f32.gmra.mxu0 %v1276
      %v1440 = vpop.f32.mrf.mxu0
      %v1441 = vadd.f32 0.0, %v1440
      %1442 = vmatmul.f32.gmra.mxu0 %v1279
      %v1443 = vpop.f32.mrf.mxu0
      %v1444 = vadd.f32 0.0, %v1443
      %1445 = vmatmul.f32.gmra.mxu0 %v1282
      %v1446 = vpop.f32.mrf.mxu0
      %v1447 = vadd.f32 0.0, %v1446
      %1448 = vmatmul.f32.gmra.mxu0 %v1285
      %v1449 = vpop.f32.mrf.mxu0
      %v1450 = vadd.f32 0.0, %v1449
      %1451 = vmatmul.f32.gmra.mxu0 %v1288
      %v1452 = vpop.f32.mrf.mxu0
      %v1453 = vadd.f32 0.0, %v1452
      %1454 = vdwg.mxu0
      %v1456 = vsel %vm1145, %v1046, 0
      %v1459 = vsel %vm1145, %v1047, 0
      %v1462 = vsel %vm1145, %v1048, 0
      %v1465 = vsel %vm1145, %v1049, 0
      %v1468 = vsel %vm1145, %v1050, 0
      %v1471 = vsel %vm1145, %v1051, 0
      %v1474 = vsel %vm1145, %v1052, 0
      %v1477 = vsel %vm1145, %v1053, 0
      %v1480 = vsel %vm1145, %v1054, 0
      %v1483 = vsel %vm1145, %v1055, 0
      %v1486 = vsel %vm1145, %v1056, 0
      %v1489 = vsel %vm1145, %v1057, 0
      %v1492 = vsel %vm1145, %v1058, 0
      %v1495 = vsel %vm1145, %v1059, 0
      %v1498 = vsel %vm1145, %v1060, 0
      %v1501 = vsel %vm1145, %v1061, 0
      %v1504 = vsel %vm1145, %v1062, 0
      %v1507 = vsel %vm1145, %v1063, 0
      %v1510 = vsel %vm1145, %v1064, 0
      %v1513 = vsel %vm1145, %v1065, 0
      %v1516 = vsel %vm1145, %v1066, 0
      %v1519 = vsel %vm1145, %v1067, 0
      %v1522 = vsel %vm1145, %v1068, 0
      %v1525 = vsel %vm1145, %v1069, 0
      %v1528 = vsel %vm1145, %v1070, 0
      %v1531 = vsel %vm1145, %v1071, 0
      %v1534 = vsel %vm1145, %v1072, 0
      %v1537 = vsel %vm1145, %v1073, 0
      %v1540 = vsel %vm1145, %v1074, 0
      %v1543 = vsel %vm1145, %v1075, 0
      %v1546 = vsel %vm1145, %v1076, 0
      %v1549 = vsel %vm1145, %v1077, 0
      %v1552 = vsel %vm1145, %v1078, 0
      %v1555 = vsel %vm1145, %v1079, 0
      %v1558 = vsel %vm1145, %v1080, 0
      %v1561 = vsel %vm1145, %v1081, 0
      %v1564 = vsel %vm1145, %v1082, 0
      %v1567 = vsel %vm1145, %v1083, 0
      %v1570 = vsel %vm1145, %v1084, 0
      %v1573 = vsel %vm1145, %v1085, 0
      %v1576 = vsel %vm1145, %v1086, 0
      %v1579 = vsel %vm1145, %v1087, 0
      %v1582 = vsel %vm1145, %v1088, 0
      %v1585 = vsel %vm1145, %v1089, 0
      %v1588 = vsel %vm1145, %v1090, 0
      %v1591 = vsel %vm1145, %v1091, 0
      %v1594 = vsel %vm1145, %v1092, 0
      %v1597 = vsel %vm1145, %v1093, 0
      %v1600 = vsel %vm1290, %v1094, 0
      %1602 = vmatpush.msra.mxu0 0.0
      %1603 = vmatpush.msra.mxu0 0.0
      %1604 = vmatpush.msra.mxu0 0.0
      %1605 = vmatpush.msra.mxu0 0.0
      %1606 = vmatpush.msra.mxu0 0.0
      %1607 = vmatpush.msra.mxu0 0.0
      %1608 = vmatpush.msra.mxu0 0.0
      %1609 = vmatpush.msra.mxu0 0.0
      %1610 = vmatpush.msra.mxu0 0.0
      %1611 = vmatpush.msra.mxu0 0.0
      %1612 = vmatpush.msra.mxu0 0.0
      %1613 = vmatpush.msra.mxu0 0.0
      %1614 = vmatpush.msra.mxu0 0.0
      %1615 = vmatpush.msra.mxu0 0.0
      %1616 = vmatpush.msra.mxu0 0.0
      %1617 = vmatpush.msra.mxu0 %v1600
      %1618 = vmatmul.f32.gmra.mxu0 %v1456
      %v1619 = vpop.f32.mrf.mxu0
      %v1620 = vadd.f32 %v1312, %v1619
      %1621 = vmatmul.f32.gmra.mxu0 %v1459
      %v1622 = vpop.f32.mrf.mxu0
      %v1623 = vadd.f32 %v1315, %v1622
      %1624 = vmatmul.f32.gmra.mxu0 %v1462
      %v1625 = vpop.f32.mrf.mxu0
      %v1626 = vadd.f32 %v1318, %v1625
      %1627 = vmatmul.f32.gmra.mxu0 %v1465
      %v1628 = vpop.f32.mrf.mxu0
      %v1629 = vadd.f32 %v1321, %v1628
      %1630 = vmatmul.f32.gmra.mxu0 %v1468
      %v1631 = vpop.f32.mrf.mxu0
      %v1632 = vadd.f32 %v1324, %v1631
      %1633 = vmatmul.f32.gmra.mxu0 %v1471
      %v1634 = vpop.f32.mrf.mxu0
      %v1635 = vadd.f32 %v1327, %v1634
      %1636 = vmatmul.f32.gmra.mxu0 %v1474
      %v1637 = vpop.f32.mrf.mxu0
      %v1638 = vadd.f32 %v1330, %v1637
      %1639 = vmatmul.f32.gmra.mxu0 %v1477
      %v1640 = vpop.f32.mrf.mxu0
      %v1641 = vadd.f32 %v1333, %v1640
      %1642 = vmatmul.f32.gmra.mxu0 %v1480
      %v1643 = vpop.f32.mrf.mxu0
      %v1644 = vadd.f32 %v1336, %v1643
      %1645 = vmatmul.f32.gmra.mxu0 %v1483
      %v1646 = vpop.f32.mrf.mxu0
      %v1647 = vadd.f32 %v1339, %v1646
      %1648 = vmatmul.f32.gmra.mxu0 %v1486
      %v1649 = vpop.f32.mrf.mxu0
      %v1650 = vadd.f32 %v1342, %v1649
      %1651 = vmatmul.f32.gmra.mxu0 %v1489
      %v1652 = vpop.f32.mrf.mxu0
      %v1653 = vadd.f32 %v1345, %v1652
      %1654 = vmatmul.f32.gmra.mxu0 %v1492
      %v1655 = vpop.f32.mrf.mxu0
      %v1656 = vadd.f32 %v1348, %v1655
      %1657 = vmatmul.f32.gmra.mxu0 %v1495
      %v1658 = vpop.f32.mrf.mxu0
      %v1659 = vadd.f32 %v1351, %v1658
      %1660 = vmatmul.f32.gmra.mxu0 %v1498
      %v1661 = vpop.f32.mrf.mxu0
      %v1662 = vadd.f32 %v1354, %v1661
      %1663 = vmatmul.f32.gmra.mxu0 %v1501
      %v1664 = vpop.f32.mrf.mxu0
      %v1665 = vadd.f32 %v1357, %v1664
      %1666 = vmatmul.f32.gmra.mxu0 %v1504
      %v1667 = vpop.f32.mrf.mxu0
      %v1668 = vadd.f32 %v1360, %v1667
      %1669 = vmatmul.f32.gmra.mxu0 %v1507
      %v1670 = vpop.f32.mrf.mxu0
      %v1671 = vadd.f32 %v1363, %v1670
      %1672 = vmatmul.f32.gmra.mxu0 %v1510
      %v1673 = vpop.f32.mrf.mxu0
      %v1674 = vadd.f32 %v1366, %v1673
      %1675 = vmatmul.f32.gmra.mxu0 %v1513
      %v1676 = vpop.f32.mrf.mxu0
      %v1677 = vadd.f32 %v1369, %v1676
      %1678 = vmatmul.f32.gmra.mxu0 %v1516
      %v1679 = vpop.f32.mrf.mxu0
      %v1680 = vadd.f32 %v1372, %v1679
      %1681 = vmatmul.f32.gmra.mxu0 %v1519
      %v1682 = vpop.f32.mrf.mxu0
      %v1683 = vadd.f32 %v1375, %v1682
      %1684 = vmatmul.f32.gmra.mxu0 %v1522
      %v1685 = vpop.f32.mrf.mxu0
      %v1686 = vadd.f32 %v1378, %v1685
      %1687 = vmatmul.f32.gmra.mxu0 %v1525
      %v1688 = vpop.f32.mrf.mxu0
      %v1689 = vadd.f32 %v1381, %v1688
      %1690 = vmatmul.f32.gmra.mxu0 %v1528
      %v1691 = vpop.f32.mrf.mxu0
      %v1692 = vadd.f32 %v1384, %v1691
      %1693 = vmatmul.f32.gmra.mxu0 %v1531
      %v1694 = vpop.f32.mrf.mxu0
      %v1695 = vadd.f32 %v1387, %v1694
      %1696 = vmatmul.f32.gmra.mxu0 %v1534
      %v1697 = vpop.f32.mrf.mxu0
      %v1698 = vadd.f32 %v1390, %v1697
      %1699 = vmatmul.f32.gmra.mxu0 %v1537
      %v1700 = vpop.f32.mrf.mxu0
      %v1701 = vadd.f32 %v1393, %v1700
      %1702 = vmatmul.f32.gmra.mxu0 %v1540
      %v1703 = vpop.f32.mrf.mxu0
      %v1704 = vadd.f32 %v1396, %v1703
      %1705 = vmatmul.f32.gmra.mxu0 %v1543
      %v1706 = vpop.f32.mrf.mxu0
      %v1707 = vadd.f32 %v1399, %v1706
      %1708 = vmatmul.f32.gmra.mxu0 %v1546
      %v1709 = vpop.f32.mrf.mxu0
      %v1710 = vadd.f32 %v1402, %v1709
      %1711 = vmatmul.f32.gmra.mxu0 %v1549
      %v1712 = vpop.f32.mrf.mxu0
      %v1713 = vadd.f32 %v1405, %v1712
      %1714 = vmatmul.f32.gmra.mxu0 %v1552
      %v1715 = vpop.f32.mrf.mxu0
      %v1716 = vadd.f32 %v1408, %v1715
      %1717 = vmatmul.f32.gmra.mxu0 %v1555
      %v1718 = vpop.f32.mrf.mxu0
      %v1719 = vadd.f32 %v1411, %v1718
      %1720 = vmatmul.f32.gmra.mxu0 %v1558
      %v1721 = vpop.f32.mrf.mxu0
      %v1722 = vadd.f32 %v1414, %v1721
      %1723 = vmatmul.f32.gmra.mxu0 %v1561
      %v1724 = vpop.f32.mrf.mxu0
      %v1725 = vadd.f32 %v1417, %v1724
      %1726 = vmatmul.f32.gmra.mxu0 %v1564
      %v1727 = vpop.f32.mrf.mxu0
      %v1728 = vadd.f32 %v1420, %v1727
      %1729 = vmatmul.f32.gmra.mxu0 %v1567
      %v1730 = vpop.f32.mrf.mxu0
      %v1731 = vadd.f32 %v1423, %v1730
      %1732 = vmatmul.f32.gmra.mxu0 %v1570
      %v1733 = vpop.f32.mrf.mxu0
      %v1734 = vadd.f32 %v1426, %v1733
      %1735 = vmatmul.f32.gmra.mxu0 %v1573
      %v1736 = vpop.f32.mrf.mxu0
      %v1737 = vadd.f32 %v1429, %v1736
      %1738 = vmatmul.f32.gmra.mxu0 %v1576
      %v1739 = vpop.f32.mrf.mxu0
      %v1740 = vadd.f32 %v1432, %v1739
      %1741 = vmatmul.f32.gmra.mxu0 %v1579
      %v1742 = vpop.f32.mrf.mxu0
      %v1743 = vadd.f32 %v1435, %v1742
      %1744 = vmatmul.f32.gmra.mxu0 %v1582
      %v1745 = vpop.f32.mrf.mxu0
      %v1746 = vadd.f32 %v1438, %v1745
      %1747 = vmatmul.f32.gmra.mxu0 %v1585
      %v1748 = vpop.f32.mrf.mxu0
      %v1749 = vadd.f32 %v1441, %v1748
      %1750 = vmatmul.f32.gmra.mxu0 %v1588
      %v1751 = vpop.f32.mrf.mxu0
      %v1752 = vadd.f32 %v1444, %v1751
      %1753 = vmatmul.f32.gmra.mxu0 %v1591
      %v1754 = vpop.f32.mrf.mxu0
      %v1755 = vadd.f32 %v1447, %v1754
      %1756 = vmatmul.f32.gmra.mxu0 %v1594
      %v1757 = vpop.f32.mrf.mxu0
      %v1758 = vadd.f32 %v1450, %v1757
      %1759 = vmatmul.f32.gmra.mxu0 %v1597
      %v1760 = vpop.f32.mrf.mxu0
      %v1761 = vadd.f32 %v1453, %v1760
      %1762 = vdwg.mxu0
      %s1763 = scalar_lea.vmem [#allocation2], 120
      %v1764 = vld [vmem:[%s1763] sm:$0xff]
      %v1765 = vld [vmem:[%s1763 + $0x8] sm:$0xff]
      %v1766 = vld [vmem:[%s1763 + $0x10] sm:$0xff]
      %v1767 = vld [vmem:[%s1763 + $0x18] sm:$0xff]
      %v1768 = vld [vmem:[%s1763 + $0x20] sm:$0xff]
      %v1769 = vld [vmem:[%s1763 + $0x28] sm:$0xff]
      %v1770 = vld [vmem:[%s1763 + $0x30] sm:$0xff]
      %v1771 = vld [vmem:[%s1763 + $0x38] sm:$0xff]
      %v1772 = vld [vmem:[%s1763 + $0x40] sm:$0xff]
      %v1773 = vld [vmem:[%s1763 + $0x48] sm:$0xff]
      %v1774 = vld [vmem:[%s1763 + $0x50] sm:$0xff]
      %v1775 = vld [vmem:[%s1763 + $0x58] sm:$0xff]
      %v1776 = vld [vmem:[%s1763 + $0x60] sm:$0xff]
      %v1777 = vld [vmem:[%s1763 + $0x68] sm:$0xff]
      %v1778 = vld [vmem:[%s1763 + $0x70] sm:$0xff]
      %v1779 = vld [vmem:[%s1763 + $0x78] sm:$0xff]
      %v1780 = vld [vmem:[%s1763 + $0x80] sm:$0xff]
      %v1781 = vld [vmem:[%s1763 + $0x88] sm:$0xff]
      %v1782 = vld [vmem:[%s1763 + $0x90] sm:$0xff]
      %v1783 = vld [vmem:[%s1763 + $0x98] sm:$0xff]
      %v1784 = vld [vmem:[%s1763 + $0xa0] sm:$0xff]
      %v1785 = vld [vmem:[%s1763 + $0xa8] sm:$0xff]
      %v1786 = vld [vmem:[%s1763 + $0xb0] sm:$0xff]
      %v1787 = vld [vmem:[%s1763 + $0xb8] sm:$0xff]
      %v1788 = vld [vmem:[%s1763 + $0xc0] sm:$0xff]
      %v1789 = vld [vmem:[%s1763 + $0xc8] sm:$0xff]
      %v1790 = vld [vmem:[%s1763 + $0xd0] sm:$0xff]
      %v1791 = vld [vmem:[%s1763 + $0xd8] sm:$0xff]
      %v1792 = vld [vmem:[%s1763 + $0xe0] sm:$0xff]
      %v1793 = vld [vmem:[%s1763 + $0xe8] sm:$0xff]
      %v1794 = vld [vmem:[%s1763 + $0xf0] sm:$0xff]
      %v1795 = vld [vmem:[%s1763 + $0xf8] sm:$0xff]
      %v1796 = vld [vmem:[%s1763 + $0x100] sm:$0xff]
      %v1797 = vld [vmem:[%s1763 + $0x108] sm:$0xff]
      %v1798 = vld [vmem:[%s1763 + $0x110] sm:$0xff]
      %v1799 = vld [vmem:[%s1763 + $0x118] sm:$0xff]
      %v1800 = vld [vmem:[%s1763 + $0x120] sm:$0xff]
      %v1801 = vld [vmem:[%s1763 + $0x128] sm:$0xff]
      %v1802 = vld [vmem:[%s1763 + $0x130] sm:$0xff]
      %v1803 = vld [vmem:[%s1763 + $0x138] sm:$0xff]
      %v1804 = vld [vmem:[%s1763 + $0x140] sm:$0xff]
      %v1805 = vld [vmem:[%s1763 + $0x148] sm:$0xff]
      %v1806 = vld [vmem:[%s1763 + $0x150] sm:$0xff]
      %v1807 = vld [vmem:[%s1763 + $0x158] sm:$0xff]
      %v1808 = vld [vmem:[%s1763 + $0x160] sm:$0xff]
      %v1809 = vld [vmem:[%s1763 + $0x168] sm:$0xff]
      %v1810 = vld [vmem:[%s1763 + $0x170] sm:$0xff]
      %v1811 = vld [vmem:[%s1763 + $0x178] sm:$0xff]
      %s1812 = scalar_lea.vmem %s4, 4
      %v1813 = vld [vmem:[%s1812] sm:$0x3]
      %v1815 = vsel %vm1145, %v1764, 0
      %v1818 = vsel %vm1145, %v1765, 0
      %v1821 = vsel %vm1145, %v1766, 0
      %v1824 = vsel %vm1145, %v1767, 0
      %v1827 = vsel %vm1145, %v1768, 0
      %v1830 = vsel %vm1145, %v1769, 0
      %v1833 = vsel %vm1145, %v1770, 0
      %v1836 = vsel %vm1145, %v1771, 0
      %v1839 = vsel %vm1145, %v1772, 0
      %v1842 = vsel %vm1145, %v1773, 0
      %v1845 = vsel %vm1145, %v1774, 0
      %v1848 = vsel %vm1145, %v1775, 0
      %v1851 = vsel %vm1145, %v1776, 0
      %v1854 = vsel %vm1145, %v1777, 0
      %v1857 = vsel %vm1145, %v1778, 0
      %v1860 = vsel %vm1145, %v1779, 0
      %v1863 = vsel %vm1145, %v1780, 0
      %v1866 = vsel %vm1145, %v1781, 0
      %v1869 = vsel %vm1145, %v1782, 0
      %v1872 = vsel %vm1145, %v1783, 0
      %v1875 = vsel %vm1145, %v1784, 0
      %v1878 = vsel %vm1145, %v1785, 0
      %v1881 = vsel %vm1145, %v1786, 0
      %v1884 = vsel %vm1145, %v1787, 0
      %v1887 = vsel %vm1145, %v1788, 0
      %v1890 = vsel %vm1145, %v1789, 0
      %v1893 = vsel %vm1145, %v1790, 0
      %v1896 = vsel %vm1145, %v1791, 0
      %v1899 = vsel %vm1145, %v1792, 0
      %v1902 = vsel %vm1145, %v1793, 0
      %v1905 = vsel %vm1145, %v1794, 0
      %v1908 = vsel %vm1145, %v1795, 0
      %v1911 = vsel %vm1145, %v1796, 0
      %v1914 = vsel %vm1145, %v1797, 0
      %v1917 = vsel %vm1145, %v1798, 0
      %v1920 = vsel %vm1145, %v1799, 0
      %v1923 = vsel %vm1145, %v1800, 0
      %v1926 = vsel %vm1145, %v1801, 0
      %v1929 = vsel %vm1145, %v1802, 0
      %v1932 = vsel %vm1145, %v1803, 0
      %v1935 = vsel %vm1145, %v1804, 0
      %v1938 = vsel %vm1145, %v1805, 0
      %v1941 = vsel %vm1145, %v1806, 0
      %v1944 = vsel %vm1145, %v1807, 0
      %v1947 = vsel %vm1145, %v1808, 0
      %v1950 = vsel %vm1145, %v1809, 0
      %v1953 = vsel %vm1145, %v1810, 0
      %v1956 = vsel %vm1145, %v1811, 0
      %v1959 = vsel %vm1290, %v1813, 0
      %1961 = vmatpush.msra.mxu0 0.0
      %1962 = vmatpush.msra.mxu0 0.0
      %1963 = vmatpush.msra.mxu0 0.0
      %1964 = vmatpush.msra.mxu0 0.0
      %1965 = vmatpush.msra.mxu0 0.0
      %1966 = vmatpush.msra.mxu0 0.0
      %1967 = vmatpush.msra.mxu0 0.0
      %1968 = vmatpush.msra.mxu0 0.0
      %1969 = vmatpush.msra.mxu0 0.0
      %1970 = vmatpush.msra.mxu0 0.0
      %1971 = vmatpush.msra.mxu0 0.0
      %1972 = vmatpush.msra.mxu0 0.0
      %1973 = vmatpush.msra.mxu0 0.0
      %1974 = vmatpush.msra.mxu0 0.0
      %1975 = vmatpush.msra.mxu0 0.0
      %1976 = vmatpush.msra.mxu0 %v1959
      %1977 = vmatmul.f32.gmra.mxu0 %v1815
      %v1978 = vpop.f32.mrf.mxu0
      %v1979 = vadd.f32 0.0, %v1978
      %1980 = vmatmul.f32.gmra.mxu0 %v1818
      %v1981 = vpop.f32.mrf.mxu0
      %v1982 = vadd.f32 0.0, %v1981
      %1983 = vmatmul.f32.gmra.mxu0 %v1821
      %v1984 = vpop.f32.mrf.mxu0
      %v1985 = vadd.f32 0.0, %v1984
      %1986 = vmatmul.f32.gmra.mxu0 %v1824
      %v1987 = vpop.f32.mrf.mxu0
      %v1988 = vadd.f32 0.0, %v1987
      %1989 = vmatmul.f32.gmra.mxu0 %v1827
      %v1990 = vpop.f32.mrf.mxu0
      %v1991 = vadd.f32 0.0, %v1990
      %1992 = vmatmul.f32.gmra.mxu0 %v1830
      %v1993 = vpop.f32.mrf.mxu0
      %v1994 = vadd.f32 0.0, %v1993
      %1995 = vmatmul.f32.gmra.mxu0 %v1833
      %v1996 = vpop.f32.mrf.mxu0
      %v1997 = vadd.f32 0.0, %v1996
      %1998 = vmatmul.f32.gmra.mxu0 %v1836
      %v1999 = vpop.f32.mrf.mxu0
      %v2000 = vadd.f32 0.0, %v1999
      %2001 = vmatmul.f32.gmra.mxu0 %v1839
      %v2002 = vpop.f32.mrf.mxu0
      %v2003 = vadd.f32 0.0, %v2002
      %2004 = vmatmul.f32.gmra.mxu0 %v1842
      %v2005 = vpop.f32.mrf.mxu0
      %v2006 = vadd.f32 0.0, %v2005
      %2007 = vmatmul.f32.gmra.mxu0 %v1845
      %v2008 = vpop.f32.mrf.mxu0
      %v2009 = vadd.f32 0.0, %v2008
      %2010 = vmatmul.f32.gmra.mxu0 %v1848
      %v2011 = vpop.f32.mrf.mxu0
      %v2012 = vadd.f32 0.0, %v2011
      %2013 = vmatmul.f32.gmra.mxu0 %v1851
      %v2014 = vpop.f32.mrf.mxu0
      %v2015 = vadd.f32 0.0, %v2014
      %2016 = vmatmul.f32.gmra.mxu0 %v1854
      %v2017 = vpop.f32.mrf.mxu0
      %v2018 = vadd.f32 0.0, %v2017
      %2019 = vmatmul.f32.gmra.mxu0 %v1857
      %v2020 = vpop.f32.mrf.mxu0
      %v2021 = vadd.f32 0.0, %v2020
      %2022 = vmatmul.f32.gmra.mxu0 %v1860
      %v2023 = vpop.f32.mrf.mxu0
      %v2024 = vadd.f32 0.0, %v2023
      %2025 = vmatmul.f32.gmra.mxu0 %v1863
      %v2026 = vpop.f32.mrf.mxu0
      %v2027 = vadd.f32 0.0, %v2026
      %2028 = vmatmul.f32.gmra.mxu0 %v1866
      %v2029 = vpop.f32.mrf.mxu0
      %v2030 = vadd.f32 0.0, %v2029
      %2031 = vmatmul.f32.gmra.mxu0 %v1869
      %v2032 = vpop.f32.mrf.mxu0
      %v2033 = vadd.f32 0.0, %v2032
      %2034 = vmatmul.f32.gmra.mxu0 %v1872
      %v2035 = vpop.f32.mrf.mxu0
      %v2036 = vadd.f32 0.0, %v2035
      %2037 = vmatmul.f32.gmra.mxu0 %v1875
      %v2038 = vpop.f32.mrf.mxu0
      %v2039 = vadd.f32 0.0, %v2038
      %2040 = vmatmul.f32.gmra.mxu0 %v1878
      %v2041 = vpop.f32.mrf.mxu0
      %v2042 = vadd.f32 0.0, %v2041
      %2043 = vmatmul.f32.gmra.mxu0 %v1881
      %v2044 = vpop.f32.mrf.mxu0
      %v2045 = vadd.f32 0.0, %v2044
      %2046 = vmatmul.f32.gmra.mxu0 %v1884
      %v2047 = vpop.f32.mrf.mxu0
      %v2048 = vadd.f32 0.0, %v2047
      %2049 = vmatmul.f32.gmra.mxu0 %v1887
      %v2050 = vpop.f32.mrf.mxu0
      %v2051 = vadd.f32 0.0, %v2050
      %2052 = vmatmul.f32.gmra.mxu0 %v1890
      %v2053 = vpop.f32.mrf.mxu0
      %v2054 = vadd.f32 0.0, %v2053
      %2055 = vmatmul.f32.gmra.mxu0 %v1893
      %v2056 = vpop.f32.mrf.mxu0
      %v2057 = vadd.f32 0.0, %v2056
      %2058 = vmatmul.f32.gmra.mxu0 %v1896
      %v2059 = vpop.f32.mrf.mxu0
      %v2060 = vadd.f32 0.0, %v2059
      %2061 = vmatmul.f32.gmra.mxu0 %v1899
      %v2062 = vpop.f32.mrf.mxu0
      %v2063 = vadd.f32 0.0, %v2062
      %2064 = vmatmul.f32.gmra.mxu0 %v1902
      %v2065 = vpop.f32.mrf.mxu0
      %v2066 = vadd.f32 0.0, %v2065
      %2067 = vmatmul.f32.gmra.mxu0 %v1905
      %v2068 = vpop.f32.mrf.mxu0
      %v2069 = vadd.f32 0.0, %v2068
      %2070 = vmatmul.f32.gmra.mxu0 %v1908
      %v2071 = vpop.f32.mrf.mxu0
      %v2072 = vadd.f32 0.0, %v2071
      %2073 = vmatmul.f32.gmra.mxu0 %v1911
      %v2074 = vpop.f32.mrf.mxu0
      %v2075 = vadd.f32 0.0, %v2074
      %2076 = vmatmul.f32.gmra.mxu0 %v1914
      %v2077 = vpop.f32.mrf.mxu0
      %v2078 = vadd.f32 0.0, %v2077
      %2079 = vmatmul.f32.gmra.mxu0 %v1917
      %v2080 = vpop.f32.mrf.mxu0
      %v2081 = vadd.f32 0.0, %v2080
      %2082 = vmatmul.f32.gmra.mxu0 %v1920
      %v2083 = vpop.f32.mrf.mxu0
      %v2084 = vadd.f32 0.0, %v2083
      %2085 = vmatmul.f32.gmra.mxu0 %v1923
      %v2086 = vpop.f32.mrf.mxu0
      %v2087 = vadd.f32 0.0, %v2086
      %2088 = vmatmul.f32.gmra.mxu0 %v1926
      %v2089 = vpop.f32.mrf.mxu0
      %v2090 = vadd.f32 0.0, %v2089
      %2091 = vmatmul.f32.gmra.mxu0 %v1929
      %v2092 = vpop.f32.mrf.mxu0
      %v2093 = vadd.f32 0.0, %v2092
      %2094 = vmatmul.f32.gmra.mxu0 %v1932
      %v2095 = vpop.f32.mrf.mxu0
      %v2096 = vadd.f32 0.0, %v2095
      %2097 = vmatmul.f32.gmra.mxu0 %v1935
      %v2098 = vpop.f32.mrf.mxu0
      %v2099 = vadd.f32 0.0, %v2098
      %2100 = vmatmul.f32.gmra.mxu0 %v1938
      %v2101 = vpop.f32.mrf.mxu0
      %v2102 = vadd.f32 0.0, %v2101
      %2103 = vmatmul.f32.gmra.mxu0 %v1941
      %v2104 = vpop.f32.mrf.mxu0
      %v2105 = vadd.f32 0.0, %v2104
      %2106 = vmatmul.f32.gmra.mxu0 %v1944
      %v2107 = vpop.f32.mrf.mxu0
      %v2108 = vadd.f32 0.0, %v2107
      %2109 = vmatmul.f32.gmra.mxu0 %v1947
      %v2110 = vpop.f32.mrf.mxu0
      %v2111 = vadd.f32 0.0, %v2110
      %2112 = vmatmul.f32.gmra.mxu0 %v1950
      %v2113 = vpop.f32.mrf.mxu0
      %v2114 = vadd.f32 0.0, %v2113
      %2115 = vmatmul.f32.gmra.mxu0 %v1953
      %v2116 = vpop.f32.mrf.mxu0
      %v2117 = vadd.f32 0.0, %v2116
      %2118 = vmatmul.f32.gmra.mxu0 %v1956
      %v2119 = vpop.f32.mrf.mxu0
      %v2120 = vadd.f32 0.0, %v2119
      %2121 = vdwg.mxu0
      %v2122 = vadd.f32 %v1620, %v1979
      %v2123 = vadd.f32 %v1623, %v1982
      %v2124 = vadd.f32 %v1626, %v1985
      %v2125 = vadd.f32 %v1629, %v1988
      %v2126 = vadd.f32 %v1632, %v1991
      %v2127 = vadd.f32 %v1635, %v1994
      %v2128 = vadd.f32 %v1638, %v1997
      %v2129 = vadd.f32 %v1641, %v2000
      %v2130 = vadd.f32 %v1644, %v2003
      %v2131 = vadd.f32 %v1647, %v2006
      %v2132 = vadd.f32 %v1650, %v2009
      %v2133 = vadd.f32 %v1653, %v2012
      %v2134 = vadd.f32 %v1656, %v2015
      %v2135 = vadd.f32 %v1659, %v2018
      %v2136 = vadd.f32 %v1662, %v2021
      %v2137 = vadd.f32 %v1665, %v2024
      %v2138 = vadd.f32 %v1668, %v2027
      %v2139 = vadd.f32 %v1671, %v2030
      %v2140 = vadd.f32 %v1674, %v2033
      %v2141 = vadd.f32 %v1677, %v2036
      %v2142 = vadd.f32 %v1680, %v2039
      %v2143 = vadd.f32 %v1683, %v2042
      %v2144 = vadd.f32 %v1686, %v2045
      %v2145 = vadd.f32 %v1689, %v2048
      %v2146 = vadd.f32 %v1692, %v2051
      %v2147 = vadd.f32 %v1695, %v2054
      %v2148 = vadd.f32 %v1698, %v2057
      %v2149 = vadd.f32 %v1701, %v2060
      %v2150 = vadd.f32 %v1704, %v2063
      %v2151 = vadd.f32 %v1707, %v2066
      %v2152 = vadd.f32 %v1710, %v2069
      %v2153 = vadd.f32 %v1713, %v2072
      %v2154 = vadd.f32 %v1716, %v2075
      %v2155 = vadd.f32 %v1719, %v2078
      %v2156 = vadd.f32 %v1722, %v2081
      %v2157 = vadd.f32 %v1725, %v2084
      %v2158 = vadd.f32 %v1728, %v2087
      %v2159 = vadd.f32 %v1731, %v2090
      %v2160 = vadd.f32 %v1734, %v2093
      %v2161 = vadd.f32 %v1737, %v2096
      %v2162 = vadd.f32 %v1740, %v2099
      %v2163 = vadd.f32 %v1743, %v2102
      %v2164 = vadd.f32 %v1746, %v2105
      %v2165 = vadd.f32 %v1749, %v2108
      %v2166 = vadd.f32 %v1752, %v2111
      %v2167 = vadd.f32 %v1755, %v2114
      %v2168 = vadd.f32 %v1758, %v2117
      %v2169 = vadd.f32 %v1761, %v2120
      %2170 = vst.msk [vmem:[#allocation3] sm:$0xff] %vm1145, %v2122
      %2171 = vst.msk [vmem:[#allocation3 + $0x8] sm:$0xff] %vm1145, %v2123
      %2172 = vst.msk [vmem:[#allocation3 + $0x10] sm:$0xff] %vm1145, %v2124
      %2173 = vst.msk [vmem:[#allocation3 + $0x18] sm:$0xff] %vm1145, %v2125
      %2174 = vst.msk [vmem:[#allocation3 + $0x20] sm:$0xff] %vm1145, %v2126
      %2175 = vst.msk [vmem:[#allocation3 + $0x28] sm:$0xff] %vm1145, %v2127
      %2176 = vst.msk [vmem:[#allocation3 + $0x30] sm:$0xff] %vm1145, %v2128
      %2177 = vst.msk [vmem:[#allocation3 + $0x38] sm:$0xff] %vm1145, %v2129
      %2178 = vst.msk [vmem:[#allocation3 + $0x40] sm:$0xff] %vm1145, %v2130
      %2179 = vst.msk [vmem:[#allocation3 + $0x48] sm:$0xff] %vm1145, %v2131
      %2180 = vst.msk [vmem:[#allocation3 + $0x50] sm:$0xff] %vm1145, %v2132
      %2181 = vst.msk [vmem:[#allocation3 + $0x58] sm:$0xff] %vm1145, %v2133
      %2182 = vst.msk [vmem:[#allocation3 + $0x60] sm:$0xff] %vm1145, %v2134
      %2183 = vst.msk [vmem:[#allocation3 + $0x68] sm:$0xff] %vm1145, %v2135
      %2184 = vst.msk [vmem:[#allocation3 + $0x70] sm:$0xff] %vm1145, %v2136
      %2185 = vst.msk [vmem:[#allocation3 + $0x78] sm:$0xff] %vm1145, %v2137
      %2186 = vst.msk [vmem:[#allocation3 + $0x80] sm:$0xff] %vm1145, %v2138
      %2187 = vst.msk [vmem:[#allocation3 + $0x88] sm:$0xff] %vm1145, %v2139
      %2188 = vst.msk [vmem:[#allocation3 + $0x90] sm:$0xff] %vm1145, %v2140
      %2189 = vst.msk [vmem:[#allocation3 + $0x98] sm:$0xff] %vm1145, %v2141
      %2190 = vst.msk [vmem:[#allocation3 + $0xa0] sm:$0xff] %vm1145, %v2142
      %2191 = vst.msk [vmem:[#allocation3 + $0xa8] sm:$0xff] %vm1145, %v2143
      %2192 = vst.msk [vmem:[#allocation3 + $0xb0] sm:$0xff] %vm1145, %v2144
      %2193 = vst.msk [vmem:[#allocation3 + $0xb8] sm:$0xff] %vm1145, %v2145
      %2194 = vst.msk [vmem:[#allocation3 + $0xc0] sm:$0xff] %vm1145, %v2146
      %2195 = vst.msk [vmem:[#allocation3 + $0xc8] sm:$0xff] %vm1145, %v2147
      %2196 = vst.msk [vmem:[#allocation3 + $0xd0] sm:$0xff] %vm1145, %v2148
      %2197 = vst.msk [vmem:[#allocation3 + $0xd8] sm:$0xff] %vm1145, %v2149
      %2198 = vst.msk [vmem:[#allocation3 + $0xe0] sm:$0xff] %vm1145, %v2150
      %2199 = vst.msk [vmem:[#allocation3 + $0xe8] sm:$0xff] %vm1145, %v2151
      %2200 = vst.msk [vmem:[#allocation3 + $0xf0] sm:$0xff] %vm1145, %v2152
      %2201 = vst.msk [vmem:[#allocation3 + $0xf8] sm:$0xff] %vm1145, %v2153
      %2202 = vst.msk [vmem:[#allocation3 + $0x100] sm:$0xff] %vm1145, %v2154
      %2203 = vst.msk [vmem:[#allocation3 + $0x108] sm:$0xff] %vm1145, %v2155
      %2204 = vst.msk [vmem:[#allocation3 + $0x110] sm:$0xff] %vm1145, %v2156
      %2205 = vst.msk [vmem:[#allocation3 + $0x118] sm:$0xff] %vm1145, %v2157
      %2206 = vst.msk [vmem:[#allocation3 + $0x120] sm:$0xff] %vm1145, %v2158
      %2207 = vst.msk [vmem:[#allocation3 + $0x128] sm:$0xff] %vm1145, %v2159
      %2208 = vst.msk [vmem:[#allocation3 + $0x130] sm:$0xff] %vm1145, %v2160
      %2209 = vst.msk [vmem:[#allocation3 + $0x138] sm:$0xff] %vm1145, %v2161
      %2210 = vst.msk [vmem:[#allocation3 + $0x140] sm:$0xff] %vm1145, %v2162
      %2211 = vst.msk [vmem:[#allocation3 + $0x148] sm:$0xff] %vm1145, %v2163
      %2212 = vst.msk [vmem:[#allocation3 + $0x150] sm:$0xff] %vm1145, %v2164
      %2213 = vst.msk [vmem:[#allocation3 + $0x158] sm:$0xff] %vm1145, %v2165
      %2214 = vst.msk [vmem:[#allocation3 + $0x160] sm:$0xff] %vm1145, %v2166
      %2215 = vst.msk [vmem:[#allocation3 + $0x168] sm:$0xff] %vm1145, %v2167
      %2216 = vst.msk [vmem:[#allocation3 + $0x170] sm:$0xff] %vm1145, %v2168
      %2217 = vst.msk [vmem:[#allocation3 + $0x178] sm:$0xff] %vm1145, %v2169
      %s2218 = scalar_lea.vmem [#allocation2], 48
      %v2219 = vld [vmem:[%s2218] sm:$0xff]
      %v2220 = vld [vmem:[%s2218 + $0x8] sm:$0xff]
      %v2221 = vld [vmem:[%s2218 + $0x10] sm:$0xff]
      %v2222 = vld [vmem:[%s2218 + $0x18] sm:$0xff]
      %v2223 = vld [vmem:[%s2218 + $0x20] sm:$0xff]
      %v2224 = vld [vmem:[%s2218 + $0x28] sm:$0xff]
      %v2225 = vld [vmem:[%s2218 + $0x30] sm:$0xff]
      %v2226 = vld [vmem:[%s2218 + $0x38] sm:$0xff]
      %v2227 = vld [vmem:[%s2218 + $0x40] sm:$0xff]
      %v2228 = vld [vmem:[%s2218 + $0x48] sm:$0xff]
      %v2229 = vld [vmem:[%s2218 + $0x50] sm:$0xff]
      %v2230 = vld [vmem:[%s2218 + $0x58] sm:$0xff]
      %v2231 = vld [vmem:[%s2218 + $0x60] sm:$0xff]
      %v2232 = vld [vmem:[%s2218 + $0x68] sm:$0xff]
      %v2233 = vld [vmem:[%s2218 + $0x70] sm:$0xff]
      %v2234 = vld [vmem:[%s2218 + $0x78] sm:$0xff]
      %v2235 = vld [vmem:[%s2218 + $0x80] sm:$0xff]
      %v2236 = vld [vmem:[%s2218 + $0x88] sm:$0xff]
      %v2237 = vld [vmem:[%s2218 + $0x90] sm:$0xff]
      %v2238 = vld [vmem:[%s2218 + $0x98] sm:$0xff]
      %v2239 = vld [vmem:[%s2218 + $0xa0] sm:$0xff]
      %v2240 = vld [vmem:[%s2218 + $0xa8] sm:$0xff]
      %v2241 = vld [vmem:[%s2218 + $0xb0] sm:$0xff]
      %v2242 = vld [vmem:[%s2218 + $0xb8] sm:$0xff]
      %v2243 = vld [vmem:[%s2218 + $0xc0] sm:$0xff]
      %v2244 = vld [vmem:[%s2218 + $0xc8] sm:$0xff]
      %v2245 = vld [vmem:[%s2218 + $0xd0] sm:$0xff]
      %v2246 = vld [vmem:[%s2218 + $0xd8] sm:$0xff]
      %v2247 = vld [vmem:[%s2218 + $0xe0] sm:$0xff]
      %v2248 = vld [vmem:[%s2218 + $0xe8] sm:$0xff]
      %v2249 = vld [vmem:[%s2218 + $0xf0] sm:$0xff]
      %v2250 = vld [vmem:[%s2218 + $0xf8] sm:$0xff]
      %v2251 = vld [vmem:[%s2218 + $0x100] sm:$0xff]
      %v2252 = vld [vmem:[%s2218 + $0x108] sm:$0xff]
      %v2253 = vld [vmem:[%s2218 + $0x110] sm:$0xff]
      %v2254 = vld [vmem:[%s2218 + $0x118] sm:$0xff]
      %v2255 = vld [vmem:[%s2218 + $0x120] sm:$0xff]
      %v2256 = vld [vmem:[%s2218 + $0x128] sm:$0xff]
      %v2257 = vld [vmem:[%s2218 + $0x130] sm:$0xff]
      %v2258 = vld [vmem:[%s2218 + $0x138] sm:$0xff]
      %v2259 = vld [vmem:[%s2218 + $0x140] sm:$0xff]
      %v2260 = vld [vmem:[%s2218 + $0x148] sm:$0xff]
      %v2261 = vld [vmem:[%s2218 + $0x150] sm:$0xff]
      %v2262 = vld [vmem:[%s2218 + $0x158] sm:$0xff]
      %v2263 = vld [vmem:[%s2218 + $0x160] sm:$0xff]
      %v2264 = vld [vmem:[%s2218 + $0x168] sm:$0xff]
      %v2265 = vld [vmem:[%s2218 + $0x170] sm:$0xff]
      %v2266 = vld [vmem:[%s2218 + $0x178] sm:$0xff]
      %v2267 = vld [vmem:[%s5] sm:$0x3]
      %v2268 = vld [vmem:[%s996] sm:$0xff]
      %v2269 = vld [vmem:[%s996 + $0x8] sm:$0xff]
      %v2270 = vld [vmem:[%s996 + $0x10] sm:$0xff]
      %v2271 = vld [vmem:[%s996 + $0x18] sm:$0xff]
      %v2272 = vld [vmem:[%s996 + $0x20] sm:$0xff]
      %v2273 = vld [vmem:[%s996 + $0x28] sm:$0xff]
      %v2274 = vld [vmem:[%s996 + $0x30] sm:$0xff]
      %v2275 = vld [vmem:[%s996 + $0x38] sm:$0xff]
      %v2276 = vld [vmem:[%s996 + $0x40] sm:$0xff]
      %v2277 = vld [vmem:[%s996 + $0x48] sm:$0xff]
      %v2278 = vld [vmem:[%s996 + $0x50] sm:$0xff]
      %v2279 = vld [vmem:[%s996 + $0x58] sm:$0xff]
      %v2280 = vld [vmem:[%s996 + $0x60] sm:$0xff]
      %v2281 = vld [vmem:[%s996 + $0x68] sm:$0xff]
      %v2282 = vld [vmem:[%s996 + $0x70] sm:$0xff]
      %v2283 = vld [vmem:[%s996 + $0x78] sm:$0xff]
      %v2284 = vld [vmem:[%s996 + $0x80] sm:$0xff]
      %v2285 = vld [vmem:[%s996 + $0x88] sm:$0xff]
      %v2286 = vld [vmem:[%s996 + $0x90] sm:$0xff]
      %v2287 = vld [vmem:[%s996 + $0x98] sm:$0xff]
      %v2288 = vld [vmem:[%s996 + $0xa0] sm:$0xff]
      %v2289 = vld [vmem:[%s996 + $0xa8] sm:$0xff]
      %v2290 = vld [vmem:[%s996 + $0xb0] sm:$0xff]
      %v2291 = vld [vmem:[%s996 + $0xb8] sm:$0xff]
      %v2292 = vld [vmem:[%s996 + $0xc0] sm:$0xff]
      %v2293 = vld [vmem:[%s996 + $0xc8] sm:$0xff]
      %v2294 = vld [vmem:[%s996 + $0xd0] sm:$0xff]
      %v2295 = vld [vmem:[%s996 + $0xd8] sm:$0xff]
      %v2296 = vld [vmem:[%s996 + $0xe0] sm:$0xff]
      %v2297 = vld [vmem:[%s996 + $0xe8] sm:$0xff]
      %v2298 = vld [vmem:[%s996 + $0xf0] sm:$0xff]
      %v2299 = vld [vmem:[%s996 + $0xf8] sm:$0xff]
      %v2300 = vld [vmem:[%s996 + $0x100] sm:$0xff]
      %v2301 = vld [vmem:[%s996 + $0x108] sm:$0xff]
      %v2302 = vld [vmem:[%s996 + $0x110] sm:$0xff]
      %v2303 = vld [vmem:[%s996 + $0x118] sm:$0xff]
      %v2304 = vld [vmem:[%s996 + $0x120] sm:$0xff]
      %v2305 = vld [vmem:[%s996 + $0x128] sm:$0xff]
      %v2306 = vld [vmem:[%s996 + $0x130] sm:$0xff]
      %v2307 = vld [vmem:[%s996 + $0x138] sm:$0xff]
      %v2308 = vld [vmem:[%s996 + $0x140] sm:$0xff]
      %v2309 = vld [vmem:[%s996 + $0x148] sm:$0xff]
      %v2310 = vld [vmem:[%s996 + $0x150] sm:$0xff]
      %v2311 = vld [vmem:[%s996 + $0x158] sm:$0xff]
      %v2312 = vld [vmem:[%s996 + $0x160] sm:$0xff]
      %v2313 = vld [vmem:[%s996 + $0x168] sm:$0xff]
      %v2314 = vld [vmem:[%s996 + $0x170] sm:$0xff]
      %v2315 = vld [vmem:[%s996 + $0x178] sm:$0xff]
      %s2316 = scalar_lea.vmem %s5, 2
      %v2317 = vld [vmem:[%s2316] sm:$0x3]
      %2366 = vrot.lane.b32.xlu0 %v2268, 126
      %v2367 = vpop.permute.xlu0 %2366
      %2368 = vrot.lane.b32.xlu0 %v2269, 126
      %v2369 = vpop.permute.xlu0 %2368
      %2370 = vrot.lane.b32.xlu0 %v2270, 126
      %v2371 = vpop.permute.xlu0 %2370
      %2372 = vrot.lane.b32.xlu0 %v2271, 126
      %v2373 = vpop.permute.xlu0 %2372
      %2374 = vrot.lane.b32.xlu0 %v2272, 126
      %v2375 = vpop.permute.xlu0 %2374
      %2376 = vrot.lane.b32.xlu0 %v2273, 126
      %v2377 = vpop.permute.xlu0 %2376
      %2378 = vrot.lane.b32.xlu0 %v2274, 126
      %v2379 = vpop.permute.xlu0 %2378
      %2380 = vrot.lane.b32.xlu0 %v2275, 126
      %v2381 = vpop.permute.xlu0 %2380
      %2382 = vrot.lane.b32.xlu0 %v2276, 126
      %v2383 = vpop.permute.xlu0 %2382
      %2384 = vrot.lane.b32.xlu0 %v2277, 126
      %v2385 = vpop.permute.xlu0 %2384
      %2386 = vrot.lane.b32.xlu0 %v2278, 126
      %v2387 = vpop.permute.xlu0 %2386
      %2388 = vrot.lane.b32.xlu0 %v2279, 126
      %v2389 = vpop.permute.xlu0 %2388
      %2390 = vrot.lane.b32.xlu0 %v2280, 126
      %v2391 = vpop.permute.xlu0 %2390
      %2392 = vrot.lane.b32.xlu0 %v2281, 126
      %v2393 = vpop.permute.xlu0 %2392
      %2394 = vrot.lane.b32.xlu0 %v2282, 126
      %v2395 = vpop.permute.xlu0 %2394
      %2396 = vrot.lane.b32.xlu0 %v2283, 126
      %v2397 = vpop.permute.xlu0 %2396
      %2398 = vrot.lane.b32.xlu0 %v2284, 126
      %v2399 = vpop.permute.xlu0 %2398
      %2400 = vrot.lane.b32.xlu0 %v2285, 126
      %v2401 = vpop.permute.xlu0 %2400
      %2402 = vrot.lane.b32.xlu0 %v2286, 126
      %v2403 = vpop.permute.xlu0 %2402
      %2404 = vrot.lane.b32.xlu0 %v2287, 126
      %v2405 = vpop.permute.xlu0 %2404
      %2406 = vrot.lane.b32.xlu0 %v2288, 126
      %v2407 = vpop.permute.xlu0 %2406
      %2408 = vrot.lane.b32.xlu0 %v2289, 126
      %v2409 = vpop.permute.xlu0 %2408
      %2410 = vrot.lane.b32.xlu0 %v2290, 126
      %v2411 = vpop.permute.xlu0 %2410
      %2412 = vrot.lane.b32.xlu0 %v2291, 126
      %v2413 = vpop.permute.xlu0 %2412
      %2414 = vrot.lane.b32.xlu0 %v2292, 126
      %v2415 = vpop.permute.xlu0 %2414
      %2416 = vrot.lane.b32.xlu0 %v2293, 126
      %v2417 = vpop.permute.xlu0 %2416
      %2418 = vrot.lane.b32.xlu0 %v2294, 126
      %v2419 = vpop.permute.xlu0 %2418
      %2420 = vrot.lane.b32.xlu0 %v2295, 126
      %v2421 = vpop.permute.xlu0 %2420
      %2422 = vrot.lane.b32.xlu0 %v2296, 126
      %v2423 = vpop.permute.xlu0 %2422
      %2424 = vrot.lane.b32.xlu0 %v2297, 126
      %v2425 = vpop.permute.xlu0 %2424
      %2426 = vrot.lane.b32.xlu0 %v2298, 126
      %v2427 = vpop.permute.xlu0 %2426
      %2428 = vrot.lane.b32.xlu0 %v2299, 126
      %v2429 = vpop.permute.xlu0 %2428
      %2430 = vrot.lane.b32.xlu0 %v2300, 126
      %v2431 = vpop.permute.xlu0 %2430
      %2432 = vrot.lane.b32.xlu0 %v2301, 126
      %v2433 = vpop.permute.xlu0 %2432
      %2434 = vrot.lane.b32.xlu0 %v2302, 126
      %v2435 = vpop.permute.xlu0 %2434
      %2436 = vrot.lane.b32.xlu0 %v2303, 126
      %v2437 = vpop.permute.xlu0 %2436
      %2438 = vrot.lane.b32.xlu0 %v2304, 126
      %v2439 = vpop.permute.xlu0 %2438
      %2440 = vrot.lane.b32.xlu0 %v2305, 126
      %v2441 = vpop.permute.xlu0 %2440
      %2442 = vrot.lane.b32.xlu0 %v2306, 126
      %v2443 = vpop.permute.xlu0 %2442
      %2444 = vrot.lane.b32.xlu0 %v2307, 126
      %v2445 = vpop.permute.xlu0 %2444
      %2446 = vrot.lane.b32.xlu0 %v2308, 126
      %v2447 = vpop.permute.xlu0 %2446
      %2448 = vrot.lane.b32.xlu0 %v2309, 126
      %v2449 = vpop.permute.xlu0 %2448
      %2450 = vrot.lane.b32.xlu0 %v2310, 126
      %v2451 = vpop.permute.xlu0 %2450
      %2452 = vrot.lane.b32.xlu0 %v2311, 126
      %v2453 = vpop.permute.xlu0 %2452
      %2454 = vrot.lane.b32.xlu0 %v2312, 126
      %v2455 = vpop.permute.xlu0 %2454
      %2456 = vrot.lane.b32.xlu0 %v2313, 126
      %v2457 = vpop.permute.xlu0 %2456
      %2458 = vrot.lane.b32.xlu0 %v2314, 126
      %v2459 = vpop.permute.xlu0 %2458
      %2460 = vrot.lane.b32.xlu0 %v2315, 126
      %v2461 = vpop.permute.xlu0 %2460
      %v2462 = vsel %vm1145, %v2367, 0
      %v2464 = vsel %vm1145, %v2369, 0
      %v2466 = vsel %vm1145, %v2371, 0
      %v2468 = vsel %vm1145, %v2373, 0
      %v2470 = vsel %vm1145, %v2375, 0
      %v2472 = vsel %vm1145, %v2377, 0
      %v2474 = vsel %vm1145, %v2379, 0
      %v2476 = vsel %vm1145, %v2381, 0
      %v2478 = vsel %vm1145, %v2383, 0
      %v2480 = vsel %vm1145, %v2385, 0
      %v2482 = vsel %vm1145, %v2387, 0
      %v2484 = vsel %vm1145, %v2389, 0
      %v2486 = vsel %vm1145, %v2391, 0
      %v2488 = vsel %vm1145, %v2393, 0
      %v2490 = vsel %vm1145, %v2395, 0
      %v2492 = vsel %vm1145, %v2397, 0
      %v2494 = vsel %vm1145, %v2399, 0
      %v2496 = vsel %vm1145, %v2401, 0
      %v2498 = vsel %vm1145, %v2403, 0
      %v2500 = vsel %vm1145, %v2405, 0
      %v2502 = vsel %vm1145, %v2407, 0
      %v2504 = vsel %vm1145, %v2409, 0
      %v2506 = vsel %vm1145, %v2411, 0
      %v2508 = vsel %vm1145, %v2413, 0
      %v2510 = vsel %vm1145, %v2415, 0
      %v2512 = vsel %vm1145, %v2417, 0
      %v2514 = vsel %vm1145, %v2419, 0
      %v2516 = vsel %vm1145, %v2421, 0
      %v2518 = vsel %vm1145, %v2423, 0
      %v2520 = vsel %vm1145, %v2425, 0
      %v2522 = vsel %vm1145, %v2427, 0
      %v2524 = vsel %vm1145, %v2429, 0
      %v2526 = vsel %vm1145, %v2431, 0
      %v2528 = vsel %vm1145, %v2433, 0
      %v2530 = vsel %vm1145, %v2435, 0
      %v2532 = vsel %vm1145, %v2437, 0
      %v2534 = vsel %vm1145, %v2439, 0
      %v2536 = vsel %vm1145, %v2441, 0
      %v2538 = vsel %vm1145, %v2443, 0
      %v2540 = vsel %vm1145, %v2445, 0
      %v2542 = vsel %vm1145, %v2447, 0
      %v2544 = vsel %vm1145, %v2449, 0
      %v2546 = vsel %vm1145, %v2451, 0
      %v2548 = vsel %vm1145, %v2453, 0
      %v2550 = vsel %vm1145, %v2455, 0
      %v2552 = vsel %vm1145, %v2457, 0
      %v2554 = vsel %vm1145, %v2459, 0
      %v2556 = vsel %vm1145, %v2461, 0
      %v2559 = vsel %vm1290, %v2317, 0
      %2561 = vmatpush.msra.mxu0 0.0
      %2562 = vmatpush.msra.mxu0 0.0
      %2563 = vmatpush.msra.mxu0 0.0
      %2564 = vmatpush.msra.mxu0 0.0
      %2565 = vmatpush.msra.mxu0 0.0
      %2566 = vmatpush.msra.mxu0 0.0
      %2567 = vmatpush.msra.mxu0 0.0
      %2568 = vmatpush.msra.mxu0 0.0
      %2569 = vmatpush.msra.mxu0 0.0
      %2570 = vmatpush.msra.mxu0 0.0
      %2571 = vmatpush.msra.mxu0 0.0
      %2572 = vmatpush.msra.mxu0 0.0
      %2573 = vmatpush.msra.mxu0 0.0
      %2574 = vmatpush.msra.mxu0 0.0
      %2575 = vmatpush.msra.mxu0 0.0
      %2576 = vmatpush.msra.mxu0 %v2559
      %2577 = vmatmul.f32.gmra.mxu0 %v2462
      %v2578 = vpop.f32.mrf.mxu0
      %v2579 = vadd.f32 0.0, %v2578
      %2580 = vmatmul.f32.gmra.mxu0 %v2464
      %v2581 = vpop.f32.mrf.mxu0
      %v2582 = vadd.f32 0.0, %v2581
      %2583 = vmatmul.f32.gmra.mxu0 %v2466
      %v2584 = vpop.f32.mrf.mxu0
      %v2585 = vadd.f32 0.0, %v2584
      %2586 = vmatmul.f32.gmra.mxu0 %v2468
      %v2587 = vpop.f32.mrf.mxu0
      %v2588 = vadd.f32 0.0, %v2587
      %2589 = vmatmul.f32.gmra.mxu0 %v2470
      %v2590 = vpop.f32.mrf.mxu0
      %v2591 = vadd.f32 0.0, %v2590
      %2592 = vmatmul.f32.gmra.mxu0 %v2472
      %v2593 = vpop.f32.mrf.mxu0
      %v2594 = vadd.f32 0.0, %v2593
      %2595 = vmatmul.f32.gmra.mxu0 %v2474
      %v2596 = vpop.f32.mrf.mxu0
      %v2597 = vadd.f32 0.0, %v2596
      %2598 = vmatmul.f32.gmra.mxu0 %v2476
      %v2599 = vpop.f32.mrf.mxu0
      %v2600 = vadd.f32 0.0, %v2599
      %2601 = vmatmul.f32.gmra.mxu0 %v2478
      %v2602 = vpop.f32.mrf.mxu0
      %v2603 = vadd.f32 0.0, %v2602
      %2604 = vmatmul.f32.gmra.mxu0 %v2480
      %v2605 = vpop.f32.mrf.mxu0
      %v2606 = vadd.f32 0.0, %v2605
      %2607 = vmatmul.f32.gmra.mxu0 %v2482
      %v2608 = vpop.f32.mrf.mxu0
      %v2609 = vadd.f32 0.0, %v2608
      %2610 = vmatmul.f32.gmra.mxu0 %v2484
      %v2611 = vpop.f32.mrf.mxu0
      %v2612 = vadd.f32 0.0, %v2611
      %2613 = vmatmul.f32.gmra.mxu0 %v2486
      %v2614 = vpop.f32.mrf.mxu0
      %v2615 = vadd.f32 0.0, %v2614
      %2616 = vmatmul.f32.gmra.mxu0 %v2488
      %v2617 = vpop.f32.mrf.mxu0
      %v2618 = vadd.f32 0.0, %v2617
      %2619 = vmatmul.f32.gmra.mxu0 %v2490
      %v2620 = vpop.f32.mrf.mxu0
      %v2621 = vadd.f32 0.0, %v2620
      %2622 = vmatmul.f32.gmra.mxu0 %v2492
      %v2623 = vpop.f32.mrf.mxu0
      %v2624 = vadd.f32 0.0, %v2623
      %2625 = vmatmul.f32.gmra.mxu0 %v2494
      %v2626 = vpop.f32.mrf.mxu0
      %v2627 = vadd.f32 0.0, %v2626
      %2628 = vmatmul.f32.gmra.mxu0 %v2496
      %v2629 = vpop.f32.mrf.mxu0
      %v2630 = vadd.f32 0.0, %v2629
      %2631 = vmatmul.f32.gmra.mxu0 %v2498
      %v2632 = vpop.f32.mrf.mxu0
      %v2633 = vadd.f32 0.0, %v2632
      %2634 = vmatmul.f32.gmra.mxu0 %v2500
      %v2635 = vpop.f32.mrf.mxu0
      %v2636 = vadd.f32 0.0, %v2635
      %2637 = vmatmul.f32.gmra.mxu0 %v2502
      %v2638 = vpop.f32.mrf.mxu0
      %v2639 = vadd.f32 0.0, %v2638
      %2640 = vmatmul.f32.gmra.mxu0 %v2504
      %v2641 = vpop.f32.mrf.mxu0
      %v2642 = vadd.f32 0.0, %v2641
      %2643 = vmatmul.f32.gmra.mxu0 %v2506
      %v2644 = vpop.f32.mrf.mxu0
      %v2645 = vadd.f32 0.0, %v2644
      %2646 = vmatmul.f32.gmra.mxu0 %v2508
      %v2647 = vpop.f32.mrf.mxu0
      %v2648 = vadd.f32 0.0, %v2647
      %2649 = vmatmul.f32.gmra.mxu0 %v2510
      %v2650 = vpop.f32.mrf.mxu0
      %v2651 = vadd.f32 0.0, %v2650
      %2652 = vmatmul.f32.gmra.mxu0 %v2512
      %v2653 = vpop.f32.mrf.mxu0
      %v2654 = vadd.f32 0.0, %v2653
      %2655 = vmatmul.f32.gmra.mxu0 %v2514
      %v2656 = vpop.f32.mrf.mxu0
      %v2657 = vadd.f32 0.0, %v2656
      %2658 = vmatmul.f32.gmra.mxu0 %v2516
      %v2659 = vpop.f32.mrf.mxu0
      %v2660 = vadd.f32 0.0, %v2659
      %2661 = vmatmul.f32.gmra.mxu0 %v2518
      %v2662 = vpop.f32.mrf.mxu0
      %v2663 = vadd.f32 0.0, %v2662
      %2664 = vmatmul.f32.gmra.mxu0 %v2520
      %v2665 = vpop.f32.mrf.mxu0
      %v2666 = vadd.f32 0.0, %v2665
      %2667 = vmatmul.f32.gmra.mxu0 %v2522
      %v2668 = vpop.f32.mrf.mxu0
      %v2669 = vadd.f32 0.0, %v2668
      %2670 = vmatmul.f32.gmra.mxu0 %v2524
      %v2671 = vpop.f32.mrf.mxu0
      %v2672 = vadd.f32 0.0, %v2671
      %2673 = vmatmul.f32.gmra.mxu0 %v2526
      %v2674 = vpop.f32.mrf.mxu0
      %v2675 = vadd.f32 0.0, %v2674
      %2676 = vmatmul.f32.gmra.mxu0 %v2528
      %v2677 = vpop.f32.mrf.mxu0
      %v2678 = vadd.f32 0.0, %v2677
      %2679 = vmatmul.f32.gmra.mxu0 %v2530
      %v2680 = vpop.f32.mrf.mxu0
      %v2681 = vadd.f32 0.0, %v2680
      %2682 = vmatmul.f32.gmra.mxu0 %v2532
      %v2683 = vpop.f32.mrf.mxu0
      %v2684 = vadd.f32 0.0, %v2683
      %2685 = vmatmul.f32.gmra.mxu0 %v2534
      %v2686 = vpop.f32.mrf.mxu0
      %v2687 = vadd.f32 0.0, %v2686
      %2688 = vmatmul.f32.gmra.mxu0 %v2536
      %v2689 = vpop.f32.mrf.mxu0
      %v2690 = vadd.f32 0.0, %v2689
      %2691 = vmatmul.f32.gmra.mxu0 %v2538
      %v2692 = vpop.f32.mrf.mxu0
      %v2693 = vadd.f32 0.0, %v2692
      %2694 = vmatmul.f32.gmra.mxu0 %v2540
      %v2695 = vpop.f32.mrf.mxu0
      %v2696 = vadd.f32 0.0, %v2695
      %2697 = vmatmul.f32.gmra.mxu0 %v2542
      %v2698 = vpop.f32.mrf.mxu0
      %v2699 = vadd.f32 0.0, %v2698
      %2700 = vmatmul.f32.gmra.mxu0 %v2544
      %v2701 = vpop.f32.mrf.mxu0
      %v2702 = vadd.f32 0.0, %v2701
      %2703 = vmatmul.f32.gmra.mxu0 %v2546
      %v2704 = vpop.f32.mrf.mxu0
      %v2705 = vadd.f32 0.0, %v2704
      %2706 = vmatmul.f32.gmra.mxu0 %v2548
      %v2707 = vpop.f32.mrf.mxu0
      %v2708 = vadd.f32 0.0, %v2707
      %2709 = vmatmul.f32.gmra.mxu0 %v2550
      %v2710 = vpop.f32.mrf.mxu0
      %v2711 = vadd.f32 0.0, %v2710
      %2712 = vmatmul.f32.gmra.mxu0 %v2552
      %v2713 = vpop.f32.mrf.mxu0
      %v2714 = vadd.f32 0.0, %v2713
      %2715 = vmatmul.f32.gmra.mxu0 %v2554
      %v2716 = vpop.f32.mrf.mxu0
      %v2717 = vadd.f32 0.0, %v2716
      %2718 = vmatmul.f32.gmra.mxu0 %v2556
      %v2719 = vpop.f32.mrf.mxu0
      %v2720 = vadd.f32 0.0, %v2719
      %2721 = vdwg.mxu0
      %2770 = vrot.lane.b32.xlu0 %v2219, 126
      %v2771 = vpop.permute.xlu0 %2770
      %2772 = vrot.lane.b32.xlu0 %v2220, 126
      %v2773 = vpop.permute.xlu0 %2772
      %2774 = vrot.lane.b32.xlu0 %v2221, 126
      %v2775 = vpop.permute.xlu0 %2774
      %2776 = vrot.lane.b32.xlu0 %v2222, 126
      %v2777 = vpop.permute.xlu0 %2776
      %2778 = vrot.lane.b32.xlu0 %v2223, 126
      %v2779 = vpop.permute.xlu0 %2778
      %2780 = vrot.lane.b32.xlu0 %v2224, 126
      %v2781 = vpop.permute.xlu0 %2780
      %2782 = vrot.lane.b32.xlu0 %v2225, 126
      %v2783 = vpop.permute.xlu0 %2782
      %2784 = vrot.lane.b32.xlu0 %v2226, 126
      %v2785 = vpop.permute.xlu0 %2784
      %2786 = vrot.lane.b32.xlu0 %v2227, 126
      %v2787 = vpop.permute.xlu0 %2786
      %2788 = vrot.lane.b32.xlu0 %v2228, 126
      %v2789 = vpop.permute.xlu0 %2788
      %2790 = vrot.lane.b32.xlu0 %v2229, 126
      %v2791 = vpop.permute.xlu0 %2790
      %2792 = vrot.lane.b32.xlu0 %v2230, 126
      %v2793 = vpop.permute.xlu0 %2792
      %2794 = vrot.lane.b32.xlu0 %v2231, 126
      %v2795 = vpop.permute.xlu0 %2794
      %2796 = vrot.lane.b32.xlu0 %v2232, 126
      %v2797 = vpop.permute.xlu0 %2796
      %2798 = vrot.lane.b32.xlu0 %v2233, 126
      %v2799 = vpop.permute.xlu0 %2798
      %2800 = vrot.lane.b32.xlu0 %v2234, 126
      %v2801 = vpop.permute.xlu0 %2800
      %2802 = vrot.lane.b32.xlu0 %v2235, 126
      %v2803 = vpop.permute.xlu0 %2802
      %2804 = vrot.lane.b32.xlu0 %v2236, 126
      %v2805 = vpop.permute.xlu0 %2804
      %2806 = vrot.lane.b32.xlu0 %v2237, 126
      %v2807 = vpop.permute.xlu0 %2806
      %2808 = vrot.lane.b32.xlu0 %v2238, 126
      %v2809 = vpop.permute.xlu0 %2808
      %2810 = vrot.lane.b32.xlu0 %v2239, 126
      %v2811 = vpop.permute.xlu0 %2810
      %2812 = vrot.lane.b32.xlu0 %v2240, 126
      %v2813 = vpop.permute.xlu0 %2812
      %2814 = vrot.lane.b32.xlu0 %v2241, 126
      %v2815 = vpop.permute.xlu0 %2814
      %2816 = vrot.lane.b32.xlu0 %v2242, 126
      %v2817 = vpop.permute.xlu0 %2816
      %2818 = vrot.lane.b32.xlu0 %v2243, 126
      %v2819 = vpop.permute.xlu0 %2818
      %2820 = vrot.lane.b32.xlu0 %v2244, 126
      %v2821 = vpop.permute.xlu0 %2820
      %2822 = vrot.lane.b32.xlu0 %v2245, 126
      %v2823 = vpop.permute.xlu0 %2822
      %2824 = vrot.lane.b32.xlu0 %v2246, 126
      %v2825 = vpop.permute.xlu0 %2824
      %2826 = vrot.lane.b32.xlu0 %v2247, 126
      %v2827 = vpop.permute.xlu0 %2826
      %2828 = vrot.lane.b32.xlu0 %v2248, 126
      %v2829 = vpop.permute.xlu0 %2828
      %2830 = vrot.lane.b32.xlu0 %v2249, 126
      %v2831 = vpop.permute.xlu0 %2830
      %2832 = vrot.lane.b32.xlu0 %v2250, 126
      %v2833 = vpop.permute.xlu0 %2832
      %2834 = vrot.lane.b32.xlu0 %v2251, 126
      %v2835 = vpop.permute.xlu0 %2834
      %2836 = vrot.lane.b32.xlu0 %v2252, 126
      %v2837 = vpop.permute.xlu0 %2836
      %2838 = vrot.lane.b32.xlu0 %v2253, 126
      %v2839 = vpop.permute.xlu0 %2838
      %2840 = vrot.lane.b32.xlu0 %v2254, 126
      %v2841 = vpop.permute.xlu0 %2840
      %2842 = vrot.lane.b32.xlu0 %v2255, 126
      %v2843 = vpop.permute.xlu0 %2842
      %2844 = vrot.lane.b32.xlu0 %v2256, 126
      %v2845 = vpop.permute.xlu0 %2844
      %2846 = vrot.lane.b32.xlu0 %v2257, 126
      %v2847 = vpop.permute.xlu0 %2846
      %2848 = vrot.lane.b32.xlu0 %v2258, 126
      %v2849 = vpop.permute.xlu0 %2848
      %2850 = vrot.lane.b32.xlu0 %v2259, 126
      %v2851 = vpop.permute.xlu0 %2850
      %2852 = vrot.lane.b32.xlu0 %v2260, 126
      %v2853 = vpop.permute.xlu0 %2852
      %2854 = vrot.lane.b32.xlu0 %v2261, 126
      %v2855 = vpop.permute.xlu0 %2854
      %2856 = vrot.lane.b32.xlu0 %v2262, 126
      %v2857 = vpop.permute.xlu0 %2856
      %2858 = vrot.lane.b32.xlu0 %v2263, 126
      %v2859 = vpop.permute.xlu0 %2858
      %2860 = vrot.lane.b32.xlu0 %v2264, 126
      %v2861 = vpop.permute.xlu0 %2860
      %2862 = vrot.lane.b32.xlu0 %v2265, 126
      %v2863 = vpop.permute.xlu0 %2862
      %2864 = vrot.lane.b32.xlu0 %v2266, 126
      %v2865 = vpop.permute.xlu0 %2864
      %v2866 = vsel %vm1145, %v2771, 0
      %v2868 = vsel %vm1145, %v2773, 0
      %v2870 = vsel %vm1145, %v2775, 0
      %v2872 = vsel %vm1145, %v2777, 0
      %v2874 = vsel %vm1145, %v2779, 0
      %v2876 = vsel %vm1145, %v2781, 0
      %v2878 = vsel %vm1145, %v2783, 0
      %v2880 = vsel %vm1145, %v2785, 0
      %v2882 = vsel %vm1145, %v2787, 0
      %v2884 = vsel %vm1145, %v2789, 0
      %v2886 = vsel %vm1145, %v2791, 0
      %v2888 = vsel %vm1145, %v2793, 0
      %v2890 = vsel %vm1145, %v2795, 0
      %v2892 = vsel %vm1145, %v2797, 0
      %v2894 = vsel %vm1145, %v2799, 0
      %v2896 = vsel %vm1145, %v2801, 0
      %v2898 = vsel %vm1145, %v2803, 0
      %v2900 = vsel %vm1145, %v2805, 0
      %v2902 = vsel %vm1145, %v2807, 0
      %v2904 = vsel %vm1145, %v2809, 0
      %v2906 = vsel %vm1145, %v2811, 0
      %v2908 = vsel %vm1145, %v2813, 0
      %v2910 = vsel %vm1145, %v2815, 0
      %v2912 = vsel %vm1145, %v2817, 0
      %v2914 = vsel %vm1145, %v2819, 0
      %v2916 = vsel %vm1145, %v2821, 0
      %v2918 = vsel %vm1145, %v2823, 0
      %v2920 = vsel %vm1145, %v2825, 0
      %v2922 = vsel %vm1145, %v2827, 0
      %v2924 = vsel %vm1145, %v2829, 0
      %v2926 = vsel %vm1145, %v2831, 0
      %v2928 = vsel %vm1145, %v2833, 0
      %v2930 = vsel %vm1145, %v2835, 0
      %v2932 = vsel %vm1145, %v2837, 0
      %v2934 = vsel %vm1145, %v2839, 0
      %v2936 = vsel %vm1145, %v2841, 0
      %v2938 = vsel %vm1145, %v2843, 0
      %v2940 = vsel %vm1145, %v2845, 0
      %v2942 = vsel %vm1145, %v2847, 0
      %v2944 = vsel %vm1145, %v2849, 0
      %v2946 = vsel %vm1145, %v2851, 0
      %v2948 = vsel %vm1145, %v2853, 0
      %v2950 = vsel %vm1145, %v2855, 0
      %v2952 = vsel %vm1145, %v2857, 0
      %v2954 = vsel %vm1145, %v2859, 0
      %v2956 = vsel %vm1145, %v2861, 0
      %v2958 = vsel %vm1145, %v2863, 0
      %v2960 = vsel %vm1145, %v2865, 0
      %v2963 = vsel %vm1290, %v2267, 0
      %2965 = vmatpush.msra.mxu0 0.0
      %2966 = vmatpush.msra.mxu0 0.0
      %2967 = vmatpush.msra.mxu0 0.0
      %2968 = vmatpush.msra.mxu0 0.0
      %2969 = vmatpush.msra.mxu0 0.0
      %2970 = vmatpush.msra.mxu0 0.0
      %2971 = vmatpush.msra.mxu0 0.0
      %2972 = vmatpush.msra.mxu0 0.0
      %2973 = vmatpush.msra.mxu0 0.0
      %2974 = vmatpush.msra.mxu0 0.0
      %2975 = vmatpush.msra.mxu0 0.0
      %2976 = vmatpush.msra.mxu0 0.0
      %2977 = vmatpush.msra.mxu0 0.0
      %2978 = vmatpush.msra.mxu0 0.0
      %2979 = vmatpush.msra.mxu0 0.0
      %2980 = vmatpush.msra.mxu0 %v2963
      %2981 = vmatmul.f32.gmra.mxu0 %v2866
      %v2982 = vpop.f32.mrf.mxu0
      %v2983 = vadd.f32 %v2579, %v2982
      %2984 = vmatmul.f32.gmra.mxu0 %v2868
      %v2985 = vpop.f32.mrf.mxu0
      %v2986 = vadd.f32 %v2582, %v2985
      %2987 = vmatmul.f32.gmra.mxu0 %v2870
      %v2988 = vpop.f32.mrf.mxu0
      %v2989 = vadd.f32 %v2585, %v2988
      %2990 = vmatmul.f32.gmra.mxu0 %v2872
      %v2991 = vpop.f32.mrf.mxu0
      %v2992 = vadd.f32 %v2588, %v2991
      %2993 = vmatmul.f32.gmra.mxu0 %v2874
      %v2994 = vpop.f32.mrf.mxu0
      %v2995 = vadd.f32 %v2591, %v2994
      %2996 = vmatmul.f32.gmra.mxu0 %v2876
      %v2997 = vpop.f32.mrf.mxu0
      %v2998 = vadd.f32 %v2594, %v2997
      %2999 = vmatmul.f32.gmra.mxu0 %v2878
      %v3000 = vpop.f32.mrf.mxu0
      %v3001 = vadd.f32 %v2597, %v3000
      %3002 = vmatmul.f32.gmra.mxu0 %v2880
      %v3003 = vpop.f32.mrf.mxu0
      %v3004 = vadd.f32 %v2600, %v3003
      %3005 = vmatmul.f32.gmra.mxu0 %v2882
      %v3006 = vpop.f32.mrf.mxu0
      %v3007 = vadd.f32 %v2603, %v3006
      %3008 = vmatmul.f32.gmra.mxu0 %v2884
      %v3009 = vpop.f32.mrf.mxu0
      %v3010 = vadd.f32 %v2606, %v3009
      %3011 = vmatmul.f32.gmra.mxu0 %v2886
      %v3012 = vpop.f32.mrf.mxu0
      %v3013 = vadd.f32 %v2609, %v3012
      %3014 = vmatmul.f32.gmra.mxu0 %v2888
      %v3015 = vpop.f32.mrf.mxu0
      %v3016 = vadd.f32 %v2612, %v3015
      %3017 = vmatmul.f32.gmra.mxu0 %v2890
      %v3018 = vpop.f32.mrf.mxu0
      %v3019 = vadd.f32 %v2615, %v3018
      %3020 = vmatmul.f32.gmra.mxu0 %v2892
      %v3021 = vpop.f32.mrf.mxu0
      %v3022 = vadd.f32 %v2618, %v3021
      %3023 = vmatmul.f32.gmra.mxu0 %v2894
      %v3024 = vpop.f32.mrf.mxu0
      %v3025 = vadd.f32 %v2621, %v3024
      %3026 = vmatmul.f32.gmra.mxu0 %v2896
      %v3027 = vpop.f32.mrf.mxu0
      %v3028 = vadd.f32 %v2624, %v3027
      %3029 = vmatmul.f32.gmra.mxu0 %v2898
      %v3030 = vpop.f32.mrf.mxu0
      %v3031 = vadd.f32 %v2627, %v3030
      %3032 = vmatmul.f32.gmra.mxu0 %v2900
      %v3033 = vpop.f32.mrf.mxu0
      %v3034 = vadd.f32 %v2630, %v3033
      %3035 = vmatmul.f32.gmra.mxu0 %v2902
      %v3036 = vpop.f32.mrf.mxu0
      %v3037 = vadd.f32 %v2633, %v3036
      %3038 = vmatmul.f32.gmra.mxu0 %v2904
      %v3039 = vpop.f32.mrf.mxu0
      %v3040 = vadd.f32 %v2636, %v3039
      %3041 = vmatmul.f32.gmra.mxu0 %v2906
      %v3042 = vpop.f32.mrf.mxu0
      %v3043 = vadd.f32 %v2639, %v3042
      %3044 = vmatmul.f32.gmra.mxu0 %v2908
      %v3045 = vpop.f32.mrf.mxu0
      %v3046 = vadd.f32 %v2642, %v3045
      %3047 = vmatmul.f32.gmra.mxu0 %v2910
      %v3048 = vpop.f32.mrf.mxu0
      %v3049 = vadd.f32 %v2645, %v3048
      %3050 = vmatmul.f32.gmra.mxu0 %v2912
      %v3051 = vpop.f32.mrf.mxu0
      %v3052 = vadd.f32 %v2648, %v3051
      %3053 = vmatmul.f32.gmra.mxu0 %v2914
      %v3054 = vpop.f32.mrf.mxu0
      %v3055 = vadd.f32 %v2651, %v3054
      %3056 = vmatmul.f32.gmra.mxu0 %v2916
      %v3057 = vpop.f32.mrf.mxu0
      %v3058 = vadd.f32 %v2654, %v3057
      %3059 = vmatmul.f32.gmra.mxu0 %v2918
      %v3060 = vpop.f32.mrf.mxu0
      %v3061 = vadd.f32 %v2657, %v3060
      %3062 = vmatmul.f32.gmra.mxu0 %v2920
      %v3063 = vpop.f32.mrf.mxu0
      %v3064 = vadd.f32 %v2660, %v3063
      %3065 = vmatmul.f32.gmra.mxu0 %v2922
      %v3066 = vpop.f32.mrf.mxu0
      %v3067 = vadd.f32 %v2663, %v3066
      %3068 = vmatmul.f32.gmra.mxu0 %v2924
      %v3069 = vpop.f32.mrf.mxu0
      %v3070 = vadd.f32 %v2666, %v3069
      %3071 = vmatmul.f32.gmra.mxu0 %v2926
      %v3072 = vpop.f32.mrf.mxu0
      %v3073 = vadd.f32 %v2669, %v3072
      %3074 = vmatmul.f32.gmra.mxu0 %v2928
      %v3075 = vpop.f32.mrf.mxu0
      %v3076 = vadd.f32 %v2672, %v3075
      %3077 = vmatmul.f32.gmra.mxu0 %v2930
      %v3078 = vpop.f32.mrf.mxu0
      %v3079 = vadd.f32 %v2675, %v3078
      %3080 = vmatmul.f32.gmra.mxu0 %v2932
      %v3081 = vpop.f32.mrf.mxu0
      %v3082 = vadd.f32 %v2678, %v3081
      %3083 = vmatmul.f32.gmra.mxu0 %v2934
      %v3084 = vpop.f32.mrf.mxu0
      %v3085 = vadd.f32 %v2681, %v3084
      %3086 = vmatmul.f32.gmra.mxu0 %v2936
      %v3087 = vpop.f32.mrf.mxu0
      %v3088 = vadd.f32 %v2684, %v3087
      %3089 = vmatmul.f32.gmra.mxu0 %v2938
      %v3090 = vpop.f32.mrf.mxu0
      %v3091 = vadd.f32 %v2687, %v3090
      %3092 = vmatmul.f32.gmra.mxu0 %v2940
      %v3093 = vpop.f32.mrf.mxu0
      %v3094 = vadd.f32 %v2690, %v3093
      %3095 = vmatmul.f32.gmra.mxu0 %v2942
      %v3096 = vpop.f32.mrf.mxu0
      %v3097 = vadd.f32 %v2693, %v3096
      %3098 = vmatmul.f32.gmra.mxu0 %v2944
      %v3099 = vpop.f32.mrf.mxu0
      %v3100 = vadd.f32 %v2696, %v3099
      %3101 = vmatmul.f32.gmra.mxu0 %v2946
      %v3102 = vpop.f32.mrf.mxu0
      %v3103 = vadd.f32 %v2699, %v3102
      %3104 = vmatmul.f32.gmra.mxu0 %v2948
      %v3105 = vpop.f32.mrf.mxu0
      %v3106 = vadd.f32 %v2702, %v3105
      %3107 = vmatmul.f32.gmra.mxu0 %v2950
      %v3108 = vpop.f32.mrf.mxu0
      %v3109 = vadd.f32 %v2705, %v3108
      %3110 = vmatmul.f32.gmra.mxu0 %v2952
      %v3111 = vpop.f32.mrf.mxu0
      %v3112 = vadd.f32 %v2708, %v3111
      %3113 = vmatmul.f32.gmra.mxu0 %v2954
      %v3114 = vpop.f32.mrf.mxu0
      %v3115 = vadd.f32 %v2711, %v3114
      %3116 = vmatmul.f32.gmra.mxu0 %v2956
      %v3117 = vpop.f32.mrf.mxu0
      %v3118 = vadd.f32 %v2714, %v3117
      %3119 = vmatmul.f32.gmra.mxu0 %v2958
      %v3120 = vpop.f32.mrf.mxu0
      %v3121 = vadd.f32 %v2717, %v3120
      %3122 = vmatmul.f32.gmra.mxu0 %v2960
      %v3123 = vpop.f32.mrf.mxu0
      %v3124 = vadd.f32 %v2720, %v3123
      %3125 = vdwg.mxu0
      %s3126 = scalar_lea.vmem [#allocation2], 144
      %v3127 = vld [vmem:[%s3126] sm:$0xff]
      %v3128 = vld [vmem:[%s3126 + $0x8] sm:$0xff]
      %v3129 = vld [vmem:[%s3126 + $0x10] sm:$0xff]
      %v3130 = vld [vmem:[%s3126 + $0x18] sm:$0xff]
      %v3131 = vld [vmem:[%s3126 + $0x20] sm:$0xff]
      %v3132 = vld [vmem:[%s3126 + $0x28] sm:$0xff]
      %v3133 = vld [vmem:[%s3126 + $0x30] sm:$0xff]
      %v3134 = vld [vmem:[%s3126 + $0x38] sm:$0xff]
      %v3135 = vld [vmem:[%s3126 + $0x40] sm:$0xff]
      %v3136 = vld [vmem:[%s3126 + $0x48] sm:$0xff]
      %v3137 = vld [vmem:[%s3126 + $0x50] sm:$0xff]
      %v3138 = vld [vmem:[%s3126 + $0x58] sm:$0xff]
      %v3139 = vld [vmem:[%s3126 + $0x60] sm:$0xff]
      %v3140 = vld [vmem:[%s3126 + $0x68] sm:$0xff]
      %v3141 = vld [vmem:[%s3126 + $0x70] sm:$0xff]
      %v3142 = vld [vmem:[%s3126 + $0x78] sm:$0xff]
      %v3143 = vld [vmem:[%s3126 + $0x80] sm:$0xff]
      %v3144 = vld [vmem:[%s3126 + $0x88] sm:$0xff]
      %v3145 = vld [vmem:[%s3126 + $0x90] sm:$0xff]
      %v3146 = vld [vmem:[%s3126 + $0x98] sm:$0xff]
      %v3147 = vld [vmem:[%s3126 + $0xa0] sm:$0xff]
      %v3148 = vld [vmem:[%s3126 + $0xa8] sm:$0xff]
      %v3149 = vld [vmem:[%s3126 + $0xb0] sm:$0xff]
      %v3150 = vld [vmem:[%s3126 + $0xb8] sm:$0xff]
      %v3151 = vld [vmem:[%s3126 + $0xc0] sm:$0xff]
      %v3152 = vld [vmem:[%s3126 + $0xc8] sm:$0xff]
      %v3153 = vld [vmem:[%s3126 + $0xd0] sm:$0xff]
      %v3154 = vld [vmem:[%s3126 + $0xd8] sm:$0xff]
      %v3155 = vld [vmem:[%s3126 + $0xe0] sm:$0xff]
      %v3156 = vld [vmem:[%s3126 + $0xe8] sm:$0xff]
      %v3157 = vld [vmem:[%s3126 + $0xf0] sm:$0xff]
      %v3158 = vld [vmem:[%s3126 + $0xf8] sm:$0xff]
      %v3159 = vld [vmem:[%s3126 + $0x100] sm:$0xff]
      %v3160 = vld [vmem:[%s3126 + $0x108] sm:$0xff]
      %v3161 = vld [vmem:[%s3126 + $0x110] sm:$0xff]
      %v3162 = vld [vmem:[%s3126 + $0x118] sm:$0xff]
      %v3163 = vld [vmem:[%s3126 + $0x120] sm:$0xff]
      %v3164 = vld [vmem:[%s3126 + $0x128] sm:$0xff]
      %v3165 = vld [vmem:[%s3126 + $0x130] sm:$0xff]
      %v3166 = vld [vmem:[%s3126 + $0x138] sm:$0xff]
      %v3167 = vld [vmem:[%s3126 + $0x140] sm:$0xff]
      %v3168 = vld [vmem:[%s3126 + $0x148] sm:$0xff]
      %v3169 = vld [vmem:[%s3126 + $0x150] sm:$0xff]
      %v3170 = vld [vmem:[%s3126 + $0x158] sm:$0xff]
      %v3171 = vld [vmem:[%s3126 + $0x160] sm:$0xff]
      %v3172 = vld [vmem:[%s3126 + $0x168] sm:$0xff]
      %v3173 = vld [vmem:[%s3126 + $0x170] sm:$0xff]
      %v3174 = vld [vmem:[%s3126 + $0x178] sm:$0xff]
      %s3175 = scalar_lea.vmem %s5, 4
      %v3176 = vld [vmem:[%s3175] sm:$0x3]
      %3225 = vrot.lane.b32.xlu0 %v3127, 126
      %v3226 = vpop.permute.xlu0 %3225
      %3227 = vrot.lane.b32.xlu0 %v3128, 126
      %v3228 = vpop.permute.xlu0 %3227
      %3229 = vrot.lane.b32.xlu0 %v3129, 126
      %v3230 = vpop.permute.xlu0 %3229
      %3231 = vrot.lane.b32.xlu0 %v3130, 126
      %v3232 = vpop.permute.xlu0 %3231
      %3233 = vrot.lane.b32.xlu0 %v3131, 126
      %v3234 = vpop.permute.xlu0 %3233
      %3235 = vrot.lane.b32.xlu0 %v3132, 126
      %v3236 = vpop.permute.xlu0 %3235
      %3237 = vrot.lane.b32.xlu0 %v3133, 126
      %v3238 = vpop.permute.xlu0 %3237
      %3239 = vrot.lane.b32.xlu0 %v3134, 126
      %v3240 = vpop.permute.xlu0 %3239
      %3241 = vrot.lane.b32.xlu0 %v3135, 126
      %v3242 = vpop.permute.xlu0 %3241
      %3243 = vrot.lane.b32.xlu0 %v3136, 126
      %v3244 = vpop.permute.xlu0 %3243
      %3245 = vrot.lane.b32.xlu0 %v3137, 126
      %v3246 = vpop.permute.xlu0 %3245
      %3247 = vrot.lane.b32.xlu0 %v3138, 126
      %v3248 = vpop.permute.xlu0 %3247
      %3249 = vrot.lane.b32.xlu0 %v3139, 126
      %v3250 = vpop.permute.xlu0 %3249
      %3251 = vrot.lane.b32.xlu0 %v3140, 126
      %v3252 = vpop.permute.xlu0 %3251
      %3253 = vrot.lane.b32.xlu0 %v3141, 126
      %v3254 = vpop.permute.xlu0 %3253
      %3255 = vrot.lane.b32.xlu0 %v3142, 126
      %v3256 = vpop.permute.xlu0 %3255
      %3257 = vrot.lane.b32.xlu0 %v3143, 126
      %v3258 = vpop.permute.xlu0 %3257
      %3259 = vrot.lane.b32.xlu0 %v3144, 126
      %v3260 = vpop.permute.xlu0 %3259
      %3261 = vrot.lane.b32.xlu0 %v3145, 126
      %v3262 = vpop.permute.xlu0 %3261
      %3263 = vrot.lane.b32.xlu0 %v3146, 126
      %v3264 = vpop.permute.xlu0 %3263
      %3265 = vrot.lane.b32.xlu0 %v3147, 126
      %v3266 = vpop.permute.xlu0 %3265
      %3267 = vrot.lane.b32.xlu0 %v3148, 126
      %v3268 = vpop.permute.xlu0 %3267
      %3269 = vrot.lane.b32.xlu0 %v3149, 126
      %v3270 = vpop.permute.xlu0 %3269
      %3271 = vrot.lane.b32.xlu0 %v3150, 126
      %v3272 = vpop.permute.xlu0 %3271
      %3273 = vrot.lane.b32.xlu0 %v3151, 126
      %v3274 = vpop.permute.xlu0 %3273
      %3275 = vrot.lane.b32.xlu0 %v3152, 126
      %v3276 = vpop.permute.xlu0 %3275
      %3277 = vrot.lane.b32.xlu0 %v3153, 126
      %v3278 = vpop.permute.xlu0 %3277
      %3279 = vrot.lane.b32.xlu0 %v3154, 126
      %v3280 = vpop.permute.xlu0 %3279
      %3281 = vrot.lane.b32.xlu0 %v3155, 126
      %v3282 = vpop.permute.xlu0 %3281
      %3283 = vrot.lane.b32.xlu0 %v3156, 126
      %v3284 = vpop.permute.xlu0 %3283
      %3285 = vrot.lane.b32.xlu0 %v3157, 126
      %v3286 = vpop.permute.xlu0 %3285
      %3287 = vrot.lane.b32.xlu0 %v3158, 126
      %v3288 = vpop.permute.xlu0 %3287
      %3289 = vrot.lane.b32.xlu0 %v3159, 126
      %v3290 = vpop.permute.xlu0 %3289
      %3291 = vrot.lane.b32.xlu0 %v3160, 126
      %v3292 = vpop.permute.xlu0 %3291
      %3293 = vrot.lane.b32.xlu0 %v3161, 126
      %v3294 = vpop.permute.xlu0 %3293
      %3295 = vrot.lane.b32.xlu0 %v3162, 126
      %v3296 = vpop.permute.xlu0 %3295
      %3297 = vrot.lane.b32.xlu0 %v3163, 126
      %v3298 = vpop.permute.xlu0 %3297
      %3299 = vrot.lane.b32.xlu0 %v3164, 126
      %v3300 = vpop.permute.xlu0 %3299
      %3301 = vrot.lane.b32.xlu0 %v3165, 126
      %v3302 = vpop.permute.xlu0 %3301
      %3303 = vrot.lane.b32.xlu0 %v3166, 126
      %v3304 = vpop.permute.xlu0 %3303
      %3305 = vrot.lane.b32.xlu0 %v3167, 126
      %v3306 = vpop.permute.xlu0 %3305
      %3307 = vrot.lane.b32.xlu0 %v3168, 126
      %v3308 = vpop.permute.xlu0 %3307
      %3309 = vrot.lane.b32.xlu0 %v3169, 126
      %v3310 = vpop.permute.xlu0 %3309
      %3311 = vrot.lane.b32.xlu0 %v3170, 126
      %v3312 = vpop.permute.xlu0 %3311
      %3313 = vrot.lane.b32.xlu0 %v3171, 126
      %v3314 = vpop.permute.xlu0 %3313
      %3315 = vrot.lane.b32.xlu0 %v3172, 126
      %v3316 = vpop.permute.xlu0 %3315
      %3317 = vrot.lane.b32.xlu0 %v3173, 126
      %v3318 = vpop.permute.xlu0 %3317
      %3319 = vrot.lane.b32.xlu0 %v3174, 126
      %v3320 = vpop.permute.xlu0 %3319
      %v3321 = vsel %vm1145, %v3226, 0
      %v3323 = vsel %vm1145, %v3228, 0
      %v3325 = vsel %vm1145, %v3230, 0
      %v3327 = vsel %vm1145, %v3232, 0
      %v3329 = vsel %vm1145, %v3234, 0
      %v3331 = vsel %vm1145, %v3236, 0
      %v3333 = vsel %vm1145, %v3238, 0
      %v3335 = vsel %vm1145, %v3240, 0
      %v3337 = vsel %vm1145, %v3242, 0
      %v3339 = vsel %vm1145, %v3244, 0
      %v3341 = vsel %vm1145, %v3246, 0
      %v3343 = vsel %vm1145, %v3248, 0
      %v3345 = vsel %vm1145, %v3250, 0
      %v3347 = vsel %vm1145, %v3252, 0
      %v3349 = vsel %vm1145, %v3254, 0
      %v3351 = vsel %vm1145, %v3256, 0
      %v3353 = vsel %vm1145, %v3258, 0
      %v3355 = vsel %vm1145, %v3260, 0
      %v3357 = vsel %vm1145, %v3262, 0
      %v3359 = vsel %vm1145, %v3264, 0
      %v3361 = vsel %vm1145, %v3266, 0
      %v3363 = vsel %vm1145, %v3268, 0
      %v3365 = vsel %vm1145, %v3270, 0
      %v3367 = vsel %vm1145, %v3272, 0
      %v3369 = vsel %vm1145, %v3274, 0
      %v3371 = vsel %vm1145, %v3276, 0
      %v3373 = vsel %vm1145, %v3278, 0
      %v3375 = vsel %vm1145, %v3280, 0
      %v3377 = vsel %vm1145, %v3282, 0
      %v3379 = vsel %vm1145, %v3284, 0
      %v3381 = vsel %vm1145, %v3286, 0
      %v3383 = vsel %vm1145, %v3288, 0
      %v3385 = vsel %vm1145, %v3290, 0
      %v3387 = vsel %vm1145, %v3292, 0
      %v3389 = vsel %vm1145, %v3294, 0
      %v3391 = vsel %vm1145, %v3296, 0
      %v3393 = vsel %vm1145, %v3298, 0
      %v3395 = vsel %vm1145, %v3300, 0
      %v3397 = vsel %vm1145, %v3302, 0
      %v3399 = vsel %vm1145, %v3304, 0
      %v3401 = vsel %vm1145, %v3306, 0
      %v3403 = vsel %vm1145, %v3308, 0
      %v3405 = vsel %vm1145, %v3310, 0
      %v3407 = vsel %vm1145, %v3312, 0
      %v3409 = vsel %vm1145, %v3314, 0
      %v3411 = vsel %vm1145, %v3316, 0
      %v3413 = vsel %vm1145, %v3318, 0
      %v3415 = vsel %vm1145, %v3320, 0
      %v3418 = vsel %vm1290, %v3176, 0
      %3420 = vmatpush.msra.mxu0 0.0
      %3421 = vmatpush.msra.mxu0 0.0
      %3422 = vmatpush.msra.mxu0 0.0
      %3423 = vmatpush.msra.mxu0 0.0
      %3424 = vmatpush.msra.mxu0 0.0
      %3425 = vmatpush.msra.mxu0 0.0
      %3426 = vmatpush.msra.mxu0 0.0
      %3427 = vmatpush.msra.mxu0 0.0
      %3428 = vmatpush.msra.mxu0 0.0
      %3429 = vmatpush.msra.mxu0 0.0
      %3430 = vmatpush.msra.mxu0 0.0
      %3431 = vmatpush.msra.mxu0 0.0
      %3432 = vmatpush.msra.mxu0 0.0
      %3433 = vmatpush.msra.mxu0 0.0
      %3434 = vmatpush.msra.mxu0 0.0
      %3435 = vmatpush.msra.mxu0 %v3418
      %3436 = vmatmul.f32.gmra.mxu0 %v3321
      %v3437 = vpop.f32.mrf.mxu0
      %v3438 = vadd.f32 0.0, %v3437
      %3439 = vmatmul.f32.gmra.mxu0 %v3323
      %v3440 = vpop.f32.mrf.mxu0
      %v3441 = vadd.f32 0.0, %v3440
      %3442 = vmatmul.f32.gmra.mxu0 %v3325
      %v3443 = vpop.f32.mrf.mxu0
      %v3444 = vadd.f32 0.0, %v3443
      %3445 = vmatmul.f32.gmra.mxu0 %v3327
      %v3446 = vpop.f32.mrf.mxu0
      %v3447 = vadd.f32 0.0, %v3446
      %3448 = vmatmul.f32.gmra.mxu0 %v3329
      %v3449 = vpop.f32.mrf.mxu0
      %v3450 = vadd.f32 0.0, %v3449
      %3451 = vmatmul.f32.gmra.mxu0 %v3331
      %v3452 = vpop.f32.mrf.mxu0
      %v3453 = vadd.f32 0.0, %v3452
      %3454 = vmatmul.f32.gmra.mxu0 %v3333
      %v3455 = vpop.f32.mrf.mxu0
      %v3456 = vadd.f32 0.0, %v3455
      %3457 = vmatmul.f32.gmra.mxu0 %v3335
      %v3458 = vpop.f32.mrf.mxu0
      %v3459 = vadd.f32 0.0, %v3458
      %3460 = vmatmul.f32.gmra.mxu0 %v3337
      %v3461 = vpop.f32.mrf.mxu0
      %v3462 = vadd.f32 0.0, %v3461
      %3463 = vmatmul.f32.gmra.mxu0 %v3339
      %v3464 = vpop.f32.mrf.mxu0
      %v3465 = vadd.f32 0.0, %v3464
      %3466 = vmatmul.f32.gmra.mxu0 %v3341
      %v3467 = vpop.f32.mrf.mxu0
      %v3468 = vadd.f32 0.0, %v3467
      %3469 = vmatmul.f32.gmra.mxu0 %v3343
      %v3470 = vpop.f32.mrf.mxu0
      %v3471 = vadd.f32 0.0, %v3470
      %3472 = vmatmul.f32.gmra.mxu0 %v3345
      %v3473 = vpop.f32.mrf.mxu0
      %v3474 = vadd.f32 0.0, %v3473
      %3475 = vmatmul.f32.gmra.mxu0 %v3347
      %v3476 = vpop.f32.mrf.mxu0
      %v3477 = vadd.f32 0.0, %v3476
      %3478 = vmatmul.f32.gmra.mxu0 %v3349
      %v3479 = vpop.f32.mrf.mxu0
      %v3480 = vadd.f32 0.0, %v3479
      %3481 = vmatmul.f32.gmra.mxu0 %v3351
      %v3482 = vpop.f32.mrf.mxu0
      %v3483 = vadd.f32 0.0, %v3482
      %3484 = vmatmul.f32.gmra.mxu0 %v3353
      %v3485 = vpop.f32.mrf.mxu0
      %v3486 = vadd.f32 0.0, %v3485
      %3487 = vmatmul.f32.gmra.mxu0 %v3355
      %v3488 = vpop.f32.mrf.mxu0
      %v3489 = vadd.f32 0.0, %v3488
      %3490 = vmatmul.f32.gmra.mxu0 %v3357
      %v3491 = vpop.f32.mrf.mxu0
      %v3492 = vadd.f32 0.0, %v3491
      %3493 = vmatmul.f32.gmra.mxu0 %v3359
      %v3494 = vpop.f32.mrf.mxu0
      %v3495 = vadd.f32 0.0, %v3494
      %3496 = vmatmul.f32.gmra.mxu0 %v3361
      %v3497 = vpop.f32.mrf.mxu0
      %v3498 = vadd.f32 0.0, %v3497
      %3499 = vmatmul.f32.gmra.mxu0 %v3363
      %v3500 = vpop.f32.mrf.mxu0
      %v3501 = vadd.f32 0.0, %v3500
      %3502 = vmatmul.f32.gmra.mxu0 %v3365
      %v3503 = vpop.f32.mrf.mxu0
      %v3504 = vadd.f32 0.0, %v3503
      %3505 = vmatmul.f32.gmra.mxu0 %v3367
      %v3506 = vpop.f32.mrf.mxu0
      %v3507 = vadd.f32 0.0, %v3506
      %3508 = vmatmul.f32.gmra.mxu0 %v3369
      %v3509 = vpop.f32.mrf.mxu0
      %v3510 = vadd.f32 0.0, %v3509
      %3511 = vmatmul.f32.gmra.mxu0 %v3371
      %v3512 = vpop.f32.mrf.mxu0
      %v3513 = vadd.f32 0.0, %v3512
      %3514 = vmatmul.f32.gmra.mxu0 %v3373
      %v3515 = vpop.f32.mrf.mxu0
      %v3516 = vadd.f32 0.0, %v3515
      %3517 = vmatmul.f32.gmra.mxu0 %v3375
      %v3518 = vpop.f32.mrf.mxu0
      %v3519 = vadd.f32 0.0, %v3518
      %3520 = vmatmul.f32.gmra.mxu0 %v3377
      %v3521 = vpop.f32.mrf.mxu0
      %v3522 = vadd.f32 0.0, %v3521
      %3523 = vmatmul.f32.gmra.mxu0 %v3379
      %v3524 = vpop.f32.mrf.mxu0
      %v3525 = vadd.f32 0.0, %v3524
      %3526 = vmatmul.f32.gmra.mxu0 %v3381
      %v3527 = vpop.f32.mrf.mxu0
      %v3528 = vadd.f32 0.0, %v3527
      %3529 = vmatmul.f32.gmra.mxu0 %v3383
      %v3530 = vpop.f32.mrf.mxu0
      %v3531 = vadd.f32 0.0, %v3530
      %3532 = vmatmul.f32.gmra.mxu0 %v3385
      %v3533 = vpop.f32.mrf.mxu0
      %v3534 = vadd.f32 0.0, %v3533
      %3535 = vmatmul.f32.gmra.mxu0 %v3387
      %v3536 = vpop.f32.mrf.mxu0
      %v3537 = vadd.f32 0.0, %v3536
      %3538 = vmatmul.f32.gmra.mxu0 %v3389
      %v3539 = vpop.f32.mrf.mxu0
      %v3540 = vadd.f32 0.0, %v3539
      %3541 = vmatmul.f32.gmra.mxu0 %v3391
      %v3542 = vpop.f32.mrf.mxu0
      %v3543 = vadd.f32 0.0, %v3542
      %3544 = vmatmul.f32.gmra.mxu0 %v3393
      %v3545 = vpop.f32.mrf.mxu0
      %v3546 = vadd.f32 0.0, %v3545
      %3547 = vmatmul.f32.gmra.mxu0 %v3395
      %v3548 = vpop.f32.mrf.mxu0
      %v3549 = vadd.f32 0.0, %v3548
      %3550 = vmatmul.f32.gmra.mxu0 %v3397
      %v3551 = vpop.f32.mrf.mxu0
      %v3552 = vadd.f32 0.0, %v3551
      %3553 = vmatmul.f32.gmra.mxu0 %v3399
      %v3554 = vpop.f32.mrf.mxu0
      %v3555 = vadd.f32 0.0, %v3554
      %3556 = vmatmul.f32.gmra.mxu0 %v3401
      %v3557 = vpop.f32.mrf.mxu0
      %v3558 = vadd.f32 0.0, %v3557
      %3559 = vmatmul.f32.gmra.mxu0 %v3403
      %v3560 = vpop.f32.mrf.mxu0
      %v3561 = vadd.f32 0.0, %v3560
      %3562 = vmatmul.f32.gmra.mxu0 %v3405
      %v3563 = vpop.f32.mrf.mxu0
      %v3564 = vadd.f32 0.0, %v3563
      %3565 = vmatmul.f32.gmra.mxu0 %v3407
      %v3566 = vpop.f32.mrf.mxu0
      %v3567 = vadd.f32 0.0, %v3566
      %3568 = vmatmul.f32.gmra.mxu0 %v3409
      %v3569 = vpop.f32.mrf.mxu0
      %v3570 = vadd.f32 0.0, %v3569
      %3571 = vmatmul.f32.gmra.mxu0 %v3411
      %v3572 = vpop.f32.mrf.mxu0
      %v3573 = vadd.f32 0.0, %v3572
      %3574 = vmatmul.f32.gmra.mxu0 %v3413
      %v3575 = vpop.f32.mrf.mxu0
      %v3576 = vadd.f32 0.0, %v3575
      %3577 = vmatmul.f32.gmra.mxu0 %v3415
      %v3578 = vpop.f32.mrf.mxu0
      %v3579 = vadd.f32 0.0, %v3578
      %3580 = vdwg.mxu0
      %v3581 = vadd.f32 %v2983, %v3438
      %v3582 = vadd.f32 %v2986, %v3441
      %v3583 = vadd.f32 %v2989, %v3444
      %v3584 = vadd.f32 %v2992, %v3447
      %v3585 = vadd.f32 %v2995, %v3450
      %v3586 = vadd.f32 %v2998, %v3453
      %v3587 = vadd.f32 %v3001, %v3456
      %v3588 = vadd.f32 %v3004, %v3459
      %v3589 = vadd.f32 %v3007, %v3462
      %v3590 = vadd.f32 %v3010, %v3465
      %v3591 = vadd.f32 %v3013, %v3468
      %v3592 = vadd.f32 %v3016, %v3471
      %v3593 = vadd.f32 %v3019, %v3474
      %v3594 = vadd.f32 %v3022, %v3477
      %v3595 = vadd.f32 %v3025, %v3480
      %v3596 = vadd.f32 %v3028, %v3483
      %v3597 = vadd.f32 %v3031, %v3486
      %v3598 = vadd.f32 %v3034, %v3489
      %v3599 = vadd.f32 %v3037, %v3492
      %v3600 = vadd.f32 %v3040, %v3495
      %v3601 = vadd.f32 %v3043, %v3498
      %v3602 = vadd.f32 %v3046, %v3501
      %v3603 = vadd.f32 %v3049, %v3504
      %v3604 = vadd.f32 %v3052, %v3507
      %v3605 = vadd.f32 %v3055, %v3510
      %v3606 = vadd.f32 %v3058, %v3513
      %v3607 = vadd.f32 %v3061, %v3516
      %v3608 = vadd.f32 %v3064, %v3519
      %v3609 = vadd.f32 %v3067, %v3522
      %v3610 = vadd.f32 %v3070, %v3525
      %v3611 = vadd.f32 %v3073, %v3528
      %v3612 = vadd.f32 %v3076, %v3531
      %v3613 = vadd.f32 %v3079, %v3534
      %v3614 = vadd.f32 %v3082, %v3537
      %v3615 = vadd.f32 %v3085, %v3540
      %v3616 = vadd.f32 %v3088, %v3543
      %v3617 = vadd.f32 %v3091, %v3546
      %v3618 = vadd.f32 %v3094, %v3549
      %v3619 = vadd.f32 %v3097, %v3552
      %v3620 = vadd.f32 %v3100, %v3555
      %v3621 = vadd.f32 %v3103, %v3558
      %v3622 = vadd.f32 %v3106, %v3561
      %v3623 = vadd.f32 %v3109, %v3564
      %v3624 = vadd.f32 %v3112, %v3567
      %v3625 = vadd.f32 %v3115, %v3570
      %v3626 = vadd.f32 %v3118, %v3573
      %v3627 = vadd.f32 %v3121, %v3576
      %v3628 = vadd.f32 %v3124, %v3579
      %3677 = vrot.lane.b32.xlu0 %v3581, 2
      %v3678 = vpop.permute.xlu0 %3677
      %3679 = vrot.lane.b32.xlu0 %v3582, 2
      %v3680 = vpop.permute.xlu0 %3679
      %3681 = vrot.lane.b32.xlu0 %v3583, 2
      %v3682 = vpop.permute.xlu0 %3681
      %3683 = vrot.lane.b32.xlu0 %v3584, 2
      %v3684 = vpop.permute.xlu0 %3683
      %3685 = vrot.lane.b32.xlu0 %v3585, 2
      %v3686 = vpop.permute.xlu0 %3685
      %3687 = vrot.lane.b32.xlu0 %v3586, 2
      %v3688 = vpop.permute.xlu0 %3687
      %3689 = vrot.lane.b32.xlu0 %v3587, 2
      %v3690 = vpop.permute.xlu0 %3689
      %3691 = vrot.lane.b32.xlu0 %v3588, 2
      %v3692 = vpop.permute.xlu0 %3691
      %3693 = vrot.lane.b32.xlu0 %v3589, 2
      %v3694 = vpop.permute.xlu0 %3693
      %3695 = vrot.lane.b32.xlu0 %v3590, 2
      %v3696 = vpop.permute.xlu0 %3695
      %3697 = vrot.lane.b32.xlu0 %v3591, 2
      %v3698 = vpop.permute.xlu0 %3697
      %3699 = vrot.lane.b32.xlu0 %v3592, 2
      %v3700 = vpop.permute.xlu0 %3699
      %3701 = vrot.lane.b32.xlu0 %v3593, 2
      %v3702 = vpop.permute.xlu0 %3701
      %3703 = vrot.lane.b32.xlu0 %v3594, 2
      %v3704 = vpop.permute.xlu0 %3703
      %3705 = vrot.lane.b32.xlu0 %v3595, 2
      %v3706 = vpop.permute.xlu0 %3705
      %3707 = vrot.lane.b32.xlu0 %v3596, 2
      %v3708 = vpop.permute.xlu0 %3707
      %3709 = vrot.lane.b32.xlu0 %v3597, 2
      %v3710 = vpop.permute.xlu0 %3709
      %3711 = vrot.lane.b32.xlu0 %v3598, 2
      %v3712 = vpop.permute.xlu0 %3711
      %3713 = vrot.lane.b32.xlu0 %v3599, 2
      %v3714 = vpop.permute.xlu0 %3713
      %3715 = vrot.lane.b32.xlu0 %v3600, 2
      %v3716 = vpop.permute.xlu0 %3715
      %3717 = vrot.lane.b32.xlu0 %v3601, 2
      %v3718 = vpop.permute.xlu0 %3717
      %3719 = vrot.lane.b32.xlu0 %v3602, 2
      %v3720 = vpop.permute.xlu0 %3719
      %3721 = vrot.lane.b32.xlu0 %v3603, 2
      %v3722 = vpop.permute.xlu0 %3721
      %3723 = vrot.lane.b32.xlu0 %v3604, 2
      %v3724 = vpop.permute.xlu0 %3723
      %3725 = vrot.lane.b32.xlu0 %v3605, 2
      %v3726 = vpop.permute.xlu0 %3725
      %3727 = vrot.lane.b32.xlu0 %v3606, 2
      %v3728 = vpop.permute.xlu0 %3727
      %3729 = vrot.lane.b32.xlu0 %v3607, 2
      %v3730 = vpop.permute.xlu0 %3729
      %3731 = vrot.lane.b32.xlu0 %v3608, 2
      %v3732 = vpop.permute.xlu0 %3731
      %3733 = vrot.lane.b32.xlu0 %v3609, 2
      %v3734 = vpop.permute.xlu0 %3733
      %3735 = vrot.lane.b32.xlu0 %v3610, 2
      %v3736 = vpop.permute.xlu0 %3735
      %3737 = vrot.lane.b32.xlu0 %v3611, 2
      %v3738 = vpop.permute.xlu0 %3737
      %3739 = vrot.lane.b32.xlu0 %v3612, 2
      %v3740 = vpop.permute.xlu0 %3739
      %3741 = vrot.lane.b32.xlu0 %v3613, 2
      %v3742 = vpop.permute.xlu0 %3741
      %3743 = vrot.lane.b32.xlu0 %v3614, 2
      %v3744 = vpop.permute.xlu0 %3743
      %3745 = vrot.lane.b32.xlu0 %v3615, 2
      %v3746 = vpop.permute.xlu0 %3745
      %3747 = vrot.lane.b32.xlu0 %v3616, 2
      %v3748 = vpop.permute.xlu0 %3747
      %3749 = vrot.lane.b32.xlu0 %v3617, 2
      %v3750 = vpop.permute.xlu0 %3749
      %3751 = vrot.lane.b32.xlu0 %v3618, 2
      %v3752 = vpop.permute.xlu0 %3751
      %3753 = vrot.lane.b32.xlu0 %v3619, 2
      %v3754 = vpop.permute.xlu0 %3753
      %3755 = vrot.lane.b32.xlu0 %v3620, 2
      %v3756 = vpop.permute.xlu0 %3755
      %3757 = vrot.lane.b32.xlu0 %v3621, 2
      %v3758 = vpop.permute.xlu0 %3757
      %3759 = vrot.lane.b32.xlu0 %v3622, 2
      %v3760 = vpop.permute.xlu0 %3759
      %3761 = vrot.lane.b32.xlu0 %v3623, 2
      %v3762 = vpop.permute.xlu0 %3761
      %3763 = vrot.lane.b32.xlu0 %v3624, 2
      %v3764 = vpop.permute.xlu0 %3763
      %3765 = vrot.lane.b32.xlu0 %v3625, 2
      %v3766 = vpop.permute.xlu0 %3765
      %3767 = vrot.lane.b32.xlu0 %v3626, 2
      %v3768 = vpop.permute.xlu0 %3767
      %3769 = vrot.lane.b32.xlu0 %v3627, 2
      %v3770 = vpop.permute.xlu0 %3769
      %3771 = vrot.lane.b32.xlu0 %v3628, 2
      %v3772 = vpop.permute.xlu0 %3771
      %vm3821 = vcmask 31760
      %3822 = vst.msk [vmem:[#allocation3] sm:$0xff] %vm3821, %v3678
      %3823 = vst.msk [vmem:[#allocation3 + $0x8] sm:$0xff] %vm3821, %v3680
      %3824 = vst.msk [vmem:[#allocation3 + $0x10] sm:$0xff] %vm3821, %v3682
      %3825 = vst.msk [vmem:[#allocation3 + $0x18] sm:$0xff] %vm3821, %v3684
      %3826 = vst.msk [vmem:[#allocation3 + $0x20] sm:$0xff] %vm3821, %v3686
      %3827 = vst.msk [vmem:[#allocation3 + $0x28] sm:$0xff] %vm3821, %v3688
      %3828 = vst.msk [vmem:[#allocation3 + $0x30] sm:$0xff] %vm3821, %v3690
      %3829 = vst.msk [vmem:[#allocation3 + $0x38] sm:$0xff] %vm3821, %v3692
      %3830 = vst.msk [vmem:[#allocation3 + $0x40] sm:$0xff] %vm3821, %v3694
      %3831 = vst.msk [vmem:[#allocation3 + $0x48] sm:$0xff] %vm3821, %v3696
      %3832 = vst.msk [vmem:[#allocation3 + $0x50] sm:$0xff] %vm3821, %v3698
      %3833 = vst.msk [vmem:[#allocation3 + $0x58] sm:$0xff] %vm3821, %v3700
      %3834 = vst.msk [vmem:[#allocation3 + $0x60] sm:$0xff] %vm3821, %v3702
      %3835 = vst.msk [vmem:[#allocation3 + $0x68] sm:$0xff] %vm3821, %v3704
      %3836 = vst.msk [vmem:[#allocation3 + $0x70] sm:$0xff] %vm3821, %v3706
      %3837 = vst.msk [vmem:[#allocation3 + $0x78] sm:$0xff] %vm3821, %v3708
      %3838 = vst.msk [vmem:[#allocation3 + $0x80] sm:$0xff] %vm3821, %v3710
      %3839 = vst.msk [vmem:[#allocation3 + $0x88] sm:$0xff] %vm3821, %v3712
      %3840 = vst.msk [vmem:[#allocation3 + $0x90] sm:$0xff] %vm3821, %v3714
      %3841 = vst.msk [vmem:[#allocation3 + $0x98] sm:$0xff] %vm3821, %v3716
      %3842 = vst.msk [vmem:[#allocation3 + $0xa0] sm:$0xff] %vm3821, %v3718
      %3843 = vst.msk [vmem:[#allocation3 + $0xa8] sm:$0xff] %vm3821, %v3720
      %3844 = vst.msk [vmem:[#allocation3 + $0xb0] sm:$0xff] %vm3821, %v3722
      %3845 = vst.msk [vmem:[#allocation3 + $0xb8] sm:$0xff] %vm3821, %v3724
      %3846 = vst.msk [vmem:[#allocation3 + $0xc0] sm:$0xff] %vm3821, %v3726
      %3847 = vst.msk [vmem:[#allocation3 + $0xc8] sm:$0xff] %vm3821, %v3728
      %3848 = vst.msk [vmem:[#allocation3 + $0xd0] sm:$0xff] %vm3821, %v3730
      %3849 = vst.msk [vmem:[#allocation3 + $0xd8] sm:$0xff] %vm3821, %v3732
      %3850 = vst.msk [vmem:[#allocation3 + $0xe0] sm:$0xff] %vm3821, %v3734
      %3851 = vst.msk [vmem:[#allocation3 + $0xe8] sm:$0xff] %vm3821, %v3736
      %3852 = vst.msk [vmem:[#allocation3 + $0xf0] sm:$0xff] %vm3821, %v3738
      %3853 = vst.msk [vmem:[#allocation3 + $0xf8] sm:$0xff] %vm3821, %v3740
      %3854 = vst.msk [vmem:[#allocation3 + $0x100] sm:$0xff] %vm3821, %v3742
      %3855 = vst.msk [vmem:[#allocation3 + $0x108] sm:$0xff] %vm3821, %v3744
      %3856 = vst.msk [vmem:[#allocation3 + $0x110] sm:$0xff] %vm3821, %v3746
      %3857 = vst.msk [vmem:[#allocation3 + $0x118] sm:$0xff] %vm3821, %v3748
      %3858 = vst.msk [vmem:[#allocation3 + $0x120] sm:$0xff] %vm3821, %v3750
      %3859 = vst.msk [vmem:[#allocation3 + $0x128] sm:$0xff] %vm3821, %v3752
      %3860 = vst.msk [vmem:[#allocation3 + $0x130] sm:$0xff] %vm3821, %v3754
      %3861 = vst.msk [vmem:[#allocation3 + $0x138] sm:$0xff] %vm3821, %v3756
      %3862 = vst.msk [vmem:[#allocation3 + $0x140] sm:$0xff] %vm3821, %v3758
      %3863 = vst.msk [vmem:[#allocation3 + $0x148] sm:$0xff] %vm3821, %v3760
      %3864 = vst.msk [vmem:[#allocation3 + $0x150] sm:$0xff] %vm3821, %v3762
      %3865 = vst.msk [vmem:[#allocation3 + $0x158] sm:$0xff] %vm3821, %v3764
      %3866 = vst.msk [vmem:[#allocation3 + $0x160] sm:$0xff] %vm3821, %v3766
      %3867 = vst.msk [vmem:[#allocation3 + $0x168] sm:$0xff] %vm3821, %v3768
      %3868 = vst.msk [vmem:[#allocation3 + $0x170] sm:$0xff] %vm3821, %v3770
      %3869 = vst.msk [vmem:[#allocation3 + $0x178] sm:$0xff] %vm3821, %v3772
      %s3870 = scalar_lea.vmem [#allocation2], 24
      %v3871 = vld [vmem:[%s3870] sm:$0xff]
      %v3872 = vld [vmem:[%s3870 + $0x8] sm:$0xff]
      %v3873 = vld [vmem:[%s3870 + $0x10] sm:$0xff]
      %v3874 = vld [vmem:[%s3870 + $0x18] sm:$0xff]
      %v3875 = vld [vmem:[%s3870 + $0x20] sm:$0xff]
      %v3876 = vld [vmem:[%s3870 + $0x28] sm:$0xff]
      %v3877 = vld [vmem:[%s3870 + $0x30] sm:$0xff]
      %v3878 = vld [vmem:[%s3870 + $0x38] sm:$0xff]
      %v3879 = vld [vmem:[%s3870 + $0x40] sm:$0xff]
      %v3880 = vld [vmem:[%s3870 + $0x48] sm:$0xff]
      %v3881 = vld [vmem:[%s3870 + $0x50] sm:$0xff]
      %v3882 = vld [vmem:[%s3870 + $0x58] sm:$0xff]
      %v3883 = vld [vmem:[%s3870 + $0x60] sm:$0xff]
      %v3884 = vld [vmem:[%s3870 + $0x68] sm:$0xff]
      %v3885 = vld [vmem:[%s3870 + $0x70] sm:$0xff]
      %v3886 = vld [vmem:[%s3870 + $0x78] sm:$0xff]
      %v3887 = vld [vmem:[%s3870 + $0x80] sm:$0xff]
      %v3888 = vld [vmem:[%s3870 + $0x88] sm:$0xff]
      %v3889 = vld [vmem:[%s3870 + $0x90] sm:$0xff]
      %v3890 = vld [vmem:[%s3870 + $0x98] sm:$0xff]
      %v3891 = vld [vmem:[%s3870 + $0xa0] sm:$0xff]
      %v3892 = vld [vmem:[%s3870 + $0xa8] sm:$0xff]
      %v3893 = vld [vmem:[%s3870 + $0xb0] sm:$0xff]
      %v3894 = vld [vmem:[%s3870 + $0xb8] sm:$0xff]
      %v3895 = vld [vmem:[%s3870 + $0xc0] sm:$0xff]
      %v3896 = vld [vmem:[%s3870 + $0xc8] sm:$0xff]
      %v3897 = vld [vmem:[%s3870 + $0xd0] sm:$0xff]
      %v3898 = vld [vmem:[%s3870 + $0xd8] sm:$0xff]
      %v3899 = vld [vmem:[%s3870 + $0xe0] sm:$0xff]
      %v3900 = vld [vmem:[%s3870 + $0xe8] sm:$0xff]
      %v3901 = vld [vmem:[%s3870 + $0xf0] sm:$0xff]
      %v3902 = vld [vmem:[%s3870 + $0xf8] sm:$0xff]
      %v3903 = vld [vmem:[%s3870 + $0x100] sm:$0xff]
      %v3904 = vld [vmem:[%s3870 + $0x108] sm:$0xff]
      %v3905 = vld [vmem:[%s3870 + $0x110] sm:$0xff]
      %v3906 = vld [vmem:[%s3870 + $0x118] sm:$0xff]
      %v3907 = vld [vmem:[%s3870 + $0x120] sm:$0xff]
      %v3908 = vld [vmem:[%s3870 + $0x128] sm:$0xff]
      %v3909 = vld [vmem:[%s3870 + $0x130] sm:$0xff]
      %v3910 = vld [vmem:[%s3870 + $0x138] sm:$0xff]
      %v3911 = vld [vmem:[%s3870 + $0x140] sm:$0xff]
      %v3912 = vld [vmem:[%s3870 + $0x148] sm:$0xff]
      %v3913 = vld [vmem:[%s3870 + $0x150] sm:$0xff]
      %v3914 = vld [vmem:[%s3870 + $0x158] sm:$0xff]
      %v3915 = vld [vmem:[%s3870 + $0x160] sm:$0xff]
      %v3916 = vld [vmem:[%s3870 + $0x168] sm:$0xff]
      %v3917 = vld [vmem:[%s3870 + $0x170] sm:$0xff]
      %v3918 = vld [vmem:[%s3870 + $0x178] sm:$0xff]
      %v3919 = vld [vmem:[%s6] sm:$0x3]
      %v3920 = vld [vmem:[%s996] sm:$0xff]
      %v3921 = vld [vmem:[%s996 + $0x8] sm:$0xff]
      %v3922 = vld [vmem:[%s996 + $0x10] sm:$0xff]
      %v3923 = vld [vmem:[%s996 + $0x18] sm:$0xff]
      %v3924 = vld [vmem:[%s996 + $0x20] sm:$0xff]
      %v3925 = vld [vmem:[%s996 + $0x28] sm:$0xff]
      %v3926 = vld [vmem:[%s996 + $0x30] sm:$0xff]
      %v3927 = vld [vmem:[%s996 + $0x38] sm:$0xff]
      %v3928 = vld [vmem:[%s996 + $0x40] sm:$0xff]
      %v3929 = vld [vmem:[%s996 + $0x48] sm:$0xff]
      %v3930 = vld [vmem:[%s996 + $0x50] sm:$0xff]
      %v3931 = vld [vmem:[%s996 + $0x58] sm:$0xff]
      %v3932 = vld [vmem:[%s996 + $0x60] sm:$0xff]
      %v3933 = vld [vmem:[%s996 + $0x68] sm:$0xff]
      %v3934 = vld [vmem:[%s996 + $0x70] sm:$0xff]
      %v3935 = vld [vmem:[%s996 + $0x78] sm:$0xff]
      %v3936 = vld [vmem:[%s996 + $0x80] sm:$0xff]
      %v3937 = vld [vmem:[%s996 + $0x88] sm:$0xff]
      %v3938 = vld [vmem:[%s996 + $0x90] sm:$0xff]
      %v3939 = vld [vmem:[%s996 + $0x98] sm:$0xff]
      %v3940 = vld [vmem:[%s996 + $0xa0] sm:$0xff]
      %v3941 = vld [vmem:[%s996 + $0xa8] sm:$0xff]
      %v3942 = vld [vmem:[%s996 + $0xb0] sm:$0xff]
      %v3943 = vld [vmem:[%s996 + $0xb8] sm:$0xff]
      %v3944 = vld [vmem:[%s996 + $0xc0] sm:$0xff]
      %v3945 = vld [vmem:[%s996 + $0xc8] sm:$0xff]
      %v3946 = vld [vmem:[%s996 + $0xd0] sm:$0xff]
      %v3947 = vld [vmem:[%s996 + $0xd8] sm:$0xff]
      %v3948 = vld [vmem:[%s996 + $0xe0] sm:$0xff]
      %v3949 = vld [vmem:[%s996 + $0xe8] sm:$0xff]
      %v3950 = vld [vmem:[%s996 + $0xf0] sm:$0xff]
      %v3951 = vld [vmem:[%s996 + $0xf8] sm:$0xff]
      %v3952 = vld [vmem:[%s996 + $0x100] sm:$0xff]
      %v3953 = vld [vmem:[%s996 + $0x108] sm:$0xff]
      %v3954 = vld [vmem:[%s996 + $0x110] sm:$0xff]
      %v3955 = vld [vmem:[%s996 + $0x118] sm:$0xff]
      %v3956 = vld [vmem:[%s996 + $0x120] sm:$0xff]
      %v3957 = vld [vmem:[%s996 + $0x128] sm:$0xff]
      %v3958 = vld [vmem:[%s996 + $0x130] sm:$0xff]
      %v3959 = vld [vmem:[%s996 + $0x138] sm:$0xff]
      %v3960 = vld [vmem:[%s996 + $0x140] sm:$0xff]
      %v3961 = vld [vmem:[%s996 + $0x148] sm:$0xff]
      %v3962 = vld [vmem:[%s996 + $0x150] sm:$0xff]
      %v3963 = vld [vmem:[%s996 + $0x158] sm:$0xff]
      %v3964 = vld [vmem:[%s996 + $0x160] sm:$0xff]
      %v3965 = vld [vmem:[%s996 + $0x168] sm:$0xff]
      %v3966 = vld [vmem:[%s996 + $0x170] sm:$0xff]
      %v3967 = vld [vmem:[%s996 + $0x178] sm:$0xff]
      %s3968 = scalar_lea.vmem %s6, 2
      %v3969 = vld [vmem:[%s3968] sm:$0x3]
      %4018 = vrot.lane.b32.xlu0 %v3920, 124
      %v4019 = vpop.permute.xlu0 %4018
      %4020 = vrot.lane.b32.xlu0 %v3921, 124
      %v4021 = vpop.permute.xlu0 %4020
      %4022 = vrot.lane.b32.xlu0 %v3922, 124
      %v4023 = vpop.permute.xlu0 %4022
      %4024 = vrot.lane.b32.xlu0 %v3923, 124
      %v4025 = vpop.permute.xlu0 %4024
      %4026 = vrot.lane.b32.xlu0 %v3924, 124
      %v4027 = vpop.permute.xlu0 %4026
      %4028 = vrot.lane.b32.xlu0 %v3925, 124
      %v4029 = vpop.permute.xlu0 %4028
      %4030 = vrot.lane.b32.xlu0 %v3926, 124
      %v4031 = vpop.permute.xlu0 %4030
      %4032 = vrot.lane.b32.xlu0 %v3927, 124
      %v4033 = vpop.permute.xlu0 %4032
      %4034 = vrot.lane.b32.xlu0 %v3928, 124
      %v4035 = vpop.permute.xlu0 %4034
      %4036 = vrot.lane.b32.xlu0 %v3929, 124
      %v4037 = vpop.permute.xlu0 %4036
      %4038 = vrot.lane.b32.xlu0 %v3930, 124
      %v4039 = vpop.permute.xlu0 %4038
      %4040 = vrot.lane.b32.xlu0 %v3931, 124
      %v4041 = vpop.permute.xlu0 %4040
      %4042 = vrot.lane.b32.xlu0 %v3932, 124
      %v4043 = vpop.permute.xlu0 %4042
      %4044 = vrot.lane.b32.xlu0 %v3933, 124
      %v4045 = vpop.permute.xlu0 %4044
      %4046 = vrot.lane.b32.xlu0 %v3934, 124
      %v4047 = vpop.permute.xlu0 %4046
      %4048 = vrot.lane.b32.xlu0 %v3935, 124
      %v4049 = vpop.permute.xlu0 %4048
      %4050 = vrot.lane.b32.xlu0 %v3936, 124
      %v4051 = vpop.permute.xlu0 %4050
      %4052 = vrot.lane.b32.xlu0 %v3937, 124
      %v4053 = vpop.permute.xlu0 %4052
      %4054 = vrot.lane.b32.xlu0 %v3938, 124
      %v4055 = vpop.permute.xlu0 %4054
      %4056 = vrot.lane.b32.xlu0 %v3939, 124
      %v4057 = vpop.permute.xlu0 %4056
      %4058 = vrot.lane.b32.xlu0 %v3940, 124
      %v4059 = vpop.permute.xlu0 %4058
      %4060 = vrot.lane.b32.xlu0 %v3941, 124
      %v4061 = vpop.permute.xlu0 %4060
      %4062 = vrot.lane.b32.xlu0 %v3942, 124
      %v4063 = vpop.permute.xlu0 %4062
      %4064 = vrot.lane.b32.xlu0 %v3943, 124
      %v4065 = vpop.permute.xlu0 %4064
      %4066 = vrot.lane.b32.xlu0 %v3944, 124
      %v4067 = vpop.permute.xlu0 %4066
      %4068 = vrot.lane.b32.xlu0 %v3945, 124
      %v4069 = vpop.permute.xlu0 %4068
      %4070 = vrot.lane.b32.xlu0 %v3946, 124
      %v4071 = vpop.permute.xlu0 %4070
      %4072 = vrot.lane.b32.xlu0 %v3947, 124
      %v4073 = vpop.permute.xlu0 %4072
      %4074 = vrot.lane.b32.xlu0 %v3948, 124
      %v4075 = vpop.permute.xlu0 %4074
      %4076 = vrot.lane.b32.xlu0 %v3949, 124
      %v4077 = vpop.permute.xlu0 %4076
      %4078 = vrot.lane.b32.xlu0 %v3950, 124
      %v4079 = vpop.permute.xlu0 %4078
      %4080 = vrot.lane.b32.xlu0 %v3951, 124
      %v4081 = vpop.permute.xlu0 %4080
      %4082 = vrot.lane.b32.xlu0 %v3952, 124
      %v4083 = vpop.permute.xlu0 %4082
      %4084 = vrot.lane.b32.xlu0 %v3953, 124
      %v4085 = vpop.permute.xlu0 %4084
      %4086 = vrot.lane.b32.xlu0 %v3954, 124
      %v4087 = vpop.permute.xlu0 %4086
      %4088 = vrot.lane.b32.xlu0 %v3955, 124
      %v4089 = vpop.permute.xlu0 %4088
      %4090 = vrot.lane.b32.xlu0 %v3956, 124
      %v4091 = vpop.permute.xlu0 %4090
      %4092 = vrot.lane.b32.xlu0 %v3957, 124
      %v4093 = vpop.permute.xlu0 %4092
      %4094 = vrot.lane.b32.xlu0 %v3958, 124
      %v4095 = vpop.permute.xlu0 %4094
      %4096 = vrot.lane.b32.xlu0 %v3959, 124
      %v4097 = vpop.permute.xlu0 %4096
      %4098 = vrot.lane.b32.xlu0 %v3960, 124
      %v4099 = vpop.permute.xlu0 %4098
      %4100 = vrot.lane.b32.xlu0 %v3961, 124
      %v4101 = vpop.permute.xlu0 %4100
      %4102 = vrot.lane.b32.xlu0 %v3962, 124
      %v4103 = vpop.permute.xlu0 %4102
      %4104 = vrot.lane.b32.xlu0 %v3963, 124
      %v4105 = vpop.permute.xlu0 %4104
      %4106 = vrot.lane.b32.xlu0 %v3964, 124
      %v4107 = vpop.permute.xlu0 %4106
      %4108 = vrot.lane.b32.xlu0 %v3965, 124
      %v4109 = vpop.permute.xlu0 %4108
      %4110 = vrot.lane.b32.xlu0 %v3966, 124
      %v4111 = vpop.permute.xlu0 %4110
      %4112 = vrot.lane.b32.xlu0 %v3967, 124
      %v4113 = vpop.permute.xlu0 %4112
      %v4114 = vsel %vm1145, %v4019, 0
      %v4116 = vsel %vm1145, %v4021, 0
      %v4118 = vsel %vm1145, %v4023, 0
      %v4120 = vsel %vm1145, %v4025, 0
      %v4122 = vsel %vm1145, %v4027, 0
      %v4124 = vsel %vm1145, %v4029, 0
      %v4126 = vsel %vm1145, %v4031, 0
      %v4128 = vsel %vm1145, %v4033, 0
      %v4130 = vsel %vm1145, %v4035, 0
      %v4132 = vsel %vm1145, %v4037, 0
      %v4134 = vsel %vm1145, %v4039, 0
      %v4136 = vsel %vm1145, %v4041, 0
      %v4138 = vsel %vm1145, %v4043, 0
      %v4140 = vsel %vm1145, %v4045, 0
      %v4142 = vsel %vm1145, %v4047, 0
      %v4144 = vsel %vm1145, %v4049, 0
      %v4146 = vsel %vm1145, %v4051, 0
      %v4148 = vsel %vm1145, %v4053, 0
      %v4150 = vsel %vm1145, %v4055, 0
      %v4152 = vsel %vm1145, %v4057, 0
      %v4154 = vsel %vm1145, %v4059, 0
      %v4156 = vsel %vm1145, %v4061, 0
      %v4158 = vsel %vm1145, %v4063, 0
      %v4160 = vsel %vm1145, %v4065, 0
      %v4162 = vsel %vm1145, %v4067, 0
      %v4164 = vsel %vm1145, %v4069, 0
      %v4166 = vsel %vm1145, %v4071, 0
      %v4168 = vsel %vm1145, %v4073, 0
      %v4170 = vsel %vm1145, %v4075, 0
      %v4172 = vsel %vm1145, %v4077, 0
      %v4174 = vsel %vm1145, %v4079, 0
      %v4176 = vsel %vm1145, %v4081, 0
      %v4178 = vsel %vm1145, %v4083, 0
      %v4180 = vsel %vm1145, %v4085, 0
      %v4182 = vsel %vm1145, %v4087, 0
      %v4184 = vsel %vm1145, %v4089, 0
      %v4186 = vsel %vm1145, %v4091, 0
      %v4188 = vsel %vm1145, %v4093, 0
      %v4190 = vsel %vm1145, %v4095, 0
      %v4192 = vsel %vm1145, %v4097, 0
      %v4194 = vsel %vm1145, %v4099, 0
      %v4196 = vsel %vm1145, %v4101, 0
      %v4198 = vsel %vm1145, %v4103, 0
      %v4200 = vsel %vm1145, %v4105, 0
      %v4202 = vsel %vm1145, %v4107, 0
      %v4204 = vsel %vm1145, %v4109, 0
      %v4206 = vsel %vm1145, %v4111, 0
      %v4208 = vsel %vm1145, %v4113, 0
      %v4211 = vsel %vm1290, %v3969, 0
      %4213 = vmatpush.msra.mxu0 0.0
      %4214 = vmatpush.msra.mxu0 0.0
      %4215 = vmatpush.msra.mxu0 0.0
      %4216 = vmatpush.msra.mxu0 0.0
      %4217 = vmatpush.msra.mxu0 0.0
      %4218 = vmatpush.msra.mxu0 0.0
      %4219 = vmatpush.msra.mxu0 0.0
      %4220 = vmatpush.msra.mxu0 0.0
      %4221 = vmatpush.msra.mxu0 0.0
      %4222 = vmatpush.msra.mxu0 0.0
      %4223 = vmatpush.msra.mxu0 0.0
      %4224 = vmatpush.msra.mxu0 0.0
      %4225 = vmatpush.msra.mxu0 0.0
      %4226 = vmatpush.msra.mxu0 0.0
      %4227 = vmatpush.msra.mxu0 0.0
      %4228 = vmatpush.msra.mxu0 %v4211
      %4229 = vmatmul.f32.gmra.mxu0 %v4114
      %v4230 = vpop.f32.mrf.mxu0
      %v4231 = vadd.f32 0.0, %v4230
      %4232 = vmatmul.f32.gmra.mxu0 %v4116
      %v4233 = vpop.f32.mrf.mxu0
      %v4234 = vadd.f32 0.0, %v4233
      %4235 = vmatmul.f32.gmra.mxu0 %v4118
      %v4236 = vpop.f32.mrf.mxu0
      %v4237 = vadd.f32 0.0, %v4236
      %4238 = vmatmul.f32.gmra.mxu0 %v4120
      %v4239 = vpop.f32.mrf.mxu0
      %v4240 = vadd.f32 0.0, %v4239
      %4241 = vmatmul.f32.gmra.mxu0 %v4122
      %v4242 = vpop.f32.mrf.mxu0
      %v4243 = vadd.f32 0.0, %v4242
      %4244 = vmatmul.f32.gmra.mxu0 %v4124
      %v4245 = vpop.f32.mrf.mxu0
      %v4246 = vadd.f32 0.0, %v4245
      %4247 = vmatmul.f32.gmra.mxu0 %v4126
      %v4248 = vpop.f32.mrf.mxu0
      %v4249 = vadd.f32 0.0, %v4248
      %4250 = vmatmul.f32.gmra.mxu0 %v4128
      %v4251 = vpop.f32.mrf.mxu0
      %v4252 = vadd.f32 0.0, %v4251
      %4253 = vmatmul.f32.gmra.mxu0 %v4130
      %v4254 = vpop.f32.mrf.mxu0
      %v4255 = vadd.f32 0.0, %v4254
      %4256 = vmatmul.f32.gmra.mxu0 %v4132
      %v4257 = vpop.f32.mrf.mxu0
      %v4258 = vadd.f32 0.0, %v4257
      %4259 = vmatmul.f32.gmra.mxu0 %v4134
      %v4260 = vpop.f32.mrf.mxu0
      %v4261 = vadd.f32 0.0, %v4260
      %4262 = vmatmul.f32.gmra.mxu0 %v4136
      %v4263 = vpop.f32.mrf.mxu0
      %v4264 = vadd.f32 0.0, %v4263
      %4265 = vmatmul.f32.gmra.mxu0 %v4138
      %v4266 = vpop.f32.mrf.mxu0
      %v4267 = vadd.f32 0.0, %v4266
      %4268 = vmatmul.f32.gmra.mxu0 %v4140
      %v4269 = vpop.f32.mrf.mxu0
      %v4270 = vadd.f32 0.0, %v4269
      %4271 = vmatmul.f32.gmra.mxu0 %v4142
      %v4272 = vpop.f32.mrf.mxu0
      %v4273 = vadd.f32 0.0, %v4272
      %4274 = vmatmul.f32.gmra.mxu0 %v4144
      %v4275 = vpop.f32.mrf.mxu0
      %v4276 = vadd.f32 0.0, %v4275
      %4277 = vmatmul.f32.gmra.mxu0 %v4146
      %v4278 = vpop.f32.mrf.mxu0
      %v4279 = vadd.f32 0.0, %v4278
      %4280 = vmatmul.f32.gmra.mxu0 %v4148
      %v4281 = vpop.f32.mrf.mxu0
      %v4282 = vadd.f32 0.0, %v4281
      %4283 = vmatmul.f32.gmra.mxu0 %v4150
      %v4284 = vpop.f32.mrf.mxu0
      %v4285 = vadd.f32 0.0, %v4284
      %4286 = vmatmul.f32.gmra.mxu0 %v4152
      %v4287 = vpop.f32.mrf.mxu0
      %v4288 = vadd.f32 0.0, %v4287
      %4289 = vmatmul.f32.gmra.mxu0 %v4154
      %v4290 = vpop.f32.mrf.mxu0
      %v4291 = vadd.f32 0.0, %v4290
      %4292 = vmatmul.f32.gmra.mxu0 %v4156
      %v4293 = vpop.f32.mrf.mxu0
      %v4294 = vadd.f32 0.0, %v4293
      %4295 = vmatmul.f32.gmra.mxu0 %v4158
      %v4296 = vpop.f32.mrf.mxu0
      %v4297 = vadd.f32 0.0, %v4296
      %4298 = vmatmul.f32.gmra.mxu0 %v4160
      %v4299 = vpop.f32.mrf.mxu0
      %v4300 = vadd.f32 0.0, %v4299
      %4301 = vmatmul.f32.gmra.mxu0 %v4162
      %v4302 = vpop.f32.mrf.mxu0
      %v4303 = vadd.f32 0.0, %v4302
      %4304 = vmatmul.f32.gmra.mxu0 %v4164
      %v4305 = vpop.f32.mrf.mxu0
      %v4306 = vadd.f32 0.0, %v4305
      %4307 = vmatmul.f32.gmra.mxu0 %v4166
      %v4308 = vpop.f32.mrf.mxu0
      %v4309 = vadd.f32 0.0, %v4308
      %4310 = vmatmul.f32.gmra.mxu0 %v4168
      %v4311 = vpop.f32.mrf.mxu0
      %v4312 = vadd.f32 0.0, %v4311
      %4313 = vmatmul.f32.gmra.mxu0 %v4170
      %v4314 = vpop.f32.mrf.mxu0
      %v4315 = vadd.f32 0.0, %v4314
      %4316 = vmatmul.f32.gmra.mxu0 %v4172
      %v4317 = vpop.f32.mrf.mxu0
      %v4318 = vadd.f32 0.0, %v4317
      %4319 = vmatmul.f32.gmra.mxu0 %v4174
      %v4320 = vpop.f32.mrf.mxu0
      %v4321 = vadd.f32 0.0, %v4320
      %4322 = vmatmul.f32.gmra.mxu0 %v4176
      %v4323 = vpop.f32.mrf.mxu0
      %v4324 = vadd.f32 0.0, %v4323
      %4325 = vmatmul.f32.gmra.mxu0 %v4178
      %v4326 = vpop.f32.mrf.mxu0
      %v4327 = vadd.f32 0.0, %v4326
      %4328 = vmatmul.f32.gmra.mxu0 %v4180
      %v4329 = vpop.f32.mrf.mxu0
      %v4330 = vadd.f32 0.0, %v4329
      %4331 = vmatmul.f32.gmra.mxu0 %v4182
      %v4332 = vpop.f32.mrf.mxu0
      %v4333 = vadd.f32 0.0, %v4332
      %4334 = vmatmul.f32.gmra.mxu0 %v4184
      %v4335 = vpop.f32.mrf.mxu0
      %v4336 = vadd.f32 0.0, %v4335
      %4337 = vmatmul.f32.gmra.mxu0 %v4186
      %v4338 = vpop.f32.mrf.mxu0
      %v4339 = vadd.f32 0.0, %v4338
      %4340 = vmatmul.f32.gmra.mxu0 %v4188
      %v4341 = vpop.f32.mrf.mxu0
      %v4342 = vadd.f32 0.0, %v4341
      %4343 = vmatmul.f32.gmra.mxu0 %v4190
      %v4344 = vpop.f32.mrf.mxu0
      %v4345 = vadd.f32 0.0, %v4344
      %4346 = vmatmul.f32.gmra.mxu0 %v4192
      %v4347 = vpop.f32.mrf.mxu0
      %v4348 = vadd.f32 0.0, %v4347
      %4349 = vmatmul.f32.gmra.mxu0 %v4194
      %v4350 = vpop.f32.mrf.mxu0
      %v4351 = vadd.f32 0.0, %v4350
      %4352 = vmatmul.f32.gmra.mxu0 %v4196
      %v4353 = vpop.f32.mrf.mxu0
      %v4354 = vadd.f32 0.0, %v4353
      %4355 = vmatmul.f32.gmra.mxu0 %v4198
      %v4356 = vpop.f32.mrf.mxu0
      %v4357 = vadd.f32 0.0, %v4356
      %4358 = vmatmul.f32.gmra.mxu0 %v4200
      %v4359 = vpop.f32.mrf.mxu0
      %v4360 = vadd.f32 0.0, %v4359
      %4361 = vmatmul.f32.gmra.mxu0 %v4202
      %v4362 = vpop.f32.mrf.mxu0
      %v4363 = vadd.f32 0.0, %v4362
      %4364 = vmatmul.f32.gmra.mxu0 %v4204
      %v4365 = vpop.f32.mrf.mxu0
      %v4366 = vadd.f32 0.0, %v4365
      %4367 = vmatmul.f32.gmra.mxu0 %v4206
      %v4368 = vpop.f32.mrf.mxu0
      %v4369 = vadd.f32 0.0, %v4368
      %4370 = vmatmul.f32.gmra.mxu0 %v4208
      %v4371 = vpop.f32.mrf.mxu0
      %v4372 = vadd.f32 0.0, %v4371
      %4373 = vdwg.mxu0
      %4422 = vrot.lane.b32.xlu0 %v3871, 124
      %v4423 = vpop.permute.xlu0 %4422
      %4424 = vrot.lane.b32.xlu0 %v3872, 124
      %v4425 = vpop.permute.xlu0 %4424
      %4426 = vrot.lane.b32.xlu0 %v3873, 124
      %v4427 = vpop.permute.xlu0 %4426
      %4428 = vrot.lane.b32.xlu0 %v3874, 124
      %v4429 = vpop.permute.xlu0 %4428
      %4430 = vrot.lane.b32.xlu0 %v3875, 124
      %v4431 = vpop.permute.xlu0 %4430
      %4432 = vrot.lane.b32.xlu0 %v3876, 124
      %v4433 = vpop.permute.xlu0 %4432
      %4434 = vrot.lane.b32.xlu0 %v3877, 124
      %v4435 = vpop.permute.xlu0 %4434
      %4436 = vrot.lane.b32.xlu0 %v3878, 124
      %v4437 = vpop.permute.xlu0 %4436
      %4438 = vrot.lane.b32.xlu0 %v3879, 124
      %v4439 = vpop.permute.xlu0 %4438
      %4440 = vrot.lane.b32.xlu0 %v3880, 124
      %v4441 = vpop.permute.xlu0 %4440
      %4442 = vrot.lane.b32.xlu0 %v3881, 124
      %v4443 = vpop.permute.xlu0 %4442
      %4444 = vrot.lane.b32.xlu0 %v3882, 124
      %v4445 = vpop.permute.xlu0 %4444
      %4446 = vrot.lane.b32.xlu0 %v3883, 124
      %v4447 = vpop.permute.xlu0 %4446
      %4448 = vrot.lane.b32.xlu0 %v3884, 124
      %v4449 = vpop.permute.xlu0 %4448
      %4450 = vrot.lane.b32.xlu0 %v3885, 124
      %v4451 = vpop.permute.xlu0 %4450
      %4452 = vrot.lane.b32.xlu0 %v3886, 124
      %v4453 = vpop.permute.xlu0 %4452
      %4454 = vrot.lane.b32.xlu0 %v3887, 124
      %v4455 = vpop.permute.xlu0 %4454
      %4456 = vrot.lane.b32.xlu0 %v3888, 124
      %v4457 = vpop.permute.xlu0 %4456
      %4458 = vrot.lane.b32.xlu0 %v3889, 124
      %v4459 = vpop.permute.xlu0 %4458
      %4460 = vrot.lane.b32.xlu0 %v3890, 124
      %v4461 = vpop.permute.xlu0 %4460
      %4462 = vrot.lane.b32.xlu0 %v3891, 124
      %v4463 = vpop.permute.xlu0 %4462
      %4464 = vrot.lane.b32.xlu0 %v3892, 124
      %v4465 = vpop.permute.xlu0 %4464
      %4466 = vrot.lane.b32.xlu0 %v3893, 124
      %v4467 = vpop.permute.xlu0 %4466
      %4468 = vrot.lane.b32.xlu0 %v3894, 124
      %v4469 = vpop.permute.xlu0 %4468
      %4470 = vrot.lane.b32.xlu0 %v3895, 124
      %v4471 = vpop.permute.xlu0 %4470
      %4472 = vrot.lane.b32.xlu0 %v3896, 124
      %v4473 = vpop.permute.xlu0 %4472
      %4474 = vrot.lane.b32.xlu0 %v3897, 124
      %v4475 = vpop.permute.xlu0 %4474
      %4476 = vrot.lane.b32.xlu0 %v3898, 124
      %v4477 = vpop.permute.xlu0 %4476
      %4478 = vrot.lane.b32.xlu0 %v3899, 124
      %v4479 = vpop.permute.xlu0 %4478
      %4480 = vrot.lane.b32.xlu0 %v3900, 124
      %v4481 = vpop.permute.xlu0 %4480
      %4482 = vrot.lane.b32.xlu0 %v3901, 124
      %v4483 = vpop.permute.xlu0 %4482
      %4484 = vrot.lane.b32.xlu0 %v3902, 124
      %v4485 = vpop.permute.xlu0 %4484
      %4486 = vrot.lane.b32.xlu0 %v3903, 124
      %v4487 = vpop.permute.xlu0 %4486
      %4488 = vrot.lane.b32.xlu0 %v3904, 124
      %v4489 = vpop.permute.xlu0 %4488
      %4490 = vrot.lane.b32.xlu0 %v3905, 124
      %v4491 = vpop.permute.xlu0 %4490
      %4492 = vrot.lane.b32.xlu0 %v3906, 124
      %v4493 = vpop.permute.xlu0 %4492
      %4494 = vrot.lane.b32.xlu0 %v3907, 124
      %v4495 = vpop.permute.xlu0 %4494
      %4496 = vrot.lane.b32.xlu0 %v3908, 124
      %v4497 = vpop.permute.xlu0 %4496
      %4498 = vrot.lane.b32.xlu0 %v3909, 124
      %v4499 = vpop.permute.xlu0 %4498
      %4500 = vrot.lane.b32.xlu0 %v3910, 124
      %v4501 = vpop.permute.xlu0 %4500
      %4502 = vrot.lane.b32.xlu0 %v3911, 124
      %v4503 = vpop.permute.xlu0 %4502
      %4504 = vrot.lane.b32.xlu0 %v3912, 124
      %v4505 = vpop.permute.xlu0 %4504
      %4506 = vrot.lane.b32.xlu0 %v3913, 124
      %v4507 = vpop.permute.xlu0 %4506
      %4508 = vrot.lane.b32.xlu0 %v3914, 124
      %v4509 = vpop.permute.xlu0 %4508
      %4510 = vrot.lane.b32.xlu0 %v3915, 124
      %v4511 = vpop.permute.xlu0 %4510
      %4512 = vrot.lane.b32.xlu0 %v3916, 124
      %v4513 = vpop.permute.xlu0 %4512
      %4514 = vrot.lane.b32.xlu0 %v3917, 124
      %v4515 = vpop.permute.xlu0 %4514
      %4516 = vrot.lane.b32.xlu0 %v3918, 124
      %v4517 = vpop.permute.xlu0 %4516
      %v4518 = vsel %vm1145, %v4423, 0
      %v4520 = vsel %vm1145, %v4425, 0
      %v4522 = vsel %vm1145, %v4427, 0
      %v4524 = vsel %vm1145, %v4429, 0
      %v4526 = vsel %vm1145, %v4431, 0
      %v4528 = vsel %vm1145, %v4433, 0
      %v4530 = vsel %vm1145, %v4435, 0
      %v4532 = vsel %vm1145, %v4437, 0
      %v4534 = vsel %vm1145, %v4439, 0
      %v4536 = vsel %vm1145, %v4441, 0
      %v4538 = vsel %vm1145, %v4443, 0
      %v4540 = vsel %vm1145, %v4445, 0
      %v4542 = vsel %vm1145, %v4447, 0
      %v4544 = vsel %vm1145, %v4449, 0
      %v4546 = vsel %vm1145, %v4451, 0
      %v4548 = vsel %vm1145, %v4453, 0
      %v4550 = vsel %vm1145, %v4455, 0
      %v4552 = vsel %vm1145, %v4457, 0
      %v4554 = vsel %vm1145, %v4459, 0
      %v4556 = vsel %vm1145, %v4461, 0
      %v4558 = vsel %vm1145, %v4463, 0
      %v4560 = vsel %vm1145, %v4465, 0
      %v4562 = vsel %vm1145, %v4467, 0
      %v4564 = vsel %vm1145, %v4469, 0
      %v4566 = vsel %vm1145, %v4471, 0
      %v4568 = vsel %vm1145, %v4473, 0
      %v4570 = vsel %vm1145, %v4475, 0
      %v4572 = vsel %vm1145, %v4477, 0
      %v4574 = vsel %vm1145, %v4479, 0
      %v4576 = vsel %vm1145, %v4481, 0
      %v4578 = vsel %vm1145, %v4483, 0
      %v4580 = vsel %vm1145, %v4485, 0
      %v4582 = vsel %vm1145, %v4487, 0
      %v4584 = vsel %vm1145, %v4489, 0
      %v4586 = vsel %vm1145, %v4491, 0
      %v4588 = vsel %vm1145, %v4493, 0
      %v4590 = vsel %vm1145, %v4495, 0
      %v4592 = vsel %vm1145, %v4497, 0
      %v4594 = vsel %vm1145, %v4499, 0
      %v4596 = vsel %vm1145, %v4501, 0
      %v4598 = vsel %vm1145, %v4503, 0
      %v4600 = vsel %vm1145, %v4505, 0
      %v4602 = vsel %vm1145, %v4507, 0
      %v4604 = vsel %vm1145, %v4509, 0
      %v4606 = vsel %vm1145, %v4511, 0
      %v4608 = vsel %vm1145, %v4513, 0
      %v4610 = vsel %vm1145, %v4515, 0
      %v4612 = vsel %vm1145, %v4517, 0
      %v4615 = vsel %vm1290, %v3919, 0
      %4617 = vmatpush.msra.mxu0 0.0
      %4618 = vmatpush.msra.mxu0 0.0
      %4619 = vmatpush.msra.mxu0 0.0
      %4620 = vmatpush.msra.mxu0 0.0
      %4621 = vmatpush.msra.mxu0 0.0
      %4622 = vmatpush.msra.mxu0 0.0
      %4623 = vmatpush.msra.mxu0 0.0
      %4624 = vmatpush.msra.mxu0 0.0
      %4625 = vmatpush.msra.mxu0 0.0
      %4626 = vmatpush.msra.mxu0 0.0
      %4627 = vmatpush.msra.mxu0 0.0
      %4628 = vmatpush.msra.mxu0 0.0
      %4629 = vmatpush.msra.mxu0 0.0
      %4630 = vmatpush.msra.mxu0 0.0
      %4631 = vmatpush.msra.mxu0 0.0
      %4632 = vmatpush.msra.mxu0 %v4615
      %4633 = vmatmul.f32.gmra.mxu0 %v4518
      %v4634 = vpop.f32.mrf.mxu0
      %v4635 = vadd.f32 %v4231, %v4634
      %4636 = vmatmul.f32.gmra.mxu0 %v4520
      %v4637 = vpop.f32.mrf.mxu0
      %v4638 = vadd.f32 %v4234, %v4637
      %4639 = vmatmul.f32.gmra.mxu0 %v4522
      %v4640 = vpop.f32.mrf.mxu0
      %v4641 = vadd.f32 %v4237, %v4640
      %4642 = vmatmul.f32.gmra.mxu0 %v4524
      %v4643 = vpop.f32.mrf.mxu0
      %v4644 = vadd.f32 %v4240, %v4643
      %4645 = vmatmul.f32.gmra.mxu0 %v4526
      %v4646 = vpop.f32.mrf.mxu0
      %v4647 = vadd.f32 %v4243, %v4646
      %4648 = vmatmul.f32.gmra.mxu0 %v4528
      %v4649 = vpop.f32.mrf.mxu0
      %v4650 = vadd.f32 %v4246, %v4649
      %4651 = vmatmul.f32.gmra.mxu0 %v4530
      %v4652 = vpop.f32.mrf.mxu0
      %v4653 = vadd.f32 %v4249, %v4652
      %4654 = vmatmul.f32.gmra.mxu0 %v4532
      %v4655 = vpop.f32.mrf.mxu0
      %v4656 = vadd.f32 %v4252, %v4655
      %4657 = vmatmul.f32.gmra.mxu0 %v4534
      %v4658 = vpop.f32.mrf.mxu0
      %v4659 = vadd.f32 %v4255, %v4658
      %4660 = vmatmul.f32.gmra.mxu0 %v4536
      %v4661 = vpop.f32.mrf.mxu0
      %v4662 = vadd.f32 %v4258, %v4661
      %4663 = vmatmul.f32.gmra.mxu0 %v4538
      %v4664 = vpop.f32.mrf.mxu0
      %v4665 = vadd.f32 %v4261, %v4664
      %4666 = vmatmul.f32.gmra.mxu0 %v4540
      %v4667 = vpop.f32.mrf.mxu0
      %v4668 = vadd.f32 %v4264, %v4667
      %4669 = vmatmul.f32.gmra.mxu0 %v4542
      %v4670 = vpop.f32.mrf.mxu0
      %v4671 = vadd.f32 %v4267, %v4670
      %4672 = vmatmul.f32.gmra.mxu0 %v4544
      %v4673 = vpop.f32.mrf.mxu0
      %v4674 = vadd.f32 %v4270, %v4673
      %4675 = vmatmul.f32.gmra.mxu0 %v4546
      %v4676 = vpop.f32.mrf.mxu0
      %v4677 = vadd.f32 %v4273, %v4676
      %4678 = vmatmul.f32.gmra.mxu0 %v4548
      %v4679 = vpop.f32.mrf.mxu0
      %v4680 = vadd.f32 %v4276, %v4679
      %4681 = vmatmul.f32.gmra.mxu0 %v4550
      %v4682 = vpop.f32.mrf.mxu0
      %v4683 = vadd.f32 %v4279, %v4682
      %4684 = vmatmul.f32.gmra.mxu0 %v4552
      %v4685 = vpop.f32.mrf.mxu0
      %v4686 = vadd.f32 %v4282, %v4685
      %4687 = vmatmul.f32.gmra.mxu0 %v4554
      %v4688 = vpop.f32.mrf.mxu0
      %v4689 = vadd.f32 %v4285, %v4688
      %4690 = vmatmul.f32.gmra.mxu0 %v4556
      %v4691 = vpop.f32.mrf.mxu0
      %v4692 = vadd.f32 %v4288, %v4691
      %4693 = vmatmul.f32.gmra.mxu0 %v4558
      %v4694 = vpop.f32.mrf.mxu0
      %v4695 = vadd.f32 %v4291, %v4694
      %4696 = vmatmul.f32.gmra.mxu0 %v4560
      %v4697 = vpop.f32.mrf.mxu0
      %v4698 = vadd.f32 %v4294, %v4697
      %4699 = vmatmul.f32.gmra.mxu0 %v4562
      %v4700 = vpop.f32.mrf.mxu0
      %v4701 = vadd.f32 %v4297, %v4700
      %4702 = vmatmul.f32.gmra.mxu0 %v4564
      %v4703 = vpop.f32.mrf.mxu0
      %v4704 = vadd.f32 %v4300, %v4703
      %4705 = vmatmul.f32.gmra.mxu0 %v4566
      %v4706 = vpop.f32.mrf.mxu0
      %v4707 = vadd.f32 %v4303, %v4706
      %4708 = vmatmul.f32.gmra.mxu0 %v4568
      %v4709 = vpop.f32.mrf.mxu0
      %v4710 = vadd.f32 %v4306, %v4709
      %4711 = vmatmul.f32.gmra.mxu0 %v4570
      %v4712 = vpop.f32.mrf.mxu0
      %v4713 = vadd.f32 %v4309, %v4712
      %4714 = vmatmul.f32.gmra.mxu0 %v4572
      %v4715 = vpop.f32.mrf.mxu0
      %v4716 = vadd.f32 %v4312, %v4715
      %4717 = vmatmul.f32.gmra.mxu0 %v4574
      %v4718 = vpop.f32.mrf.mxu0
      %v4719 = vadd.f32 %v4315, %v4718
      %4720 = vmatmul.f32.gmra.mxu0 %v4576
      %v4721 = vpop.f32.mrf.mxu0
      %v4722 = vadd.f32 %v4318, %v4721
      %4723 = vmatmul.f32.gmra.mxu0 %v4578
      %v4724 = vpop.f32.mrf.mxu0
      %v4725 = vadd.f32 %v4321, %v4724
      %4726 = vmatmul.f32.gmra.mxu0 %v4580
      %v4727 = vpop.f32.mrf.mxu0
      %v4728 = vadd.f32 %v4324, %v4727
      %4729 = vmatmul.f32.gmra.mxu0 %v4582
      %v4730 = vpop.f32.mrf.mxu0
      %v4731 = vadd.f32 %v4327, %v4730
      %4732 = vmatmul.f32.gmra.mxu0 %v4584
      %v4733 = vpop.f32.mrf.mxu0
      %v4734 = vadd.f32 %v4330, %v4733
      %4735 = vmatmul.f32.gmra.mxu0 %v4586
      %v4736 = vpop.f32.mrf.mxu0
      %v4737 = vadd.f32 %v4333, %v4736
      %4738 = vmatmul.f32.gmra.mxu0 %v4588
      %v4739 = vpop.f32.mrf.mxu0
      %v4740 = vadd.f32 %v4336, %v4739
      %4741 = vmatmul.f32.gmra.mxu0 %v4590
      %v4742 = vpop.f32.mrf.mxu0
      %v4743 = vadd.f32 %v4339, %v4742
      %4744 = vmatmul.f32.gmra.mxu0 %v4592
      %v4745 = vpop.f32.mrf.mxu0
      %v4746 = vadd.f32 %v4342, %v4745
      %4747 = vmatmul.f32.gmra.mxu0 %v4594
      %v4748 = vpop.f32.mrf.mxu0
      %v4749 = vadd.f32 %v4345, %v4748
      %4750 = vmatmul.f32.gmra.mxu0 %v4596
      %v4751 = vpop.f32.mrf.mxu0
      %v4752 = vadd.f32 %v4348, %v4751
      %4753 = vmatmul.f32.gmra.mxu0 %v4598
      %v4754 = vpop.f32.mrf.mxu0
      %v4755 = vadd.f32 %v4351, %v4754
      %4756 = vmatmul.f32.gmra.mxu0 %v4600
      %v4757 = vpop.f32.mrf.mxu0
      %v4758 = vadd.f32 %v4354, %v4757
      %4759 = vmatmul.f32.gmra.mxu0 %v4602
      %v4760 = vpop.f32.mrf.mxu0
      %v4761 = vadd.f32 %v4357, %v4760
      %4762 = vmatmul.f32.gmra.mxu0 %v4604
      %v4763 = vpop.f32.mrf.mxu0
      %v4764 = vadd.f32 %v4360, %v4763
      %4765 = vmatmul.f32.gmra.mxu0 %v4606
      %v4766 = vpop.f32.mrf.mxu0
      %v4767 = vadd.f32 %v4363, %v4766
      %4768 = vmatmul.f32.gmra.mxu0 %v4608
      %v4769 = vpop.f32.mrf.mxu0
      %v4770 = vadd.f32 %v4366, %v4769
      %4771 = vmatmul.f32.gmra.mxu0 %v4610
      %v4772 = vpop.f32.mrf.mxu0
      %v4773 = vadd.f32 %v4369, %v4772
      %4774 = vmatmul.f32.gmra.mxu0 %v4612
      %v4775 = vpop.f32.mrf.mxu0
      %v4776 = vadd.f32 %v4372, %v4775
      %4777 = vdwg.mxu0
      %s4778 = scalar_lea.vmem [#allocation2], 168
      %v4779 = vld [vmem:[%s4778] sm:$0xff]
      %v4780 = vld [vmem:[%s4778 + $0x8] sm:$0xff]
      %v4781 = vld [vmem:[%s4778 + $0x10] sm:$0xff]
      %v4782 = vld [vmem:[%s4778 + $0x18] sm:$0xff]
      %v4783 = vld [vmem:[%s4778 + $0x20] sm:$0xff]
      %v4784 = vld [vmem:[%s4778 + $0x28] sm:$0xff]
      %v4785 = vld [vmem:[%s4778 + $0x30] sm:$0xff]
      %v4786 = vld [vmem:[%s4778 + $0x38] sm:$0xff]
      %v4787 = vld [vmem:[%s4778 + $0x40] sm:$0xff]
      %v4788 = vld [vmem:[%s4778 + $0x48] sm:$0xff]
      %v4789 = vld [vmem:[%s4778 + $0x50] sm:$0xff]
      %v4790 = vld [vmem:[%s4778 + $0x58] sm:$0xff]
      %v4791 = vld [vmem:[%s4778 + $0x60] sm:$0xff]
      %v4792 = vld [vmem:[%s4778 + $0x68] sm:$0xff]
      %v4793 = vld [vmem:[%s4778 + $0x70] sm:$0xff]
      %v4794 = vld [vmem:[%s4778 + $0x78] sm:$0xff]
      %v4795 = vld [vmem:[%s4778 + $0x80] sm:$0xff]
      %v4796 = vld [vmem:[%s4778 + $0x88] sm:$0xff]
      %v4797 = vld [vmem:[%s4778 + $0x90] sm:$0xff]
      %v4798 = vld [vmem:[%s4778 + $0x98] sm:$0xff]
      %v4799 = vld [vmem:[%s4778 + $0xa0] sm:$0xff]
      %v4800 = vld [vmem:[%s4778 + $0xa8] sm:$0xff]
      %v4801 = vld [vmem:[%s4778 + $0xb0] sm:$0xff]
      %v4802 = vld [vmem:[%s4778 + $0xb8] sm:$0xff]
      %v4803 = vld [vmem:[%s4778 + $0xc0] sm:$0xff]
      %v4804 = vld [vmem:[%s4778 + $0xc8] sm:$0xff]
      %v4805 = vld [vmem:[%s4778 + $0xd0] sm:$0xff]
      %v4806 = vld [vmem:[%s4778 + $0xd8] sm:$0xff]
      %v4807 = vld [vmem:[%s4778 + $0xe0] sm:$0xff]
      %v4808 = vld [vmem:[%s4778 + $0xe8] sm:$0xff]
      %v4809 = vld [vmem:[%s4778 + $0xf0] sm:$0xff]
      %v4810 = vld [vmem:[%s4778 + $0xf8] sm:$0xff]
      %v4811 = vld [vmem:[%s4778 + $0x100] sm:$0xff]
      %v4812 = vld [vmem:[%s4778 + $0x108] sm:$0xff]
      %v4813 = vld [vmem:[%s4778 + $0x110] sm:$0xff]
      %v4814 = vld [vmem:[%s4778 + $0x118] sm:$0xff]
      %v4815 = vld [vmem:[%s4778 + $0x120] sm:$0xff]
      %v4816 = vld [vmem:[%s4778 + $0x128] sm:$0xff]
      %v4817 = vld [vmem:[%s4778 + $0x130] sm:$0xff]
      %v4818 = vld [vmem:[%s4778 + $0x138] sm:$0xff]
      %v4819 = vld [vmem:[%s4778 + $0x140] sm:$0xff]
      %v4820 = vld [vmem:[%s4778 + $0x148] sm:$0xff]
      %v4821 = vld [vmem:[%s4778 + $0x150] sm:$0xff]
      %v4822 = vld [vmem:[%s4778 + $0x158] sm:$0xff]
      %v4823 = vld [vmem:[%s4778 + $0x160] sm:$0xff]
      %v4824 = vld [vmem:[%s4778 + $0x168] sm:$0xff]
      %v4825 = vld [vmem:[%s4778 + $0x170] sm:$0xff]
      %v4826 = vld [vmem:[%s4778 + $0x178] sm:$0xff]
      %s4827 = scalar_lea.vmem %s6, 4
      %v4828 = vld [vmem:[%s4827] sm:$0x3]
      %4877 = vrot.lane.b32.xlu0 %v4779, 124
      %v4878 = vpop.permute.xlu0 %4877
      %4879 = vrot.lane.b32.xlu0 %v4780, 124
      %v4880 = vpop.permute.xlu0 %4879
      %4881 = vrot.lane.b32.xlu0 %v4781, 124
      %v4882 = vpop.permute.xlu0 %4881
      %4883 = vrot.lane.b32.xlu0 %v4782, 124
      %v4884 = vpop.permute.xlu0 %4883
      %4885 = vrot.lane.b32.xlu0 %v4783, 124
      %v4886 = vpop.permute.xlu0 %4885
      %4887 = vrot.lane.b32.xlu0 %v4784, 124
      %v4888 = vpop.permute.xlu0 %4887
      %4889 = vrot.lane.b32.xlu0 %v4785, 124
      %v4890 = vpop.permute.xlu0 %4889
      %4891 = vrot.lane.b32.xlu0 %v4786, 124
      %v4892 = vpop.permute.xlu0 %4891
      %4893 = vrot.lane.b32.xlu0 %v4787, 124
      %v4894 = vpop.permute.xlu0 %4893
      %4895 = vrot.lane.b32.xlu0 %v4788, 124
      %v4896 = vpop.permute.xlu0 %4895
      %4897 = vrot.lane.b32.xlu0 %v4789, 124
      %v4898 = vpop.permute.xlu0 %4897
      %4899 = vrot.lane.b32.xlu0 %v4790, 124
      %v4900 = vpop.permute.xlu0 %4899
      %4901 = vrot.lane.b32.xlu0 %v4791, 124
      %v4902 = vpop.permute.xlu0 %4901
      %4903 = vrot.lane.b32.xlu0 %v4792, 124
      %v4904 = vpop.permute.xlu0 %4903
      %4905 = vrot.lane.b32.xlu0 %v4793, 124
      %v4906 = vpop.permute.xlu0 %4905
      %4907 = vrot.lane.b32.xlu0 %v4794, 124
      %v4908 = vpop.permute.xlu0 %4907
      %4909 = vrot.lane.b32.xlu0 %v4795, 124
      %v4910 = vpop.permute.xlu0 %4909
      %4911 = vrot.lane.b32.xlu0 %v4796, 124
      %v4912 = vpop.permute.xlu0 %4911
      %4913 = vrot.lane.b32.xlu0 %v4797, 124
      %v4914 = vpop.permute.xlu0 %4913
      %4915 = vrot.lane.b32.xlu0 %v4798, 124
      %v4916 = vpop.permute.xlu0 %4915
      %4917 = vrot.lane.b32.xlu0 %v4799, 124
      %v4918 = vpop.permute.xlu0 %4917
      %4919 = vrot.lane.b32.xlu0 %v4800, 124
      %v4920 = vpop.permute.xlu0 %4919
      %4921 = vrot.lane.b32.xlu0 %v4801, 124
      %v4922 = vpop.permute.xlu0 %4921
      %4923 = vrot.lane.b32.xlu0 %v4802, 124
      %v4924 = vpop.permute.xlu0 %4923
      %4925 = vrot.lane.b32.xlu0 %v4803, 124
      %v4926 = vpop.permute.xlu0 %4925
      %4927 = vrot.lane.b32.xlu0 %v4804, 124
      %v4928 = vpop.permute.xlu0 %4927
      %4929 = vrot.lane.b32.xlu0 %v4805, 124
      %v4930 = vpop.permute.xlu0 %4929
      %4931 = vrot.lane.b32.xlu0 %v4806, 124
      %v4932 = vpop.permute.xlu0 %4931
      %4933 = vrot.lane.b32.xlu0 %v4807, 124
      %v4934 = vpop.permute.xlu0 %4933
      %4935 = vrot.lane.b32.xlu0 %v4808, 124
      %v4936 = vpop.permute.xlu0 %4935
      %4937 = vrot.lane.b32.xlu0 %v4809, 124
      %v4938 = vpop.permute.xlu0 %4937
      %4939 = vrot.lane.b32.xlu0 %v4810, 124
      %v4940 = vpop.permute.xlu0 %4939
      %4941 = vrot.lane.b32.xlu0 %v4811, 124
      %v4942 = vpop.permute.xlu0 %4941
      %4943 = vrot.lane.b32.xlu0 %v4812, 124
      %v4944 = vpop.permute.xlu0 %4943
      %4945 = vrot.lane.b32.xlu0 %v4813, 124
      %v4946 = vpop.permute.xlu0 %4945
      %4947 = vrot.lane.b32.xlu0 %v4814, 124
      %v4948 = vpop.permute.xlu0 %4947
      %4949 = vrot.lane.b32.xlu0 %v4815, 124
      %v4950 = vpop.permute.xlu0 %4949
      %4951 = vrot.lane.b32.xlu0 %v4816, 124
      %v4952 = vpop.permute.xlu0 %4951
      %4953 = vrot.lane.b32.xlu0 %v4817, 124
      %v4954 = vpop.permute.xlu0 %4953
      %4955 = vrot.lane.b32.xlu0 %v4818, 124
      %v4956 = vpop.permute.xlu0 %4955
      %4957 = vrot.lane.b32.xlu0 %v4819, 124
      %v4958 = vpop.permute.xlu0 %4957
      %4959 = vrot.lane.b32.xlu0 %v4820, 124
      %v4960 = vpop.permute.xlu0 %4959
      %4961 = vrot.lane.b32.xlu0 %v4821, 124
      %v4962 = vpop.permute.xlu0 %4961
      %4963 = vrot.lane.b32.xlu0 %v4822, 124
      %v4964 = vpop.permute.xlu0 %4963
      %4965 = vrot.lane.b32.xlu0 %v4823, 124
      %v4966 = vpop.permute.xlu0 %4965
      %4967 = vrot.lane.b32.xlu0 %v4824, 124
      %v4968 = vpop.permute.xlu0 %4967
      %4969 = vrot.lane.b32.xlu0 %v4825, 124
      %v4970 = vpop.permute.xlu0 %4969
      %4971 = vrot.lane.b32.xlu0 %v4826, 124
      %v4972 = vpop.permute.xlu0 %4971
      %v4973 = vsel %vm1145, %v4878, 0
      %v4975 = vsel %vm1145, %v4880, 0
      %v4977 = vsel %vm1145, %v4882, 0
      %v4979 = vsel %vm1145, %v4884, 0
      %v4981 = vsel %vm1145, %v4886, 0
      %v4983 = vsel %vm1145, %v4888, 0
      %v4985 = vsel %vm1145, %v4890, 0
      %v4987 = vsel %vm1145, %v4892, 0
      %v4989 = vsel %vm1145, %v4894, 0
      %v4991 = vsel %vm1145, %v4896, 0
      %v4993 = vsel %vm1145, %v4898, 0
      %v4995 = vsel %vm1145, %v4900, 0
      %v4997 = vsel %vm1145, %v4902, 0
      %v4999 = vsel %vm1145, %v4904, 0
      %v5001 = vsel %vm1145, %v4906, 0
      %v5003 = vsel %vm1145, %v4908, 0
      %v5005 = vsel %vm1145, %v4910, 0
      %v5007 = vsel %vm1145, %v4912, 0
      %v5009 = vsel %vm1145, %v4914, 0
      %v5011 = vsel %vm1145, %v4916, 0
      %v5013 = vsel %vm1145, %v4918, 0
      %v5015 = vsel %vm1145, %v4920, 0
      %v5017 = vsel %vm1145, %v4922, 0
      %v5019 = vsel %vm1145, %v4924, 0
      %v5021 = vsel %vm1145, %v4926, 0
      %v5023 = vsel %vm1145, %v4928, 0
      %v5025 = vsel %vm1145, %v4930, 0
      %v5027 = vsel %vm1145, %v4932, 0
      %v5029 = vsel %vm1145, %v4934, 0
      %v5031 = vsel %vm1145, %v4936, 0
      %v5033 = vsel %vm1145, %v4938, 0
      %v5035 = vsel %vm1145, %v4940, 0
      %v5037 = vsel %vm1145, %v4942, 0
      %v5039 = vsel %vm1145, %v4944, 0
      %v5041 = vsel %vm1145, %v4946, 0
      %v5043 = vsel %vm1145, %v4948, 0
      %v5045 = vsel %vm1145, %v4950, 0
      %v5047 = vsel %vm1145, %v4952, 0
      %v5049 = vsel %vm1145, %v4954, 0
      %v5051 = vsel %vm1145, %v4956, 0
      %v5053 = vsel %vm1145, %v4958, 0
      %v5055 = vsel %vm1145, %v4960, 0
      %v5057 = vsel %vm1145, %v4962, 0
      %v5059 = vsel %vm1145, %v4964, 0
      %v5061 = vsel %vm1145, %v4966, 0
      %v5063 = vsel %vm1145, %v4968, 0
      %v5065 = vsel %vm1145, %v4970, 0
      %v5067 = vsel %vm1145, %v4972, 0
      %v5070 = vsel %vm1290, %v4828, 0
      %5072 = vmatpush.msra.mxu0 0.0
      %5073 = vmatpush.msra.mxu0 0.0
      %5074 = vmatpush.msra.mxu0 0.0
      %5075 = vmatpush.msra.mxu0 0.0
      %5076 = vmatpush.msra.mxu0 0.0
      %5077 = vmatpush.msra.mxu0 0.0
      %5078 = vmatpush.msra.mxu0 0.0
      %5079 = vmatpush.msra.mxu0 0.0
      %5080 = vmatpush.msra.mxu0 0.0
      %5081 = vmatpush.msra.mxu0 0.0
      %5082 = vmatpush.msra.mxu0 0.0
      %5083 = vmatpush.msra.mxu0 0.0
      %5084 = vmatpush.msra.mxu0 0.0
      %5085 = vmatpush.msra.mxu0 0.0
      %5086 = vmatpush.msra.mxu0 0.0
      %5087 = vmatpush.msra.mxu0 %v5070
      %5088 = vmatmul.f32.gmra.mxu0 %v4973
      %v5089 = vpop.f32.mrf.mxu0
      %v5090 = vadd.f32 0.0, %v5089
      %5091 = vmatmul.f32.gmra.mxu0 %v4975
      %v5092 = vpop.f32.mrf.mxu0
      %v5093 = vadd.f32 0.0, %v5092
      %5094 = vmatmul.f32.gmra.mxu0 %v4977
      %v5095 = vpop.f32.mrf.mxu0
      %v5096 = vadd.f32 0.0, %v5095
      %5097 = vmatmul.f32.gmra.mxu0 %v4979
      %v5098 = vpop.f32.mrf.mxu0
      %v5099 = vadd.f32 0.0, %v5098
      %5100 = vmatmul.f32.gmra.mxu0 %v4981
      %v5101 = vpop.f32.mrf.mxu0
      %v5102 = vadd.f32 0.0, %v5101
      %5103 = vmatmul.f32.gmra.mxu0 %v4983
      %v5104 = vpop.f32.mrf.mxu0
      %v5105 = vadd.f32 0.0, %v5104
      %5106 = vmatmul.f32.gmra.mxu0 %v4985
      %v5107 = vpop.f32.mrf.mxu0
      %v5108 = vadd.f32 0.0, %v5107
      %5109 = vmatmul.f32.gmra.mxu0 %v4987
      %v5110 = vpop.f32.mrf.mxu0
      %v5111 = vadd.f32 0.0, %v5110
      %5112 = vmatmul.f32.gmra.mxu0 %v4989
      %v5113 = vpop.f32.mrf.mxu0
      %v5114 = vadd.f32 0.0, %v5113
      %5115 = vmatmul.f32.gmra.mxu0 %v4991
      %v5116 = vpop.f32.mrf.mxu0
      %v5117 = vadd.f32 0.0, %v5116
      %5118 = vmatmul.f32.gmra.mxu0 %v4993
      %v5119 = vpop.f32.mrf.mxu0
      %v5120 = vadd.f32 0.0, %v5119
      %5121 = vmatmul.f32.gmra.mxu0 %v4995
      %v5122 = vpop.f32.mrf.mxu0
      %v5123 = vadd.f32 0.0, %v5122
      %5124 = vmatmul.f32.gmra.mxu0 %v4997
      %v5125 = vpop.f32.mrf.mxu0
      %v5126 = vadd.f32 0.0, %v5125
      %5127 = vmatmul.f32.gmra.mxu0 %v4999
      %v5128 = vpop.f32.mrf.mxu0
      %v5129 = vadd.f32 0.0, %v5128
      %5130 = vmatmul.f32.gmra.mxu0 %v5001
      %v5131 = vpop.f32.mrf.mxu0
      %v5132 = vadd.f32 0.0, %v5131
      %5133 = vmatmul.f32.gmra.mxu0 %v5003
      %v5134 = vpop.f32.mrf.mxu0
      %v5135 = vadd.f32 0.0, %v5134
      %5136 = vmatmul.f32.gmra.mxu0 %v5005
      %v5137 = vpop.f32.mrf.mxu0
      %v5138 = vadd.f32 0.0, %v5137
      %5139 = vmatmul.f32.gmra.mxu0 %v5007
      %v5140 = vpop.f32.mrf.mxu0
      %v5141 = vadd.f32 0.0, %v5140
      %5142 = vmatmul.f32.gmra.mxu0 %v5009
      %v5143 = vpop.f32.mrf.mxu0
      %v5144 = vadd.f32 0.0, %v5143
      %5145 = vmatmul.f32.gmra.mxu0 %v5011
      %v5146 = vpop.f32.mrf.mxu0
      %v5147 = vadd.f32 0.0, %v5146
      %5148 = vmatmul.f32.gmra.mxu0 %v5013
      %v5149 = vpop.f32.mrf.mxu0
      %v5150 = vadd.f32 0.0, %v5149
      %5151 = vmatmul.f32.gmra.mxu0 %v5015
      %v5152 = vpop.f32.mrf.mxu0
      %v5153 = vadd.f32 0.0, %v5152
      %5154 = vmatmul.f32.gmra.mxu0 %v5017
      %v5155 = vpop.f32.mrf.mxu0
      %v5156 = vadd.f32 0.0, %v5155
      %5157 = vmatmul.f32.gmra.mxu0 %v5019
      %v5158 = vpop.f32.mrf.mxu0
      %v5159 = vadd.f32 0.0, %v5158
      %5160 = vmatmul.f32.gmra.mxu0 %v5021
      %v5161 = vpop.f32.mrf.mxu0
      %v5162 = vadd.f32 0.0, %v5161
      %5163 = vmatmul.f32.gmra.mxu0 %v5023
      %v5164 = vpop.f32.mrf.mxu0
      %v5165 = vadd.f32 0.0, %v5164
      %5166 = vmatmul.f32.gmra.mxu0 %v5025
      %v5167 = vpop.f32.mrf.mxu0
      %v5168 = vadd.f32 0.0, %v5167
      %5169 = vmatmul.f32.gmra.mxu0 %v5027
      %v5170 = vpop.f32.mrf.mxu0
      %v5171 = vadd.f32 0.0, %v5170
      %5172 = vmatmul.f32.gmra.mxu0 %v5029
      %v5173 = vpop.f32.mrf.mxu0
      %v5174 = vadd.f32 0.0, %v5173
      %5175 = vmatmul.f32.gmra.mxu0 %v5031
      %v5176 = vpop.f32.mrf.mxu0
      %v5177 = vadd.f32 0.0, %v5176
      %5178 = vmatmul.f32.gmra.mxu0 %v5033
      %v5179 = vpop.f32.mrf.mxu0
      %v5180 = vadd.f32 0.0, %v5179
      %5181 = vmatmul.f32.gmra.mxu0 %v5035
      %v5182 = vpop.f32.mrf.mxu0
      %v5183 = vadd.f32 0.0, %v5182
      %5184 = vmatmul.f32.gmra.mxu0 %v5037
      %v5185 = vpop.f32.mrf.mxu0
      %v5186 = vadd.f32 0.0, %v5185
      %5187 = vmatmul.f32.gmra.mxu0 %v5039
      %v5188 = vpop.f32.mrf.mxu0
      %v5189 = vadd.f32 0.0, %v5188
      %5190 = vmatmul.f32.gmra.mxu0 %v5041
      %v5191 = vpop.f32.mrf.mxu0
      %v5192 = vadd.f32 0.0, %v5191
      %5193 = vmatmul.f32.gmra.mxu0 %v5043
      %v5194 = vpop.f32.mrf.mxu0
      %v5195 = vadd.f32 0.0, %v5194
      %5196 = vmatmul.f32.gmra.mxu0 %v5045
      %v5197 = vpop.f32.mrf.mxu0
      %v5198 = vadd.f32 0.0, %v5197
      %5199 = vmatmul.f32.gmra.mxu0 %v5047
      %v5200 = vpop.f32.mrf.mxu0
      %v5201 = vadd.f32 0.0, %v5200
      %5202 = vmatmul.f32.gmra.mxu0 %v5049
      %v5203 = vpop.f32.mrf.mxu0
      %v5204 = vadd.f32 0.0, %v5203
      %5205 = vmatmul.f32.gmra.mxu0 %v5051
      %v5206 = vpop.f32.mrf.mxu0
      %v5207 = vadd.f32 0.0, %v5206
      %5208 = vmatmul.f32.gmra.mxu0 %v5053
      %v5209 = vpop.f32.mrf.mxu0
      %v5210 = vadd.f32 0.0, %v5209
      %5211 = vmatmul.f32.gmra.mxu0 %v5055
      %v5212 = vpop.f32.mrf.mxu0
      %v5213 = vadd.f32 0.0, %v5212
      %5214 = vmatmul.f32.gmra.mxu0 %v5057
      %v5215 = vpop.f32.mrf.mxu0
      %v5216 = vadd.f32 0.0, %v5215
      %5217 = vmatmul.f32.gmra.mxu0 %v5059
      %v5218 = vpop.f32.mrf.mxu0
      %v5219 = vadd.f32 0.0, %v5218
      %5220 = vmatmul.f32.gmra.mxu0 %v5061
      %v5221 = vpop.f32.mrf.mxu0
      %v5222 = vadd.f32 0.0, %v5221
      %5223 = vmatmul.f32.gmra.mxu0 %v5063
      %v5224 = vpop.f32.mrf.mxu0
      %v5225 = vadd.f32 0.0, %v5224
      %5226 = vmatmul.f32.gmra.mxu0 %v5065
      %v5227 = vpop.f32.mrf.mxu0
      %v5228 = vadd.f32 0.0, %v5227
      %5229 = vmatmul.f32.gmra.mxu0 %v5067
      %v5230 = vpop.f32.mrf.mxu0
      %v5231 = vadd.f32 0.0, %v5230
      %5232 = vdwg.mxu0
      %v5233 = vadd.f32 %v4635, %v5090
      %v5234 = vadd.f32 %v4638, %v5093
      %v5235 = vadd.f32 %v4641, %v5096
      %v5236 = vadd.f32 %v4644, %v5099
      %v5237 = vadd.f32 %v4647, %v5102
      %v5238 = vadd.f32 %v4650, %v5105
      %v5239 = vadd.f32 %v4653, %v5108
      %v5240 = vadd.f32 %v4656, %v5111
      %v5241 = vadd.f32 %v4659, %v5114
      %v5242 = vadd.f32 %v4662, %v5117
      %v5243 = vadd.f32 %v4665, %v5120
      %v5244 = vadd.f32 %v4668, %v5123
      %v5245 = vadd.f32 %v4671, %v5126
      %v5246 = vadd.f32 %v4674, %v5129
      %v5247 = vadd.f32 %v4677, %v5132
      %v5248 = vadd.f32 %v4680, %v5135
      %v5249 = vadd.f32 %v4683, %v5138
      %v5250 = vadd.f32 %v4686, %v5141
      %v5251 = vadd.f32 %v4689, %v5144
      %v5252 = vadd.f32 %v4692, %v5147
      %v5253 = vadd.f32 %v4695, %v5150
      %v5254 = vadd.f32 %v4698, %v5153
      %v5255 = vadd.f32 %v4701, %v5156
      %v5256 = vadd.f32 %v4704, %v5159
      %v5257 = vadd.f32 %v4707, %v5162
      %v5258 = vadd.f32 %v4710, %v5165
      %v5259 = vadd.f32 %v4713, %v5168
      %v5260 = vadd.f32 %v4716, %v5171
      %v5261 = vadd.f32 %v4719, %v5174
      %v5262 = vadd.f32 %v4722, %v5177
      %v5263 = vadd.f32 %v4725, %v5180
      %v5264 = vadd.f32 %v4728, %v5183
      %v5265 = vadd.f32 %v4731, %v5186
      %v5266 = vadd.f32 %v4734, %v5189
      %v5267 = vadd.f32 %v4737, %v5192
      %v5268 = vadd.f32 %v4740, %v5195
      %v5269 = vadd.f32 %v4743, %v5198
      %v5270 = vadd.f32 %v4746, %v5201
      %v5271 = vadd.f32 %v4749, %v5204
      %v5272 = vadd.f32 %v4752, %v5207
      %v5273 = vadd.f32 %v4755, %v5210
      %v5274 = vadd.f32 %v4758, %v5213
      %v5275 = vadd.f32 %v4761, %v5216
      %v5276 = vadd.f32 %v4764, %v5219
      %v5277 = vadd.f32 %v4767, %v5222
      %v5278 = vadd.f32 %v4770, %v5225
      %v5279 = vadd.f32 %v4773, %v5228
      %v5280 = vadd.f32 %v4776, %v5231
      %5329 = vrot.lane.b32.xlu0 %v5233, 4
      %v5330 = vpop.permute.xlu0 %5329
      %5331 = vrot.lane.b32.xlu0 %v5234, 4
      %v5332 = vpop.permute.xlu0 %5331
      %5333 = vrot.lane.b32.xlu0 %v5235, 4
      %v5334 = vpop.permute.xlu0 %5333
      %5335 = vrot.lane.b32.xlu0 %v5236, 4
      %v5336 = vpop.permute.xlu0 %5335
      %5337 = vrot.lane.b32.xlu0 %v5237, 4
      %v5338 = vpop.permute.xlu0 %5337
      %5339 = vrot.lane.b32.xlu0 %v5238, 4
      %v5340 = vpop.permute.xlu0 %5339
      %5341 = vrot.lane.b32.xlu0 %v5239, 4
      %v5342 = vpop.permute.xlu0 %5341
      %5343 = vrot.lane.b32.xlu0 %v5240, 4
      %v5344 = vpop.permute.xlu0 %5343
      %5345 = vrot.lane.b32.xlu0 %v5241, 4
      %v5346 = vpop.permute.xlu0 %5345
      %5347 = vrot.lane.b32.xlu0 %v5242, 4
      %v5348 = vpop.permute.xlu0 %5347
      %5349 = vrot.lane.b32.xlu0 %v5243, 4
      %v5350 = vpop.permute.xlu0 %5349
      %5351 = vrot.lane.b32.xlu0 %v5244, 4
      %v5352 = vpop.permute.xlu0 %5351
      %5353 = vrot.lane.b32.xlu0 %v5245, 4
      %v5354 = vpop.permute.xlu0 %5353
      %5355 = vrot.lane.b32.xlu0 %v5246, 4
      %v5356 = vpop.permute.xlu0 %5355
      %5357 = vrot.lane.b32.xlu0 %v5247, 4
      %v5358 = vpop.permute.xlu0 %5357
      %5359 = vrot.lane.b32.xlu0 %v5248, 4
      %v5360 = vpop.permute.xlu0 %5359
      %5361 = vrot.lane.b32.xlu0 %v5249, 4
      %v5362 = vpop.permute.xlu0 %5361
      %5363 = vrot.lane.b32.xlu0 %v5250, 4
      %v5364 = vpop.permute.xlu0 %5363
      %5365 = vrot.lane.b32.xlu0 %v5251, 4
      %v5366 = vpop.permute.xlu0 %5365
      %5367 = vrot.lane.b32.xlu0 %v5252, 4
      %v5368 = vpop.permute.xlu0 %5367
      %5369 = vrot.lane.b32.xlu0 %v5253, 4
      %v5370 = vpop.permute.xlu0 %5369
      %5371 = vrot.lane.b32.xlu0 %v5254, 4
      %v5372 = vpop.permute.xlu0 %5371
      %5373 = vrot.lane.b32.xlu0 %v5255, 4
      %v5374 = vpop.permute.xlu0 %5373
      %5375 = vrot.lane.b32.xlu0 %v5256, 4
      %v5376 = vpop.permute.xlu0 %5375
      %5377 = vrot.lane.b32.xlu0 %v5257, 4
      %v5378 = vpop.permute.xlu0 %5377
      %5379 = vrot.lane.b32.xlu0 %v5258, 4
      %v5380 = vpop.permute.xlu0 %5379
      %5381 = vrot.lane.b32.xlu0 %v5259, 4
      %v5382 = vpop.permute.xlu0 %5381
      %5383 = vrot.lane.b32.xlu0 %v5260, 4
      %v5384 = vpop.permute.xlu0 %5383
      %5385 = vrot.lane.b32.xlu0 %v5261, 4
      %v5386 = vpop.permute.xlu0 %5385
      %5387 = vrot.lane.b32.xlu0 %v5262, 4
      %v5388 = vpop.permute.xlu0 %5387
      %5389 = vrot.lane.b32.xlu0 %v5263, 4
      %v5390 = vpop.permute.xlu0 %5389
      %5391 = vrot.lane.b32.xlu0 %v5264, 4
      %v5392 = vpop.permute.xlu0 %5391
      %5393 = vrot.lane.b32.xlu0 %v5265, 4
      %v5394 = vpop.permute.xlu0 %5393
      %5395 = vrot.lane.b32.xlu0 %v5266, 4
      %v5396 = vpop.permute.xlu0 %5395
      %5397 = vrot.lane.b32.xlu0 %v5267, 4
      %v5398 = vpop.permute.xlu0 %5397
      %5399 = vrot.lane.b32.xlu0 %v5268, 4
      %v5400 = vpop.permute.xlu0 %5399
      %5401 = vrot.lane.b32.xlu0 %v5269, 4
      %v5402 = vpop.permute.xlu0 %5401
      %5403 = vrot.lane.b32.xlu0 %v5270, 4
      %v5404 = vpop.permute.xlu0 %5403
      %5405 = vrot.lane.b32.xlu0 %v5271, 4
      %v5406 = vpop.permute.xlu0 %5405
      %5407 = vrot.lane.b32.xlu0 %v5272, 4
      %v5408 = vpop.permute.xlu0 %5407
      %5409 = vrot.lane.b32.xlu0 %v5273, 4
      %v5410 = vpop.permute.xlu0 %5409
      %5411 = vrot.lane.b32.xlu0 %v5274, 4
      %v5412 = vpop.permute.xlu0 %5411
      %5413 = vrot.lane.b32.xlu0 %v5275, 4
      %v5414 = vpop.permute.xlu0 %5413
      %5415 = vrot.lane.b32.xlu0 %v5276, 4
      %v5416 = vpop.permute.xlu0 %5415
      %5417 = vrot.lane.b32.xlu0 %v5277, 4
      %v5418 = vpop.permute.xlu0 %5417
      %5419 = vrot.lane.b32.xlu0 %v5278, 4
      %v5420 = vpop.permute.xlu0 %5419
      %5421 = vrot.lane.b32.xlu0 %v5279, 4
      %v5422 = vpop.permute.xlu0 %5421
      %5423 = vrot.lane.b32.xlu0 %v5280, 4
      %v5424 = vpop.permute.xlu0 %5423
      %vm5473 = vcmask 48160
      %5474 = vst.msk [vmem:[#allocation3] sm:$0xff] %vm5473, %v5330
      %5475 = vst.msk [vmem:[#allocation3 + $0x8] sm:$0xff] %vm5473, %v5332
      %5476 = vst.msk [vmem:[#allocation3 + $0x10] sm:$0xff] %vm5473, %v5334
      %5477 = vst.msk [vmem:[#allocation3 + $0x18] sm:$0xff] %vm5473, %v5336
      %5478 = vst.msk [vmem:[#allocation3 + $0x20] sm:$0xff] %vm5473, %v5338
      %5479 = vst.msk [vmem:[#allocation3 + $0x28] sm:$0xff] %vm5473, %v5340
      %5480 = vst.msk [vmem:[#allocation3 + $0x30] sm:$0xff] %vm5473, %v5342
      %5481 = vst.msk [vmem:[#allocation3 + $0x38] sm:$0xff] %vm5473, %v5344
      %5482 = vst.msk [vmem:[#allocation3 + $0x40] sm:$0xff] %vm5473, %v5346
      %5483 = vst.msk [vmem:[#allocation3 + $0x48] sm:$0xff] %vm5473, %v5348
      %5484 = vst.msk [vmem:[#allocation3 + $0x50] sm:$0xff] %vm5473, %v5350
      %5485 = vst.msk [vmem:[#allocation3 + $0x58] sm:$0xff] %vm5473, %v5352
      %5486 = vst.msk [vmem:[#allocation3 + $0x60] sm:$0xff] %vm5473, %v5354
      %5487 = vst.msk [vmem:[#allocation3 + $0x68] sm:$0xff] %vm5473, %v5356
      %5488 = vst.msk [vmem:[#allocation3 + $0x70] sm:$0xff] %vm5473, %v5358
      %5489 = vst.msk [vmem:[#allocation3 + $0x78] sm:$0xff] %vm5473, %v5360
      %5490 = vst.msk [vmem:[#allocation3 + $0x80] sm:$0xff] %vm5473, %v5362
      %5491 = vst.msk [vmem:[#allocation3 + $0x88] sm:$0xff] %vm5473, %v5364
      %5492 = vst.msk [vmem:[#allocation3 + $0x90] sm:$0xff] %vm5473, %v5366
      %5493 = vst.msk [vmem:[#allocation3 + $0x98] sm:$0xff] %vm5473, %v5368
      %5494 = vst.msk [vmem:[#allocation3 + $0xa0] sm:$0xff] %vm5473, %v5370
      %5495 = vst.msk [vmem:[#allocation3 + $0xa8] sm:$0xff] %vm5473, %v5372
      %5496 = vst.msk [vmem:[#allocation3 + $0xb0] sm:$0xff] %vm5473, %v5374
      %5497 = vst.msk [vmem:[#allocation3 + $0xb8] sm:$0xff] %vm5473, %v5376
      %5498 = vst.msk [vmem:[#allocation3 + $0xc0] sm:$0xff] %vm5473, %v5378
      %5499 = vst.msk [vmem:[#allocation3 + $0xc8] sm:$0xff] %vm5473, %v5380
      %5500 = vst.msk [vmem:[#allocation3 + $0xd0] sm:$0xff] %vm5473, %v5382
      %5501 = vst.msk [vmem:[#allocation3 + $0xd8] sm:$0xff] %vm5473, %v5384
      %5502 = vst.msk [vmem:[#allocation3 + $0xe0] sm:$0xff] %vm5473, %v5386
      %5503 = vst.msk [vmem:[#allocation3 + $0xe8] sm:$0xff] %vm5473, %v5388
      %5504 = vst.msk [vmem:[#allocation3 + $0xf0] sm:$0xff] %vm5473, %v5390
      %5505 = vst.msk [vmem:[#allocation3 + $0xf8] sm:$0xff] %vm5473, %v5392
      %5506 = vst.msk [vmem:[#allocation3 + $0x100] sm:$0xff] %vm5473, %v5394
      %5507 = vst.msk [vmem:[#allocation3 + $0x108] sm:$0xff] %vm5473, %v5396
      %5508 = vst.msk [vmem:[#allocation3 + $0x110] sm:$0xff] %vm5473, %v5398
      %5509 = vst.msk [vmem:[#allocation3 + $0x118] sm:$0xff] %vm5473, %v5400
      %5510 = vst.msk [vmem:[#allocation3 + $0x120] sm:$0xff] %vm5473, %v5402
      %5511 = vst.msk [vmem:[#allocation3 + $0x128] sm:$0xff] %vm5473, %v5404
      %5512 = vst.msk [vmem:[#allocation3 + $0x130] sm:$0xff] %vm5473, %v5406
      %5513 = vst.msk [vmem:[#allocation3 + $0x138] sm:$0xff] %vm5473, %v5408
      %5514 = vst.msk [vmem:[#allocation3 + $0x140] sm:$0xff] %vm5473, %v5410
      %5515 = vst.msk [vmem:[#allocation3 + $0x148] sm:$0xff] %vm5473, %v5412
      %5516 = vst.msk [vmem:[#allocation3 + $0x150] sm:$0xff] %vm5473, %v5414
      %5517 = vst.msk [vmem:[#allocation3 + $0x158] sm:$0xff] %vm5473, %v5416
      %5518 = vst.msk [vmem:[#allocation3 + $0x160] sm:$0xff] %vm5473, %v5418
      %5519 = vst.msk [vmem:[#allocation3 + $0x168] sm:$0xff] %vm5473, %v5420
      %5520 = vst.msk [vmem:[#allocation3 + $0x170] sm:$0xff] %vm5473, %v5422
      %5521 = vst.msk [vmem:[#allocation3 + $0x178] sm:$0xff] %vm5473, %v5424
      %v5522 = vld [vmem:[#allocation2] sm:$0xff]
      %v5523 = vld [vmem:[#allocation2 + $0x8] sm:$0xff]
      %v5524 = vld [vmem:[#allocation2 + $0x10] sm:$0xff]
      %v5525 = vld [vmem:[#allocation2 + $0x18] sm:$0xff]
      %v5526 = vld [vmem:[#allocation2 + $0x20] sm:$0xff]
      %v5527 = vld [vmem:[#allocation2 + $0x28] sm:$0xff]
      %v5528 = vld [vmem:[#allocation2 + $0x30] sm:$0xff]
      %v5529 = vld [vmem:[#allocation2 + $0x38] sm:$0xff]
      %v5530 = vld [vmem:[#allocation2 + $0x40] sm:$0xff]
      %v5531 = vld [vmem:[#allocation2 + $0x48] sm:$0xff]
      %v5532 = vld [vmem:[#allocation2 + $0x50] sm:$0xff]
      %v5533 = vld [vmem:[#allocation2 + $0x58] sm:$0xff]
      %v5534 = vld [vmem:[#allocation2 + $0x60] sm:$0xff]
      %v5535 = vld [vmem:[#allocation2 + $0x68] sm:$0xff]
      %v5536 = vld [vmem:[#allocation2 + $0x70] sm:$0xff]
      %v5537 = vld [vmem:[#allocation2 + $0x78] sm:$0xff]
      %v5538 = vld [vmem:[#allocation2 + $0x80] sm:$0xff]
      %v5539 = vld [vmem:[#allocation2 + $0x88] sm:$0xff]
      %v5540 = vld [vmem:[#allocation2 + $0x90] sm:$0xff]
      %v5541 = vld [vmem:[#allocation2 + $0x98] sm:$0xff]
      %v5542 = vld [vmem:[#allocation2 + $0xa0] sm:$0xff]
      %v5543 = vld [vmem:[#allocation2 + $0xa8] sm:$0xff]
      %v5544 = vld [vmem:[#allocation2 + $0xb0] sm:$0xff]
      %v5545 = vld [vmem:[#allocation2 + $0xb8] sm:$0xff]
      %v5546 = vld [vmem:[#allocation2 + $0xc0] sm:$0xff]
      %v5547 = vld [vmem:[#allocation2 + $0xc8] sm:$0xff]
      %v5548 = vld [vmem:[#allocation2 + $0xd0] sm:$0xff]
      %v5549 = vld [vmem:[#allocation2 + $0xd8] sm:$0xff]
      %v5550 = vld [vmem:[#allocation2 + $0xe0] sm:$0xff]
      %v5551 = vld [vmem:[#allocation2 + $0xe8] sm:$0xff]
      %v5552 = vld [vmem:[#allocation2 + $0xf0] sm:$0xff]
      %v5553 = vld [vmem:[#allocation2 + $0xf8] sm:$0xff]
      %v5554 = vld [vmem:[#allocation2 + $0x100] sm:$0xff]
      %v5555 = vld [vmem:[#allocation2 + $0x108] sm:$0xff]
      %v5556 = vld [vmem:[#allocation2 + $0x110] sm:$0xff]
      %v5557 = vld [vmem:[#allocation2 + $0x118] sm:$0xff]
      %v5558 = vld [vmem:[#allocation2 + $0x120] sm:$0xff]
      %v5559 = vld [vmem:[#allocation2 + $0x128] sm:$0xff]
      %v5560 = vld [vmem:[#allocation2 + $0x130] sm:$0xff]
      %v5561 = vld [vmem:[#allocation2 + $0x138] sm:$0xff]
      %v5562 = vld [vmem:[#allocation2 + $0x140] sm:$0xff]
      %v5563 = vld [vmem:[#allocation2 + $0x148] sm:$0xff]
      %v5564 = vld [vmem:[#allocation2 + $0x150] sm:$0xff]
      %v5565 = vld [vmem:[#allocation2 + $0x158] sm:$0xff]
      %v5566 = vld [vmem:[#allocation2 + $0x160] sm:$0xff]
      %v5567 = vld [vmem:[#allocation2 + $0x168] sm:$0xff]
      %v5568 = vld [vmem:[#allocation2 + $0x170] sm:$0xff]
      %v5569 = vld [vmem:[#allocation2 + $0x178] sm:$0xff]
      %v5570 = vld [vmem:[%s7] sm:$0x3]
      %v5571 = vld [vmem:[%s996] sm:$0xff]
      %v5572 = vld [vmem:[%s996 + $0x8] sm:$0xff]
      %v5573 = vld [vmem:[%s996 + $0x10] sm:$0xff]
      %v5574 = vld [vmem:[%s996 + $0x18] sm:$0xff]
      %v5575 = vld [vmem:[%s996 + $0x20] sm:$0xff]
      %v5576 = vld [vmem:[%s996 + $0x28] sm:$0xff]
      %v5577 = vld [vmem:[%s996 + $0x30] sm:$0xff]
      %v5578 = vld [vmem:[%s996 + $0x38] sm:$0xff]
      %v5579 = vld [vmem:[%s996 + $0x40] sm:$0xff]
      %v5580 = vld [vmem:[%s996 + $0x48] sm:$0xff]
      %v5581 = vld [vmem:[%s996 + $0x50] sm:$0xff]
      %v5582 = vld [vmem:[%s996 + $0x58] sm:$0xff]
      %v5583 = vld [vmem:[%s996 + $0x60] sm:$0xff]
      %v5584 = vld [vmem:[%s996 + $0x68] sm:$0xff]
      %v5585 = vld [vmem:[%s996 + $0x70] sm:$0xff]
      %v5586 = vld [vmem:[%s996 + $0x78] sm:$0xff]
      %v5587 = vld [vmem:[%s996 + $0x80] sm:$0xff]
      %v5588 = vld [vmem:[%s996 + $0x88] sm:$0xff]
      %v5589 = vld [vmem:[%s996 + $0x90] sm:$0xff]
      %v5590 = vld [vmem:[%s996 + $0x98] sm:$0xff]
      %v5591 = vld [vmem:[%s996 + $0xa0] sm:$0xff]
      %v5592 = vld [vmem:[%s996 + $0xa8] sm:$0xff]
      %v5593 = vld [vmem:[%s996 + $0xb0] sm:$0xff]
      %v5594 = vld [vmem:[%s996 + $0xb8] sm:$0xff]
      %v5595 = vld [vmem:[%s996 + $0xc0] sm:$0xff]
      %v5596 = vld [vmem:[%s996 + $0xc8] sm:$0xff]
      %v5597 = vld [vmem:[%s996 + $0xd0] sm:$0xff]
      %v5598 = vld [vmem:[%s996 + $0xd8] sm:$0xff]
      %v5599 = vld [vmem:[%s996 + $0xe0] sm:$0xff]
      %v5600 = vld [vmem:[%s996 + $0xe8] sm:$0xff]
      %v5601 = vld [vmem:[%s996 + $0xf0] sm:$0xff]
      %v5602 = vld [vmem:[%s996 + $0xf8] sm:$0xff]
      %v5603 = vld [vmem:[%s996 + $0x100] sm:$0xff]
      %v5604 = vld [vmem:[%s996 + $0x108] sm:$0xff]
      %v5605 = vld [vmem:[%s996 + $0x110] sm:$0xff]
      %v5606 = vld [vmem:[%s996 + $0x118] sm:$0xff]
      %v5607 = vld [vmem:[%s996 + $0x120] sm:$0xff]
      %v5608 = vld [vmem:[%s996 + $0x128] sm:$0xff]
      %v5609 = vld [vmem:[%s996 + $0x130] sm:$0xff]
      %v5610 = vld [vmem:[%s996 + $0x138] sm:$0xff]
      %v5611 = vld [vmem:[%s996 + $0x140] sm:$0xff]
      %v5612 = vld [vmem:[%s996 + $0x148] sm:$0xff]
      %v5613 = vld [vmem:[%s996 + $0x150] sm:$0xff]
      %v5614 = vld [vmem:[%s996 + $0x158] sm:$0xff]
      %v5615 = vld [vmem:[%s996 + $0x160] sm:$0xff]
      %v5616 = vld [vmem:[%s996 + $0x168] sm:$0xff]
      %v5617 = vld [vmem:[%s996 + $0x170] sm:$0xff]
      %v5618 = vld [vmem:[%s996 + $0x178] sm:$0xff]
      %s5619 = scalar_lea.vmem %s7, 2
      %v5620 = vld [vmem:[%s5619] sm:$0x3]
      %5669 = vrot.lane.b32.xlu0 %v5571, 122
      %v5670 = vpop.permute.xlu0 %5669
      %5671 = vrot.lane.b32.xlu0 %v5572, 122
      %v5672 = vpop.permute.xlu0 %5671
      %5673 = vrot.lane.b32.xlu0 %v5573, 122
      %v5674 = vpop.permute.xlu0 %5673
      %5675 = vrot.lane.b32.xlu0 %v5574, 122
      %v5676 = vpop.permute.xlu0 %5675
      %5677 = vrot.lane.b32.xlu0 %v5575, 122
      %v5678 = vpop.permute.xlu0 %5677
      %5679 = vrot.lane.b32.xlu0 %v5576, 122
      %v5680 = vpop.permute.xlu0 %5679
      %5681 = vrot.lane.b32.xlu0 %v5577, 122
      %v5682 = vpop.permute.xlu0 %5681
      %5683 = vrot.lane.b32.xlu0 %v5578, 122
      %v5684 = vpop.permute.xlu0 %5683
      %5685 = vrot.lane.b32.xlu0 %v5579, 122
      %v5686 = vpop.permute.xlu0 %5685
      %5687 = vrot.lane.b32.xlu0 %v5580, 122
      %v5688 = vpop.permute.xlu0 %5687
      %5689 = vrot.lane.b32.xlu0 %v5581, 122
      %v5690 = vpop.permute.xlu0 %5689
      %5691 = vrot.lane.b32.xlu0 %v5582, 122
      %v5692 = vpop.permute.xlu0 %5691
      %5693 = vrot.lane.b32.xlu0 %v5583, 122
      %v5694 = vpop.permute.xlu0 %5693
      %5695 = vrot.lane.b32.xlu0 %v5584, 122
      %v5696 = vpop.permute.xlu0 %5695
      %5697 = vrot.lane.b32.xlu0 %v5585, 122
      %v5698 = vpop.permute.xlu0 %5697
      %5699 = vrot.lane.b32.xlu0 %v5586, 122
      %v5700 = vpop.permute.xlu0 %5699
      %5701 = vrot.lane.b32.xlu0 %v5587, 122
      %v5702 = vpop.permute.xlu0 %5701
      %5703 = vrot.lane.b32.xlu0 %v5588, 122
      %v5704 = vpop.permute.xlu0 %5703
      %5705 = vrot.lane.b32.xlu0 %v5589, 122
      %v5706 = vpop.permute.xlu0 %5705
      %5707 = vrot.lane.b32.xlu0 %v5590, 122
      %v5708 = vpop.permute.xlu0 %5707
      %5709 = vrot.lane.b32.xlu0 %v5591, 122
      %v5710 = vpop.permute.xlu0 %5709
      %5711 = vrot.lane.b32.xlu0 %v5592, 122
      %v5712 = vpop.permute.xlu0 %5711
      %5713 = vrot.lane.b32.xlu0 %v5593, 122
      %v5714 = vpop.permute.xlu0 %5713
      %5715 = vrot.lane.b32.xlu0 %v5594, 122
      %v5716 = vpop.permute.xlu0 %5715
      %5717 = vrot.lane.b32.xlu0 %v5595, 122
      %v5718 = vpop.permute.xlu0 %5717
      %5719 = vrot.lane.b32.xlu0 %v5596, 122
      %v5720 = vpop.permute.xlu0 %5719
      %5721 = vrot.lane.b32.xlu0 %v5597, 122
      %v5722 = vpop.permute.xlu0 %5721
      %5723 = vrot.lane.b32.xlu0 %v5598, 122
      %v5724 = vpop.permute.xlu0 %5723
      %5725 = vrot.lane.b32.xlu0 %v5599, 122
      %v5726 = vpop.permute.xlu0 %5725
      %5727 = vrot.lane.b32.xlu0 %v5600, 122
      %v5728 = vpop.permute.xlu0 %5727
      %5729 = vrot.lane.b32.xlu0 %v5601, 122
      %v5730 = vpop.permute.xlu0 %5729
      %5731 = vrot.lane.b32.xlu0 %v5602, 122
      %v5732 = vpop.permute.xlu0 %5731
      %5733 = vrot.lane.b32.xlu0 %v5603, 122
      %v5734 = vpop.permute.xlu0 %5733
      %5735 = vrot.lane.b32.xlu0 %v5604, 122
      %v5736 = vpop.permute.xlu0 %5735
      %5737 = vrot.lane.b32.xlu0 %v5605, 122
      %v5738 = vpop.permute.xlu0 %5737
      %5739 = vrot.lane.b32.xlu0 %v5606, 122
      %v5740 = vpop.permute.xlu0 %5739
      %5741 = vrot.lane.b32.xlu0 %v5607, 122
      %v5742 = vpop.permute.xlu0 %5741
      %5743 = vrot.lane.b32.xlu0 %v5608, 122
      %v5744 = vpop.permute.xlu0 %5743
      %5745 = vrot.lane.b32.xlu0 %v5609, 122
      %v5746 = vpop.permute.xlu0 %5745
      %5747 = vrot.lane.b32.xlu0 %v5610, 122
      %v5748 = vpop.permute.xlu0 %5747
      %5749 = vrot.lane.b32.xlu0 %v5611, 122
      %v5750 = vpop.permute.xlu0 %5749
      %5751 = vrot.lane.b32.xlu0 %v5612, 122
      %v5752 = vpop.permute.xlu0 %5751
      %5753 = vrot.lane.b32.xlu0 %v5613, 122
      %v5754 = vpop.permute.xlu0 %5753
      %5755 = vrot.lane.b32.xlu0 %v5614, 122
      %v5756 = vpop.permute.xlu0 %5755
      %5757 = vrot.lane.b32.xlu0 %v5615, 122
      %v5758 = vpop.permute.xlu0 %5757
      %5759 = vrot.lane.b32.xlu0 %v5616, 122
      %v5760 = vpop.permute.xlu0 %5759
      %5761 = vrot.lane.b32.xlu0 %v5617, 122
      %v5762 = vpop.permute.xlu0 %5761
      %5763 = vrot.lane.b32.xlu0 %v5618, 122
      %v5764 = vpop.permute.xlu0 %5763
      %v5765 = vsel %vm1145, %v5670, 0
      %v5767 = vsel %vm1145, %v5672, 0
      %v5769 = vsel %vm1145, %v5674, 0
      %v5771 = vsel %vm1145, %v5676, 0
      %v5773 = vsel %vm1145, %v5678, 0
      %v5775 = vsel %vm1145, %v5680, 0
      %v5777 = vsel %vm1145, %v5682, 0
      %v5779 = vsel %vm1145, %v5684, 0
      %v5781 = vsel %vm1145, %v5686, 0
      %v5783 = vsel %vm1145, %v5688, 0
      %v5785 = vsel %vm1145, %v5690, 0
      %v5787 = vsel %vm1145, %v5692, 0
      %v5789 = vsel %vm1145, %v5694, 0
      %v5791 = vsel %vm1145, %v5696, 0
      %v5793 = vsel %vm1145, %v5698, 0
      %v5795 = vsel %vm1145, %v5700, 0
      %v5797 = vsel %vm1145, %v5702, 0
      %v5799 = vsel %vm1145, %v5704, 0
      %v5801 = vsel %vm1145, %v5706, 0
      %v5803 = vsel %vm1145, %v5708, 0
      %v5805 = vsel %vm1145, %v5710, 0
      %v5807 = vsel %vm1145, %v5712, 0
      %v5809 = vsel %vm1145, %v5714, 0
      %v5811 = vsel %vm1145, %v5716, 0
      %v5813 = vsel %vm1145, %v5718, 0
      %v5815 = vsel %vm1145, %v5720, 0
      %v5817 = vsel %vm1145, %v5722, 0
      %v5819 = vsel %vm1145, %v5724, 0
      %v5821 = vsel %vm1145, %v5726, 0
      %v5823 = vsel %vm1145, %v5728, 0
      %v5825 = vsel %vm1145, %v5730, 0
      %v5827 = vsel %vm1145, %v5732, 0
      %v5829 = vsel %vm1145, %v5734, 0
      %v5831 = vsel %vm1145, %v5736, 0
      %v5833 = vsel %vm1145, %v5738, 0
      %v5835 = vsel %vm1145, %v5740, 0
      %v5837 = vsel %vm1145, %v5742, 0
      %v5839 = vsel %vm1145, %v5744, 0
      %v5841 = vsel %vm1145, %v5746, 0
      %v5843 = vsel %vm1145, %v5748, 0
      %v5845 = vsel %vm1145, %v5750, 0
      %v5847 = vsel %vm1145, %v5752, 0
      %v5849 = vsel %vm1145, %v5754, 0
      %v5851 = vsel %vm1145, %v5756, 0
      %v5853 = vsel %vm1145, %v5758, 0
      %v5855 = vsel %vm1145, %v5760, 0
      %v5857 = vsel %vm1145, %v5762, 0
      %v5859 = vsel %vm1145, %v5764, 0
      %v5862 = vsel %vm1290, %v5620, 0
      %5864 = vmatpush.msra.mxu0 0.0
      %5865 = vmatpush.msra.mxu0 0.0
      %5866 = vmatpush.msra.mxu0 0.0
      %5867 = vmatpush.msra.mxu0 0.0
      %5868 = vmatpush.msra.mxu0 0.0
      %5869 = vmatpush.msra.mxu0 0.0
      %5870 = vmatpush.msra.mxu0 0.0
      %5871 = vmatpush.msra.mxu0 0.0
      %5872 = vmatpush.msra.mxu0 0.0
      %5873 = vmatpush.msra.mxu0 0.0
      %5874 = vmatpush.msra.mxu0 0.0
      %5875 = vmatpush.msra.mxu0 0.0
      %5876 = vmatpush.msra.mxu0 0.0
      %5877 = vmatpush.msra.mxu0 0.0
      %5878 = vmatpush.msra.mxu0 0.0
      %5879 = vmatpush.msra.mxu0 %v5862
      %5880 = vmatmul.f32.gmra.mxu0 %v5765
      %v5881 = vpop.f32.mrf.mxu0
      %v5882 = vadd.f32 0.0, %v5881
      %5883 = vmatmul.f32.gmra.mxu0 %v5767
      %v5884 = vpop.f32.mrf.mxu0
      %v5885 = vadd.f32 0.0, %v5884
      %5886 = vmatmul.f32.gmra.mxu0 %v5769
      %v5887 = vpop.f32.mrf.mxu0
      %v5888 = vadd.f32 0.0, %v5887
      %5889 = vmatmul.f32.gmra.mxu0 %v5771
      %v5890 = vpop.f32.mrf.mxu0
      %v5891 = vadd.f32 0.0, %v5890
      %5892 = vmatmul.f32.gmra.mxu0 %v5773
      %v5893 = vpop.f32.mrf.mxu0
      %v5894 = vadd.f32 0.0, %v5893
      %5895 = vmatmul.f32.gmra.mxu0 %v5775
      %v5896 = vpop.f32.mrf.mxu0
      %v5897 = vadd.f32 0.0, %v5896
      %5898 = vmatmul.f32.gmra.mxu0 %v5777
      %v5899 = vpop.f32.mrf.mxu0
      %v5900 = vadd.f32 0.0, %v5899
      %5901 = vmatmul.f32.gmra.mxu0 %v5779
      %v5902 = vpop.f32.mrf.mxu0
      %v5903 = vadd.f32 0.0, %v5902
      %5904 = vmatmul.f32.gmra.mxu0 %v5781
      %v5905 = vpop.f32.mrf.mxu0
      %v5906 = vadd.f32 0.0, %v5905
      %5907 = vmatmul.f32.gmra.mxu0 %v5783
      %v5908 = vpop.f32.mrf.mxu0
      %v5909 = vadd.f32 0.0, %v5908
      %5910 = vmatmul.f32.gmra.mxu0 %v5785
      %v5911 = vpop.f32.mrf.mxu0
      %v5912 = vadd.f32 0.0, %v5911
      %5913 = vmatmul.f32.gmra.mxu0 %v5787
      %v5914 = vpop.f32.mrf.mxu0
      %v5915 = vadd.f32 0.0, %v5914
      %5916 = vmatmul.f32.gmra.mxu0 %v5789
      %v5917 = vpop.f32.mrf.mxu0
      %v5918 = vadd.f32 0.0, %v5917
      %5919 = vmatmul.f32.gmra.mxu0 %v5791
      %v5920 = vpop.f32.mrf.mxu0
      %v5921 = vadd.f32 0.0, %v5920
      %5922 = vmatmul.f32.gmra.mxu0 %v5793
      %v5923 = vpop.f32.mrf.mxu0
      %v5924 = vadd.f32 0.0, %v5923
      %5925 = vmatmul.f32.gmra.mxu0 %v5795
      %v5926 = vpop.f32.mrf.mxu0
      %v5927 = vadd.f32 0.0, %v5926
      %5928 = vmatmul.f32.gmra.mxu0 %v5797
      %v5929 = vpop.f32.mrf.mxu0
      %v5930 = vadd.f32 0.0, %v5929
      %5931 = vmatmul.f32.gmra.mxu0 %v5799
      %v5932 = vpop.f32.mrf.mxu0
      %v5933 = vadd.f32 0.0, %v5932
      %5934 = vmatmul.f32.gmra.mxu0 %v5801
      %v5935 = vpop.f32.mrf.mxu0
      %v5936 = vadd.f32 0.0, %v5935
      %5937 = vmatmul.f32.gmra.mxu0 %v5803
      %v5938 = vpop.f32.mrf.mxu0
      %v5939 = vadd.f32 0.0, %v5938
      %5940 = vmatmul.f32.gmra.mxu0 %v5805
      %v5941 = vpop.f32.mrf.mxu0
      %v5942 = vadd.f32 0.0, %v5941
      %5943 = vmatmul.f32.gmra.mxu0 %v5807
      %v5944 = vpop.f32.mrf.mxu0
      %v5945 = vadd.f32 0.0, %v5944
      %5946 = vmatmul.f32.gmra.mxu0 %v5809
      %v5947 = vpop.f32.mrf.mxu0
      %v5948 = vadd.f32 0.0, %v5947
      %5949 = vmatmul.f32.gmra.mxu0 %v5811
      %v5950 = vpop.f32.mrf.mxu0
      %v5951 = vadd.f32 0.0, %v5950
      %5952 = vmatmul.f32.gmra.mxu0 %v5813
      %v5953 = vpop.f32.mrf.mxu0
      %v5954 = vadd.f32 0.0, %v5953
      %5955 = vmatmul.f32.gmra.mxu0 %v5815
      %v5956 = vpop.f32.mrf.mxu0
      %v5957 = vadd.f32 0.0, %v5956
      %5958 = vmatmul.f32.gmra.mxu0 %v5817
      %v5959 = vpop.f32.mrf.mxu0
      %v5960 = vadd.f32 0.0, %v5959
      %5961 = vmatmul.f32.gmra.mxu0 %v5819
      %v5962 = vpop.f32.mrf.mxu0
      %v5963 = vadd.f32 0.0, %v5962
      %5964 = vmatmul.f32.gmra.mxu0 %v5821
      %v5965 = vpop.f32.mrf.mxu0
      %v5966 = vadd.f32 0.0, %v5965
      %5967 = vmatmul.f32.gmra.mxu0 %v5823
      %v5968 = vpop.f32.mrf.mxu0
      %v5969 = vadd.f32 0.0, %v5968
      %5970 = vmatmul.f32.gmra.mxu0 %v5825
      %v5971 = vpop.f32.mrf.mxu0
      %v5972 = vadd.f32 0.0, %v5971
      %5973 = vmatmul.f32.gmra.mxu0 %v5827
      %v5974 = vpop.f32.mrf.mxu0
      %v5975 = vadd.f32 0.0, %v5974
      %5976 = vmatmul.f32.gmra.mxu0 %v5829
      %v5977 = vpop.f32.mrf.mxu0
      %v5978 = vadd.f32 0.0, %v5977
      %5979 = vmatmul.f32.gmra.mxu0 %v5831
      %v5980 = vpop.f32.mrf.mxu0
      %v5981 = vadd.f32 0.0, %v5980
      %5982 = vmatmul.f32.gmra.mxu0 %v5833
      %v5983 = vpop.f32.mrf.mxu0
      %v5984 = vadd.f32 0.0, %v5983
      %5985 = vmatmul.f32.gmra.mxu0 %v5835
      %v5986 = vpop.f32.mrf.mxu0
      %v5987 = vadd.f32 0.0, %v5986
      %5988 = vmatmul.f32.gmra.mxu0 %v5837
      %v5989 = vpop.f32.mrf.mxu0
      %v5990 = vadd.f32 0.0, %v5989
      %5991 = vmatmul.f32.gmra.mxu0 %v5839
      %v5992 = vpop.f32.mrf.mxu0
      %v5993 = vadd.f32 0.0, %v5992
      %5994 = vmatmul.f32.gmra.mxu0 %v5841
      %v5995 = vpop.f32.mrf.mxu0
      %v5996 = vadd.f32 0.0, %v5995
      %5997 = vmatmul.f32.gmra.mxu0 %v5843
      %v5998 = vpop.f32.mrf.mxu0
      %v5999 = vadd.f32 0.0, %v5998
      %6000 = vmatmul.f32.gmra.mxu0 %v5845
      %v6001 = vpop.f32.mrf.mxu0
      %v6002 = vadd.f32 0.0, %v6001
      %6003 = vmatmul.f32.gmra.mxu0 %v5847
      %v6004 = vpop.f32.mrf.mxu0
      %v6005 = vadd.f32 0.0, %v6004
      %6006 = vmatmul.f32.gmra.mxu0 %v5849
      %v6007 = vpop.f32.mrf.mxu0
      %v6008 = vadd.f32 0.0, %v6007
      %6009 = vmatmul.f32.gmra.mxu0 %v5851
      %v6010 = vpop.f32.mrf.mxu0
      %v6011 = vadd.f32 0.0, %v6010
      %6012 = vmatmul.f32.gmra.mxu0 %v5853
      %v6013 = vpop.f32.mrf.mxu0
      %v6014 = vadd.f32 0.0, %v6013
      %6015 = vmatmul.f32.gmra.mxu0 %v5855
      %v6016 = vpop.f32.mrf.mxu0
      %v6017 = vadd.f32 0.0, %v6016
      %6018 = vmatmul.f32.gmra.mxu0 %v5857
      %v6019 = vpop.f32.mrf.mxu0
      %v6020 = vadd.f32 0.0, %v6019
      %6021 = vmatmul.f32.gmra.mxu0 %v5859
      %v6022 = vpop.f32.mrf.mxu0
      %v6023 = vadd.f32 0.0, %v6022
      %6024 = vdwg.mxu0
      %6073 = vrot.lane.b32.xlu0 %v5522, 122
      %v6074 = vpop.permute.xlu0 %6073
      %6075 = vrot.lane.b32.xlu0 %v5523, 122
      %v6076 = vpop.permute.xlu0 %6075
      %6077 = vrot.lane.b32.xlu0 %v5524, 122
      %v6078 = vpop.permute.xlu0 %6077
      %6079 = vrot.lane.b32.xlu0 %v5525, 122
      %v6080 = vpop.permute.xlu0 %6079
      %6081 = vrot.lane.b32.xlu0 %v5526, 122
      %v6082 = vpop.permute.xlu0 %6081
      %6083 = vrot.lane.b32.xlu0 %v5527, 122
      %v6084 = vpop.permute.xlu0 %6083
      %6085 = vrot.lane.b32.xlu0 %v5528, 122
      %v6086 = vpop.permute.xlu0 %6085
      %6087 = vrot.lane.b32.xlu0 %v5529, 122
      %v6088 = vpop.permute.xlu0 %6087
      %6089 = vrot.lane.b32.xlu0 %v5530, 122
      %v6090 = vpop.permute.xlu0 %6089
      %6091 = vrot.lane.b32.xlu0 %v5531, 122
      %v6092 = vpop.permute.xlu0 %6091
      %6093 = vrot.lane.b32.xlu0 %v5532, 122
      %v6094 = vpop.permute.xlu0 %6093
      %6095 = vrot.lane.b32.xlu0 %v5533, 122
      %v6096 = vpop.permute.xlu0 %6095
      %6097 = vrot.lane.b32.xlu0 %v5534, 122
      %v6098 = vpop.permute.xlu0 %6097
      %6099 = vrot.lane.b32.xlu0 %v5535, 122
      %v6100 = vpop.permute.xlu0 %6099
      %6101 = vrot.lane.b32.xlu0 %v5536, 122
      %v6102 = vpop.permute.xlu0 %6101
      %6103 = vrot.lane.b32.xlu0 %v5537, 122
      %v6104 = vpop.permute.xlu0 %6103
      %6105 = vrot.lane.b32.xlu0 %v5538, 122
      %v6106 = vpop.permute.xlu0 %6105
      %6107 = vrot.lane.b32.xlu0 %v5539, 122
      %v6108 = vpop.permute.xlu0 %6107
      %6109 = vrot.lane.b32.xlu0 %v5540, 122
      %v6110 = vpop.permute.xlu0 %6109
      %6111 = vrot.lane.b32.xlu0 %v5541, 122
      %v6112 = vpop.permute.xlu0 %6111
      %6113 = vrot.lane.b32.xlu0 %v5542, 122
      %v6114 = vpop.permute.xlu0 %6113
      %6115 = vrot.lane.b32.xlu0 %v5543, 122
      %v6116 = vpop.permute.xlu0 %6115
      %6117 = vrot.lane.b32.xlu0 %v5544, 122
      %v6118 = vpop.permute.xlu0 %6117
      %6119 = vrot.lane.b32.xlu0 %v5545, 122
      %v6120 = vpop.permute.xlu0 %6119
      %6121 = vrot.lane.b32.xlu0 %v5546, 122
      %v6122 = vpop.permute.xlu0 %6121
      %6123 = vrot.lane.b32.xlu0 %v5547, 122
      %v6124 = vpop.permute.xlu0 %6123
      %6125 = vrot.lane.b32.xlu0 %v5548, 122
      %v6126 = vpop.permute.xlu0 %6125
      %6127 = vrot.lane.b32.xlu0 %v5549, 122
      %v6128 = vpop.permute.xlu0 %6127
      %6129 = vrot.lane.b32.xlu0 %v5550, 122
      %v6130 = vpop.permute.xlu0 %6129
      %6131 = vrot.lane.b32.xlu0 %v5551, 122
      %v6132 = vpop.permute.xlu0 %6131
      %6133 = vrot.lane.b32.xlu0 %v5552, 122
      %v6134 = vpop.permute.xlu0 %6133
      %6135 = vrot.lane.b32.xlu0 %v5553, 122
      %v6136 = vpop.permute.xlu0 %6135
      %6137 = vrot.lane.b32.xlu0 %v5554, 122
      %v6138 = vpop.permute.xlu0 %6137
      %6139 = vrot.lane.b32.xlu0 %v5555, 122
      %v6140 = vpop.permute.xlu0 %6139
      %6141 = vrot.lane.b32.xlu0 %v5556, 122
      %v6142 = vpop.permute.xlu0 %6141
      %6143 = vrot.lane.b32.xlu0 %v5557, 122
      %v6144 = vpop.permute.xlu0 %6143
      %6145 = vrot.lane.b32.xlu0 %v5558, 122
      %v6146 = vpop.permute.xlu0 %6145
      %6147 = vrot.lane.b32.xlu0 %v5559, 122
      %v6148 = vpop.permute.xlu0 %6147
      %6149 = vrot.lane.b32.xlu0 %v5560, 122
      %v6150 = vpop.permute.xlu0 %6149
      %6151 = vrot.lane.b32.xlu0 %v5561, 122
      %v6152 = vpop.permute.xlu0 %6151
      %6153 = vrot.lane.b32.xlu0 %v5562, 122
      %v6154 = vpop.permute.xlu0 %6153
      %6155 = vrot.lane.b32.xlu0 %v5563, 122
      %v6156 = vpop.permute.xlu0 %6155
      %6157 = vrot.lane.b32.xlu0 %v5564, 122
      %v6158 = vpop.permute.xlu0 %6157
      %6159 = vrot.lane.b32.xlu0 %v5565, 122
      %v6160 = vpop.permute.xlu0 %6159
      %6161 = vrot.lane.b32.xlu0 %v5566, 122
      %v6162 = vpop.permute.xlu0 %6161
      %6163 = vrot.lane.b32.xlu0 %v5567, 122
      %v6164 = vpop.permute.xlu0 %6163
      %6165 = vrot.lane.b32.xlu0 %v5568, 122
      %v6166 = vpop.permute.xlu0 %6165
      %6167 = vrot.lane.b32.xlu0 %v5569, 122
      %v6168 = vpop.permute.xlu0 %6167
      %v6169 = vsel %vm1145, %v6074, 0
      %v6171 = vsel %vm1145, %v6076, 0
      %v6173 = vsel %vm1145, %v6078, 0
      %v6175 = vsel %vm1145, %v6080, 0
      %v6177 = vsel %vm1145, %v6082, 0
      %v6179 = vsel %vm1145, %v6084, 0
      %v6181 = vsel %vm1145, %v6086, 0
      %v6183 = vsel %vm1145, %v6088, 0
      %v6185 = vsel %vm1145, %v6090, 0
      %v6187 = vsel %vm1145, %v6092, 0
      %v6189 = vsel %vm1145, %v6094, 0
      %v6191 = vsel %vm1145, %v6096, 0
      %v6193 = vsel %vm1145, %v6098, 0
      %v6195 = vsel %vm1145, %v6100, 0
      %v6197 = vsel %vm1145, %v6102, 0
      %v6199 = vsel %vm1145, %v6104, 0
      %v6201 = vsel %vm1145, %v6106, 0
      %v6203 = vsel %vm1145, %v6108, 0
      %v6205 = vsel %vm1145, %v6110, 0
      %v6207 = vsel %vm1145, %v6112, 0
      %v6209 = vsel %vm1145, %v6114, 0
      %v6211 = vsel %vm1145, %v6116, 0
      %v6213 = vsel %vm1145, %v6118, 0
      %v6215 = vsel %vm1145, %v6120, 0
      %v6217 = vsel %vm1145, %v6122, 0
      %v6219 = vsel %vm1145, %v6124, 0
      %v6221 = vsel %vm1145, %v6126, 0
      %v6223 = vsel %vm1145, %v6128, 0
      %v6225 = vsel %vm1145, %v6130, 0
      %v6227 = vsel %vm1145, %v6132, 0
      %v6229 = vsel %vm1145, %v6134, 0
      %v6231 = vsel %vm1145, %v6136, 0
      %v6233 = vsel %vm1145, %v6138, 0
      %v6235 = vsel %vm1145, %v6140, 0
      %v6237 = vsel %vm1145, %v6142, 0
      %v6239 = vsel %vm1145, %v6144, 0
      %v6241 = vsel %vm1145, %v6146, 0
      %v6243 = vsel %vm1145, %v6148, 0
      %v6245 = vsel %vm1145, %v6150, 0
      %v6247 = vsel %vm1145, %v6152, 0
      %v6249 = vsel %vm1145, %v6154, 0
      %v6251 = vsel %vm1145, %v6156, 0
      %v6253 = vsel %vm1145, %v6158, 0
      %v6255 = vsel %vm1145, %v6160, 0
      %v6257 = vsel %vm1145, %v6162, 0
      %v6259 = vsel %vm1145, %v6164, 0
      %v6261 = vsel %vm1145, %v6166, 0
      %v6263 = vsel %vm1145, %v6168, 0
      %v6266 = vsel %vm1290, %v5570, 0
      %6268 = vmatpush.msra.mxu0 0.0
      %6269 = vmatpush.msra.mxu0 0.0
      %6270 = vmatpush.msra.mxu0 0.0
      %6271 = vmatpush.msra.mxu0 0.0
      %6272 = vmatpush.msra.mxu0 0.0
      %6273 = vmatpush.msra.mxu0 0.0
      %6274 = vmatpush.msra.mxu0 0.0
      %6275 = vmatpush.msra.mxu0 0.0
      %6276 = vmatpush.msra.mxu0 0.0
      %6277 = vmatpush.msra.mxu0 0.0
      %6278 = vmatpush.msra.mxu0 0.0
      %6279 = vmatpush.msra.mxu0 0.0
      %6280 = vmatpush.msra.mxu0 0.0
      %6281 = vmatpush.msra.mxu0 0.0
      %6282 = vmatpush.msra.mxu0 0.0
      %6283 = vmatpush.msra.mxu0 %v6266
      %6284 = vmatmul.f32.gmra.mxu0 %v6169
      %v6285 = vpop.f32.mrf.mxu0
      %v6286 = vadd.f32 %v5882, %v6285
      %6287 = vmatmul.f32.gmra.mxu0 %v6171
      %v6288 = vpop.f32.mrf.mxu0
      %v6289 = vadd.f32 %v5885, %v6288
      %6290 = vmatmul.f32.gmra.mxu0 %v6173
      %v6291 = vpop.f32.mrf.mxu0
      %v6292 = vadd.f32 %v5888, %v6291
      %6293 = vmatmul.f32.gmra.mxu0 %v6175
      %v6294 = vpop.f32.mrf.mxu0
      %v6295 = vadd.f32 %v5891, %v6294
      %6296 = vmatmul.f32.gmra.mxu0 %v6177
      %v6297 = vpop.f32.mrf.mxu0
      %v6298 = vadd.f32 %v5894, %v6297
      %6299 = vmatmul.f32.gmra.mxu0 %v6179
      %v6300 = vpop.f32.mrf.mxu0
      %v6301 = vadd.f32 %v5897, %v6300
      %6302 = vmatmul.f32.gmra.mxu0 %v6181
      %v6303 = vpop.f32.mrf.mxu0
      %v6304 = vadd.f32 %v5900, %v6303
      %6305 = vmatmul.f32.gmra.mxu0 %v6183
      %v6306 = vpop.f32.mrf.mxu0
      %v6307 = vadd.f32 %v5903, %v6306
      %6308 = vmatmul.f32.gmra.mxu0 %v6185
      %v6309 = vpop.f32.mrf.mxu0
      %v6310 = vadd.f32 %v5906, %v6309
      %6311 = vmatmul.f32.gmra.mxu0 %v6187
      %v6312 = vpop.f32.mrf.mxu0
      %v6313 = vadd.f32 %v5909, %v6312
      %6314 = vmatmul.f32.gmra.mxu0 %v6189
      %v6315 = vpop.f32.mrf.mxu0
      %v6316 = vadd.f32 %v5912, %v6315
      %6317 = vmatmul.f32.gmra.mxu0 %v6191
      %v6318 = vpop.f32.mrf.mxu0
      %v6319 = vadd.f32 %v5915, %v6318
      %6320 = vmatmul.f32.gmra.mxu0 %v6193
      %v6321 = vpop.f32.mrf.mxu0
      %v6322 = vadd.f32 %v5918, %v6321
      %6323 = vmatmul.f32.gmra.mxu0 %v6195
      %v6324 = vpop.f32.mrf.mxu0
      %v6325 = vadd.f32 %v5921, %v6324
      %6326 = vmatmul.f32.gmra.mxu0 %v6197
      %v6327 = vpop.f32.mrf.mxu0
      %v6328 = vadd.f32 %v5924, %v6327
      %6329 = vmatmul.f32.gmra.mxu0 %v6199
      %v6330 = vpop.f32.mrf.mxu0
      %v6331 = vadd.f32 %v5927, %v6330
      %6332 = vmatmul.f32.gmra.mxu0 %v6201
      %v6333 = vpop.f32.mrf.mxu0
      %v6334 = vadd.f32 %v5930, %v6333
      %6335 = vmatmul.f32.gmra.mxu0 %v6203
      %v6336 = vpop.f32.mrf.mxu0
      %v6337 = vadd.f32 %v5933, %v6336
      %6338 = vmatmul.f32.gmra.mxu0 %v6205
      %v6339 = vpop.f32.mrf.mxu0
      %v6340 = vadd.f32 %v5936, %v6339
      %6341 = vmatmul.f32.gmra.mxu0 %v6207
      %v6342 = vpop.f32.mrf.mxu0
      %v6343 = vadd.f32 %v5939, %v6342
      %6344 = vmatmul.f32.gmra.mxu0 %v6209
      %v6345 = vpop.f32.mrf.mxu0
      %v6346 = vadd.f32 %v5942, %v6345
      %6347 = vmatmul.f32.gmra.mxu0 %v6211
      %v6348 = vpop.f32.mrf.mxu0
      %v6349 = vadd.f32 %v5945, %v6348
      %6350 = vmatmul.f32.gmra.mxu0 %v6213
      %v6351 = vpop.f32.mrf.mxu0
      %v6352 = vadd.f32 %v5948, %v6351
      %6353 = vmatmul.f32.gmra.mxu0 %v6215
      %v6354 = vpop.f32.mrf.mxu0
      %v6355 = vadd.f32 %v5951, %v6354
      %6356 = vmatmul.f32.gmra.mxu0 %v6217
      %v6357 = vpop.f32.mrf.mxu0
      %v6358 = vadd.f32 %v5954, %v6357
      %6359 = vmatmul.f32.gmra.mxu0 %v6219
      %v6360 = vpop.f32.mrf.mxu0
      %v6361 = vadd.f32 %v5957, %v6360
      %6362 = vmatmul.f32.gmra.mxu0 %v6221
      %v6363 = vpop.f32.mrf.mxu0
      %v6364 = vadd.f32 %v5960, %v6363
      %6365 = vmatmul.f32.gmra.mxu0 %v6223
      %v6366 = vpop.f32.mrf.mxu0
      %v6367 = vadd.f32 %v5963, %v6366
      %6368 = vmatmul.f32.gmra.mxu0 %v6225
      %v6369 = vpop.f32.mrf.mxu0
      %v6370 = vadd.f32 %v5966, %v6369
      %6371 = vmatmul.f32.gmra.mxu0 %v6227
      %v6372 = vpop.f32.mrf.mxu0
      %v6373 = vadd.f32 %v5969, %v6372
      %6374 = vmatmul.f32.gmra.mxu0 %v6229
      %v6375 = vpop.f32.mrf.mxu0
      %v6376 = vadd.f32 %v5972, %v6375
      %6377 = vmatmul.f32.gmra.mxu0 %v6231
      %v6378 = vpop.f32.mrf.mxu0
      %v6379 = vadd.f32 %v5975, %v6378
      %6380 = vmatmul.f32.gmra.mxu0 %v6233
      %v6381 = vpop.f32.mrf.mxu0
      %v6382 = vadd.f32 %v5978, %v6381
      %6383 = vmatmul.f32.gmra.mxu0 %v6235
      %v6384 = vpop.f32.mrf.mxu0
      %v6385 = vadd.f32 %v5981, %v6384
      %6386 = vmatmul.f32.gmra.mxu0 %v6237
      %v6387 = vpop.f32.mrf.mxu0
      %v6388 = vadd.f32 %v5984, %v6387
      %6389 = vmatmul.f32.gmra.mxu0 %v6239
      %v6390 = vpop.f32.mrf.mxu0
      %v6391 = vadd.f32 %v5987, %v6390
      %6392 = vmatmul.f32.gmra.mxu0 %v6241
      %v6393 = vpop.f32.mrf.mxu0
      %v6394 = vadd.f32 %v5990, %v6393
      %6395 = vmatmul.f32.gmra.mxu0 %v6243
      %v6396 = vpop.f32.mrf.mxu0
      %v6397 = vadd.f32 %v5993, %v6396
      %6398 = vmatmul.f32.gmra.mxu0 %v6245
      %v6399 = vpop.f32.mrf.mxu0
      %v6400 = vadd.f32 %v5996, %v6399
      %6401 = vmatmul.f32.gmra.mxu0 %v6247
      %v6402 = vpop.f32.mrf.mxu0
      %v6403 = vadd.f32 %v5999, %v6402
      %6404 = vmatmul.f32.gmra.mxu0 %v6249
      %v6405 = vpop.f32.mrf.mxu0
      %v6406 = vadd.f32 %v6002, %v6405
      %6407 = vmatmul.f32.gmra.mxu0 %v6251
      %v6408 = vpop.f32.mrf.mxu0
      %v6409 = vadd.f32 %v6005, %v6408
      %6410 = vmatmul.f32.gmra.mxu0 %v6253
      %v6411 = vpop.f32.mrf.mxu0
      %v6412 = vadd.f32 %v6008, %v6411
      %6413 = vmatmul.f32.gmra.mxu0 %v6255
      %v6414 = vpop.f32.mrf.mxu0
      %v6415 = vadd.f32 %v6011, %v6414
      %6416 = vmatmul.f32.gmra.mxu0 %v6257
      %v6417 = vpop.f32.mrf.mxu0
      %v6418 = vadd.f32 %v6014, %v6417
      %6419 = vmatmul.f32.gmra.mxu0 %v6259
      %v6420 = vpop.f32.mrf.mxu0
      %v6421 = vadd.f32 %v6017, %v6420
      %6422 = vmatmul.f32.gmra.mxu0 %v6261
      %v6423 = vpop.f32.mrf.mxu0
      %v6424 = vadd.f32 %v6020, %v6423
      %6425 = vmatmul.f32.gmra.mxu0 %v6263
      %v6426 = vpop.f32.mrf.mxu0
      %v6427 = vadd.f32 %v6023, %v6426
      %6428 = vdwg.mxu0
      %s6429 = scalar_lea.vmem [#allocation2], 192
      %v6430 = vld [vmem:[%s6429] sm:$0xff]
      %v6431 = vld [vmem:[%s6429 + $0x8] sm:$0xff]
      %v6432 = vld [vmem:[%s6429 + $0x10] sm:$0xff]
      %v6433 = vld [vmem:[%s6429 + $0x18] sm:$0xff]
      %v6434 = vld [vmem:[%s6429 + $0x20] sm:$0xff]
      %v6435 = vld [vmem:[%s6429 + $0x28] sm:$0xff]
      %v6436 = vld [vmem:[%s6429 + $0x30] sm:$0xff]
      %v6437 = vld [vmem:[%s6429 + $0x38] sm:$0xff]
      %v6438 = vld [vmem:[%s6429 + $0x40] sm:$0xff]
      %v6439 = vld [vmem:[%s6429 + $0x48] sm:$0xff]
      %v6440 = vld [vmem:[%s6429 + $0x50] sm:$0xff]
      %v6441 = vld [vmem:[%s6429 + $0x58] sm:$0xff]
      %v6442 = vld [vmem:[%s6429 + $0x60] sm:$0xff]
      %v6443 = vld [vmem:[%s6429 + $0x68] sm:$0xff]
      %v6444 = vld [vmem:[%s6429 + $0x70] sm:$0xff]
      %v6445 = vld [vmem:[%s6429 + $0x78] sm:$0xff]
      %v6446 = vld [vmem:[%s6429 + $0x80] sm:$0xff]
      %v6447 = vld [vmem:[%s6429 + $0x88] sm:$0xff]
      %v6448 = vld [vmem:[%s6429 + $0x90] sm:$0xff]
      %v6449 = vld [vmem:[%s6429 + $0x98] sm:$0xff]
      %v6450 = vld [vmem:[%s6429 + $0xa0] sm:$0xff]
      %v6451 = vld [vmem:[%s6429 + $0xa8] sm:$0xff]
      %v6452 = vld [vmem:[%s6429 + $0xb0] sm:$0xff]
      %v6453 = vld [vmem:[%s6429 + $0xb8] sm:$0xff]
      %v6454 = vld [vmem:[%s6429 + $0xc0] sm:$0xff]
      %v6455 = vld [vmem:[%s6429 + $0xc8] sm:$0xff]
      %v6456 = vld [vmem:[%s6429 + $0xd0] sm:$0xff]
      %v6457 = vld [vmem:[%s6429 + $0xd8] sm:$0xff]
      %v6458 = vld [vmem:[%s6429 + $0xe0] sm:$0xff]
      %v6459 = vld [vmem:[%s6429 + $0xe8] sm:$0xff]
      %v6460 = vld [vmem:[%s6429 + $0xf0] sm:$0xff]
      %v6461 = vld [vmem:[%s6429 + $0xf8] sm:$0xff]
      %v6462 = vld [vmem:[%s6429 + $0x100] sm:$0xff]
      %v6463 = vld [vmem:[%s6429 + $0x108] sm:$0xff]
      %v6464 = vld [vmem:[%s6429 + $0x110] sm:$0xff]
      %v6465 = vld [vmem:[%s6429 + $0x118] sm:$0xff]
      %v6466 = vld [vmem:[%s6429 + $0x120] sm:$0xff]
      %v6467 = vld [vmem:[%s6429 + $0x128] sm:$0xff]
      %v6468 = vld [vmem:[%s6429 + $0x130] sm:$0xff]
      %v6469 = vld [vmem:[%s6429 + $0x138] sm:$0xff]
      %v6470 = vld [vmem:[%s6429 + $0x140] sm:$0xff]
      %v6471 = vld [vmem:[%s6429 + $0x148] sm:$0xff]
      %v6472 = vld [vmem:[%s6429 + $0x150] sm:$0xff]
      %v6473 = vld [vmem:[%s6429 + $0x158] sm:$0xff]
      %v6474 = vld [vmem:[%s6429 + $0x160] sm:$0xff]
      %v6475 = vld [vmem:[%s6429 + $0x168] sm:$0xff]
      %v6476 = vld [vmem:[%s6429 + $0x170] sm:$0xff]
      %v6477 = vld [vmem:[%s6429 + $0x178] sm:$0xff]
      %s6478 = scalar_lea.vmem %s7, 4
      %v6479 = vld [vmem:[%s6478] sm:$0x3]
      %6528 = vrot.lane.b32.xlu0 %v6430, 122
      %v6529 = vpop.permute.xlu0 %6528
      %6530 = vrot.lane.b32.xlu0 %v6431, 122
      %v6531 = vpop.permute.xlu0 %6530
      %6532 = vrot.lane.b32.xlu0 %v6432, 122
      %v6533 = vpop.permute.xlu0 %6532
      %6534 = vrot.lane.b32.xlu0 %v6433, 122
      %v6535 = vpop.permute.xlu0 %6534
      %6536 = vrot.lane.b32.xlu0 %v6434, 122
      %v6537 = vpop.permute.xlu0 %6536
      %6538 = vrot.lane.b32.xlu0 %v6435, 122
      %v6539 = vpop.permute.xlu0 %6538
      %6540 = vrot.lane.b32.xlu0 %v6436, 122
      %v6541 = vpop.permute.xlu0 %6540
      %6542 = vrot.lane.b32.xlu0 %v6437, 122
      %v6543 = vpop.permute.xlu0 %6542
      %6544 = vrot.lane.b32.xlu0 %v6438, 122
      %v6545 = vpop.permute.xlu0 %6544
      %6546 = vrot.lane.b32.xlu0 %v6439, 122
      %v6547 = vpop.permute.xlu0 %6546
      %6548 = vrot.lane.b32.xlu0 %v6440, 122
      %v6549 = vpop.permute.xlu0 %6548
      %6550 = vrot.lane.b32.xlu0 %v6441, 122
      %v6551 = vpop.permute.xlu0 %6550
      %6552 = vrot.lane.b32.xlu0 %v6442, 122
      %v6553 = vpop.permute.xlu0 %6552
      %6554 = vrot.lane.b32.xlu0 %v6443, 122
      %v6555 = vpop.permute.xlu0 %6554
      %6556 = vrot.lane.b32.xlu0 %v6444, 122
      %v6557 = vpop.permute.xlu0 %6556
      %6558 = vrot.lane.b32.xlu0 %v6445, 122
      %v6559 = vpop.permute.xlu0 %6558
      %6560 = vrot.lane.b32.xlu0 %v6446, 122
      %v6561 = vpop.permute.xlu0 %6560
      %6562 = vrot.lane.b32.xlu0 %v6447, 122
      %v6563 = vpop.permute.xlu0 %6562
      %6564 = vrot.lane.b32.xlu0 %v6448, 122
      %v6565 = vpop.permute.xlu0 %6564
      %6566 = vrot.lane.b32.xlu0 %v6449, 122
      %v6567 = vpop.permute.xlu0 %6566
      %6568 = vrot.lane.b32.xlu0 %v6450, 122
      %v6569 = vpop.permute.xlu0 %6568
      %6570 = vrot.lane.b32.xlu0 %v6451, 122
      %v6571 = vpop.permute.xlu0 %6570
      %6572 = vrot.lane.b32.xlu0 %v6452, 122
      %v6573 = vpop.permute.xlu0 %6572
      %6574 = vrot.lane.b32.xlu0 %v6453, 122
      %v6575 = vpop.permute.xlu0 %6574
      %6576 = vrot.lane.b32.xlu0 %v6454, 122
      %v6577 = vpop.permute.xlu0 %6576
      %6578 = vrot.lane.b32.xlu0 %v6455, 122
      %v6579 = vpop.permute.xlu0 %6578
      %6580 = vrot.lane.b32.xlu0 %v6456, 122
      %v6581 = vpop.permute.xlu0 %6580
      %6582 = vrot.lane.b32.xlu0 %v6457, 122
      %v6583 = vpop.permute.xlu0 %6582
      %6584 = vrot.lane.b32.xlu0 %v6458, 122
      %v6585 = vpop.permute.xlu0 %6584
      %6586 = vrot.lane.b32.xlu0 %v6459, 122
      %v6587 = vpop.permute.xlu0 %6586
      %6588 = vrot.lane.b32.xlu0 %v6460, 122
      %v6589 = vpop.permute.xlu0 %6588
      %6590 = vrot.lane.b32.xlu0 %v6461, 122
      %v6591 = vpop.permute.xlu0 %6590
      %6592 = vrot.lane.b32.xlu0 %v6462, 122
      %v6593 = vpop.permute.xlu0 %6592
      %6594 = vrot.lane.b32.xlu0 %v6463, 122
      %v6595 = vpop.permute.xlu0 %6594
      %6596 = vrot.lane.b32.xlu0 %v6464, 122
      %v6597 = vpop.permute.xlu0 %6596
      %6598 = vrot.lane.b32.xlu0 %v6465, 122
      %v6599 = vpop.permute.xlu0 %6598
      %6600 = vrot.lane.b32.xlu0 %v6466, 122
      %v6601 = vpop.permute.xlu0 %6600
      %6602 = vrot.lane.b32.xlu0 %v6467, 122
      %v6603 = vpop.permute.xlu0 %6602
      %6604 = vrot.lane.b32.xlu0 %v6468, 122
      %v6605 = vpop.permute.xlu0 %6604
      %6606 = vrot.lane.b32.xlu0 %v6469, 122
      %v6607 = vpop.permute.xlu0 %6606
      %6608 = vrot.lane.b32.xlu0 %v6470, 122
      %v6609 = vpop.permute.xlu0 %6608
      %6610 = vrot.lane.b32.xlu0 %v6471, 122
      %v6611 = vpop.permute.xlu0 %6610
      %6612 = vrot.lane.b32.xlu0 %v6472, 122
      %v6613 = vpop.permute.xlu0 %6612
      %6614 = vrot.lane.b32.xlu0 %v6473, 122
      %v6615 = vpop.permute.xlu0 %6614
      %6616 = vrot.lane.b32.xlu0 %v6474, 122
      %v6617 = vpop.permute.xlu0 %6616
      %6618 = vrot.lane.b32.xlu0 %v6475, 122
      %v6619 = vpop.permute.xlu0 %6618
      %6620 = vrot.lane.b32.xlu0 %v6476, 122
      %v6621 = vpop.permute.xlu0 %6620
      %6622 = vrot.lane.b32.xlu0 %v6477, 122
      %v6623 = vpop.permute.xlu0 %6622
      %v6624 = vsel %vm1145, %v6529, 0
      %v6626 = vsel %vm1145, %v6531, 0
      %v6628 = vsel %vm1145, %v6533, 0
      %v6630 = vsel %vm1145, %v6535, 0
      %v6632 = vsel %vm1145, %v6537, 0
      %v6634 = vsel %vm1145, %v6539, 0
      %v6636 = vsel %vm1145, %v6541, 0
      %v6638 = vsel %vm1145, %v6543, 0
      %v6640 = vsel %vm1145, %v6545, 0
      %v6642 = vsel %vm1145, %v6547, 0
      %v6644 = vsel %vm1145, %v6549, 0
      %v6646 = vsel %vm1145, %v6551, 0
      %v6648 = vsel %vm1145, %v6553, 0
      %v6650 = vsel %vm1145, %v6555, 0
      %v6652 = vsel %vm1145, %v6557, 0
      %v6654 = vsel %vm1145, %v6559, 0
      %v6656 = vsel %vm1145, %v6561, 0
      %v6658 = vsel %vm1145, %v6563, 0
      %v6660 = vsel %vm1145, %v6565, 0
      %v6662 = vsel %vm1145, %v6567, 0
      %v6664 = vsel %vm1145, %v6569, 0
      %v6666 = vsel %vm1145, %v6571, 0
      %v6668 = vsel %vm1145, %v6573, 0
      %v6670 = vsel %vm1145, %v6575, 0
      %v6672 = vsel %vm1145, %v6577, 0
      %v6674 = vsel %vm1145, %v6579, 0
      %v6676 = vsel %vm1145, %v6581, 0
      %v6678 = vsel %vm1145, %v6583, 0
      %v6680 = vsel %vm1145, %v6585, 0
      %v6682 = vsel %vm1145, %v6587, 0
      %v6684 = vsel %vm1145, %v6589, 0
      %v6686 = vsel %vm1145, %v6591, 0
      %v6688 = vsel %vm1145, %v6593, 0
      %v6690 = vsel %vm1145, %v6595, 0
      %v6692 = vsel %vm1145, %v6597, 0
      %v6694 = vsel %vm1145, %v6599, 0
      %v6696 = vsel %vm1145, %v6601, 0
      %v6698 = vsel %vm1145, %v6603, 0
      %v6700 = vsel %vm1145, %v6605, 0
      %v6702 = vsel %vm1145, %v6607, 0
      %v6704 = vsel %vm1145, %v6609, 0
      %v6706 = vsel %vm1145, %v6611, 0
      %v6708 = vsel %vm1145, %v6613, 0
      %v6710 = vsel %vm1145, %v6615, 0
      %v6712 = vsel %vm1145, %v6617, 0
      %v6714 = vsel %vm1145, %v6619, 0
      %v6716 = vsel %vm1145, %v6621, 0
      %v6718 = vsel %vm1145, %v6623, 0
      %v6721 = vsel %vm1290, %v6479, 0
      %6723 = vmatpush.msra.mxu0 0.0
      %6724 = vmatpush.msra.mxu0 0.0
      %6725 = vmatpush.msra.mxu0 0.0
      %6726 = vmatpush.msra.mxu0 0.0
      %6727 = vmatpush.msra.mxu0 0.0
      %6728 = vmatpush.msra.mxu0 0.0
      %6729 = vmatpush.msra.mxu0 0.0
      %6730 = vmatpush.msra.mxu0 0.0
      %6731 = vmatpush.msra.mxu0 0.0
      %6732 = vmatpush.msra.mxu0 0.0
      %6733 = vmatpush.msra.mxu0 0.0
      %6734 = vmatpush.msra.mxu0 0.0
      %6735 = vmatpush.msra.mxu0 0.0
      %6736 = vmatpush.msra.mxu0 0.0
      %6737 = vmatpush.msra.mxu0 0.0
      %6738 = vmatpush.msra.mxu0 %v6721
      %6739 = vmatmul.f32.gmra.mxu0 %v6624
      %v6740 = vpop.f32.mrf.mxu0
      %v6741 = vadd.f32 0.0, %v6740
      %6742 = vmatmul.f32.gmra.mxu0 %v6626
      %v6743 = vpop.f32.mrf.mxu0
      %v6744 = vadd.f32 0.0, %v6743
      %6745 = vmatmul.f32.gmra.mxu0 %v6628
      %v6746 = vpop.f32.mrf.mxu0
      %v6747 = vadd.f32 0.0, %v6746
      %6748 = vmatmul.f32.gmra.mxu0 %v6630
      %v6749 = vpop.f32.mrf.mxu0
      %v6750 = vadd.f32 0.0, %v6749
      %6751 = vmatmul.f32.gmra.mxu0 %v6632
      %v6752 = vpop.f32.mrf.mxu0
      %v6753 = vadd.f32 0.0, %v6752
      %6754 = vmatmul.f32.gmra.mxu0 %v6634
      %v6755 = vpop.f32.mrf.mxu0
      %v6756 = vadd.f32 0.0, %v6755
      %6757 = vmatmul.f32.gmra.mxu0 %v6636
      %v6758 = vpop.f32.mrf.mxu0
      %v6759 = vadd.f32 0.0, %v6758
      %6760 = vmatmul.f32.gmra.mxu0 %v6638
      %v6761 = vpop.f32.mrf.mxu0
      %v6762 = vadd.f32 0.0, %v6761
      %6763 = vmatmul.f32.gmra.mxu0 %v6640
      %v6764 = vpop.f32.mrf.mxu0
      %v6765 = vadd.f32 0.0, %v6764
      %6766 = vmatmul.f32.gmra.mxu0 %v6642
      %v6767 = vpop.f32.mrf.mxu0
      %v6768 = vadd.f32 0.0, %v6767
      %6769 = vmatmul.f32.gmra.mxu0 %v6644
      %v6770 = vpop.f32.mrf.mxu0
      %v6771 = vadd.f32 0.0, %v6770
      %6772 = vmatmul.f32.gmra.mxu0 %v6646
      %v6773 = vpop.f32.mrf.mxu0
      %v6774 = vadd.f32 0.0, %v6773
      %6775 = vmatmul.f32.gmra.mxu0 %v6648
      %v6776 = vpop.f32.mrf.mxu0
      %v6777 = vadd.f32 0.0, %v6776
      %6778 = vmatmul.f32.gmra.mxu0 %v6650
      %v6779 = vpop.f32.mrf.mxu0
      %v6780 = vadd.f32 0.0, %v6779
      %6781 = vmatmul.f32.gmra.mxu0 %v6652
      %v6782 = vpop.f32.mrf.mxu0
      %v6783 = vadd.f32 0.0, %v6782
      %6784 = vmatmul.f32.gmra.mxu0 %v6654
      %v6785 = vpop.f32.mrf.mxu0
      %v6786 = vadd.f32 0.0, %v6785
      %6787 = vmatmul.f32.gmra.mxu0 %v6656
      %v6788 = vpop.f32.mrf.mxu0
      %v6789 = vadd.f32 0.0, %v6788
      %6790 = vmatmul.f32.gmra.mxu0 %v6658
      %v6791 = vpop.f32.mrf.mxu0
      %v6792 = vadd.f32 0.0, %v6791
      %6793 = vmatmul.f32.gmra.mxu0 %v6660
      %v6794 = vpop.f32.mrf.mxu0
      %v6795 = vadd.f32 0.0, %v6794
      %6796 = vmatmul.f32.gmra.mxu0 %v6662
      %v6797 = vpop.f32.mrf.mxu0
      %v6798 = vadd.f32 0.0, %v6797
      %6799 = vmatmul.f32.gmra.mxu0 %v6664
      %v6800 = vpop.f32.mrf.mxu0
      %v6801 = vadd.f32 0.0, %v6800
      %6802 = vmatmul.f32.gmra.mxu0 %v6666
      %v6803 = vpop.f32.mrf.mxu0
      %v6804 = vadd.f32 0.0, %v6803
      %6805 = vmatmul.f32.gmra.mxu0 %v6668
      %v6806 = vpop.f32.mrf.mxu0
      %v6807 = vadd.f32 0.0, %v6806
      %6808 = vmatmul.f32.gmra.mxu0 %v6670
      %v6809 = vpop.f32.mrf.mxu0
      %v6810 = vadd.f32 0.0, %v6809
      %6811 = vmatmul.f32.gmra.mxu0 %v6672
      %v6812 = vpop.f32.mrf.mxu0
      %v6813 = vadd.f32 0.0, %v6812
      %6814 = vmatmul.f32.gmra.mxu0 %v6674
      %v6815 = vpop.f32.mrf.mxu0
      %v6816 = vadd.f32 0.0, %v6815
      %6817 = vmatmul.f32.gmra.mxu0 %v6676
      %v6818 = vpop.f32.mrf.mxu0
      %v6819 = vadd.f32 0.0, %v6818
      %6820 = vmatmul.f32.gmra.mxu0 %v6678
      %v6821 = vpop.f32.mrf.mxu0
      %v6822 = vadd.f32 0.0, %v6821
      %6823 = vmatmul.f32.gmra.mxu0 %v6680
      %v6824 = vpop.f32.mrf.mxu0
      %v6825 = vadd.f32 0.0, %v6824
      %6826 = vmatmul.f32.gmra.mxu0 %v6682
      %v6827 = vpop.f32.mrf.mxu0
      %v6828 = vadd.f32 0.0, %v6827
      %6829 = vmatmul.f32.gmra.mxu0 %v6684
      %v6830 = vpop.f32.mrf.mxu0
      %v6831 = vadd.f32 0.0, %v6830
      %6832 = vmatmul.f32.gmra.mxu0 %v6686
      %v6833 = vpop.f32.mrf.mxu0
      %v6834 = vadd.f32 0.0, %v6833
      %6835 = vmatmul.f32.gmra.mxu0 %v6688
      %v6836 = vpop.f32.mrf.mxu0
      %v6837 = vadd.f32 0.0, %v6836
      %6838 = vmatmul.f32.gmra.mxu0 %v6690
      %v6839 = vpop.f32.mrf.mxu0
      %v6840 = vadd.f32 0.0, %v6839
      %6841 = vmatmul.f32.gmra.mxu0 %v6692
      %v6842 = vpop.f32.mrf.mxu0
      %v6843 = vadd.f32 0.0, %v6842
      %6844 = vmatmul.f32.gmra.mxu0 %v6694
      %v6845 = vpop.f32.mrf.mxu0
      %v6846 = vadd.f32 0.0, %v6845
      %6847 = vmatmul.f32.gmra.mxu0 %v6696
      %v6848 = vpop.f32.mrf.mxu0
      %v6849 = vadd.f32 0.0, %v6848
      %6850 = vmatmul.f32.gmra.mxu0 %v6698
      %v6851 = vpop.f32.mrf.mxu0
      %v6852 = vadd.f32 0.0, %v6851
      %6853 = vmatmul.f32.gmra.mxu0 %v6700
      %v6854 = vpop.f32.mrf.mxu0
      %v6855 = vadd.f32 0.0, %v6854
      %6856 = vmatmul.f32.gmra.mxu0 %v6702
      %v6857 = vpop.f32.mrf.mxu0
      %v6858 = vadd.f32 0.0, %v6857
      %6859 = vmatmul.f32.gmra.mxu0 %v6704
      %v6860 = vpop.f32.mrf.mxu0
      %v6861 = vadd.f32 0.0, %v6860
      %6862 = vmatmul.f32.gmra.mxu0 %v6706
      %v6863 = vpop.f32.mrf.mxu0
      %v6864 = vadd.f32 0.0, %v6863
      %6865 = vmatmul.f32.gmra.mxu0 %v6708
      %v6866 = vpop.f32.mrf.mxu0
      %v6867 = vadd.f32 0.0, %v6866
      %6868 = vmatmul.f32.gmra.mxu0 %v6710
      %v6869 = vpop.f32.mrf.mxu0
      %v6870 = vadd.f32 0.0, %v6869
      %6871 = vmatmul.f32.gmra.mxu0 %v6712
      %v6872 = vpop.f32.mrf.mxu0
      %v6873 = vadd.f32 0.0, %v6872
      %6874 = vmatmul.f32.gmra.mxu0 %v6714
      %v6875 = vpop.f32.mrf.mxu0
      %v6876 = vadd.f32 0.0, %v6875
      %6877 = vmatmul.f32.gmra.mxu0 %v6716
      %v6878 = vpop.f32.mrf.mxu0
      %v6879 = vadd.f32 0.0, %v6878
      %6880 = vmatmul.f32.gmra.mxu0 %v6718
      %v6881 = vpop.f32.mrf.mxu0
      %v6882 = vadd.f32 0.0, %v6881
      %6883 = vdwg.mxu0
      %v6884 = vadd.f32 %v6286, %v6741
      %v6885 = vadd.f32 %v6289, %v6744
      %v6886 = vadd.f32 %v6292, %v6747
      %v6887 = vadd.f32 %v6295, %v6750
      %v6888 = vadd.f32 %v6298, %v6753
      %v6889 = vadd.f32 %v6301, %v6756
      %v6890 = vadd.f32 %v6304, %v6759
      %v6891 = vadd.f32 %v6307, %v6762
      %v6892 = vadd.f32 %v6310, %v6765
      %v6893 = vadd.f32 %v6313, %v6768
      %v6894 = vadd.f32 %v6316, %v6771
      %v6895 = vadd.f32 %v6319, %v6774
      %v6896 = vadd.f32 %v6322, %v6777
      %v6897 = vadd.f32 %v6325, %v6780
      %v6898 = vadd.f32 %v6328, %v6783
      %v6899 = vadd.f32 %v6331, %v6786
      %v6900 = vadd.f32 %v6334, %v6789
      %v6901 = vadd.f32 %v6337, %v6792
      %v6902 = vadd.f32 %v6340, %v6795
      %v6903 = vadd.f32 %v6343, %v6798
      %v6904 = vadd.f32 %v6346, %v6801
      %v6905 = vadd.f32 %v6349, %v6804
      %v6906 = vadd.f32 %v6352, %v6807
      %v6907 = vadd.f32 %v6355, %v6810
      %v6908 = vadd.f32 %v6358, %v6813
      %v6909 = vadd.f32 %v6361, %v6816
      %v6910 = vadd.f32 %v6364, %v6819
      %v6911 = vadd.f32 %v6367, %v6822
      %v6912 = vadd.f32 %v6370, %v6825
      %v6913 = vadd.f32 %v6373, %v6828
      %v6914 = vadd.f32 %v6376, %v6831
      %v6915 = vadd.f32 %v6379, %v6834
      %v6916 = vadd.f32 %v6382, %v6837
      %v6917 = vadd.f32 %v6385, %v6840
      %v6918 = vadd.f32 %v6388, %v6843
      %v6919 = vadd.f32 %v6391, %v6846
      %v6920 = vadd.f32 %v6394, %v6849
      %v6921 = vadd.f32 %v6397, %v6852
      %v6922 = vadd.f32 %v6400, %v6855
      %v6923 = vadd.f32 %v6403, %v6858
      %v6924 = vadd.f32 %v6406, %v6861
      %v6925 = vadd.f32 %v6409, %v6864
      %v6926 = vadd.f32 %v6412, %v6867
      %v6927 = vadd.f32 %v6415, %v6870
      %v6928 = vadd.f32 %v6418, %v6873
      %v6929 = vadd.f32 %v6421, %v6876
      %v6930 = vadd.f32 %v6424, %v6879
      %v6931 = vadd.f32 %v6427, %v6882
      %6980 = vrot.lane.b32.xlu0 %v6884, 6
      %v6981 = vpop.permute.xlu0 %6980
      %6982 = vrot.lane.b32.xlu0 %v6885, 6
      %v6983 = vpop.permute.xlu0 %6982
      %6984 = vrot.lane.b32.xlu0 %v6886, 6
      %v6985 = vpop.permute.xlu0 %6984
      %6986 = vrot.lane.b32.xlu0 %v6887, 6
      %v6987 = vpop.permute.xlu0 %6986
      %6988 = vrot.lane.b32.xlu0 %v6888, 6
      %v6989 = vpop.permute.xlu0 %6988
      %6990 = vrot.lane.b32.xlu0 %v6889, 6
      %v6991 = vpop.permute.xlu0 %6990
      %6992 = vrot.lane.b32.xlu0 %v6890, 6
      %v6993 = vpop.permute.xlu0 %6992
      %6994 = vrot.lane.b32.xlu0 %v6891, 6
      %v6995 = vpop.permute.xlu0 %6994
      %6996 = vrot.lane.b32.xlu0 %v6892, 6
      %v6997 = vpop.permute.xlu0 %6996
      %6998 = vrot.lane.b32.xlu0 %v6893, 6
      %v6999 = vpop.permute.xlu0 %6998
      %7000 = vrot.lane.b32.xlu0 %v6894, 6
      %v7001 = vpop.permute.xlu0 %7000
      %7002 = vrot.lane.b32.xlu0 %v6895, 6
      %v7003 = vpop.permute.xlu0 %7002
      %7004 = vrot.lane.b32.xlu0 %v6896, 6
      %v7005 = vpop.permute.xlu0 %7004
      %7006 = vrot.lane.b32.xlu0 %v6897, 6
      %v7007 = vpop.permute.xlu0 %7006
      %7008 = vrot.lane.b32.xlu0 %v6898, 6
      %v7009 = vpop.permute.xlu0 %7008
      %7010 = vrot.lane.b32.xlu0 %v6899, 6
      %v7011 = vpop.permute.xlu0 %7010
      %7012 = vrot.lane.b32.xlu0 %v6900, 6
      %v7013 = vpop.permute.xlu0 %7012
      %7014 = vrot.lane.b32.xlu0 %v6901, 6
      %v7015 = vpop.permute.xlu0 %7014
      %7016 = vrot.lane.b32.xlu0 %v6902, 6
      %v7017 = vpop.permute.xlu0 %7016
      %7018 = vrot.lane.b32.xlu0 %v6903, 6
      %v7019 = vpop.permute.xlu0 %7018
      %7020 = vrot.lane.b32.xlu0 %v6904, 6
      %v7021 = vpop.permute.xlu0 %7020
      %7022 = vrot.lane.b32.xlu0 %v6905, 6
      %v7023 = vpop.permute.xlu0 %7022
      %7024 = vrot.lane.b32.xlu0 %v6906, 6
      %v7025 = vpop.permute.xlu0 %7024
      %7026 = vrot.lane.b32.xlu0 %v6907, 6
      %v7027 = vpop.permute.xlu0 %7026
      %7028 = vrot.lane.b32.xlu0 %v6908, 6
      %v7029 = vpop.permute.xlu0 %7028
      %7030 = vrot.lane.b32.xlu0 %v6909, 6
      %v7031 = vpop.permute.xlu0 %7030
      %7032 = vrot.lane.b32.xlu0 %v6910, 6
      %v7033 = vpop.permute.xlu0 %7032
      %7034 = vrot.lane.b32.xlu0 %v6911, 6
      %v7035 = vpop.permute.xlu0 %7034
      %7036 = vrot.lane.b32.xlu0 %v6912, 6
      %v7037 = vpop.permute.xlu0 %7036
      %7038 = vrot.lane.b32.xlu0 %v6913, 6
      %v7039 = vpop.permute.xlu0 %7038
      %7040 = vrot.lane.b32.xlu0 %v6914, 6
      %v7041 = vpop.permute.xlu0 %7040
      %7042 = vrot.lane.b32.xlu0 %v6915, 6
      %v7043 = vpop.permute.xlu0 %7042
      %7044 = vrot.lane.b32.xlu0 %v6916, 6
      %v7045 = vpop.permute.xlu0 %7044
      %7046 = vrot.lane.b32.xlu0 %v6917, 6
      %v7047 = vpop.permute.xlu0 %7046
      %7048 = vrot.lane.b32.xlu0 %v6918, 6
      %v7049 = vpop.permute.xlu0 %7048
      %7050 = vrot.lane.b32.xlu0 %v6919, 6
      %v7051 = vpop.permute.xlu0 %7050
      %7052 = vrot.lane.b32.xlu0 %v6920, 6
      %v7053 = vpop.permute.xlu0 %7052
      %7054 = vrot.lane.b32.xlu0 %v6921, 6
      %v7055 = vpop.permute.xlu0 %7054
      %7056 = vrot.lane.b32.xlu0 %v6922, 6
      %v7057 = vpop.permute.xlu0 %7056
      %7058 = vrot.lane.b32.xlu0 %v6923, 6
      %v7059 = vpop.permute.xlu0 %7058
      %7060 = vrot.lane.b32.xlu0 %v6924, 6
      %v7061 = vpop.permute.xlu0 %7060
      %7062 = vrot.lane.b32.xlu0 %v6925, 6
      %v7063 = vpop.permute.xlu0 %7062
      %7064 = vrot.lane.b32.xlu0 %v6926, 6
      %v7065 = vpop.permute.xlu0 %7064
      %7066 = vrot.lane.b32.xlu0 %v6927, 6
      %v7067 = vpop.permute.xlu0 %7066
      %7068 = vrot.lane.b32.xlu0 %v6928, 6
      %v7069 = vpop.permute.xlu0 %7068
      %7070 = vrot.lane.b32.xlu0 %v6929, 6
      %v7071 = vpop.permute.xlu0 %7070
      %7072 = vrot.lane.b32.xlu0 %v6930, 6
      %v7073 = vpop.permute.xlu0 %7072
      %7074 = vrot.lane.b32.xlu0 %v6931, 6
      %v7075 = vpop.permute.xlu0 %7074
      %vm7124 = vcmask 64560
      %7125 = vst.msk [vmem:[#allocation3] sm:$0xff] %vm7124, %v6981
      %7126 = vst.msk [vmem:[#allocation3 + $0x8] sm:$0xff] %vm7124, %v6983
      %7127 = vst.msk [vmem:[#allocation3 + $0x10] sm:$0xff] %vm7124, %v6985
      %7128 = vst.msk [vmem:[#allocation3 + $0x18] sm:$0xff] %vm7124, %v6987
      %7129 = vst.msk [vmem:[#allocation3 + $0x20] sm:$0xff] %vm7124, %v6989
      %7130 = vst.msk [vmem:[#allocation3 + $0x28] sm:$0xff] %vm7124, %v6991
      %7131 = vst.msk [vmem:[#allocation3 + $0x30] sm:$0xff] %vm7124, %v6993
      %7132 = vst.msk [vmem:[#allocation3 + $0x38] sm:$0xff] %vm7124, %v6995
      %7133 = vst.msk [vmem:[#allocation3 + $0x40] sm:$0xff] %vm7124, %v6997
      %7134 = vst.msk [vmem:[#allocation3 + $0x48] sm:$0xff] %vm7124, %v6999
      %7135 = vst.msk [vmem:[#allocation3 + $0x50] sm:$0xff] %vm7124, %v7001
      %7136 = vst.msk [vmem:[#allocation3 + $0x58] sm:$0xff] %vm7124, %v7003
      %7137 = vst.msk [vmem:[#allocation3 + $0x60] sm:$0xff] %vm7124, %v7005
      %7138 = vst.msk [vmem:[#allocation3 + $0x68] sm:$0xff] %vm7124, %v7007
      %7139 = vst.msk [vmem:[#allocation3 + $0x70] sm:$0xff] %vm7124, %v7009
      %7140 = vst.msk [vmem:[#allocation3 + $0x78] sm:$0xff] %vm7124, %v7011
      %7141 = vst.msk [vmem:[#allocation3 + $0x80] sm:$0xff] %vm7124, %v7013
      %7142 = vst.msk [vmem:[#allocation3 + $0x88] sm:$0xff] %vm7124, %v7015
      %7143 = vst.msk [vmem:[#allocation3 + $0x90] sm:$0xff] %vm7124, %v7017
      %7144 = vst.msk [vmem:[#allocation3 + $0x98] sm:$0xff] %vm7124, %v7019
      %7145 = vst.msk [vmem:[#allocation3 + $0xa0] sm:$0xff] %vm7124, %v7021
      %7146 = vst.msk [vmem:[#allocation3 + $0xa8] sm:$0xff] %vm7124, %v7023
      %7147 = vst.msk [vmem:[#allocation3 + $0xb0] sm:$0xff] %vm7124, %v7025
      %7148 = vst.msk [vmem:[#allocation3 + $0xb8] sm:$0xff] %vm7124, %v7027
      %7149 = vst.msk [vmem:[#allocation3 + $0xc0] sm:$0xff] %vm7124, %v7029
      %7150 = vst.msk [vmem:[#allocation3 + $0xc8] sm:$0xff] %vm7124, %v7031
      %7151 = vst.msk [vmem:[#allocation3 + $0xd0] sm:$0xff] %vm7124, %v7033
      %7152 = vst.msk [vmem:[#allocation3 + $0xd8] sm:$0xff] %vm7124, %v7035
      %7153 = vst.msk [vmem:[#allocation3 + $0xe0] sm:$0xff] %vm7124, %v7037
      %7154 = vst.msk [vmem:[#allocation3 + $0xe8] sm:$0xff] %vm7124, %v7039
      %7155 = vst.msk [vmem:[#allocation3 + $0xf0] sm:$0xff] %vm7124, %v7041
      %7156 = vst.msk [vmem:[#allocation3 + $0xf8] sm:$0xff] %vm7124, %v7043
      %7157 = vst.msk [vmem:[#allocation3 + $0x100] sm:$0xff] %vm7124, %v7045
      %7158 = vst.msk [vmem:[#allocation3 + $0x108] sm:$0xff] %vm7124, %v7047
      %7159 = vst.msk [vmem:[#allocation3 + $0x110] sm:$0xff] %vm7124, %v7049
      %7160 = vst.msk [vmem:[#allocation3 + $0x118] sm:$0xff] %vm7124, %v7051
      %7161 = vst.msk [vmem:[#allocation3 + $0x120] sm:$0xff] %vm7124, %v7053
      %7162 = vst.msk [vmem:[#allocation3 + $0x128] sm:$0xff] %vm7124, %v7055
      %7163 = vst.msk [vmem:[#allocation3 + $0x130] sm:$0xff] %vm7124, %v7057
      %7164 = vst.msk [vmem:[#allocation3 + $0x138] sm:$0xff] %vm7124, %v7059
      %7165 = vst.msk [vmem:[#allocation3 + $0x140] sm:$0xff] %vm7124, %v7061
      %7166 = vst.msk [vmem:[#allocation3 + $0x148] sm:$0xff] %vm7124, %v7063
      %7167 = vst.msk [vmem:[#allocation3 + $0x150] sm:$0xff] %vm7124, %v7065
      %7168 = vst.msk [vmem:[#allocation3 + $0x158] sm:$0xff] %vm7124, %v7067
      %7169 = vst.msk [vmem:[#allocation3 + $0x160] sm:$0xff] %vm7124, %v7069
      %7170 = vst.msk [vmem:[#allocation3 + $0x168] sm:$0xff] %vm7124, %v7071
      %7171 = vst.msk [vmem:[#allocation3 + $0x170] sm:$0xff] %vm7124, %v7073
      %7172 = vst.msk [vmem:[#allocation3 + $0x178] sm:$0xff] %vm7124, %v7075
      %v7173 = vld [vmem:[%s1045] sm:$0xff]
      %v7174 = vld [vmem:[%s1045 + $0x8] sm:$0xff]
      %v7175 = vld [vmem:[%s1045 + $0x10] sm:$0xff]
      %v7176 = vld [vmem:[%s1045 + $0x18] sm:$0xff]
      %v7177 = vld [vmem:[%s1045 + $0x20] sm:$0xff]
      %v7178 = vld [vmem:[%s1045 + $0x28] sm:$0xff]
      %v7179 = vld [vmem:[%s1045 + $0x30] sm:$0xff]
      %v7180 = vld [vmem:[%s1045 + $0x38] sm:$0xff]
      %v7181 = vld [vmem:[%s1045 + $0x40] sm:$0xff]
      %v7182 = vld [vmem:[%s1045 + $0x48] sm:$0xff]
      %v7183 = vld [vmem:[%s1045 + $0x50] sm:$0xff]
      %v7184 = vld [vmem:[%s1045 + $0x58] sm:$0xff]
      %v7185 = vld [vmem:[%s1045 + $0x60] sm:$0xff]
      %v7186 = vld [vmem:[%s1045 + $0x68] sm:$0xff]
      %v7187 = vld [vmem:[%s1045 + $0x70] sm:$0xff]
      %v7188 = vld [vmem:[%s1045 + $0x78] sm:$0xff]
      %v7189 = vld [vmem:[%s1045 + $0x80] sm:$0xff]
      %v7190 = vld [vmem:[%s1045 + $0x88] sm:$0xff]
      %v7191 = vld [vmem:[%s1045 + $0x90] sm:$0xff]
      %v7192 = vld [vmem:[%s1045 + $0x98] sm:$0xff]
      %v7193 = vld [vmem:[%s1045 + $0xa0] sm:$0xff]
      %v7194 = vld [vmem:[%s1045 + $0xa8] sm:$0xff]
      %v7195 = vld [vmem:[%s1045 + $0xb0] sm:$0xff]
      %v7196 = vld [vmem:[%s1045 + $0xb8] sm:$0xff]
      %v7197 = vld [vmem:[%s1045 + $0xc0] sm:$0xff]
      %v7198 = vld [vmem:[%s1045 + $0xc8] sm:$0xff]
      %v7199 = vld [vmem:[%s1045 + $0xd0] sm:$0xff]
      %v7200 = vld [vmem:[%s1045 + $0xd8] sm:$0xff]
      %v7201 = vld [vmem:[%s1045 + $0xe0] sm:$0xff]
      %v7202 = vld [vmem:[%s1045 + $0xe8] sm:$0xff]
      %v7203 = vld [vmem:[%s1045 + $0xf0] sm:$0xff]
      %v7204 = vld [vmem:[%s1045 + $0xf8] sm:$0xff]
      %v7205 = vld [vmem:[%s1045 + $0x100] sm:$0xff]
      %v7206 = vld [vmem:[%s1045 + $0x108] sm:$0xff]
      %v7207 = vld [vmem:[%s1045 + $0x110] sm:$0xff]
      %v7208 = vld [vmem:[%s1045 + $0x118] sm:$0xff]
      %v7209 = vld [vmem:[%s1045 + $0x120] sm:$0xff]
      %v7210 = vld [vmem:[%s1045 + $0x128] sm:$0xff]
      %v7211 = vld [vmem:[%s1045 + $0x130] sm:$0xff]
      %v7212 = vld [vmem:[%s1045 + $0x138] sm:$0xff]
      %v7213 = vld [vmem:[%s1045 + $0x140] sm:$0xff]
      %v7214 = vld [vmem:[%s1045 + $0x148] sm:$0xff]
      %v7215 = vld [vmem:[%s1045 + $0x150] sm:$0xff]
      %v7216 = vld [vmem:[%s1045 + $0x158] sm:$0xff]
      %v7217 = vld [vmem:[%s1045 + $0x160] sm:$0xff]
      %v7218 = vld [vmem:[%s1045 + $0x168] sm:$0xff]
      %v7219 = vld [vmem:[%s1045 + $0x170] sm:$0xff]
      %v7220 = vld [vmem:[%s1045 + $0x178] sm:$0xff]
      %v7221 = vld [vmem:[%s996] sm:$0xff]
      %v7222 = vld [vmem:[%s996 + $0x8] sm:$0xff]
      %v7223 = vld [vmem:[%s996 + $0x10] sm:$0xff]
      %v7224 = vld [vmem:[%s996 + $0x18] sm:$0xff]
      %v7225 = vld [vmem:[%s996 + $0x20] sm:$0xff]
      %v7226 = vld [vmem:[%s996 + $0x28] sm:$0xff]
      %v7227 = vld [vmem:[%s996 + $0x30] sm:$0xff]
      %v7228 = vld [vmem:[%s996 + $0x38] sm:$0xff]
      %v7229 = vld [vmem:[%s996 + $0x40] sm:$0xff]
      %v7230 = vld [vmem:[%s996 + $0x48] sm:$0xff]
      %v7231 = vld [vmem:[%s996 + $0x50] sm:$0xff]
      %v7232 = vld [vmem:[%s996 + $0x58] sm:$0xff]
      %v7233 = vld [vmem:[%s996 + $0x60] sm:$0xff]
      %v7234 = vld [vmem:[%s996 + $0x68] sm:$0xff]
      %v7235 = vld [vmem:[%s996 + $0x70] sm:$0xff]
      %v7236 = vld [vmem:[%s996 + $0x78] sm:$0xff]
      %v7237 = vld [vmem:[%s996 + $0x80] sm:$0xff]
      %v7238 = vld [vmem:[%s996 + $0x88] sm:$0xff]
      %v7239 = vld [vmem:[%s996 + $0x90] sm:$0xff]
      %v7240 = vld [vmem:[%s996 + $0x98] sm:$0xff]
      %v7241 = vld [vmem:[%s996 + $0xa0] sm:$0xff]
      %v7242 = vld [vmem:[%s996 + $0xa8] sm:$0xff]
      %v7243 = vld [vmem:[%s996 + $0xb0] sm:$0xff]
      %v7244 = vld [vmem:[%s996 + $0xb8] sm:$0xff]
      %v7245 = vld [vmem:[%s996 + $0xc0] sm:$0xff]
      %v7246 = vld [vmem:[%s996 + $0xc8] sm:$0xff]
      %v7247 = vld [vmem:[%s996 + $0xd0] sm:$0xff]
      %v7248 = vld [vmem:[%s996 + $0xd8] sm:$0xff]
      %v7249 = vld [vmem:[%s996 + $0xe0] sm:$0xff]
      %v7250 = vld [vmem:[%s996 + $0xe8] sm:$0xff]
      %v7251 = vld [vmem:[%s996 + $0xf0] sm:$0xff]
      %v7252 = vld [vmem:[%s996 + $0xf8] sm:$0xff]
      %v7253 = vld [vmem:[%s996 + $0x100] sm:$0xff]
      %v7254 = vld [vmem:[%s996 + $0x108] sm:$0xff]
      %v7255 = vld [vmem:[%s996 + $0x110] sm:$0xff]
      %v7256 = vld [vmem:[%s996 + $0x118] sm:$0xff]
      %v7257 = vld [vmem:[%s996 + $0x120] sm:$0xff]
      %v7258 = vld [vmem:[%s996 + $0x128] sm:$0xff]
      %v7259 = vld [vmem:[%s996 + $0x130] sm:$0xff]
      %v7260 = vld [vmem:[%s996 + $0x138] sm:$0xff]
      %v7261 = vld [vmem:[%s996 + $0x140] sm:$0xff]
      %v7262 = vld [vmem:[%s996 + $0x148] sm:$0xff]
      %v7263 = vld [vmem:[%s996 + $0x150] sm:$0xff]
      %v7264 = vld [vmem:[%s996 + $0x158] sm:$0xff]
      %v7265 = vld [vmem:[%s996 + $0x160] sm:$0xff]
      %v7266 = vld [vmem:[%s996 + $0x168] sm:$0xff]
      %v7267 = vld [vmem:[%s996 + $0x170] sm:$0xff]
      %v7268 = vld [vmem:[%s996 + $0x178] sm:$0xff]
      %v7269 = vmax.f32 %v7173, %v7221
      %v7270 = vmax.f32 %v7174, %v7222
      %v7271 = vmax.f32 %v7175, %v7223
      %v7272 = vmax.f32 %v7176, %v7224
      %v7273 = vmax.f32 %v7177, %v7225
      %v7274 = vmax.f32 %v7178, %v7226
      %v7275 = vmax.f32 %v7179, %v7227
      %v7276 = vmax.f32 %v7180, %v7228
      %v7277 = vmax.f32 %v7181, %v7229
      %v7278 = vmax.f32 %v7182, %v7230
      %v7279 = vmax.f32 %v7183, %v7231
      %v7280 = vmax.f32 %v7184, %v7232
      %v7281 = vmax.f32 %v7185, %v7233
      %v7282 = vmax.f32 %v7186, %v7234
      %v7283 = vmax.f32 %v7187, %v7235
      %v7284 = vmax.f32 %v7188, %v7236
      %v7285 = vmax.f32 %v7189, %v7237
      %v7286 = vmax.f32 %v7190, %v7238
      %v7287 = vmax.f32 %v7191, %v7239
      %v7288 = vmax.f32 %v7192, %v7240
      %v7289 = vmax.f32 %v7193, %v7241
      %v7290 = vmax.f32 %v7194, %v7242
      %v7291 = vmax.f32 %v7195, %v7243
      %v7292 = vmax.f32 %v7196, %v7244
      %v7293 = vmax.f32 %v7197, %v7245
      %v7294 = vmax.f32 %v7198, %v7246
      %v7295 = vmax.f32 %v7199, %v7247
      %v7296 = vmax.f32 %v7200, %v7248
      %v7297 = vmax.f32 %v7201, %v7249
      %v7298 = vmax.f32 %v7202, %v7250
      %v7299 = vmax.f32 %v7203, %v7251
      %v7300 = vmax.f32 %v7204, %v7252
      %v7301 = vmax.f32 %v7205, %v7253
      %v7302 = vmax.f32 %v7206, %v7254
      %v7303 = vmax.f32 %v7207, %v7255
      %v7304 = vmax.f32 %v7208, %v7256
      %v7305 = vmax.f32 %v7209, %v7257
      %v7306 = vmax.f32 %v7210, %v7258
      %v7307 = vmax.f32 %v7211, %v7259
      %v7308 = vmax.f32 %v7212, %v7260
      %v7309 = vmax.f32 %v7213, %v7261
      %v7310 = vmax.f32 %v7214, %v7262
      %v7311 = vmax.f32 %v7215, %v7263
      %v7312 = vmax.f32 %v7216, %v7264
      %v7313 = vmax.f32 %v7217, %v7265
      %v7314 = vmax.f32 %v7218, %v7266
      %v7315 = vmax.f32 %v7219, %v7267
      %v7316 = vmax.f32 %v7220, %v7268
      %v7317 = vld [vmem:[%s1763] sm:$0xff]
      %v7318 = vld [vmem:[%s1763 + $0x8] sm:$0xff]
      %v7319 = vld [vmem:[%s1763 + $0x10] sm:$0xff]
      %v7320 = vld [vmem:[%s1763 + $0x18] sm:$0xff]
      %v7321 = vld [vmem:[%s1763 + $0x20] sm:$0xff]
      %v7322 = vld [vmem:[%s1763 + $0x28] sm:$0xff]
      %v7323 = vld [vmem:[%s1763 + $0x30] sm:$0xff]
      %v7324 = vld [vmem:[%s1763 + $0x38] sm:$0xff]
      %v7325 = vld [vmem:[%s1763 + $0x40] sm:$0xff]
      %v7326 = vld [vmem:[%s1763 + $0x48] sm:$0xff]
      %v7327 = vld [vmem:[%s1763 + $0x50] sm:$0xff]
      %v7328 = vld [vmem:[%s1763 + $0x58] sm:$0xff]
      %v7329 = vld [vmem:[%s1763 + $0x60] sm:$0xff]
      %v7330 = vld [vmem:[%s1763 + $0x68] sm:$0xff]
      %v7331 = vld [vmem:[%s1763 + $0x70] sm:$0xff]
      %v7332 = vld [vmem:[%s1763 + $0x78] sm:$0xff]
      %v7333 = vld [vmem:[%s1763 + $0x80] sm:$0xff]
      %v7334 = vld [vmem:[%s1763 + $0x88] sm:$0xff]
      %v7335 = vld [vmem:[%s1763 + $0x90] sm:$0xff]
      %v7336 = vld [vmem:[%s1763 + $0x98] sm:$0xff]
      %v7337 = vld [vmem:[%s1763 + $0xa0] sm:$0xff]
      %v7338 = vld [vmem:[%s1763 + $0xa8] sm:$0xff]
      %v7339 = vld [vmem:[%s1763 + $0xb0] sm:$0xff]
      %v7340 = vld [vmem:[%s1763 + $0xb8] sm:$0xff]
      %v7341 = vld [vmem:[%s1763 + $0xc0] sm:$0xff]
      %v7342 = vld [vmem:[%s1763 + $0xc8] sm:$0xff]
      %v7343 = vld [vmem:[%s1763 + $0xd0] sm:$0xff]
      %v7344 = vld [vmem:[%s1763 + $0xd8] sm:$0xff]
      %v7345 = vld [vmem:[%s1763 + $0xe0] sm:$0xff]
      %v7346 = vld [vmem:[%s1763 + $0xe8] sm:$0xff]
      %v7347 = vld [vmem:[%s1763 + $0xf0] sm:$0xff]
      %v7348 = vld [vmem:[%s1763 + $0xf8] sm:$0xff]
      %v7349 = vld [vmem:[%s1763 + $0x100] sm:$0xff]
      %v7350 = vld [vmem:[%s1763 + $0x108] sm:$0xff]
      %v7351 = vld [vmem:[%s1763 + $0x110] sm:$0xff]
      %v7352 = vld [vmem:[%s1763 + $0x118] sm:$0xff]
      %v7353 = vld [vmem:[%s1763 + $0x120] sm:$0xff]
      %v7354 = vld [vmem:[%s1763 + $0x128] sm:$0xff]
      %v7355 = vld [vmem:[%s1763 + $0x130] sm:$0xff]
      %v7356 = vld [vmem:[%s1763 + $0x138] sm:$0xff]
      %v7357 = vld [vmem:[%s1763 + $0x140] sm:$0xff]
      %v7358 = vld [vmem:[%s1763 + $0x148] sm:$0xff]
      %v7359 = vld [vmem:[%s1763 + $0x150] sm:$0xff]
      %v7360 = vld [vmem:[%s1763 + $0x158] sm:$0xff]
      %v7361 = vld [vmem:[%s1763 + $0x160] sm:$0xff]
      %v7362 = vld [vmem:[%s1763 + $0x168] sm:$0xff]
      %v7363 = vld [vmem:[%s1763 + $0x170] sm:$0xff]
      %v7364 = vld [vmem:[%s1763 + $0x178] sm:$0xff]
      %v7365 = vmax.f32 %v7269, %v7317
      %v7366 = vmax.f32 %v7270, %v7318
      %v7367 = vmax.f32 %v7271, %v7319
      %v7368 = vmax.f32 %v7272, %v7320
      %v7369 = vmax.f32 %v7273, %v7321
      %v7370 = vmax.f32 %v7274, %v7322
      %v7371 = vmax.f32 %v7275, %v7323
      %v7372 = vmax.f32 %v7276, %v7324
      %v7373 = vmax.f32 %v7277, %v7325
      %v7374 = vmax.f32 %v7278, %v7326
      %v7375 = vmax.f32 %v7279, %v7327
      %v7376 = vmax.f32 %v7280, %v7328
      %v7377 = vmax.f32 %v7281, %v7329
      %v7378 = vmax.f32 %v7282, %v7330
      %v7379 = vmax.f32 %v7283, %v7331
      %v7380 = vmax.f32 %v7284, %v7332
      %v7381 = vmax.f32 %v7285, %v7333
      %v7382 = vmax.f32 %v7286, %v7334
      %v7383 = vmax.f32 %v7287, %v7335
      %v7384 = vmax.f32 %v7288, %v7336
      %v7385 = vmax.f32 %v7289, %v7337
      %v7386 = vmax.f32 %v7290, %v7338
      %v7387 = vmax.f32 %v7291, %v7339
      %v7388 = vmax.f32 %v7292, %v7340
      %v7389 = vmax.f32 %v7293, %v7341
      %v7390 = vmax.f32 %v7294, %v7342
      %v7391 = vmax.f32 %v7295, %v7343
      %v7392 = vmax.f32 %v7296, %v7344
      %v7393 = vmax.f32 %v7297, %v7345
      %v7394 = vmax.f32 %v7298, %v7346
      %v7395 = vmax.f32 %v7299, %v7347
      %v7396 = vmax.f32 %v7300, %v7348
      %v7397 = vmax.f32 %v7301, %v7349
      %v7398 = vmax.f32 %v7302, %v7350
      %v7399 = vmax.f32 %v7303, %v7351
      %v7400 = vmax.f32 %v7304, %v7352
      %v7401 = vmax.f32 %v7305, %v7353
      %v7402 = vmax.f32 %v7306, %v7354
      %v7403 = vmax.f32 %v7307, %v7355
      %v7404 = vmax.f32 %v7308, %v7356
      %v7405 = vmax.f32 %v7309, %v7357
      %v7406 = vmax.f32 %v7310, %v7358
      %v7407 = vmax.f32 %v7311, %v7359
      %v7408 = vmax.f32 %v7312, %v7360
      %v7409 = vmax.f32 %v7313, %v7361
      %v7410 = vmax.f32 %v7314, %v7362
      %v7411 = vmax.f32 %v7315, %v7363
      %v7412 = vmax.f32 %v7316, %v7364
      %vm7413 = vcmask 80960
      %7414 = vst.msk [vmem:[#allocation3] sm:$0xff] %vm7413, %v7365
      %7415 = vst.msk [vmem:[#allocation3 + $0x8] sm:$0xff] %vm7413, %v7366
      %7416 = vst.msk [vmem:[#allocation3 + $0x10] sm:$0xff] %vm7413, %v7367
      %7417 = vst.msk [vmem:[#allocation3 + $0x18] sm:$0xff] %vm7413, %v7368
      %7418 = vst.msk [vmem:[#allocation3 + $0x20] sm:$0xff] %vm7413, %v7369
      %7419 = vst.msk [vmem:[#allocation3 + $0x28] sm:$0xff] %vm7413, %v7370
      %7420 = vst.msk [vmem:[#allocation3 + $0x30] sm:$0xff] %vm7413, %v7371
      %7421 = vst.msk [vmem:[#allocation3 + $0x38] sm:$0xff] %vm7413, %v7372
      %7422 = vst.msk [vmem:[#allocation3 + $0x40] sm:$0xff] %vm7413, %v7373
      %7423 = vst.msk [vmem:[#allocation3 + $0x48] sm:$0xff] %vm7413, %v7374
      %7424 = vst.msk [vmem:[#allocation3 + $0x50] sm:$0xff] %vm7413, %v7375
      %7425 = vst.msk [vmem:[#allocation3 + $0x58] sm:$0xff] %vm7413, %v7376
      %7426 = vst.msk [vmem:[#allocation3 + $0x60] sm:$0xff] %vm7413, %v7377
      %7427 = vst.msk [vmem:[#allocation3 + $0x68] sm:$0xff] %vm7413, %v7378
      %7428 = vst.msk [vmem:[#allocation3 + $0x70] sm:$0xff] %vm7413, %v7379
      %7429 = vst.msk [vmem:[#allocation3 + $0x78] sm:$0xff] %vm7413, %v7380
      %7430 = vst.msk [vmem:[#allocation3 + $0x80] sm:$0xff] %vm7413, %v7381
      %7431 = vst.msk [vmem:[#allocation3 + $0x88] sm:$0xff] %vm7413, %v7382
      %7432 = vst.msk [vmem:[#allocation3 + $0x90] sm:$0xff] %vm7413, %v7383
      %7433 = vst.msk [vmem:[#allocation3 + $0x98] sm:$0xff] %vm7413, %v7384
      %7434 = vst.msk [vmem:[#allocation3 + $0xa0] sm:$0xff] %vm7413, %v7385
      %7435 = vst.msk [vmem:[#allocation3 + $0xa8] sm:$0xff] %vm7413, %v7386
      %7436 = vst.msk [vmem:[#allocation3 + $0xb0] sm:$0xff] %vm7413, %v7387
      %7437 = vst.msk [vmem:[#allocation3 + $0xb8] sm:$0xff] %vm7413, %v7388
      %7438 = vst.msk [vmem:[#allocation3 + $0xc0] sm:$0xff] %vm7413, %v7389
      %7439 = vst.msk [vmem:[#allocation3 + $0xc8] sm:$0xff] %vm7413, %v7390
      %7440 = vst.msk [vmem:[#allocation3 + $0xd0] sm:$0xff] %vm7413, %v7391
      %7441 = vst.msk [vmem:[#allocation3 + $0xd8] sm:$0xff] %vm7413, %v7392
      %7442 = vst.msk [vmem:[#allocation3 + $0xe0] sm:$0xff] %vm7413, %v7393
      %7443 = vst.msk [vmem:[#allocation3 + $0xe8] sm:$0xff] %vm7413, %v7394
      %7444 = vst.msk [vmem:[#allocation3 + $0xf0] sm:$0xff] %vm7413, %v7395
      %7445 = vst.msk [vmem:[#allocation3 + $0xf8] sm:$0xff] %vm7413, %v7396
      %7446 = vst.msk [vmem:[#allocation3 + $0x100] sm:$0xff] %vm7413, %v7397
      %7447 = vst.msk [vmem:[#allocation3 + $0x108] sm:$0xff] %vm7413, %v7398
      %7448 = vst.msk [vmem:[#allocation3 + $0x110] sm:$0xff] %vm7413, %v7399
      %7449 = vst.msk [vmem:[#allocation3 + $0x118] sm:$0xff] %vm7413, %v7400
      %7450 = vst.msk [vmem:[#allocation3 + $0x120] sm:$0xff] %vm7413, %v7401
      %7451 = vst.msk [vmem:[#allocation3 + $0x128] sm:$0xff] %vm7413, %v7402
      %7452 = vst.msk [vmem:[#allocation3 + $0x130] sm:$0xff] %vm7413, %v7403
      %7453 = vst.msk [vmem:[#allocation3 + $0x138] sm:$0xff] %vm7413, %v7404
      %7454 = vst.msk [vmem:[#allocation3 + $0x140] sm:$0xff] %vm7413, %v7405
      %7455 = vst.msk [vmem:[#allocation3 + $0x148] sm:$0xff] %vm7413, %v7406
      %7456 = vst.msk [vmem:[#allocation3 + $0x150] sm:$0xff] %vm7413, %v7407
      %7457 = vst.msk [vmem:[#allocation3 + $0x158] sm:$0xff] %vm7413, %v7408
      %7458 = vst.msk [vmem:[#allocation3 + $0x160] sm:$0xff] %vm7413, %v7409
      %7459 = vst.msk [vmem:[#allocation3 + $0x168] sm:$0xff] %vm7413, %v7410
      %7460 = vst.msk [vmem:[#allocation3 + $0x170] sm:$0xff] %vm7413, %v7411
      %7461 = vst.msk [vmem:[#allocation3 + $0x178] sm:$0xff] %vm7413, %v7412
      %v7462 = vld [vmem:[#allocation3] sm:$0xff]
      %v7463 = vld [vmem:[#allocation3 + $0x8] sm:$0xff]
      %v7464 = vld [vmem:[#allocation3 + $0x10] sm:$0xff]
      %v7465 = vld [vmem:[#allocation3 + $0x18] sm:$0xff]
      %v7466 = vld [vmem:[#allocation3 + $0x20] sm:$0xff]
      %v7467 = vld [vmem:[#allocation3 + $0x28] sm:$0xff]
      %v7468 = vld [vmem:[#allocation3 + $0x30] sm:$0xff]
      %v7469 = vld [vmem:[#allocation3 + $0x38] sm:$0xff]
      %v7470 = vld [vmem:[#allocation3 + $0x40] sm:$0xff]
      %v7471 = vld [vmem:[#allocation3 + $0x48] sm:$0xff]
      %v7472 = vld [vmem:[#allocation3 + $0x50] sm:$0xff]
      %v7473 = vld [vmem:[#allocation3 + $0x58] sm:$0xff]
      %v7474 = vld [vmem:[#allocation3 + $0x60] sm:$0xff]
      %v7475 = vld [vmem:[#allocation3 + $0x68] sm:$0xff]
      %v7476 = vld [vmem:[#allocation3 + $0x70] sm:$0xff]
      %v7477 = vld [vmem:[#allocation3 + $0x78] sm:$0xff]
      %v7478 = vld [vmem:[#allocation3 + $0x80] sm:$0xff]
      %v7479 = vld [vmem:[#allocation3 + $0x88] sm:$0xff]
      %v7480 = vld [vmem:[#allocation3 + $0x90] sm:$0xff]
      %v7481 = vld [vmem:[#allocation3 + $0x98] sm:$0xff]
      %v7482 = vld [vmem:[#allocation3 + $0xa0] sm:$0xff]
      %v7483 = vld [vmem:[#allocation3 + $0xa8] sm:$0xff]
      %v7484 = vld [vmem:[#allocation3 + $0xb0] sm:$0xff]
      %v7485 = vld [vmem:[#allocation3 + $0xb8] sm:$0xff]
      %v7486 = vld [vmem:[#allocation3 + $0xc0] sm:$0xff]
      %v7487 = vld [vmem:[#allocation3 + $0xc8] sm:$0xff]
      %v7488 = vld [vmem:[#allocation3 + $0xd0] sm:$0xff]
      %v7489 = vld [vmem:[#allocation3 + $0xd8] sm:$0xff]
      %v7490 = vld [vmem:[#allocation3 + $0xe0] sm:$0xff]
      %v7491 = vld [vmem:[#allocation3 + $0xe8] sm:$0xff]
      %v7492 = vld [vmem:[#allocation3 + $0xf0] sm:$0xff]
      %v7493 = vld [vmem:[#allocation3 + $0xf8] sm:$0xff]
      %v7494 = vld [vmem:[#allocation3 + $0x100] sm:$0xff]
      %v7495 = vld [vmem:[#allocation3 + $0x108] sm:$0xff]
      %v7496 = vld [vmem:[#allocation3 + $0x110] sm:$0xff]
      %v7497 = vld [vmem:[#allocation3 + $0x118] sm:$0xff]
      %v7498 = vld [vmem:[#allocation3 + $0x120] sm:$0xff]
      %v7499 = vld [vmem:[#allocation3 + $0x128] sm:$0xff]
      %v7500 = vld [vmem:[#allocation3 + $0x130] sm:$0xff]
      %v7501 = vld [vmem:[#allocation3 + $0x138] sm:$0xff]
      %v7502 = vld [vmem:[#allocation3 + $0x140] sm:$0xff]
      %v7503 = vld [vmem:[#allocation3 + $0x148] sm:$0xff]
      %v7504 = vld [vmem:[#allocation3 + $0x150] sm:$0xff]
      %v7505 = vld [vmem:[#allocation3 + $0x158] sm:$0xff]
      %v7506 = vld [vmem:[#allocation3 + $0x160] sm:$0xff]
      %v7507 = vld [vmem:[#allocation3 + $0x168] sm:$0xff]
      %v7508 = vld [vmem:[#allocation3 + $0x170] sm:$0xff]
      %v7509 = vld [vmem:[#allocation3 + $0x178] sm:$0xff]
      %v7510 = vld [vmem:[%s8] sm:$0x1]
      %v7512 = vperm.slane %v7510, 0
      %v7514 = vadd.f32 %v7462, %v7512
      %v7515 = vadd.f32 %v7463, %v7512
      %v7516 = vadd.f32 %v7464, %v7512
      %v7517 = vadd.f32 %v7465, %v7512
      %v7518 = vadd.f32 %v7466, %v7512
      %v7519 = vadd.f32 %v7467, %v7512
      %v7520 = vadd.f32 %v7468, %v7512
      %v7521 = vadd.f32 %v7469, %v7512
      %v7522 = vadd.f32 %v7470, %v7512
      %v7523 = vadd.f32 %v7471, %v7512
      %v7524 = vadd.f32 %v7472, %v7512
      %v7525 = vadd.f32 %v7473, %v7512
      %v7526 = vadd.f32 %v7474, %v7512
      %v7527 = vadd.f32 %v7475, %v7512
      %v7528 = vadd.f32 %v7476, %v7512
      %v7529 = vadd.f32 %v7477, %v7512
      %v7530 = vadd.f32 %v7478, %v7512
      %v7531 = vadd.f32 %v7479, %v7512
      %v7532 = vadd.f32 %v7480, %v7512
      %v7533 = vadd.f32 %v7481, %v7512
      %v7534 = vadd.f32 %v7482, %v7512
      %v7535 = vadd.f32 %v7483, %v7512
      %v7536 = vadd.f32 %v7484, %v7512
      %v7537 = vadd.f32 %v7485, %v7512
      %v7538 = vadd.f32 %v7486, %v7512
      %v7539 = vadd.f32 %v7487, %v7512
      %v7540 = vadd.f32 %v7488, %v7512
      %v7541 = vadd.f32 %v7489, %v7512
      %v7542 = vadd.f32 %v7490, %v7512
      %v7543 = vadd.f32 %v7491, %v7512
      %v7544 = vadd.f32 %v7492, %v7512
      %v7545 = vadd.f32 %v7493, %v7512
      %v7546 = vadd.f32 %v7494, %v7512
      %v7547 = vadd.f32 %v7495, %v7512
      %v7548 = vadd.f32 %v7496, %v7512
      %v7549 = vadd.f32 %v7497, %v7512
      %v7550 = vadd.f32 %v7498, %v7512
      %v7551 = vadd.f32 %v7499, %v7512
      %v7552 = vadd.f32 %v7500, %v7512
      %v7553 = vadd.f32 %v7501, %v7512
      %v7554 = vadd.f32 %v7502, %v7512
      %v7555 = vadd.f32 %v7503, %v7512
      %v7556 = vadd.f32 %v7504, %v7512
      %v7557 = vadd.f32 %v7505, %v7512
      %v7558 = vadd.f32 %v7506, %v7512
      %v7559 = vadd.f32 %v7507, %v7512
      %v7560 = vadd.f32 %v7508, %v7512
      %v7561 = vadd.f32 %v7509, %v7512
      %v7562 = vld [vmem:[%s3] sm:$0xff]
      %v7563 = vld [vmem:[%s3 + $0x8] sm:$0xff]
      %v7564 = vld [vmem:[%s3 + $0x10] sm:$0xff]
      %7566 = vset.pattern.permute.xlu0 0
      %7567 = vperm.xlu0 %7566, %v7562
      %v7568 = vpop.permute.xlu0 %7567
      %7571 = vset.pattern.permute.xlu0 0
      %7572 = vperm.xlu0 %7571, %v7563
      %v7573 = vpop.permute.xlu0 %7572
      %7576 = vset.pattern.permute.xlu0 0
      %7577 = vperm.xlu0 %7576, %v7564
      %v7578 = vpop.permute.xlu0 %7577
      %v7580 = vperm.slane %v7516, 7
      %v7581 = vperm.slane %v7519, 7
      %v7582 = vperm.slane %v7522, 7
      %v7583 = vperm.slane %v7525, 7
      %v7584 = vperm.slane %v7528, 7
      %v7585 = vperm.slane %v7531, 7
      %v7586 = vperm.slane %v7534, 7
      %v7587 = vperm.slane %v7537, 7
      %v7588 = vperm.slane %v7540, 7
      %v7589 = vperm.slane %v7543, 7
      %v7590 = vperm.slane %v7546, 7
      %v7591 = vperm.slane %v7549, 7
      %v7592 = vperm.slane %v7552, 7
      %v7593 = vperm.slane %v7555, 7
      %v7594 = vperm.slane %v7558, 7
      %v7595 = vperm.slane %v7561, 7
      %v7596 = vmul.f32 %v7568, %v7580
      %v7597 = vmul.f32 %v7573, %v7580
      %v7598 = vmul.f32 %v7578, %v7580
      %v7599 = vmul.f32 %v7568, %v7581
      %v7600 = vmul.f32 %v7573, %v7581
      %v7601 = vmul.f32 %v7578, %v7581
      %v7602 = vmul.f32 %v7568, %v7582
      %v7603 = vmul.f32 %v7573, %v7582
      %v7604 = vmul.f32 %v7578, %v7582
      %v7605 = vmul.f32 %v7568, %v7583
      %v7606 = vmul.f32 %v7573, %v7583
      %v7607 = vmul.f32 %v7578, %v7583
      %v7608 = vmul.f32 %v7568, %v7584
      %v7609 = vmul.f32 %v7573, %v7584
      %v7610 = vmul.f32 %v7578, %v7584
      %v7611 = vmul.f32 %v7568, %v7585
      %v7612 = vmul.f32 %v7573, %v7585
      %v7613 = vmul.f32 %v7578, %v7585
      %v7614 = vmul.f32 %v7568, %v7586
      %v7615 = vmul.f32 %v7573, %v7586
      %v7616 = vmul.f32 %v7578, %v7586
      %v7617 = vmul.f32 %v7568, %v7587
      %v7618 = vmul.f32 %v7573, %v7587
      %v7619 = vmul.f32 %v7578, %v7587
      %v7620 = vmul.f32 %v7568, %v7588
      %v7621 = vmul.f32 %v7573, %v7588
      %v7622 = vmul.f32 %v7578, %v7588
      %v7623 = vmul.f32 %v7568, %v7589
      %v7624 = vmul.f32 %v7573, %v7589
      %v7625 = vmul.f32 %v7578, %v7589
      %v7626 = vmul.f32 %v7568, %v7590
      %v7627 = vmul.f32 %v7573, %v7590
      %v7628 = vmul.f32 %v7578, %v7590
      %v7629 = vmul.f32 %v7568, %v7591
      %v7630 = vmul.f32 %v7573, %v7591
      %v7631 = vmul.f32 %v7578, %v7591
      %v7632 = vmul.f32 %v7568, %v7592
      %v7633 = vmul.f32 %v7573, %v7592
      %v7634 = vmul.f32 %v7578, %v7592
      %v7635 = vmul.f32 %v7568, %v7593
      %v7636 = vmul.f32 %v7573, %v7593
      %v7637 = vmul.f32 %v7578, %v7593
      %v7638 = vmul.f32 %v7568, %v7594
      %v7639 = vmul.f32 %v7573, %v7594
      %v7640 = vmul.f32 %v7578, %v7594
      %v7641 = vmul.f32 %v7568, %v7595
      %v7642 = vmul.f32 %v7573, %v7595
      %v7643 = vmul.f32 %v7578, %v7595
      %v7644 = vadd.f32 %v7514, %v7596
      %v7645 = vadd.f32 %v7515, %v7597
      %v7646 = vadd.f32 %v7516, %v7598
      %v7647 = vadd.f32 %v7517, %v7599
      %v7648 = vadd.f32 %v7518, %v7600
      %v7649 = vadd.f32 %v7519, %v7601
      %v7650 = vadd.f32 %v7520, %v7602
      %v7651 = vadd.f32 %v7521, %v7603
      %v7652 = vadd.f32 %v7522, %v7604
      %v7653 = vadd.f32 %v7523, %v7605
      %v7654 = vadd.f32 %v7524, %v7606
      %v7655 = vadd.f32 %v7525, %v7607
      %v7656 = vadd.f32 %v7526, %v7608
      %v7657 = vadd.f32 %v7527, %v7609
      %v7658 = vadd.f32 %v7528, %v7610
      %v7659 = vadd.f32 %v7529, %v7611
      %v7660 = vadd.f32 %v7530, %v7612
      %v7661 = vadd.f32 %v7531, %v7613
      %v7662 = vadd.f32 %v7532, %v7614
      %v7663 = vadd.f32 %v7533, %v7615
      %v7664 = vadd.f32 %v7534, %v7616
      %v7665 = vadd.f32 %v7535, %v7617
      %v7666 = vadd.f32 %v7536, %v7618
      %v7667 = vadd.f32 %v7537, %v7619
      %v7668 = vadd.f32 %v7538, %v7620
      %v7669 = vadd.f32 %v7539, %v7621
      %v7670 = vadd.f32 %v7540, %v7622
      %v7671 = vadd.f32 %v7541, %v7623
      %v7672 = vadd.f32 %v7542, %v7624
      %v7673 = vadd.f32 %v7543, %v7625
      %v7674 = vadd.f32 %v7544, %v7626
      %v7675 = vadd.f32 %v7545, %v7627
      %v7676 = vadd.f32 %v7546, %v7628
      %v7677 = vadd.f32 %v7547, %v7629
      %v7678 = vadd.f32 %v7548, %v7630
      %v7679 = vadd.f32 %v7549, %v7631
      %v7680 = vadd.f32 %v7550, %v7632
      %v7681 = vadd.f32 %v7551, %v7633
      %v7682 = vadd.f32 %v7552, %v7634
      %v7683 = vadd.f32 %v7553, %v7635
      %v7684 = vadd.f32 %v7554, %v7636
      %v7685 = vadd.f32 %v7555, %v7637
      %v7686 = vadd.f32 %v7556, %v7638
      %v7687 = vadd.f32 %v7557, %v7639
      %v7688 = vadd.f32 %v7558, %v7640
      %v7689 = vadd.f32 %v7559, %v7641
      %v7690 = vadd.f32 %v7560, %v7642
      %v7691 = vadd.f32 %v7561, %v7643
      %v7692 = vld [vmem:[%s9] sm:$0x1]
      %v7694 = vperm.slane %v7692, 0
      %v7696 = vmul.f32 %v7644, %v7694
      %v7697 = vmul.f32 %v7645, %v7694
      %v7698 = vmul.f32 %v7646, %v7694
      %v7699 = vmul.f32 %v7647, %v7694
      %v7700 = vmul.f32 %v7648, %v7694
      %v7701 = vmul.f32 %v7649, %v7694
      %v7702 = vmul.f32 %v7650, %v7694
      %v7703 = vmul.f32 %v7651, %v7694
      %v7704 = vmul.f32 %v7652, %v7694
      %v7705 = vmul.f32 %v7653, %v7694
      %v7706 = vmul.f32 %v7654, %v7694
      %v7707 = vmul.f32 %v7655, %v7694
      %v7708 = vmul.f32 %v7656, %v7694
      %v7709 = vmul.f32 %v7657, %v7694
      %v7710 = vmul.f32 %v7658, %v7694
      %v7711 = vmul.f32 %v7659, %v7694
      %v7712 = vmul.f32 %v7660, %v7694
      %v7713 = vmul.f32 %v7661, %v7694
      %v7714 = vmul.f32 %v7662, %v7694
      %v7715 = vmul.f32 %v7663, %v7694
      %v7716 = vmul.f32 %v7664, %v7694
      %v7717 = vmul.f32 %v7665, %v7694
      %v7718 = vmul.f32 %v7666, %v7694
      %v7719 = vmul.f32 %v7667, %v7694
      %v7720 = vmul.f32 %v7668, %v7694
      %v7721 = vmul.f32 %v7669, %v7694
      %v7722 = vmul.f32 %v7670, %v7694
      %v7723 = vmul.f32 %v7671, %v7694
      %v7724 = vmul.f32 %v7672, %v7694
      %v7725 = vmul.f32 %v7673, %v7694
      %v7726 = vmul.f32 %v7674, %v7694
      %v7727 = vmul.f32 %v7675, %v7694
      %v7728 = vmul.f32 %v7676, %v7694
      %v7729 = vmul.f32 %v7677, %v7694
      %v7730 = vmul.f32 %v7678, %v7694
      %v7731 = vmul.f32 %v7679, %v7694
      %v7732 = vmul.f32 %v7680, %v7694
      %v7733 = vmul.f32 %v7681, %v7694
      %v7734 = vmul.f32 %v7682, %v7694
      %v7735 = vmul.f32 %v7683, %v7694
      %v7736 = vmul.f32 %v7684, %v7694
      %v7737 = vmul.f32 %v7685, %v7694
      %v7738 = vmul.f32 %v7686, %v7694
      %v7739 = vmul.f32 %v7687, %v7694
      %v7740 = vmul.f32 %v7688, %v7694
      %v7741 = vmul.f32 %v7689, %v7694
      %v7742 = vmul.f32 %v7690, %v7694
      %v7743 = vmul.f32 %v7691, %v7694
      %v7744 = vld [vmem:[%s10] sm:$0x1]
      %v7746 = vperm.slane %v7744, 0
      %v7748 = vadd.f32 %v7696, %v7746
      %v7749 = vadd.f32 %v7697, %v7746
      %v7750 = vadd.f32 %v7698, %v7746
      %v7751 = vadd.f32 %v7699, %v7746
      %v7752 = vadd.f32 %v7700, %v7746
      %v7753 = vadd.f32 %v7701, %v7746
      %v7754 = vadd.f32 %v7702, %v7746
      %v7755 = vadd.f32 %v7703, %v7746
      %v7756 = vadd.f32 %v7704, %v7746
      %v7757 = vadd.f32 %v7705, %v7746
      %v7758 = vadd.f32 %v7706, %v7746
      %v7759 = vadd.f32 %v7707, %v7746
      %v7760 = vadd.f32 %v7708, %v7746
      %v7761 = vadd.f32 %v7709, %v7746
      %v7762 = vadd.f32 %v7710, %v7746
      %v7763 = vadd.f32 %v7711, %v7746
      %v7764 = vadd.f32 %v7712, %v7746
      %v7765 = vadd.f32 %v7713, %v7746
      %v7766 = vadd.f32 %v7714, %v7746
      %v7767 = vadd.f32 %v7715, %v7746
      %v7768 = vadd.f32 %v7716, %v7746
      %v7769 = vadd.f32 %v7717, %v7746
      %v7770 = vadd.f32 %v7718, %v7746
      %v7771 = vadd.f32 %v7719, %v7746
      %v7772 = vadd.f32 %v7720, %v7746
      %v7773 = vadd.f32 %v7721, %v7746
      %v7774 = vadd.f32 %v7722, %v7746
      %v7775 = vadd.f32 %v7723, %v7746
      %v7776 = vadd.f32 %v7724, %v7746
      %v7777 = vadd.f32 %v7725, %v7746
      %v7778 = vadd.f32 %v7726, %v7746
      %v7779 = vadd.f32 %v7727, %v7746
      %v7780 = vadd.f32 %v7728, %v7746
      %v7781 = vadd.f32 %v7729, %v7746
      %v7782 = vadd.f32 %v7730, %v7746
      %v7783 = vadd.f32 %v7731, %v7746
      %v7784 = vadd.f32 %v7732, %v7746
      %v7785 = vadd.f32 %v7733, %v7746
      %v7786 = vadd.f32 %v7734, %v7746
      %v7787 = vadd.f32 %v7735, %v7746
      %v7788 = vadd.f32 %v7736, %v7746
      %v7789 = vadd.f32 %v7737, %v7746
      %v7790 = vadd.f32 %v7738, %v7746
      %v7791 = vadd.f32 %v7739, %v7746
      %v7792 = vadd.f32 %v7740, %v7746
      %v7793 = vadd.f32 %v7741, %v7746
      %v7794 = vadd.f32 %v7742, %v7746
      %v7795 = vadd.f32 %v7743, %v7746
      %v7796 = vmax.f32 %v7748, 0.0
      %v7797 = vmax.f32 %v7749, 0.0
      %v7798 = vmax.f32 %v7750, 0.0
      %v7799 = vmax.f32 %v7751, 0.0
      %v7800 = vmax.f32 %v7752, 0.0
      %v7801 = vmax.f32 %v7753, 0.0
      %v7802 = vmax.f32 %v7754, 0.0
      %v7803 = vmax.f32 %v7755, 0.0
      %v7804 = vmax.f32 %v7756, 0.0
      %v7805 = vmax.f32 %v7757, 0.0
      %v7806 = vmax.f32 %v7758, 0.0
      %v7807 = vmax.f32 %v7759, 0.0
      %v7808 = vmax.f32 %v7760, 0.0
      %v7809 = vmax.f32 %v7761, 0.0
      %v7810 = vmax.f32 %v7762, 0.0
      %v7811 = vmax.f32 %v7763, 0.0
      %v7812 = vmax.f32 %v7764, 0.0
      %v7813 = vmax.f32 %v7765, 0.0
      %v7814 = vmax.f32 %v7766, 0.0
      %v7815 = vmax.f32 %v7767, 0.0
      %v7816 = vmax.f32 %v7768, 0.0
      %v7817 = vmax.f32 %v7769, 0.0
      %v7818 = vmax.f32 %v7770, 0.0
      %v7819 = vmax.f32 %v7771, 0.0
      %v7820 = vmax.f32 %v7772, 0.0
      %v7821 = vmax.f32 %v7773, 0.0
      %v7822 = vmax.f32 %v7774, 0.0
      %v7823 = vmax.f32 %v7775, 0.0
      %v7824 = vmax.f32 %v7776, 0.0
      %v7825 = vmax.f32 %v7777, 0.0
      %v7826 = vmax.f32 %v7778, 0.0
      %v7827 = vmax.f32 %v7779, 0.0
      %v7828 = vmax.f32 %v7780, 0.0
      %v7829 = vmax.f32 %v7781, 0.0
      %v7830 = vmax.f32 %v7782, 0.0
      %v7831 = vmax.f32 %v7783, 0.0
      %v7832 = vmax.f32 %v7784, 0.0
      %v7833 = vmax.f32 %v7785, 0.0
      %v7834 = vmax.f32 %v7786, 0.0
      %v7835 = vmax.f32 %v7787, 0.0
      %v7836 = vmax.f32 %v7788, 0.0
      %v7837 = vmax.f32 %v7789, 0.0
      %v7838 = vmax.f32 %v7790, 0.0
      %v7839 = vmax.f32 %v7791, 0.0
      %v7840 = vmax.f32 %v7792, 0.0
      %v7841 = vmax.f32 %v7793, 0.0
      %v7842 = vmax.f32 %v7794, 0.0
      %v7843 = vmax.f32 %v7795, 0.0
      %v7844 = vld [vmem:[%s11] sm:$0xf]
      %v7845 = vld [vmem:[%s11 + $0x4] sm:$0x3]
      %v7846 = vld [vmem:[%s12] sm:$0x1]
      %v7848 = vperm.slane %v7846, 0
      %v7852 = vunpack.c.l.b16 %v7844
      %v7853 = vunpack.c.l.b16 %v7845
      %v7854 = vpack.c.b16 %v7853, %v7852
      %v7856 = vsel %vm922, %v7796, 0
      %v7859 = vsel %vm922, %v7797, 0
      %v7862 = vsel %vm922, %v7798, 0
      %v7865 = vsel %vm922, %v7799, 0
      %v7868 = vsel %vm922, %v7800, 0
      %v7871 = vsel %vm922, %v7801, 0
      %v7874 = vsel %vm922, %v7802, 0
      %v7877 = vsel %vm922, %v7803, 0
      %v7880 = vsel %vm922, %v7804, 0
      %v7883 = vsel %vm922, %v7805, 0
      %v7886 = vsel %vm922, %v7806, 0
      %v7889 = vsel %vm922, %v7807, 0
      %v7892 = vsel %vm922, %v7808, 0
      %v7895 = vsel %vm922, %v7809, 0
      %v7898 = vsel %vm922, %v7810, 0
      %v7901 = vsel %vm922, %v7811, 0
      %v7904 = vsel %vm922, %v7812, 0
      %v7907 = vsel %vm922, %v7813, 0
      %v7910 = vsel %vm922, %v7814, 0
      %v7913 = vsel %vm922, %v7815, 0
      %v7916 = vsel %vm922, %v7816, 0
      %v7919 = vsel %vm922, %v7817, 0
      %v7922 = vsel %vm922, %v7818, 0
      %v7925 = vsel %vm922, %v7819, 0
      %v7928 = vsel %vm922, %v7820, 0
      %v7931 = vsel %vm922, %v7821, 0
      %v7934 = vsel %vm922, %v7822, 0
      %v7937 = vsel %vm922, %v7823, 0
      %v7940 = vsel %vm922, %v7824, 0
      %v7943 = vsel %vm922, %v7825, 0
      %v7946 = vsel %vm922, %v7826, 0
      %v7949 = vsel %vm922, %v7827, 0
      %v7952 = vsel %vm922, %v7828, 0
      %v7955 = vsel %vm922, %v7829, 0
      %v7958 = vsel %vm922, %v7830, 0
      %v7961 = vsel %vm922, %v7831, 0
      %v7964 = vsel %vm922, %v7832, 0
      %v7967 = vsel %vm922, %v7833, 0
      %v7970 = vsel %vm922, %v7834, 0
      %v7973 = vsel %vm922, %v7835, 0
      %v7976 = vsel %vm922, %v7836, 0
      %v7979 = vsel %vm922, %v7837, 0
      %v7982 = vsel %vm922, %v7838, 0
      %v7985 = vsel %vm922, %v7839, 0
      %v7988 = vsel %vm922, %v7840, 0
      %v7991 = vsel %vm922, %v7841, 0
      %v7994 = vsel %vm922, %v7842, 0
      %v7997 = vsel %vm922, %v7843, 0
      %vm7999 = vcmask 1045504
      %v8001 = vsel %vm7999, %v7854, 0
      %8003 = vmatpush.bf16.msra.mxu0 0
      %8004 = vmatpush.bf16.msra.mxu0 0
      %8005 = vmatpush.bf16.msra.mxu0 0
      %8006 = vmatpush.bf16.msra.mxu0 0
      %8007 = vmatpush.bf16.msra.mxu0 0
      %8008 = vmatpush.bf16.msra.mxu0 0
      %8009 = vmatpush.bf16.msra.mxu0 0
      %8010 = vmatpush.bf16.msra.mxu0 %v8001
      %8011 = vmatmul.f32.gmra.mxu0 %v7856
      %v8012 = vpop.f32.mrf.mxu0
      %v8013 = vadd.f32 %v7848, %v8012
      %8014 = vmatmul.f32.gmra.mxu0 %v7859
      %v8015 = vpop.f32.mrf.mxu0
      %v8016 = vadd.f32 %v7848, %v8015
      %8017 = vmatmul.f32.gmra.mxu0 %v7862
      %v8018 = vpop.f32.mrf.mxu0
      %v8019 = vadd.f32 %v7848, %v8018
      %8020 = vmatmul.f32.gmra.mxu0 %v7865
      %v8021 = vpop.f32.mrf.mxu0
      %v8022 = vadd.f32 %v7848, %v8021
      %8023 = vmatmul.f32.gmra.mxu0 %v7868
      %v8024 = vpop.f32.mrf.mxu0
      %v8025 = vadd.f32 %v7848, %v8024
      %8026 = vmatmul.f32.gmra.mxu0 %v7871
      %v8027 = vpop.f32.mrf.mxu0
      %v8028 = vadd.f32 %v7848, %v8027
      %8029 = vmatmul.f32.gmra.mxu0 %v7874
      %v8030 = vpop.f32.mrf.mxu0
      %v8031 = vadd.f32 %v7848, %v8030
      %8032 = vmatmul.f32.gmra.mxu0 %v7877
      %v8033 = vpop.f32.mrf.mxu0
      %v8034 = vadd.f32 %v7848, %v8033
      %8035 = vmatmul.f32.gmra.mxu0 %v7880
      %v8036 = vpop.f32.mrf.mxu0
      %v8037 = vadd.f32 %v7848, %v8036
      %8038 = vmatmul.f32.gmra.mxu0 %v7883
      %v8039 = vpop.f32.mrf.mxu0
      %v8040 = vadd.f32 %v7848, %v8039
      %8041 = vmatmul.f32.gmra.mxu0 %v7886
      %v8042 = vpop.f32.mrf.mxu0
      %v8043 = vadd.f32 %v7848, %v8042
      %8044 = vmatmul.f32.gmra.mxu0 %v7889
      %v8045 = vpop.f32.mrf.mxu0
      %v8046 = vadd.f32 %v7848, %v8045
      %8047 = vmatmul.f32.gmra.mxu0 %v7892
      %v8048 = vpop.f32.mrf.mxu0
      %v8049 = vadd.f32 %v7848, %v8048
      %8050 = vmatmul.f32.gmra.mxu0 %v7895
      %v8051 = vpop.f32.mrf.mxu0
      %v8052 = vadd.f32 %v7848, %v8051
      %8053 = vmatmul.f32.gmra.mxu0 %v7898
      %v8054 = vpop.f32.mrf.mxu0
      %v8055 = vadd.f32 %v7848, %v8054
      %8056 = vmatmul.f32.gmra.mxu0 %v7901
      %v8057 = vpop.f32.mrf.mxu0
      %v8058 = vadd.f32 %v7848, %v8057
      %8059 = vmatmul.f32.gmra.mxu0 %v7904
      %v8060 = vpop.f32.mrf.mxu0
      %v8061 = vadd.f32 %v7848, %v8060
      %8062 = vmatmul.f32.gmra.mxu0 %v7907
      %v8063 = vpop.f32.mrf.mxu0
      %v8064 = vadd.f32 %v7848, %v8063
      %8065 = vmatmul.f32.gmra.mxu0 %v7910
      %v8066 = vpop.f32.mrf.mxu0
      %v8067 = vadd.f32 %v7848, %v8066
      %8068 = vmatmul.f32.gmra.mxu0 %v7913
      %v8069 = vpop.f32.mrf.mxu0
      %v8070 = vadd.f32 %v7848, %v8069
      %8071 = vmatmul.f32.gmra.mxu0 %v7916
      %v8072 = vpop.f32.mrf.mxu0
      %v8073 = vadd.f32 %v7848, %v8072
      %8074 = vmatmul.f32.gmra.mxu0 %v7919
      %v8075 = vpop.f32.mrf.mxu0
      %v8076 = vadd.f32 %v7848, %v8075
      %8077 = vmatmul.f32.gmra.mxu0 %v7922
      %v8078 = vpop.f32.mrf.mxu0
      %v8079 = vadd.f32 %v7848, %v8078
      %8080 = vmatmul.f32.gmra.mxu0 %v7925
      %v8081 = vpop.f32.mrf.mxu0
      %v8082 = vadd.f32 %v7848, %v8081
      %8083 = vmatmul.f32.gmra.mxu0 %v7928
      %v8084 = vpop.f32.mrf.mxu0
      %v8085 = vadd.f32 %v7848, %v8084
      %8086 = vmatmul.f32.gmra.mxu0 %v7931
      %v8087 = vpop.f32.mrf.mxu0
      %v8088 = vadd.f32 %v7848, %v8087
      %8089 = vmatmul.f32.gmra.mxu0 %v7934
      %v8090 = vpop.f32.mrf.mxu0
      %v8091 = vadd.f32 %v7848, %v8090
      %8092 = vmatmul.f32.gmra.mxu0 %v7937
      %v8093 = vpop.f32.mrf.mxu0
      %v8094 = vadd.f32 %v7848, %v8093
      %8095 = vmatmul.f32.gmra.mxu0 %v7940
      %v8096 = vpop.f32.mrf.mxu0
      %v8097 = vadd.f32 %v7848, %v8096
      %8098 = vmatmul.f32.gmra.mxu0 %v7943
      %v8099 = vpop.f32.mrf.mxu0
      %v8100 = vadd.f32 %v7848, %v8099
      %8101 = vmatmul.f32.gmra.mxu0 %v7946
      %v8102 = vpop.f32.mrf.mxu0
      %v8103 = vadd.f32 %v7848, %v8102
      %8104 = vmatmul.f32.gmra.mxu0 %v7949
      %v8105 = vpop.f32.mrf.mxu0
      %v8106 = vadd.f32 %v7848, %v8105
      %8107 = vmatmul.f32.gmra.mxu0 %v7952
      %v8108 = vpop.f32.mrf.mxu0
      %v8109 = vadd.f32 %v7848, %v8108
      %8110 = vmatmul.f32.gmra.mxu0 %v7955
      %v8111 = vpop.f32.mrf.mxu0
      %v8112 = vadd.f32 %v7848, %v8111
      %8113 = vmatmul.f32.gmra.mxu0 %v7958
      %v8114 = vpop.f32.mrf.mxu0
      %v8115 = vadd.f32 %v7848, %v8114
      %8116 = vmatmul.f32.gmra.mxu0 %v7961
      %v8117 = vpop.f32.mrf.mxu0
      %v8118 = vadd.f32 %v7848, %v8117
      %8119 = vmatmul.f32.gmra.mxu0 %v7964
      %v8120 = vpop.f32.mrf.mxu0
      %v8121 = vadd.f32 %v7848, %v8120
      %8122 = vmatmul.f32.gmra.mxu0 %v7967
      %v8123 = vpop.f32.mrf.mxu0
      %v8124 = vadd.f32 %v7848, %v8123
      %8125 = vmatmul.f32.gmra.mxu0 %v7970
      %v8126 = vpop.f32.mrf.mxu0
      %v8127 = vadd.f32 %v7848, %v8126
      %8128 = vmatmul.f32.gmra.mxu0 %v7973
      %v8129 = vpop.f32.mrf.mxu0
      %v8130 = vadd.f32 %v7848, %v8129
      %8131 = vmatmul.f32.gmra.mxu0 %v7976
      %v8132 = vpop.f32.mrf.mxu0
      %v8133 = vadd.f32 %v7848, %v8132
      %8134 = vmatmul.f32.gmra.mxu0 %v7979
      %v8135 = vpop.f32.mrf.mxu0
      %v8136 = vadd.f32 %v7848, %v8135
      %8137 = vmatmul.f32.gmra.mxu0 %v7982
      %v8138 = vpop.f32.mrf.mxu0
      %v8139 = vadd.f32 %v7848, %v8138
      %8140 = vmatmul.f32.gmra.mxu0 %v7985
      %v8141 = vpop.f32.mrf.mxu0
      %v8142 = vadd.f32 %v7848, %v8141
      %8143 = vmatmul.f32.gmra.mxu0 %v7988
      %v8144 = vpop.f32.mrf.mxu0
      %v8145 = vadd.f32 %v7848, %v8144
      %8146 = vmatmul.f32.gmra.mxu0 %v7991
      %v8147 = vpop.f32.mrf.mxu0
      %v8148 = vadd.f32 %v7848, %v8147
      %8149 = vmatmul.f32.gmra.mxu0 %v7994
      %v8150 = vpop.f32.mrf.mxu0
      %v8151 = vadd.f32 %v7848, %v8150
      %8152 = vmatmul.f32.gmra.mxu0 %v7997
      %v8153 = vpop.f32.mrf.mxu0
      %v8154 = vadd.f32 %v7848, %v8153
      %8155 = vdwg.mxu0
      %8156 = vst.msk [vmem:[%s440] sm:$0xff] %vm922, %v8013
      %8157 = vst.msk [vmem:[%s440 + $0x8] sm:$0xff] %vm922, %v8016
      %8158 = vst.msk [vmem:[%s440 + $0x10] sm:$0xff] %vm922, %v8019
      %8159 = vst.msk [vmem:[%s440 + $0x18] sm:$0xff] %vm922, %v8022
      %8160 = vst.msk [vmem:[%s440 + $0x20] sm:$0xff] %vm922, %v8025
      %8161 = vst.msk [vmem:[%s440 + $0x28] sm:$0xff] %vm922, %v8028
      %8162 = vst.msk [vmem:[%s440 + $0x30] sm:$0xff] %vm922, %v8031
      %8163 = vst.msk [vmem:[%s440 + $0x38] sm:$0xff] %vm922, %v8034
      %8164 = vst.msk [vmem:[%s440 + $0x40] sm:$0xff] %vm922, %v8037
      %8165 = vst.msk [vmem:[%s440 + $0x48] sm:$0xff] %vm922, %v8040
      %8166 = vst.msk [vmem:[%s440 + $0x50] sm:$0xff] %vm922, %v8043
      %8167 = vst.msk [vmem:[%s440 + $0x58] sm:$0xff] %vm922, %v8046
      %8168 = vst.msk [vmem:[%s440 + $0x60] sm:$0xff] %vm922, %v8049
      %8169 = vst.msk [vmem:[%s440 + $0x68] sm:$0xff] %vm922, %v8052
      %8170 = vst.msk [vmem:[%s440 + $0x70] sm:$0xff] %vm922, %v8055
      %8171 = vst.msk [vmem:[%s440 + $0x78] sm:$0xff] %vm922, %v8058
      %8172 = vst.msk [vmem:[%s440 + $0x80] sm:$0xff] %vm922, %v8061
      %8173 = vst.msk [vmem:[%s440 + $0x88] sm:$0xff] %vm922, %v8064
      %8174 = vst.msk [vmem:[%s440 + $0x90] sm:$0xff] %vm922, %v8067
      %8175 = vst.msk [vmem:[%s440 + $0x98] sm:$0xff] %vm922, %v8070
      %8176 = vst.msk [vmem:[%s440 + $0xa0] sm:$0xff] %vm922, %v8073
      %8177 = vst.msk [vmem:[%s440 + $0xa8] sm:$0xff] %vm922, %v8076
      %8178 = vst.msk [vmem:[%s440 + $0xb0] sm:$0xff] %vm922, %v8079
      %8179 = vst.msk [vmem:[%s440 + $0xb8] sm:$0xff] %vm922, %v8082
      %8180 = vst.msk [vmem:[%s440 + $0xc0] sm:$0xff] %vm922, %v8085
      %8181 = vst.msk [vmem:[%s440 + $0xc8] sm:$0xff] %vm922, %v8088
      %8182 = vst.msk [vmem:[%s440 + $0xd0] sm:$0xff] %vm922, %v8091
      %8183 = vst.msk [vmem:[%s440 + $0xd8] sm:$0xff] %vm922, %v8094
      %8184 = vst.msk [vmem:[%s440 + $0xe0] sm:$0xff] %vm922, %v8097
      %8185 = vst.msk [vmem:[%s440 + $0xe8] sm:$0xff] %vm922, %v8100
      %8186 = vst.msk [vmem:[%s440 + $0xf0] sm:$0xff] %vm922, %v8103
      %8187 = vst.msk [vmem:[%s440 + $0xf8] sm:$0xff] %vm922, %v8106
      %8188 = vst.msk [vmem:[%s440 + $0x100] sm:$0xff] %vm922, %v8109
      %8189 = vst.msk [vmem:[%s440 + $0x108] sm:$0xff] %vm922, %v8112
      %8190 = vst.msk [vmem:[%s440 + $0x110] sm:$0xff] %vm922, %v8115
      %8191 = vst.msk [vmem:[%s440 + $0x118] sm:$0xff] %vm922, %v8118
      %8192 = vst.msk [vmem:[%s440 + $0x120] sm:$0xff] %vm922, %v8121
      %8193 = vst.msk [vmem:[%s440 + $0x128] sm:$0xff] %vm922, %v8124
      %8194 = vst.msk [vmem:[%s440 + $0x130] sm:$0xff] %vm922, %v8127
      %8195 = vst.msk [vmem:[%s440 + $0x138] sm:$0xff] %vm922, %v8130
      %8196 = vst.msk [vmem:[%s440 + $0x140] sm:$0xff] %vm922, %v8133
      %8197 = vst.msk [vmem:[%s440 + $0x148] sm:$0xff] %vm922, %v8136
      %8198 = vst.msk [vmem:[%s440 + $0x150] sm:$0xff] %vm922, %v8139
      %8199 = vst.msk [vmem:[%s440 + $0x158] sm:$0xff] %vm922, %v8142
      %8200 = vst.msk [vmem:[%s440 + $0x160] sm:$0xff] %vm922, %v8145
      %8201 = vst.msk [vmem:[%s440 + $0x168] sm:$0xff] %vm922, %v8148
      %8202 = vst.msk [vmem:[%s440 + $0x170] sm:$0xff] %vm922, %v8151
      %8203 = vst.msk [vmem:[%s440 + $0x178] sm:$0xff] %vm922, %v8154
      %p8204 = scmp.lt.s32.totalorder %s24, 1
      %s8205 = scalar_select %p8204, %s24, 1
      %s8206 = smul.addr %s8205, 48
      %s8207 = smul.addr %s8206, 8
      %s8208 = scalar_lea.vmem %s13, %s8207
      // Predicated region
      $region73: #{tpu_custom_call.1} parent=71 // pred_check
        %p8209 = pneg %p320
      $region74: #{tpu_custom_call.1} parent=71 // pred_check_branch
        %8211 = sbr.rel (%p8209) target = $region76
      $region75: #{tpu_custom_call.1} parent=71 // pred_region
        _
      $region76: #{tpu_custom_call.1} parent=71 // pred_fallthru
        _
    $region72: #{tpu_custom_call.1} parent=5 // pred_fallthru
      _
    %p8212 = scmp.le.s32.totalorder 2, %s19
    // Predicated region
    $region77: #{tpu_custom_call.1} parent=5 // pred_check
      %p8213 = pneg %p8212
    $region78: #{tpu_custom_call.1} parent=5 // pred_check_branch
      %8215 = sbr.rel (%p8213) target = $region80
    $region79: #{tpu_custom_call.1} parent=5 // pred_region
      %s8216 = ssub.s32 %s19, 2
      // Predicated region
      $region81: #{tpu_custom_call.1} parent=79 // pred_check
        %p8217 = pneg %p326
      $region82: #{tpu_custom_call.1} parent=79 // pred_check_branch
        %8219 = sbr.rel (%p8217) target = $region84
      $region83: #{tpu_custom_call.1} parent=79 // pred_region
        %p8220 = scmp.lt.s32.totalorder %s25, 1
        %s8221 = scalar_select %p8220, %s25, 1
        %s8222 = smul.addr %s8221, 48
        %s8223 = smul.addr %s8222, 8
        %s8224 = scalar_lea.vmem %s13, %s8223
      $region84: #{tpu_custom_call.1} parent=79 // pred_fallthru
        _
    $region80: #{tpu_custom_call.1} parent=5 // pred_fallthru
      _
  $region6: #{tpu_custom_call.1} parent=0 // loop_footer
    %s23 = sadd.s32 1, %s19
  $region7: #{tpu_custom_call.1} parent=0 // loop_footer_branch
    %18 = sbr.rel target = $region3
  $region8: #{tpu_custom_call.1} parent=0 // loop_exit
    _

</llo_original>
